<compile_context>
chip_gen: v6e
topology: v6e:2x2x1
jax: 0.10.0
libtpu: 0.0.40
codegen_flags: <defaults>
</compile_context>

<pallas_src>
from functools import partial

import numpy as np
import jax
import jax.numpy as jnp
from jax import lax
from jax.experimental import pallas as pl
from jax.experimental.pallas import tpu as pltpu


# -----------------------------------------------------------------------------
# Pallas kernels
# -----------------------------------------------------------------------------
def _attn_block_kernel(*refs, num_heads, has_mask, eps):
    """WB windows per grid step.

    refs (in order):
      x_ref      : (WB, N, C)   raw window tokens (pre-norm)  -- also the residual
      bias_ref   : (nH, N, N)   relative-position bias (shared by all windows)
      [mask_ref] : (WB, N, N)   shift mask (only when has_mask)
      g1, b1     : (1, C)
      wqkv       : (C, 3C)  bf16, Q columns pre-scaled by head_dim**-0.5
      bqkv       : (1, 3C) f32, Q part pre-scaled
      wproj_h    : (nH, hd, C) bf16 (row-split of the (C, C) projection)
      bproj      : (1, C) f32
      o_ref      : (WB, N, C)   shortcut + attention output
    """
    if has_mask:
        (x_ref, bias_ref, mask_ref, g1_ref, b1_ref, wqkv_ref, bqkv_ref,
         wproj_ref, bproj_ref, o_ref) = refs
    else:
        (x_ref, bias_ref, g1_ref, b1_ref, wqkv_ref, bqkv_ref,
         wproj_ref, bproj_ref, o_ref) = refs
        mask_ref = None

    WB, N, C = x_ref.shape
    nH = num_heads
    hd = C // nH
    rows = WB * N

    x = x_ref[...].astype(jnp.float32)              # (WB, N, C)
    x2 = x.reshape(rows, C)                         # (rows, C)

    # --- LayerNorm1 (f32 statistics) ---
    mu = jnp.mean(x2, axis=-1, keepdims=True)
    var = jnp.mean(jnp.square(x2 - mu), axis=-1, keepdims=True)
    xn = (x2 - mu) * lax.rsqrt(var + eps)
    xn = xn * g1_ref[...] + b1_ref[...]             # (rows, C)

    # --- QKV projection (one big MXU matmul, bf16 -> f32 acc) ---
    qkv = jnp.dot(xn.astype(wqkv_ref.dtype), wqkv_ref[...],
                  preferred_element_type=jnp.float32) + bqkv_ref[...]
    qkv3 = qkv.reshape(WB, N, 3 * C)                # (WB, N, 3C)

    bias = bias_ref[...].astype(jnp.float32)        # (nH, N, N)
    mask = None
    if mask_ref is not None:
        mask = mask_ref[...].astype(jnp.float32)    # (WB, N, N)

    # residual (shortcut) + projection bias accumulator, f32
    acc = x2 + bproj_ref[...]                       # (rows, C)

    # per-head, window-batched attention (heads unrolled; each op batched over WB)
    for h in range(nH):
        qh = qkv3[:, :, h * hd:(h + 1) * hd]                    # (WB, N, hd)
        kh = qkv3[:, :, C + h * hd:C + (h + 1) * hd]
        vh = qkv3[:, :, 2 * C + h * hd:2 * C + (h + 1) * hd]

        s = jnp.einsum('wnd,wmd->wnm',
                       qh.astype(jnp.bfloat16), kh.astype(jnp.bfloat16),
                       preferred_element_type=jnp.float32)      # (WB, N, N)
        s = s + bias[h]
        if mask is not None:
            s = s + mask
        s = s - jnp.max(s, axis=-1, keepdims=True)
        p = jnp.exp(s)
        p = p * pl.reciprocal(jnp.sum(p, axis=-1, keepdims=True), approx=True)

        oh = jnp.einsum('wnm,wmd->wnd',
                        p.astype(jnp.bfloat16), vh.astype(jnp.bfloat16),
                        preferred_element_type=jnp.float32)     # (WB, N, hd)
        # accumulate this head's slice of the output projection (no concat)
        acc = acc + jnp.dot(oh.reshape(rows, hd).astype(wproj_ref.dtype),
                            wproj_ref[h],
                            preferred_element_type=jnp.float32)

    o_ref[...] = acc.reshape(WB, N, C).astype(o_ref.dtype)


def _mlp_block_kernel(x_ref, g2_ref, b2_ref, w1_ref, b1_ref, w2_ref, b2m_ref,
                      o_ref, *, eps):
    """out = x + fc2(gelu(fc1(LayerNorm2(x))))   over a (TM, C) row tile."""
    x = x_ref[...].astype(jnp.float32)              # (TM, C)
    mu = jnp.mean(x, axis=-1, keepdims=True)
    var = jnp.mean(jnp.square(x - mu), axis=-1, keepdims=True)
    xn = (x - mu) * lax.rsqrt(var + eps)
    xn = xn * g2_ref[...] + b2_ref[...]

    h = jnp.dot(xn.astype(w1_ref.dtype), w1_ref[...],
                preferred_element_type=jnp.float32) + b1_ref[...]
    # exact (erf) GELU to match torch.nn.GELU default
    h = 0.5 * h * (1.0 + lax.erf(h * jnp.float32(0.7071067811865476)))
    y = jnp.dot(h.astype(w2_ref.dtype), w2_ref[...],
                preferred_element_type=jnp.float32) + b2m_ref[...]

    o_ref[...] = (x + y).astype(o_ref.dtype)


# -----------------------------------------------------------------------------
# Tile-size helpers
# -----------------------------------------------------------------------------
def _choose_window_batch(nw_per_img, batch, n_tokens, target_rows=512):
    """Pick windows-per-grid-step WB: as large as possible (WB*N <= target_rows),
    WB | nW  or  WB = k*nW with k | B, and keep >= 2 grid steps when possible."""
    cands = sorted({d for d in range(1, nw_per_img + 1) if nw_per_img % d == 0}
                   | {k * nw_per_img for k in range(1, batch + 1) if batch % k == 0})
    w_total = batch * nw_per_img
    wb = 1
    for d in cands:
        if d * n_tokens <= target_rows:
            wb = d
    while w_total // wb < 2 and wb > 1:
        smaller = [d for d in cands if d < wb]
        if not smaller:
            break
        wb = smaller[-1]
    return wb


def _choose_row_tile(rows):
    if rows >= 512:
        return 256
    if rows % 16 == 0 and rows >= 32:
        return rows // 2          # >= 2 grid steps (megacore / v7x two TCs)
    return rows


# -----------------------------------------------------------------------------
# Pallas wrappers
# -----------------------------------------------------------------------------
def window_attention_pallas(xw, kp, *, mask, num_heads, nW_per_img, batch):
    """xw: (W_total, N, C) windowed tokens.  Returns shortcut + attn per window."""
    W_total, N, C = xw.shape
    nH = num_heads
    hd = C // nH
    WB = _choose_window_batch(nW_per_img, batch, N)
    num_blocks = W_total // WB
    has_mask = mask is not None

    kernel = partial(_attn_block_kernel, num_heads=nH, has_mask=has_mask,
                     eps=1e-5)

    in_specs = [
        pl.BlockSpec((WB, N, C), lambda i: (i, 0, 0)),          # x windows
        pl.BlockSpec((nH, N, N), lambda i: (0, 0, 0)),          # rel-pos bias
    ]
    args = [xw, kp["rel_bias"]]

    if has_mask:
        if WB <= nW_per_img:
            nblk = nW_per_img // WB
            mask_arg = mask
            mask_spec = pl.BlockSpec((WB, N, N), lambda i: (i % nblk, 0, 0))
        else:
            reps = WB // nW_per_img
            mask_arg = jnp.tile(mask, (reps, 1, 1))
            mask_spec = pl.BlockSpec((WB, N, N), lambda i: (0, 0, 0))
        in_specs.append(mask_spec)
        args.append(mask_arg)

    in_specs += [
        pl.BlockSpec((1, C), lambda i: (0, 0)),                 # gamma1
        pl.BlockSpec((1, C), lambda i: (0, 0)),                 # beta1
        pl.BlockSpec((C, 3 * C), lambda i: (0, 0)),             # Wqkv (bf16, scaled)
        pl.BlockSpec((1, 3 * C), lambda i: (0, 0)),             # bqkv (scaled)
        pl.BlockSpec((nH, hd, C), lambda i: (0, 0, 0)),         # Wproj per head (bf16)
        pl.BlockSpec((1, C), lambda i: (0, 0)),                 # bproj
    ]
    args += [kp["g1"], kp["b1"], kp["wqkv"], kp["bqkv"],
             kp["wproj_h"], kp["bproj"]]

    return pl.pallas_call(
        kernel,
        out_shape=jax.ShapeDtypeStruct((W_total, N, C), xw.dtype),
        grid=(num_blocks,),
        in_specs=in_specs,
        out_specs=pl.BlockSpec((WB, N, C), lambda i: (i, 0, 0)),
        compiler_params=pltpu.CompilerParams(
            dimension_semantics=("parallel",)),
    )(*args)


def mlp_residual_pallas(x_flat, kp):
    """x_flat: (rows, C)  ->  x + MLP(LN2(x))."""
    rows, C = x_flat.shape
    hidden = kp["w1"].shape[1]
    TM = _choose_row_tile(rows)
    grid = (pl.cdiv(rows, TM),)
    kernel = partial(_mlp_block_kernel, eps=1e-5)
    c0 = lambda i: (0, 0)
    return pl.pallas_call(
        kernel,
        out_shape=jax.ShapeDtypeStruct((rows, C), x_flat.dtype),
        grid=grid,
        in_specs=[
            pl.BlockSpec((TM, C), lambda i: (i, 0)),
            pl.BlockSpec((1, C), c0),                 # gamma2
            pl.BlockSpec((1, C), c0),                 # beta2
            pl.BlockSpec((C, hidden), c0),            # W1 (bf16)
            pl.BlockSpec((1, hidden), c0),            # b1
            pl.BlockSpec((hidden, C), c0),            # W2 (bf16)
            pl.BlockSpec((1, C), c0),                 # b2
        ],
        out_specs=pl.BlockSpec((TM, C), lambda i: (i, 0)),
        compiler_params=pltpu.CompilerParams(
            dimension_semantics=("parallel",)),
    )(x_flat, kp["g2"], kp["b2"], kp["w1"], kp["b1m"], kp["w2"], kp["b2m"])


# -----------------------------------------------------------------------------
# Static (numpy) helpers: relative position index and shift mask
# -----------------------------------------------------------------------------
def make_relative_position_index(ws):
    coords = np.stack(np.meshgrid(np.arange(ws), np.arange(ws), indexing="ij"))
    coords_flatten = coords.reshape(2, -1)                       # (2, N)
    rel = coords_flatten[:, :, None] - coords_flatten[:, None, :]
    rel = rel.transpose(1, 2, 0).astype(np.int64)                # (N, N, 2)
    rel[:, :, 0] += ws - 1
    rel[:, :, 1] += ws - 1
    rel[:, :, 0] *= 2 * ws - 1
    return rel.sum(-1)                                           # (N, N)


def make_attn_mask(H, W, ws, shift):
    """Returns (nW, N, N) float mask with 0 / -100 (shift > 0 only)."""
    N = ws * ws
    img_mask = np.zeros((1, H, W, 1), np.float32)
    cnt = 0
    slices = (slice(0, -ws), slice(-ws, -shift), slice(-shift, None))
    for h in slices:
        for w in slices:
            img_mask[:, h, w, :] = cnt
            cnt += 1
    mw = img_mask.reshape(1, H // ws, ws, W // ws, ws, 1)
    mw = mw.transpose(0, 1, 3, 2, 4, 5).reshape(-1, N)           # (nW, N)
    diff = mw[:, None, :] - mw[:, :, None]                       # (nW, N, N)
    return np.where(diff != 0, np.float32(-100.0), np.float32(0.0))


# -----------------------------------------------------------------------------
# Parameter initialization + kernel-ready preparation
# -----------------------------------------------------------------------------
def init_block_params(key, dim, num_heads, window_size, mlp_ratio):
    ks = jax.random.split(key, 8)
    hidden = int(dim * mlp_ratio)
    f32 = jnp.float32
    return {
        "g1": jnp.ones((1, dim), f32),
        "b1": jnp.zeros((1, dim), f32),
        "wqkv": jax.random.normal(ks[0], (dim, 3 * dim), f32) * 0.02,
        "bqkv": jax.random.normal(ks[1], (1, 3 * dim), f32) * 0.02,
        "wproj": jax.random.normal(ks[2], (dim, dim), f32) * 0.02,
        "bproj": jax.random.normal(ks[3], (1, dim), f32) * 0.02,
        "rpbt": jax.random.normal(
            ks[4], ((2 * window_size - 1) ** 2, num_heads), f32) * 0.02,
        "g2": jnp.ones((1, dim), f32),
        "b2": jnp.zeros((1, dim), f32),
        "w1": jax.random.normal(ks[5], (dim, hidden), f32) * 0.02,
        "b1m": jax.random.normal(ks[6], (1, hidden), f32) * 0.02,
        "w2": jax.random.normal(ks[7], (hidden, dim), f32) * 0.02,
        "b2m": jnp.zeros((1, dim), f32),
    }


def prepare_block_params(p, *, num_heads, window_size, rpi):
    """One-time prep: fold attn scale into Q weights, cast weights to bf16,
    split Wproj by head, gather the relative-position bias table."""
    C = p["wqkv"].shape[0]
    nH = num_heads
    hd = C // nH
    N = window_size * window_size
    scale = hd ** (-0.5)
    bf16 = jnp.bfloat16

    col_scale = jnp.concatenate([jnp.full((C,), scale, jnp.float32),
                                 jnp.ones((2 * C,), jnp.float32)])
    wqkv = (p["wqkv"] * col_scale[None, :]).astype(bf16)
    bqkv = p["bqkv"] * col_scale[None, :]

    rel_bias = jnp.take(p["rpbt"], jnp.asarray(rpi.reshape(-1)), axis=0)
    rel_bias = rel_bias.reshape(N, N, nH).transpose(2, 0, 1)      # (nH, N, N)

    return {
        "g1": p["g1"], "b1": p["b1"],
        "wqkv": wqkv, "bqkv": bqkv,
        "wproj_h": p["wproj"].reshape(nH, hd, C).astype(bf16),
        "bproj": p["bproj"],
        "rel_bias": rel_bias,
        "g2": p["g2"], "b2": p["b2"],
        "w1": p["w1"].astype(bf16), "b1m": p["b1m"],
        "w2": p["w2"].astype(bf16), "b2m": p["b2m"],
    }


# -----------------------------------------------------------------------------
# Swin block / BasicLayer forward
# -----------------------------------------------------------------------------
def swin_block_forward(x, kp, *, input_resolution, num_heads, window_size,
                       shift_size, mask):
    B, L, C = x.shape
    H, W = input_resolution
    ws = window_size
    shift = shift_size
    nWh, nWw = H // ws, W // ws
    nW = nWh * nWw
    N = ws * ws

    xi = x.reshape(B, H, W, C)
    if shift > 0:
        xi = jnp.roll(xi, shift=(-shift, -shift), axis=(1, 2))

    # window partition (glue)
    xw = xi.reshape(B, nWh, ws, nWw, ws, C).transpose(0, 1, 3, 2, 4, 5)
    xw = xw.reshape(B * nW, N, C)

    # fused LN1 -> QKV -> attention (+bias/mask) -> proj -> (+ shortcut)
    # (adding the shortcut in windowed coords is exact: partition/roll are
    #  per-token permutations, drop_path = Identity)
    yw = window_attention_pallas(xw, kp, mask=mask, num_heads=num_heads,
                                 nW_per_img=nW, batch=B)

    # window reverse (glue)
    yr = yw.reshape(B, nWh, nWw, ws, ws, C).transpose(0, 1, 3, 2, 4, 5)
    yr = yr.reshape(B, H, W, C)
    if shift > 0:
        yr = jnp.roll(yr, shift=(shift, shift), axis=(1, 2))

    # fused LN2 -> MLP -> GELU -> (+ residual)
    y = mlp_residual_pallas(yr.reshape(B * L, C), kp)
    return y.reshape(B, L, C)


def basic_layer_forward(x, kblocks, *, input_resolution, num_heads,
                        window_size, shift_mask):
    for i, kp in enumerate(kblocks):
        shift = 0 if i % 2 == 0 else window_size // 2
        x = swin_block_forward(
            x, kp,
            input_resolution=input_resolution, num_heads=num_heads,
            window_size=window_size, shift_size=shift,
            mask=shift_mask if shift > 0 else None)
    # TODO(synk): downsample=None in this configuration (PatchMerging not built).
    return x


# -----------------------------------------------------------------------------
# Main
# -----------------------------------------------------------------------------
if __name__ == "__main__":
    B = 2
    dim = 32
    H = W = 8
    input_resolution = (H, W)
    depth = 2
    num_heads = 4
    window_size = 4
    mlp_ratio = 4.0
    L = H * W

    key = jax.random.PRNGKey(0)
    k_x, k_p = jax.random.split(key)
    x = jax.random.normal(k_x, (B, L, dim), jnp.float32)

    rpi = make_relative_position_index(window_size)
    shift_mask = jnp.asarray(
        make_attn_mask(H, W, window_size, window_size // 2), jnp.float32)

    block_keys = jax.random.split(k_p, depth)
    kblocks = [
        prepare_block_params(
            init_block_params(block_keys[i], dim, num_heads, window_size,
                              mlp_ratio),
            num_heads=num_heads, window_size=window_size, rpi=rpi)
        for i in range(depth)
    ]

    fwd = jax.jit(partial(
        basic_layer_forward,
        input_resolution=input_resolution, num_heads=num_heads,
        window_size=window_size, shift_mask=shift_mask))

    out = fwd(x, kblocks)
    out = jax.block_until_ready(out)
    assert out.shape == (B, L, dim)
    assert bool(jnp.all(jnp.isfinite(out)))
    print("KERNEL_OK")
</pallas_src>

<mosaic_0001>
module attributes {stable_mosaic.version = 11 : i64} {
  func.func @_attn_block_kernel(%arg0: i32, %arg1: memref<4x16x32xf32, #tpu.memory_space<vmem>>, %arg2: memref<4x16x16xf32, #tpu.memory_space<vmem>>, %arg3: memref<1x32xf32, #tpu.memory_space<vmem>>, %arg4: memref<1x32xf32, #tpu.memory_space<vmem>>, %arg5: memref<32x96xbf16, #tpu.memory_space<vmem>>, %arg6: memref<1x96xf32, #tpu.memory_space<vmem>>, %arg7: memref<4x8x32xbf16, #tpu.memory_space<vmem>>, %arg8: memref<1x32xf32, #tpu.memory_space<vmem>>, %arg9: memref<4x16x32xf32, #tpu.memory_space<vmem>>) attributes {dimension_semantics = [#tpu.dimension_semantics<parallel>], iteration_bounds = array<i64: 2>, scalar_prefetch = 0 : i64, scratch_operands = 0 : i64, tpu.core_type = #tpu.core_type<tc>, window_params = [{transform_indices = @transform_0, window_bounds = array<i64: 4, 16, 32>}, {pipeline_mode = #tpu.pipeline_mode<synchronous>, transform_indices = @transform_1, window_bounds = array<i64: 4, 16, 16>}, {pipeline_mode = #tpu.pipeline_mode<synchronous>, transform_indices = @transform_2, window_bounds = array<i64: 1, 32>}, {pipeline_mode = #tpu.pipeline_mode<synchronous>, transform_indices = @transform_3, window_bounds = array<i64: 1, 32>}, {pipeline_mode = #tpu.pipeline_mode<synchronous>, transform_indices = @transform_4, window_bounds = array<i64: 32, 96>}, {pipeline_mode = #tpu.pipeline_mode<synchronous>, transform_indices = @transform_5, window_bounds = array<i64: 1, 96>}, {pipeline_mode = #tpu.pipeline_mode<synchronous>, transform_indices = @transform_6, window_bounds = array<i64: 4, 8, 32>}, {pipeline_mode = #tpu.pipeline_mode<synchronous>, transform_indices = @transform_7, window_bounds = array<i64: 1, 32>}, {transform_indices = @transform_8, window_bounds = array<i64: 4, 16, 32>}]} {
    %c0 = arith.constant 0 : index
    %c0_0 = arith.constant 0 : index
    %c0_1 = arith.constant 0 : index
    %0 = vector.load %arg1[%c0, %c0_0, %c0_1] : memref<4x16x32xf32, #tpu.memory_space<vmem>>, vector<4x16x32xf32>
    %1 = vector.shape_cast %0 : vector<4x16x32xf32> to vector<64x32xf32>
    %cst = arith.constant dense<0.000000e+00> : vector<64xf32>
    %2 = vector.multi_reduction <add>, %1, %cst [1] : vector<64x32xf32> to vector<64xf32>
    %3 = vector.shape_cast %2 : vector<64xf32> to vector<64x1xf32>
    %cst_2 = arith.constant 3.200000e+01 : f32
    %4 = vector.broadcast %cst_2 : f32 to vector<64x1xf32>
    %5 = arith.divf %3, %4 : vector<64x1xf32>
    %6 = vector.broadcast %5 : vector<64x1xf32> to vector<64x32xf32>
    %7 = arith.subf %1, %6 : vector<64x32xf32>
    %8 = arith.mulf %7, %7 : vector<64x32xf32>
    %cst_3 = arith.constant dense<0.000000e+00> : vector<64xf32>
    %9 = vector.multi_reduction <add>, %8, %cst_3 [1] : vector<64x32xf32> to vector<64xf32>
    %10 = vector.shape_cast %9 : vector<64xf32> to vector<64x1xf32>
    %cst_4 = arith.constant 3.200000e+01 : f32
    %11 = vector.broadcast %cst_4 : f32 to vector<64x1xf32>
    %12 = arith.divf %10, %11 : vector<64x1xf32>
    %13 = vector.broadcast %5 : vector<64x1xf32> to vector<64x32xf32>
    %14 = arith.subf %1, %13 : vector<64x32xf32>
    %cst_5 = arith.constant 9.99999974E-6 : f32
    %15 = vector.broadcast %cst_5 : f32 to vector<64x1xf32>
    %16 = arith.addf %12, %15 : vector<64x1xf32>
    %17 = math.rsqrt %16 : vector<64x1xf32>
    %18 = vector.broadcast %17 : vector<64x1xf32> to vector<64x32xf32>
    %19 = arith.mulf %14, %18 : vector<64x32xf32>
    %c0_6 = arith.constant 0 : index
    %c0_7 = arith.constant 0 : index
    %20 = vector.load %arg3[%c0_6, %c0_7] : memref<1x32xf32, #tpu.memory_space<vmem>>, vector<1x32xf32>
    %21 = vector.broadcast %20 : vector<1x32xf32> to vector<64x32xf32>
    %22 = arith.mulf %19, %21 : vector<64x32xf32>
    %c0_8 = arith.constant 0 : index
    %c0_9 = arith.constant 0 : index
    %23 = vector.load %arg4[%c0_8, %c0_9] : memref<1x32xf32, #tpu.memory_space<vmem>>, vector<1x32xf32>
    %24 = vector.broadcast %23 : vector<1x32xf32> to vector<64x32xf32>
    %25 = arith.addf %22, %24 : vector<64x32xf32>
    %26 = arith.truncf %25 : vector<64x32xf32> to vector<64x32xbf16>
    %c0_10 = arith.constant 0 : index
    %c0_11 = arith.constant 0 : index
    %27 = vector.load %arg5[%c0_10, %c0_11] : memref<32x96xbf16, #tpu.memory_space<vmem>>, vector<32x96xbf16>
    %cst_12 = arith.constant dense<0.000000e+00> : vector<64x96xf32>
    %28 = tpu.matmul %26, %27, %cst_12 {dimension_numbers = #tpu.dot_dimension_numbers<[1], [0], [0], [1], [0, 0, 1, 1], [], []>} : vector<64x32xbf16>, vector<32x96xbf16>, vector<64x96xf32> -> vector<64x96xf32>
    %c0_13 = arith.constant 0 : index
    %c0_14 = arith.constant 0 : index
    %29 = vector.load %arg6[%c0_13, %c0_14] : memref<1x96xf32, #tpu.memory_space<vmem>>, vector<1x96xf32>
    %30 = vector.broadcast %29 : vector<1x96xf32> to vector<64x96xf32>
    %31 = arith.addf %28, %30 : vector<64x96xf32>
    %32 = vector.shape_cast %31 : vector<64x96xf32> to vector<4x16x96xf32>
    %c0_15 = arith.constant 0 : index
    %c0_16 = arith.constant 0 : index
    %c0_17 = arith.constant 0 : index
    %33 = vector.load %arg2[%c0_15, %c0_16, %c0_17] : memref<4x16x16xf32, #tpu.memory_space<vmem>>, vector<4x16x16xf32>
    %c0_18 = arith.constant 0 : index
    %c0_19 = arith.constant 0 : index
    %34 = vector.load %arg8[%c0_18, %c0_19] : memref<1x32xf32, #tpu.memory_space<vmem>>, vector<1x32xf32>
    %35 = vector.broadcast %34 : vector<1x32xf32> to vector<64x32xf32>
    %36 = arith.addf %1, %35 : vector<64x32xf32>
    %37 = vector.extract_strided_slice %32 {offsets = [0, 0, 0], sizes = [4, 16, 8], strides = [1, 1, 1]} : vector<4x16x96xf32> to vector<4x16x8xf32>
    %38 = vector.extract_strided_slice %32 {offsets = [0, 0, 32], sizes = [4, 16, 8], strides = [1, 1, 1]} : vector<4x16x96xf32> to vector<4x16x8xf32>
    %39 = vector.extract_strided_slice %32 {offsets = [0, 0, 64], sizes = [4, 16, 8], strides = [1, 1, 1]} : vector<4x16x96xf32> to vector<4x16x8xf32>
    %40 = arith.truncf %37 : vector<4x16x8xf32> to vector<4x16x8xbf16>
    %41 = arith.truncf %38 : vector<4x16x8xf32> to vector<4x16x8xbf16>
    "tpu.trace_start"() <{level = 10 : i32, message = "wnd,wmd->wnm"}> : () -> ()
    %cst_20 = arith.constant dense<0.000000e+00> : vector<4x16x16xf32>
    %42 = tpu.matmul %40, %41, %cst_20 {dimension_numbers = #tpu.dot_dimension_numbers<[2], [2], [1], [1], [0, 0, 0, 1, 1, 1], [0], [0]>} : vector<4x16x8xbf16>, vector<4x16x8xbf16>, vector<4x16x16xf32> -> vector<4x16x16xf32>
    "tpu.trace_stop"() : () -> ()
    %43 = vector.extract_strided_slice %33 {offsets = [0, 0, 0], sizes = [1, 16, 16], strides = [1, 1, 1]} : vector<4x16x16xf32> to vector<1x16x16xf32>
    %44 = vector.shape_cast %43 : vector<1x16x16xf32> to vector<16x16xf32>
    %45 = vector.shape_cast %44 : vector<16x16xf32> to vector<1x16x16xf32>
    %46 = vector.broadcast %45 : vector<1x16x16xf32> to vector<4x16x16xf32>
    %47 = arith.addf %42, %46 : vector<4x16x16xf32>
    %cst_21 = arith.constant dense<0xFF800000> : vector<4x16xf32>
    %48 = vector.multi_reduction <maximumf>, %47, %cst_21 [2] : vector<4x16x16xf32> to vector<4x16xf32>
    %49 = vector.shape_cast %48 : vector<4x16xf32> to vector<4x16x1xf32>
    %50 = vector.broadcast %49 : vector<4x16x1xf32> to vector<4x16x16xf32>
    %51 = arith.subf %47, %50 : vector<4x16x16xf32>
    %52 = math.exp %51 : vector<4x16x16xf32>
    %cst_22 = arith.constant dense<0.000000e+00> : vector<4x16xf32>
    %53 = vector.multi_reduction <add>, %52, %cst_22 [2] : vector<4x16x16xf32> to vector<4x16xf32>
    %54 = vector.shape_cast %53 : vector<4x16xf32> to vector<4x16x1xf32>
    %55 = tpu.reciprocal %54 {approx = true} : vector<4x16x1xf32> -> vector<4x16x1xf32>
    %56 = vector.broadcast %55 : vector<4x16x1xf32> to vector<4x16x16xf32>
    %57 = arith.mulf %52, %56 : vector<4x16x16xf32>
    %58 = arith.truncf %57 : vector<4x16x16xf32> to vector<4x16x16xbf16>
    %59 = arith.truncf %39 : vector<4x16x8xf32> to vector<4x16x8xbf16>
    "tpu.trace_start"() <{level = 10 : i32, message = "wnm,wmd->wnd"}> : () -> ()
    %cst_23 = arith.constant dense<0.000000e+00> : vector<4x16x8xf32>
    %60 = tpu.matmul %58, %59, %cst_23 {dimension_numbers = #tpu.dot_dimension_numbers<[2], [1], [1], [2], [0, 0, 0, 1, 1, 2], [0], [0]>} : vector<4x16x16xbf16>, vector<4x16x8xbf16>, vector<4x16x8xf32> -> vector<4x16x8xf32>
    "tpu.trace_stop"() : () -> ()
    %61 = vector.shape_cast %60 : vector<4x16x8xf32> to vector<64x8xf32>
    %62 = arith.truncf %61 : vector<64x8xf32> to vector<64x8xbf16>
    %c0_24 = arith.constant 0 : index
    %c0_25 = arith.constant 0 : index
    %c0_26 = arith.constant 0 : index
    %63 = vector.load %arg7[%c0_24, %c0_25, %c0_26] : memref<4x8x32xbf16, #tpu.memory_space<vmem>>, vector<1x8x32xbf16>
    %64 = vector.shape_cast %63 : vector<1x8x32xbf16> to vector<8x32xbf16>
    %cst_27 = arith.constant dense<0.000000e+00> : vector<64x32xf32>
    %65 = tpu.matmul %62, %64, %cst_27 {dimension_numbers = #tpu.dot_dimension_numbers<[1], [0], [0], [1], [0, 0, 1, 1], [], []>} : vector<64x8xbf16>, vector<8x32xbf16>, vector<64x32xf32> -> vector<64x32xf32>
    %66 = arith.addf %36, %65 : vector<64x32xf32>
    %67 = vector.extract_strided_slice %32 {offsets = [0, 0, 8], sizes = [4, 16, 8], strides = [1, 1, 1]} : vector<4x16x96xf32> to vector<4x16x8xf32>
    %68 = vector.extract_strided_slice %32 {offsets = [0, 0, 40], sizes = [4, 16, 8], strides = [1, 1, 1]} : vector<4x16x96xf32> to vector<4x16x8xf32>
    %69 = vector.extract_strided_slice %32 {offsets = [0, 0, 72], sizes = [4, 16, 8], strides = [1, 1, 1]} : vector<4x16x96xf32> to vector<4x16x8xf32>
    %70 = arith.truncf %67 : vector<4x16x8xf32> to vector<4x16x8xbf16>
    %71 = arith.truncf %68 : vector<4x16x8xf32> to vector<4x16x8xbf16>
    "tpu.trace_start"() <{level = 10 : i32, message = "wnd,wmd->wnm"}> : () -> ()
    %cst_28 = arith.constant dense<0.000000e+00> : vector<4x16x16xf32>
    %72 = tpu.matmul %70, %71, %cst_28 {dimension_numbers = #tpu.dot_dimension_numbers<[2], [2], [1], [1], [0, 0, 0, 1, 1, 1], [0], [0]>} : vector<4x16x8xbf16>, vector<4x16x8xbf16>, vector<4x16x16xf32> -> vector<4x16x16xf32>
    "tpu.trace_stop"() : () -> ()
    %73 = vector.extract_strided_slice %33 {offsets = [1, 0, 0], sizes = [1, 16, 16], strides = [1, 1, 1]} : vector<4x16x16xf32> to vector<1x16x16xf32>
    %74 = vector.shape_cast %73 : vector<1x16x16xf32> to vector<16x16xf32>
    %75 = vector.shape_cast %74 : vector<16x16xf32> to vector<1x16x16xf32>
    %76 = vector.broadcast %75 : vector<1x16x16xf32> to vector<4x16x16xf32>
    %77 = arith.addf %72, %76 : vector<4x16x16xf32>
    %cst_29 = arith.constant dense<0xFF800000> : vector<4x16xf32>
    %78 = vector.multi_reduction <maximumf>, %77, %cst_29 [2] : vector<4x16x16xf32> to vector<4x16xf32>
    %79 = vector.shape_cast %78 : vector<4x16xf32> to vector<4x16x1xf32>
    %80 = vector.broadcast %79 : vector<4x16x1xf32> to vector<4x16x16xf32>
    %81 = arith.subf %77, %80 : vector<4x16x16xf32>
    %82 = math.exp %81 : vector<4x16x16xf32>
    %cst_30 = arith.constant dense<0.000000e+00> : vector<4x16xf32>
    %83 = vector.multi_reduction <add>, %82, %cst_30 [2] : vector<4x16x16xf32> to vector<4x16xf32>
    %84 = vector.shape_cast %83 : vector<4x16xf32> to vector<4x16x1xf32>
    %85 = tpu.reciprocal %84 {approx = true} : vector<4x16x1xf32> -> vector<4x16x1xf32>
    %86 = vector.broadcast %85 : vector<4x16x1xf32> to vector<4x16x16xf32>
    %87 = arith.mulf %82, %86 : vector<4x16x16xf32>
    %88 = arith.truncf %87 : vector<4x16x16xf32> to vector<4x16x16xbf16>
    %89 = arith.truncf %69 : vector<4x16x8xf32> to vector<4x16x8xbf16>
    "tpu.trace_start"() <{level = 10 : i32, message = "wnm,wmd->wnd"}> : () -> ()
    %cst_31 = arith.constant dense<0.000000e+00> : vector<4x16x8xf32>
    %90 = tpu.matmul %88, %89, %cst_31 {dimension_numbers = #tpu.dot_dimension_numbers<[2], [1], [1], [2], [0, 0, 0, 1, 1, 2], [0], [0]>} : vector<4x16x16xbf16>, vector<4x16x8xbf16>, vector<4x16x8xf32> -> vector<4x16x8xf32>
    "tpu.trace_stop"() : () -> ()
    %91 = vector.shape_cast %90 : vector<4x16x8xf32> to vector<64x8xf32>
    %92 = arith.truncf %91 : vector<64x8xf32> to vector<64x8xbf16>
    %c1 = arith.constant 1 : index
    %c0_32 = arith.constant 0 : index
    %c0_33 = arith.constant 0 : index
    %93 = vector.load %arg7[%c1, %c0_32, %c0_33] : memref<4x8x32xbf16, #tpu.memory_space<vmem>>, vector<1x8x32xbf16>
    %94 = vector.shape_cast %93 : vector<1x8x32xbf16> to vector<8x32xbf16>
    %cst_34 = arith.constant dense<0.000000e+00> : vector<64x32xf32>
    %95 = tpu.matmul %92, %94, %cst_34 {dimension_numbers = #tpu.dot_dimension_numbers<[1], [0], [0], [1], [0, 0, 1, 1], [], []>} : vector<64x8xbf16>, vector<8x32xbf16>, vector<64x32xf32> -> vector<64x32xf32>
    %96 = arith.addf %66, %95 : vector<64x32xf32>
    %97 = vector.extract_strided_slice %32 {offsets = [0, 0, 16], sizes = [4, 16, 8], strides = [1, 1, 1]} : vector<4x16x96xf32> to vector<4x16x8xf32>
    %98 = vector.extract_strided_slice %32 {offsets = [0, 0, 48], sizes = [4, 16, 8], strides = [1, 1, 1]} : vector<4x16x96xf32> to vector<4x16x8xf32>
    %99 = vector.extract_strided_slice %32 {offsets = [0, 0, 80], sizes = [4, 16, 8], strides = [1, 1, 1]} : vector<4x16x96xf32> to vector<4x16x8xf32>
    %100 = arith.truncf %97 : vector<4x16x8xf32> to vector<4x16x8xbf16>
    %101 = arith.truncf %98 : vector<4x16x8xf32> to vector<4x16x8xbf16>
    "tpu.trace_start"() <{level = 10 : i32, message = "wnd,wmd->wnm"}> : () -> ()
    %cst_35 = arith.constant dense<0.000000e+00> : vector<4x16x16xf32>
    %102 = tpu.matmul %100, %101, %cst_35 {dimension_numbers = #tpu.dot_dimension_numbers<[2], [2], [1], [1], [0, 0, 0, 1, 1, 1], [0], [0]>} : vector<4x16x8xbf16>, vector<4x16x8xbf16>, vector<4x16x16xf32> -> vector<4x16x16xf32>
    "tpu.trace_stop"() : () -> ()
    %103 = vector.extract_strided_slice %33 {offsets = [2, 0, 0], sizes = [1, 16, 16], strides = [1, 1, 1]} : vector<4x16x16xf32> to vector<1x16x16xf32>
    %104 = vector.shape_cast %103 : vector<1x16x16xf32> to vector<16x16xf32>
    %105 = vector.shape_cast %104 : vector<16x16xf32> to vector<1x16x16xf32>
    %106 = vector.broadcast %105 : vector<1x16x16xf32> to vector<4x16x16xf32>
    %107 = arith.addf %102, %106 : vector<4x16x16xf32>
    %cst_36 = arith.constant dense<0xFF800000> : vector<4x16xf32>
    %108 = vector.multi_reduction <maximumf>, %107, %cst_36 [2] : vector<4x16x16xf32> to vector<4x16xf32>
    %109 = vector.shape_cast %108 : vector<4x16xf32> to vector<4x16x1xf32>
    %110 = vector.broadcast %109 : vector<4x16x1xf32> to vector<4x16x16xf32>
    %111 = arith.subf %107, %110 : vector<4x16x16xf32>
    %112 = math.exp %111 : vector<4x16x16xf32>
    %cst_37 = arith.constant dense<0.000000e+00> : vector<4x16xf32>
    %113 = vector.multi_reduction <add>, %112, %cst_37 [2] : vector<4x16x16xf32> to vector<4x16xf32>
    %114 = vector.shape_cast %113 : vector<4x16xf32> to vector<4x16x1xf32>
    %115 = tpu.reciprocal %114 {approx = true} : vector<4x16x1xf32> -> vector<4x16x1xf32>
    %116 = vector.broadcast %115 : vector<4x16x1xf32> to vector<4x16x16xf32>
    %117 = arith.mulf %112, %116 : vector<4x16x16xf32>
    %118 = arith.truncf %117 : vector<4x16x16xf32> to vector<4x16x16xbf16>
    %119 = arith.truncf %99 : vector<4x16x8xf32> to vector<4x16x8xbf16>
    "tpu.trace_start"() <{level = 10 : i32, message = "wnm,wmd->wnd"}> : () -> ()
    %cst_38 = arith.constant dense<0.000000e+00> : vector<4x16x8xf32>
    %120 = tpu.matmul %118, %119, %cst_38 {dimension_numbers = #tpu.dot_dimension_numbers<[2], [1], [1], [2], [0, 0, 0, 1, 1, 2], [0], [0]>} : vector<4x16x16xbf16>, vector<4x16x8xbf16>, vector<4x16x8xf32> -> vector<4x16x8xf32>
    "tpu.trace_stop"() : () -> ()
    %121 = vector.shape_cast %120 : vector<4x16x8xf32> to vector<64x8xf32>
    %122 = arith.truncf %121 : vector<64x8xf32> to vector<64x8xbf16>
    %c2 = arith.constant 2 : index
    %c0_39 = arith.constant 0 : index
    %c0_40 = arith.constant 0 : index
    %123 = vector.load %arg7[%c2, %c0_39, %c0_40] : memref<4x8x32xbf16, #tpu.memory_space<vmem>>, vector<1x8x32xbf16>
    %124 = vector.shape_cast %123 : vector<1x8x32xbf16> to vector<8x32xbf16>
    %cst_41 = arith.constant dense<0.000000e+00> : vector<64x32xf32>
    %125 = tpu.matmul %122, %124, %cst_41 {dimension_numbers = #tpu.dot_dimension_numbers<[1], [0], [0], [1], [0, 0, 1, 1], [], []>} : vector<64x8xbf16>, vector<8x32xbf16>, vector<64x32xf32> -> vector<64x32xf32>
    %126 = arith.addf %96, %125 : vector<64x32xf32>
    %127 = vector.extract_strided_slice %32 {offsets = [0, 0, 24], sizes = [4, 16, 8], strides = [1, 1, 1]} : vector<4x16x96xf32> to vector<4x16x8xf32>
    %128 = vector.extract_strided_slice %32 {offsets = [0, 0, 56], sizes = [4, 16, 8], strides = [1, 1, 1]} : vector<4x16x96xf32> to vector<4x16x8xf32>
    %129 = vector.extract_strided_slice %32 {offsets = [0, 0, 88], sizes = [4, 16, 8], strides = [1, 1, 1]} : vector<4x16x96xf32> to vector<4x16x8xf32>
    %130 = arith.truncf %127 : vector<4x16x8xf32> to vector<4x16x8xbf16>
    %131 = arith.truncf %128 : vector<4x16x8xf32> to vector<4x16x8xbf16>
    "tpu.trace_start"() <{level = 10 : i32, message = "wnd,wmd->wnm"}> : () -> ()
    %cst_42 = arith.constant dense<0.000000e+00> : vector<4x16x16xf32>
    %132 = tpu.matmul %130, %131, %cst_42 {dimension_numbers = #tpu.dot_dimension_numbers<[2], [2], [1], [1], [0, 0, 0, 1, 1, 1], [0], [0]>} : vector<4x16x8xbf16>, vector<4x16x8xbf16>, vector<4x16x16xf32> -> vector<4x16x16xf32>
    "tpu.trace_stop"() : () -> ()
    %133 = vector.extract_strided_slice %33 {offsets = [3, 0, 0], sizes = [1, 16, 16], strides = [1, 1, 1]} : vector<4x16x16xf32> to vector<1x16x16xf32>
    %134 = vector.shape_cast %133 : vector<1x16x16xf32> to vector<16x16xf32>
    %135 = vector.shape_cast %134 : vector<16x16xf32> to vector<1x16x16xf32>
    %136 = vector.broadcast %135 : vector<1x16x16xf32> to vector<4x16x16xf32>
    %137 = arith.addf %132, %136 : vector<4x16x16xf32>
    %cst_43 = arith.constant dense<0xFF800000> : vector<4x16xf32>
    %138 = vector.multi_reduction <maximumf>, %137, %cst_43 [2] : vector<4x16x16xf32> to vector<4x16xf32>
    %139 = vector.shape_cast %138 : vector<4x16xf32> to vector<4x16x1xf32>
    %140 = vector.broadcast %139 : vector<4x16x1xf32> to vector<4x16x16xf32>
    %141 = arith.subf %137, %140 : vector<4x16x16xf32>
    %142 = math.exp %141 : vector<4x16x16xf32>
    %cst_44 = arith.constant dense<0.000000e+00> : vector<4x16xf32>
    %143 = vector.multi_reduction <add>, %142, %cst_44 [2] : vector<4x16x16xf32> to vector<4x16xf32>
    %144 = vector.shape_cast %143 : vector<4x16xf32> to vector<4x16x1xf32>
    %145 = tpu.reciprocal %144 {approx = true} : vector<4x16x1xf32> -> vector<4x16x1xf32>
    %146 = vector.broadcast %145 : vector<4x16x1xf32> to vector<4x16x16xf32>
    %147 = arith.mulf %142, %146 : vector<4x16x16xf32>
    %148 = arith.truncf %147 : vector<4x16x16xf32> to vector<4x16x16xbf16>
    %149 = arith.truncf %129 : vector<4x16x8xf32> to vector<4x16x8xbf16>
    "tpu.trace_start"() <{level = 10 : i32, message = "wnm,wmd->wnd"}> : () -> ()
    %cst_45 = arith.constant dense<0.000000e+00> : vector<4x16x8xf32>
    %150 = tpu.matmul %148, %149, %cst_45 {dimension_numbers = #tpu.dot_dimension_numbers<[2], [1], [1], [2], [0, 0, 0, 1, 1, 2], [0], [0]>} : vector<4x16x16xbf16>, vector<4x16x8xbf16>, vector<4x16x8xf32> -> vector<4x16x8xf32>
    "tpu.trace_stop"() : () -> ()
    %151 = vector.shape_cast %150 : vector<4x16x8xf32> to vector<64x8xf32>
    %152 = arith.truncf %151 : vector<64x8xf32> to vector<64x8xbf16>
    %c3 = arith.constant 3 : index
    %c0_46 = arith.constant 0 : index
    %c0_47 = arith.constant 0 : index
    %153 = vector.load %arg7[%c3, %c0_46, %c0_47] : memref<4x8x32xbf16, #tpu.memory_space<vmem>>, vector<1x8x32xbf16>
    %154 = vector.shape_cast %153 : vector<1x8x32xbf16> to vector<8x32xbf16>
    %cst_48 = arith.constant dense<0.000000e+00> : vector<64x32xf32>
    %155 = tpu.matmul %152, %154, %cst_48 {dimension_numbers = #tpu.dot_dimension_numbers<[1], [0], [0], [1], [0, 0, 1, 1], [], []>} : vector<64x8xbf16>, vector<8x32xbf16>, vector<64x32xf32> -> vector<64x32xf32>
    %156 = arith.addf %126, %155 : vector<64x32xf32>
    %157 = vector.shape_cast %156 : vector<64x32xf32> to vector<4x16x32xf32>
    %c0_49 = arith.constant 0 : index
    %c0_50 = arith.constant 0 : index
    %c0_51 = arith.constant 0 : index
    %158 = vector.load %arg9[%c0_49, %c0_50, %c0_51] : memref<4x16x32xf32, #tpu.memory_space<vmem>>, vector<4x16x32xf32>
    tpu.vector_store %arg9[%c0_49, %c0_50, %c0_51], %157 {strides = array<i32>} : memref<4x16x32xf32, #tpu.memory_space<vmem>>, vector<4x16x32xf32>,
    return
  }
  func.func @transform_0(%arg0: i32) -> (i32, i32, i32) {
    %c0_i32 = arith.constant 0 : i32
    %c0_i32_0 = arith.constant 0 : i32
    %c0_i32_1 = arith.constant 0 : i32
    return %arg0, %c0_i32, %c0_i32_0 : i32, i32, i32
  }
  func.func @transform_1(%arg0: i32) -> (i32, i32, i32) {
    %c0_i32 = arith.constant 0 : i32
    %c0_i32_0 = arith.constant 0 : i32
    %c0_i32_1 = arith.constant 0 : i32
    %c0_i32_2 = arith.constant 0 : i32
    return %c0_i32, %c0_i32_0, %c0_i32_1 : i32, i32, i32
  }
  func.func @transform_2(%arg0: i32) -> (i32, i32) {
    %c0_i32 = arith.constant 0 : i32
    %c0_i32_0 = arith.constant 0 : i32
    %c0_i32_1 = arith.constant 0 : i32
    return %c0_i32, %c0_i32_0 : i32, i32
  }
  func.func @transform_3(%arg0: i32) -> (i32, i32) {
    %c0_i32 = arith.constant 0 : i32
    %c0_i32_0 = arith.constant 0 : i32
    %c0_i32_1 = arith.constant 0 : i32
    return %c0_i32, %c0_i32_0 : i32, i32
  }
  func.func @transform_4(%arg0: i32) -> (i32, i32) {
    %c0_i32 = arith.constant 0 : i32
    %c0_i32_0 = arith.constant 0 : i32
    %c0_i32_1 = arith.constant 0 : i32
    return %c0_i32, %c0_i32_0 : i32, i32
  }
  func.func @transform_5(%arg0: i32) -> (i32, i32) {
    %c0_i32 = arith.constant 0 : i32
    %c0_i32_0 = arith.constant 0 : i32
    %c0_i32_1 = arith.constant 0 : i32
    return %c0_i32, %c0_i32_0 : i32, i32
  }
  func.func @transform_6(%arg0: i32) -> (i32, i32, i32) {
    %c0_i32 = arith.constant 0 : i32
    %c0_i32_0 = arith.constant 0 : i32
    %c0_i32_1 = arith.constant 0 : i32
    %c0_i32_2 = arith.constant 0 : i32
    return %c0_i32, %c0_i32_0, %c0_i32_1 : i32, i32, i32
  }
  func.func @transform_7(%arg0: i32) -> (i32, i32) {
    %c0_i32 = arith.constant 0 : i32
    %c0_i32_0 = arith.constant 0 : i32
    %c0_i32_1 = arith.constant 0 : i32
    return %c0_i32, %c0_i32_0 : i32, i32
  }
  func.func @transform_8(%arg0: i32) -> (i32, i32, i32) {
    %c0_i32 = arith.constant 0 : i32
    %c0_i32_0 = arith.constant 0 : i32
    %c0_i32_1 = arith.constant 0 : i32
    return %arg0, %c0_i32, %c0_i32_0 : i32, i32, i32
  }
}

module attributes {stable_mosaic.version = 11 : i64} {
  func.func @_mlp_block_kernel(%arg0: i32, %arg1: memref<64x32xf32, #tpu.memory_space<vmem>>, %arg2: memref<1x32xf32, #tpu.memory_space<vmem>>, %arg3: memref<1x32xf32, #tpu.memory_space<vmem>>, %arg4: memref<32x128xbf16, #tpu.memory_space<vmem>>, %arg5: memref<1x128xf32, #tpu.memory_space<vmem>>, %arg6: memref<128x32xbf16, #tpu.memory_space<vmem>>, %arg7: memref<1x32xf32, #tpu.memory_space<vmem>>, %arg8: memref<64x32xf32, #tpu.memory_space<vmem>>) attributes {dimension_semantics = [#tpu.dimension_semantics<parallel>], iteration_bounds = array<i64: 2>, scalar_prefetch = 0 : i64, scratch_operands = 0 : i64, tpu.core_type = #tpu.core_type<tc>, window_params = [{transform_indices = @transform_0, window_bounds = array<i64: 64, 32>}, {pipeline_mode = #tpu.pipeline_mode<synchronous>, transform_indices = @transform_1, window_bounds = array<i64: 1, 32>}, {pipeline_mode = #tpu.pipeline_mode<synchronous>, transform_indices = @transform_2, window_bounds = array<i64: 1, 32>}, {pipeline_mode = #tpu.pipeline_mode<synchronous>, transform_indices = @transform_3, window_bounds = array<i64: 32, 128>}, {pipeline_mode = #tpu.pipeline_mode<synchronous>, transform_indices = @transform_4, window_bounds = array<i64: 1, 128>}, {pipeline_mode = #tpu.pipeline_mode<synchronous>, transform_indices = @transform_5, window_bounds = array<i64: 128, 32>}, {pipeline_mode = #tpu.pipeline_mode<synchronous>, transform_indices = @transform_6, window_bounds = array<i64: 1, 32>}, {transform_indices = @transform_7, window_bounds = array<i64: 64, 32>}]} {
    %c0 = arith.constant 0 : index
    %c0_0 = arith.constant 0 : index
    %0 = vector.load %arg1[%c0, %c0_0] : memref<64x32xf32, #tpu.memory_space<vmem>>, vector<64x32xf32>
    %cst = arith.constant dense<0.000000e+00> : vector<64xf32>
    %1 = vector.multi_reduction <add>, %0, %cst [1] : vector<64x32xf32> to vector<64xf32>
    %2 = vector.shape_cast %1 : vector<64xf32> to vector<64x1xf32>
    %cst_1 = arith.constant 3.200000e+01 : f32
    %3 = vector.broadcast %cst_1 : f32 to vector<64x1xf32>
    %4 = arith.divf %2, %3 : vector<64x1xf32>
    %5 = vector.broadcast %4 : vector<64x1xf32> to vector<64x32xf32>
    %6 = arith.subf %0, %5 : vector<64x32xf32>
    %7 = arith.mulf %6, %6 : vector<64x32xf32>
    %cst_2 = arith.constant dense<0.000000e+00> : vector<64xf32>
    %8 = vector.multi_reduction <add>, %7, %cst_2 [1] : vector<64x32xf32> to vector<64xf32>
    %9 = vector.shape_cast %8 : vector<64xf32> to vector<64x1xf32>
    %cst_3 = arith.constant 3.200000e+01 : f32
    %10 = vector.broadcast %cst_3 : f32 to vector<64x1xf32>
    %11 = arith.divf %9, %10 : vector<64x1xf32>
    %12 = vector.broadcast %4 : vector<64x1xf32> to vector<64x32xf32>
    %13 = arith.subf %0, %12 : vector<64x32xf32>
    %cst_4 = arith.constant 9.99999974E-6 : f32
    %14 = vector.broadcast %cst_4 : f32 to vector<64x1xf32>
    %15 = arith.addf %11, %14 : vector<64x1xf32>
    %16 = math.rsqrt %15 : vector<64x1xf32>
    %17 = vector.broadcast %16 : vector<64x1xf32> to vector<64x32xf32>
    %18 = arith.mulf %13, %17 : vector<64x32xf32>
    %c0_5 = arith.constant 0 : index
    %c0_6 = arith.constant 0 : index
    %19 = vector.load %arg2[%c0_5, %c0_6] : memref<1x32xf32, #tpu.memory_space<vmem>>, vector<1x32xf32>
    %20 = vector.broadcast %19 : vector<1x32xf32> to vector<64x32xf32>
    %21 = arith.mulf %18, %20 : vector<64x32xf32>
    %c0_7 = arith.constant 0 : index
    %c0_8 = arith.constant 0 : index
    %22 = vector.load %arg3[%c0_7, %c0_8] : memref<1x32xf32, #tpu.memory_space<vmem>>, vector<1x32xf32>
    %23 = vector.broadcast %22 : vector<1x32xf32> to vector<64x32xf32>
    %24 = arith.addf %21, %23 : vector<64x32xf32>
    %25 = arith.truncf %24 : vector<64x32xf32> to vector<64x32xbf16>
    %c0_9 = arith.constant 0 : index
    %c0_10 = arith.constant 0 : index
    %26 = vector.load %arg4[%c0_9, %c0_10] : memref<32x128xbf16, #tpu.memory_space<vmem>>, vector<32x128xbf16>
    %cst_11 = arith.constant dense<0.000000e+00> : vector<64x128xf32>
    %27 = tpu.matmul %25, %26, %cst_11 {dimension_numbers = #tpu.dot_dimension_numbers<[1], [0], [0], [1], [0, 0, 1, 1], [], []>} : vector<64x32xbf16>, vector<32x128xbf16>, vector<64x128xf32> -> vector<64x128xf32>
    %c0_12 = arith.constant 0 : index
    %c0_13 = arith.constant 0 : index
    %28 = vector.load %arg5[%c0_12, %c0_13] : memref<1x128xf32, #tpu.memory_space<vmem>>, vector<1x128xf32>
    %29 = vector.broadcast %28 : vector<1x128xf32> to vector<64x128xf32>
    %30 = arith.addf %27, %29 : vector<64x128xf32>
    %cst_14 = arith.constant 5.000000e-01 : f32
    %31 = vector.broadcast %cst_14 : f32 to vector<64x128xf32>
    %32 = arith.mulf %31, %30 : vector<64x128xf32>
    %cst_15 = arith.constant 0.707106769 : f32
    %33 = vector.broadcast %cst_15 : f32 to vector<64x128xf32>
    %34 = arith.mulf %30, %33 : vector<64x128xf32>
    %35 = math.erf %34 : vector<64x128xf32>
    %cst_16 = arith.constant 1.000000e+00 : f32
    %36 = vector.broadcast %cst_16 : f32 to vector<64x128xf32>
    %37 = arith.addf %36, %35 : vector<64x128xf32>
    %38 = arith.mulf %32, %37 : vector<64x128xf32>
    %39 = arith.truncf %38 : vector<64x128xf32> to vector<64x128xbf16>
    %c0_17 = arith.constant 0 : index
    %c0_18 = arith.constant 0 : index
    %40 = vector.load %arg6[%c0_17, %c0_18] : memref<128x32xbf16, #tpu.memory_space<vmem>>, vector<128x32xbf16>
    %cst_19 = arith.constant dense<0.000000e+00> : vector<64x32xf32>
    %41 = tpu.matmul %39, %40, %cst_19 {dimension_numbers = #tpu.dot_dimension_numbers<[1], [0], [0], [1], [0, 0, 1, 1], [], []>} : vector<64x128xbf16>, vector<128x32xbf16>, vector<64x32xf32> -> vector<64x32xf32>
    %c0_20 = arith.constant 0 : index
    %c0_21 = arith.constant 0 : index
    %42 = vector.load %arg7[%c0_20, %c0_21] : memref<1x32xf32, #tpu.memory_space<vmem>>, vector<1x32xf32>
    %43 = vector.broadcast %42 : vector<1x32xf32> to vector<64x32xf32>
    %44 = arith.addf %41, %43 : vector<64x32xf32>
    %45 = arith.addf %0, %44 : vector<64x32xf32>
    %c0_22 = arith.constant 0 : index
    %c0_23 = arith.constant 0 : index
    %46 = vector.load %arg8[%c0_22, %c0_23] : memref<64x32xf32, #tpu.memory_space<vmem>>, vector<64x32xf32>
    tpu.vector_store %arg8[%c0_22, %c0_23], %45 {strides = array<i32>} : memref<64x32xf32, #tpu.memory_space<vmem>>, vector<64x32xf32>,
    return
  }
  func.func @transform_0(%arg0: i32) -> (i32, i32) {
    %c0_i32 = arith.constant 0 : i32
    %c0_i32_0 = arith.constant 0 : i32
    return %arg0, %c0_i32 : i32, i32
  }
  func.func @transform_1(%arg0: i32) -> (i32, i32) {
    %c0_i32 = arith.constant 0 : i32
    %c0_i32_0 = arith.constant 0 : i32
    %c0_i32_1 = arith.constant 0 : i32
    return %c0_i32, %c0_i32_0 : i32, i32
  }
  func.func @transform_2(%arg0: i32) -> (i32, i32) {
    %c0_i32 = arith.constant 0 : i32
    %c0_i32_0 = arith.constant 0 : i32
    %c0_i32_1 = arith.constant 0 : i32
    return %c0_i32, %c0_i32_0 : i32, i32
  }
  func.func @transform_3(%arg0: i32) -> (i32, i32) {
    %c0_i32 = arith.constant 0 : i32
    %c0_i32_0 = arith.constant 0 : i32
    %c0_i32_1 = arith.constant 0 : i32
    return %c0_i32, %c0_i32_0 : i32, i32
  }
  func.func @transform_4(%arg0: i32) -> (i32, i32) {
    %c0_i32 = arith.constant 0 : i32
    %c0_i32_0 = arith.constant 0 : i32
    %c0_i32_1 = arith.constant 0 : i32
    return %c0_i32, %c0_i32_0 : i32, i32
  }
  func.func @transform_5(%arg0: i32) -> (i32, i32) {
    %c0_i32 = arith.constant 0 : i32
    %c0_i32_0 = arith.constant 0 : i32
    %c0_i32_1 = arith.constant 0 : i32
    return %c0_i32, %c0_i32_0 : i32, i32
  }
  func.func @transform_6(%arg0: i32) -> (i32, i32) {
    %c0_i32 = arith.constant 0 : i32
    %c0_i32_0 = arith.constant 0 : i32
    %c0_i32_1 = arith.constant 0 : i32
    return %c0_i32, %c0_i32_0 : i32, i32
  }
  func.func @transform_7(%arg0: i32) -> (i32, i32) {
    %c0_i32 = arith.constant 0 : i32
    %c0_i32_0 = arith.constant 0 : i32
    return %arg0, %c0_i32 : i32, i32
  }
}

module attributes {stable_mosaic.version = 11 : i64} {
  func.func @_attn_block_kernel(%arg0: i32, %arg1: memref<4x16x32xf32, #tpu.memory_space<vmem>>, %arg2: memref<4x16x16xf32, #tpu.memory_space<vmem>>, %arg3: memref<4x16x16xf32, #tpu.memory_space<vmem>>, %arg4: memref<1x32xf32, #tpu.memory_space<vmem>>, %arg5: memref<1x32xf32, #tpu.memory_space<vmem>>, %arg6: memref<32x96xbf16, #tpu.memory_space<vmem>>, %arg7: memref<1x96xf32, #tpu.memory_space<vmem>>, %arg8: memref<4x8x32xbf16, #tpu.memory_space<vmem>>, %arg9: memref<1x32xf32, #tpu.memory_space<vmem>>, %arg10: memref<4x16x32xf32, #tpu.memory_space<vmem>>) attributes {dimension_semantics = [#tpu.dimension_semantics<parallel>], iteration_bounds = array<i64: 2>, scalar_prefetch = 0 : i64, scratch_operands = 0 : i64, tpu.core_type = #tpu.core_type<tc>, window_params = [{transform_indices = @transform_0, window_bounds = array<i64: 4, 16, 32>}, {pipeline_mode = #tpu.pipeline_mode<synchronous>, transform_indices = @transform_1, window_bounds = array<i64: 4, 16, 16>}, {transform_indices = @transform_2, window_bounds = array<i64: 4, 16, 16>}, {pipeline_mode = #tpu.pipeline_mode<synchronous>, transform_indices = @transform_3, window_bounds = array<i64: 1, 32>}, {pipeline_mode = #tpu.pipeline_mode<synchronous>, transform_indices = @transform_4, window_bounds = array<i64: 1, 32>}, {pipeline_mode = #tpu.pipeline_mode<synchronous>, transform_indices = @transform_5, window_bounds = array<i64: 32, 96>}, {pipeline_mode = #tpu.pipeline_mode<synchronous>, transform_indices = @transform_6, window_bounds = array<i64: 1, 96>}, {pipeline_mode = #tpu.pipeline_mode<synchronous>, transform_indices = @transform_7, window_bounds = array<i64: 4, 8, 32>}, {pipeline_mode = #tpu.pipeline_mode<synchronous>, transform_indices = @transform_8, window_bounds = array<i64: 1, 32>}, {transform_indices = @transform_9, window_bounds = array<i64: 4, 16, 32>}]} {
    %c0 = arith.constant 0 : index
    %c0_0 = arith.constant 0 : index
    %c0_1 = arith.constant 0 : index
    %0 = vector.load %arg1[%c0, %c0_0, %c0_1] : memref<4x16x32xf32, #tpu.memory_space<vmem>>, vector<4x16x32xf32>
    %1 = vector.shape_cast %0 : vector<4x16x32xf32> to vector<64x32xf32>
    %cst = arith.constant dense<0.000000e+00> : vector<64xf32>
    %2 = vector.multi_reduction <add>, %1, %cst [1] : vector<64x32xf32> to vector<64xf32>
    %3 = vector.shape_cast %2 : vector<64xf32> to vector<64x1xf32>
    %cst_2 = arith.constant 3.200000e+01 : f32
    %4 = vector.broadcast %cst_2 : f32 to vector<64x1xf32>
    %5 = arith.divf %3, %4 : vector<64x1xf32>
    %6 = vector.broadcast %5 : vector<64x1xf32> to vector<64x32xf32>
    %7 = arith.subf %1, %6 : vector<64x32xf32>
    %8 = arith.mulf %7, %7 : vector<64x32xf32>
    %cst_3 = arith.constant dense<0.000000e+00> : vector<64xf32>
    %9 = vector.multi_reduction <add>, %8, %cst_3 [1] : vector<64x32xf32> to vector<64xf32>
    %10 = vector.shape_cast %9 : vector<64xf32> to vector<64x1xf32>
    %cst_4 = arith.constant 3.200000e+01 : f32
    %11 = vector.broadcast %cst_4 : f32 to vector<64x1xf32>
    %12 = arith.divf %10, %11 : vector<64x1xf32>
    %13 = vector.broadcast %5 : vector<64x1xf32> to vector<64x32xf32>
    %14 = arith.subf %1, %13 : vector<64x32xf32>
    %cst_5 = arith.constant 9.99999974E-6 : f32
    %15 = vector.broadcast %cst_5 : f32 to vector<64x1xf32>
    %16 = arith.addf %12, %15 : vector<64x1xf32>
    %17 = math.rsqrt %16 : vector<64x1xf32>
    %18 = vector.broadcast %17 : vector<64x1xf32> to vector<64x32xf32>
    %19 = arith.mulf %14, %18 : vector<64x32xf32>
    %c0_6 = arith.constant 0 : index
    %c0_7 = arith.constant 0 : index
    %20 = vector.load %arg4[%c0_6, %c0_7] : memref<1x32xf32, #tpu.memory_space<vmem>>, vector<1x32xf32>
    %21 = vector.broadcast %20 : vector<1x32xf32> to vector<64x32xf32>
    %22 = arith.mulf %19, %21 : vector<64x32xf32>
    %c0_8 = arith.constant 0 : index
    %c0_9 = arith.constant 0 : index
    %23 = vector.load %arg5[%c0_8, %c0_9] : memref<1x32xf32, #tpu.memory_space<vmem>>, vector<1x32xf32>
    %24 = vector.broadcast %23 : vector<1x32xf32> to vector<64x32xf32>
    %25 = arith.addf %22, %24 : vector<64x32xf32>
    %26 = arith.truncf %25 : vector<64x32xf32> to vector<64x32xbf16>
    %c0_10 = arith.constant 0 : index
    %c0_11 = arith.constant 0 : index
    %27 = vector.load %arg6[%c0_10, %c0_11] : memref<32x96xbf16, #tpu.memory_space<vmem>>, vector<32x96xbf16>
    %cst_12 = arith.constant dense<0.000000e+00> : vector<64x96xf32>
    %28 = tpu.matmul %26, %27, %cst_12 {dimension_numbers = #tpu.dot_dimension_numbers<[1], [0], [0], [1], [0, 0, 1, 1], [], []>} : vector<64x32xbf16>, vector<32x96xbf16>, vector<64x96xf32> -> vector<64x96xf32>
    %c0_13 = arith.constant 0 : index
    %c0_14 = arith.constant 0 : index
    %29 = vector.load %arg7[%c0_13, %c0_14] : memref<1x96xf32, #tpu.memory_space<vmem>>, vector<1x96xf32>
    %30 = vector.broadcast %29 : vector<1x96xf32> to vector<64x96xf32>
    %31 = arith.addf %28, %30 : vector<64x96xf32>
    %32 = vector.shape_cast %31 : vector<64x96xf32> to vector<4x16x96xf32>
    %c0_15 = arith.constant 0 : index
    %c0_16 = arith.constant 0 : index
    %c0_17 = arith.constant 0 : index
    %33 = vector.load %arg2[%c0_15, %c0_16, %c0_17] : memref<4x16x16xf32, #tpu.memory_space<vmem>>, vector<4x16x16xf32>
    %c0_18 = arith.constant 0 : index
    %c0_19 = arith.constant 0 : index
    %c0_20 = arith.constant 0 : index
    %34 = vector.load %arg3[%c0_18, %c0_19, %c0_20] : memref<4x16x16xf32, #tpu.memory_space<vmem>>, vector<4x16x16xf32>
    %c0_21 = arith.constant 0 : index
    %c0_22 = arith.constant 0 : index
    %35 = vector.load %arg9[%c0_21, %c0_22] : memref<1x32xf32, #tpu.memory_space<vmem>>, vector<1x32xf32>
    %36 = vector.broadcast %35 : vector<1x32xf32> to vector<64x32xf32>
    %37 = arith.addf %1, %36 : vector<64x32xf32>
    %38 = vector.extract_strided_slice %32 {offsets = [0, 0, 0], sizes = [4, 16, 8], strides = [1, 1, 1]} : vector<4x16x96xf32> to vector<4x16x8xf32>
    %39 = vector.extract_strided_slice %32 {offsets = [0, 0, 32], sizes = [4, 16, 8], strides = [1, 1, 1]} : vector<4x16x96xf32> to vector<4x16x8xf32>
    %40 = vector.extract_strided_slice %32 {offsets = [0, 0, 64], sizes = [4, 16, 8], strides = [1, 1, 1]} : vector<4x16x96xf32> to vector<4x16x8xf32>
    %41 = arith.truncf %38 : vector<4x16x8xf32> to vector<4x16x8xbf16>
    %42 = arith.truncf %39 : vector<4x16x8xf32> to vector<4x16x8xbf16>
    "tpu.trace_start"() <{level = 10 : i32, message = "wnd,wmd->wnm"}> : () -> ()
    %cst_23 = arith.constant dense<0.000000e+00> : vector<4x16x16xf32>
    %43 = tpu.matmul %41, %42, %cst_23 {dimension_numbers = #tpu.dot_dimension_numbers<[2], [2], [1], [1], [0, 0, 0, 1, 1, 1], [0], [0]>} : vector<4x16x8xbf16>, vector<4x16x8xbf16>, vector<4x16x16xf32> -> vector<4x16x16xf32>
    "tpu.trace_stop"() : () -> ()
    %44 = vector.extract_strided_slice %33 {offsets = [0, 0, 0], sizes = [1, 16, 16], strides = [1, 1, 1]} : vector<4x16x16xf32> to vector<1x16x16xf32>
    %45 = vector.shape_cast %44 : vector<1x16x16xf32> to vector<16x16xf32>
    %46 = vector.shape_cast %45 : vector<16x16xf32> to vector<1x16x16xf32>
    %47 = vector.broadcast %46 : vector<1x16x16xf32> to vector<4x16x16xf32>
    %48 = arith.addf %43, %47 : vector<4x16x16xf32>
    %49 = arith.addf %48, %34 : vector<4x16x16xf32>
    %cst_24 = arith.constant dense<0xFF800000> : vector<4x16xf32>
    %50 = vector.multi_reduction <maximumf>, %49, %cst_24 [2] : vector<4x16x16xf32> to vector<4x16xf32>
    %51 = vector.shape_cast %50 : vector<4x16xf32> to vector<4x16x1xf32>
    %52 = vector.broadcast %51 : vector<4x16x1xf32> to vector<4x16x16xf32>
    %53 = arith.subf %49, %52 : vector<4x16x16xf32>
    %54 = math.exp %53 : vector<4x16x16xf32>
    %cst_25 = arith.constant dense<0.000000e+00> : vector<4x16xf32>
    %55 = vector.multi_reduction <add>, %54, %cst_25 [2] : vector<4x16x16xf32> to vector<4x16xf32>
    %56 = vector.shape_cast %55 : vector<4x16xf32> to vector<4x16x1xf32>
    %57 = tpu.reciprocal %56 {approx = true} : vector<4x16x1xf32> -> vector<4x16x1xf32>
    %58 = vector.broadcast %57 : vector<4x16x1xf32> to vector<4x16x16xf32>
    %59 = arith.mulf %54, %58 : vector<4x16x16xf32>
    %60 = arith.truncf %59 : vector<4x16x16xf32> to vector<4x16x16xbf16>
    %61 = arith.truncf %40 : vector<4x16x8xf32> to vector<4x16x8xbf16>
    "tpu.trace_start"() <{level = 10 : i32, message = "wnm,wmd->wnd"}> : () -> ()
    %cst_26 = arith.constant dense<0.000000e+00> : vector<4x16x8xf32>
    %62 = tpu.matmul %60, %61, %cst_26 {dimension_numbers = #tpu.dot_dimension_numbers<[2], [1], [1], [2], [0, 0, 0, 1, 1, 2], [0], [0]>} : vector<4x16x16xbf16>, vector<4x16x8xbf16>, vector<4x16x8xf32> -> vector<4x16x8xf32>
    "tpu.trace_stop"() : () -> ()
    %63 = vector.shape_cast %62 : vector<4x16x8xf32> to vector<64x8xf32>
    %64 = arith.truncf %63 : vector<64x8xf32> to vector<64x8xbf16>
    %c0_27 = arith.constant 0 : index
    %c0_28 = arith.constant 0 : index
    %c0_29 = arith.constant 0 : index
    %65 = vector.load %arg8[%c0_27, %c0_28, %c0_29] : memref<4x8x32xbf16, #tpu.memory_space<vmem>>, vector<1x8x32xbf16>
    %66 = vector.shape_cast %65 : vector<1x8x32xbf16> to vector<8x32xbf16>
    %cst_30 = arith.constant dense<0.000000e+00> : vector<64x32xf32>
    %67 = tpu.matmul %64, %66, %cst_30 {dimension_numbers = #tpu.dot_dimension_numbers<[1], [0], [0], [1], [0, 0, 1, 1], [], []>} : vector<64x8xbf16>, vector<8x32xbf16>, vector<64x32xf32> -> vector<64x32xf32>
    %68 = arith.addf %37, %67 : vector<64x32xf32>
    %69 = vector.extract_strided_slice %32 {offsets = [0, 0, 8], sizes = [4, 16, 8], strides = [1, 1, 1]} : vector<4x16x96xf32> to vector<4x16x8xf32>
    %70 = vector.extract_strided_slice %32 {offsets = [0, 0, 40], sizes = [4, 16, 8], strides = [1, 1, 1]} : vector<4x16x96xf32> to vector<4x16x8xf32>
    %71 = vector.extract_strided_slice %32 {offsets = [0, 0, 72], sizes = [4, 16, 8], strides = [1, 1, 1]} : vector<4x16x96xf32> to vector<4x16x8xf32>
    %72 = arith.truncf %69 : vector<4x16x8xf32> to vector<4x16x8xbf16>
    %73 = arith.truncf %70 : vector<4x16x8xf32> to vector<4x16x8xbf16>
    "tpu.trace_start"() <{level = 10 : i32, message = "wnd,wmd->wnm"}> : () -> ()
    %cst_31 = arith.constant dense<0.000000e+00> : vector<4x16x16xf32>
    %74 = tpu.matmul %72, %73, %cst_31 {dimension_numbers = #tpu.dot_dimension_numbers<[2], [2], [1], [1], [0, 0, 0, 1, 1, 1], [0], [0]>} : vector<4x16x8xbf16>, vector<4x16x8xbf16>, vector<4x16x16xf32> -> vector<4x16x16xf32>
    "tpu.trace_stop"() : () -> ()
    %75 = vector.extract_strided_slice %33 {offsets = [1, 0, 0], sizes = [1, 16, 16], strides = [1, 1, 1]} : vector<4x16x16xf32> to vector<1x16x16xf32>
    %76 = vector.shape_cast %75 : vector<1x16x16xf32> to vector<16x16xf32>
    %77 = vector.shape_cast %76 : vector<16x16xf32> to vector<1x16x16xf32>
    %78 = vector.broadcast %77 : vector<1x16x16xf32> to vector<4x16x16xf32>
    %79 = arith.addf %74, %78 : vector<4x16x16xf32>
    %80 = arith.addf %79, %34 : vector<4x16x16xf32>
    %cst_32 = arith.constant dense<0xFF800000> : vector<4x16xf32>
    %81 = vector.multi_reduction <maximumf>, %80, %cst_32 [2] : vector<4x16x16xf32> to vector<4x16xf32>
    %82 = vector.shape_cast %81 : vector<4x16xf32> to vector<4x16x1xf32>
    %83 = vector.broadcast %82 : vector<4x16x1xf32> to vector<4x16x16xf32>
    %84 = arith.subf %80, %83 : vector<4x16x16xf32>
    %85 = math.exp %84 : vector<4x16x16xf32>
    %cst_33 = arith.constant dense<0.000000e+00> : vector<4x16xf32>
    %86 = vector.multi_reduction <add>, %85, %cst_33 [2] : vector<4x16x16xf32> to vector<4x16xf32>
    %87 = vector.shape_cast %86 : vector<4x16xf32> to vector<4x16x1xf32>
    %88 = tpu.reciprocal %87 {approx = true} : vector<4x16x1xf32> -> vector<4x16x1xf32>
    %89 = vector.broadcast %88 : vector<4x16x1xf32> to vector<4x16x16xf32>
    %90 = arith.mulf %85, %89 : vector<4x16x16xf32>
    %91 = arith.truncf %90 : vector<4x16x16xf32> to vector<4x16x16xbf16>
    %92 = arith.truncf %71 : vector<4x16x8xf32> to vector<4x16x8xbf16>
    "tpu.trace_start"() <{level = 10 : i32, message = "wnm,wmd->wnd"}> : () -> ()
    %cst_34 = arith.constant dense<0.000000e+00> : vector<4x16x8xf32>
    %93 = tpu.matmul %91, %92, %cst_34 {dimension_numbers = #tpu.dot_dimension_numbers<[2], [1], [1], [2], [0, 0, 0, 1, 1, 2], [0], [0]>} : vector<4x16x16xbf16>, vector<4x16x8xbf16>, vector<4x16x8xf32> -> vector<4x16x8xf32>
    "tpu.trace_stop"() : () -> ()
    %94 = vector.shape_cast %93 : vector<4x16x8xf32> to vector<64x8xf32>
    %95 = arith.truncf %94 : vector<64x8xf32> to vector<64x8xbf16>
    %c1 = arith.constant 1 : index
    %c0_35 = arith.constant 0 : index
    %c0_36 = arith.constant 0 : index
    %96 = vector.load %arg8[%c1, %c0_35, %c0_36] : memref<4x8x32xbf16, #tpu.memory_space<vmem>>, vector<1x8x32xbf16>
    %97 = vector.shape_cast %96 : vector<1x8x32xbf16> to vector<8x32xbf16>
    %cst_37 = arith.constant dense<0.000000e+00> : vector<64x32xf32>
    %98 = tpu.matmul %95, %97, %cst_37 {dimension_numbers = #tpu.dot_dimension_numbers<[1], [0], [0], [1], [0, 0, 1, 1], [], []>} : vector<64x8xbf16>, vector<8x32xbf16>, vector<64x32xf32> -> vector<64x32xf32>
    %99 = arith.addf %68, %98 : vector<64x32xf32>
    %100 = vector.extract_strided_slice %32 {offsets = [0, 0, 16], sizes = [4, 16, 8], strides = [1, 1, 1]} : vector<4x16x96xf32> to vector<4x16x8xf32>
    %101 = vector.extract_strided_slice %32 {offsets = [0, 0, 48], sizes = [4, 16, 8], strides = [1, 1, 1]} : vector<4x16x96xf32> to vector<4x16x8xf32>
    %102 = vector.extract_strided_slice %32 {offsets = [0, 0, 80], sizes = [4, 16, 8], strides = [1, 1, 1]} : vector<4x16x96xf32> to vector<4x16x8xf32>
    %103 = arith.truncf %100 : vector<4x16x8xf32> to vector<4x16x8xbf16>
    %104 = arith.truncf %101 : vector<4x16x8xf32> to vector<4x16x8xbf16>
    "tpu.trace_start"() <{level = 10 : i32, message = "wnd,wmd->wnm"}> : () -> ()
    %cst_38 = arith.constant dense<0.000000e+00> : vector<4x16x16xf32>
    %105 = tpu.matmul %103, %104, %cst_38 {dimension_numbers = #tpu.dot_dimension_numbers<[2], [2], [1], [1], [0, 0, 0, 1, 1, 1], [0], [0]>} : vector<4x16x8xbf16>, vector<4x16x8xbf16>, vector<4x16x16xf32> -> vector<4x16x16xf32>
    "tpu.trace_stop"() : () -> ()
    %106 = vector.extract_strided_slice %33 {offsets = [2, 0, 0], sizes = [1, 16, 16], strides = [1, 1, 1]} : vector<4x16x16xf32> to vector<1x16x16xf32>
    %107 = vector.shape_cast %106 : vector<1x16x16xf32> to vector<16x16xf32>
    %108 = vector.shape_cast %107 : vector<16x16xf32> to vector<1x16x16xf32>
    %109 = vector.broadcast %108 : vector<1x16x16xf32> to vector<4x16x16xf32>
    %110 = arith.addf %105, %109 : vector<4x16x16xf32>
    %111 = arith.addf %110, %34 : vector<4x16x16xf32>
    %cst_39 = arith.constant dense<0xFF800000> : vector<4x16xf32>
    %112 = vector.multi_reduction <maximumf>, %111, %cst_39 [2] : vector<4x16x16xf32> to vector<4x16xf32>
    %113 = vector.shape_cast %112 : vector<4x16xf32> to vector<4x16x1xf32>
    %114 = vector.broadcast %113 : vector<4x16x1xf32> to vector<4x16x16xf32>
    %115 = arith.subf %111, %114 : vector<4x16x16xf32>
    %116 = math.exp %115 : vector<4x16x16xf32>
    %cst_40 = arith.constant dense<0.000000e+00> : vector<4x16xf32>
    %117 = vector.multi_reduction <add>, %116, %cst_40 [2] : vector<4x16x16xf32> to vector<4x16xf32>
    %118 = vector.shape_cast %117 : vector<4x16xf32> to vector<4x16x1xf32>
    %119 = tpu.reciprocal %118 {approx = true} : vector<4x16x1xf32> -> vector<4x16x1xf32>
    %120 = vector.broadcast %119 : vector<4x16x1xf32> to vector<4x16x16xf32>
    %121 = arith.mulf %116, %120 : vector<4x16x16xf32>
    %122 = arith.truncf %121 : vector<4x16x16xf32> to vector<4x16x16xbf16>
    %123 = arith.truncf %102 : vector<4x16x8xf32> to vector<4x16x8xbf16>
    "tpu.trace_start"() <{level = 10 : i32, message = "wnm,wmd->wnd"}> : () -> ()
    %cst_41 = arith.constant dense<0.000000e+00> : vector<4x16x8xf32>
    %124 = tpu.matmul %122, %123, %cst_41 {dimension_numbers = #tpu.dot_dimension_numbers<[2], [1], [1], [2], [0, 0, 0, 1, 1, 2], [0], [0]>} : vector<4x16x16xbf16>, vector<4x16x8xbf16>, vector<4x16x8xf32> -> vector<4x16x8xf32>
    "tpu.trace_stop"() : () -> ()
    %125 = vector.shape_cast %124 : vector<4x16x8xf32> to vector<64x8xf32>
    %126 = arith.truncf %125 : vector<64x8xf32> to vector<64x8xbf16>
    %c2 = arith.constant 2 : index
    %c0_42 = arith.constant 0 : index
    %c0_43 = arith.constant 0 : index
    %127 = vector.load %arg8[%c2, %c0_42, %c0_43] : memref<4x8x32xbf16, #tpu.memory_space<vmem>>, vector<1x8x32xbf16>
    %128 = vector.shape_cast %127 : vector<1x8x32xbf16> to vector<8x32xbf16>
    %cst_44 = arith.constant dense<0.000000e+00> : vector<64x32xf32>
    %129 = tpu.matmul %126, %128, %cst_44 {dimension_numbers = #tpu.dot_dimension_numbers<[1], [0], [0], [1], [0, 0, 1, 1], [], []>} : vector<64x8xbf16>, vector<8x32xbf16>, vector<64x32xf32> -> vector<64x32xf32>
    %130 = arith.addf %99, %129 : vector<64x32xf32>
    %131 = vector.extract_strided_slice %32 {offsets = [0, 0, 24], sizes = [4, 16, 8], strides = [1, 1, 1]} : vector<4x16x96xf32> to vector<4x16x8xf32>
    %132 = vector.extract_strided_slice %32 {offsets = [0, 0, 56], sizes = [4, 16, 8], strides = [1, 1, 1]} : vector<4x16x96xf32> to vector<4x16x8xf32>
    %133 = vector.extract_strided_slice %32 {offsets = [0, 0, 88], sizes = [4, 16, 8], strides = [1, 1, 1]} : vector<4x16x96xf32> to vector<4x16x8xf32>
    %134 = arith.truncf %131 : vector<4x16x8xf32> to vector<4x16x8xbf16>
    %135 = arith.truncf %132 : vector<4x16x8xf32> to vector<4x16x8xbf16>
    "tpu.trace_start"() <{level = 10 : i32, message = "wnd,wmd->wnm"}> : () -> ()
    %cst_45 = arith.constant dense<0.000000e+00> : vector<4x16x16xf32>
    %136 = tpu.matmul %134, %135, %cst_45 {dimension_numbers = #tpu.dot_dimension_numbers<[2], [2], [1], [1], [0, 0, 0, 1, 1, 1], [0], [0]>} : vector<4x16x8xbf16>, vector<4x16x8xbf16>, vector<4x16x16xf32> -> vector<4x16x16xf32>
    "tpu.trace_stop"() : () -> ()
    %137 = vector.extract_strided_slice %33 {offsets = [3, 0, 0], sizes = [1, 16, 16], strides = [1, 1, 1]} : vector<4x16x16xf32> to vector<1x16x16xf32>
    %138 = vector.shape_cast %137 : vector<1x16x16xf32> to vector<16x16xf32>
    %139 = vector.shape_cast %138 : vector<16x16xf32> to vector<1x16x16xf32>
    %140 = vector.broadcast %139 : vector<1x16x16xf32> to vector<4x16x16xf32>
    %141 = arith.addf %136, %140 : vector<4x16x16xf32>
    %142 = arith.addf %141, %34 : vector<4x16x16xf32>
    %cst_46 = arith.constant dense<0xFF800000> : vector<4x16xf32>
    %143 = vector.multi_reduction <maximumf>, %142, %cst_46 [2] : vector<4x16x16xf32> to vector<4x16xf32>
    %144 = vector.shape_cast %143 : vector<4x16xf32> to vector<4x16x1xf32>
    %145 = vector.broadcast %144 : vector<4x16x1xf32> to vector<4x16x16xf32>
    %146 = arith.subf %142, %145 : vector<4x16x16xf32>
    %147 = math.exp %146 : vector<4x16x16xf32>
    %cst_47 = arith.constant dense<0.000000e+00> : vector<4x16xf32>
    %148 = vector.multi_reduction <add>, %147, %cst_47 [2] : vector<4x16x16xf32> to vector<4x16xf32>
    %149 = vector.shape_cast %148 : vector<4x16xf32> to vector<4x16x1xf32>
    %150 = tpu.reciprocal %149 {approx = true} : vector<4x16x1xf32> -> vector<4x16x1xf32>
    %151 = vector.broadcast %150 : vector<4x16x1xf32> to vector<4x16x16xf32>
    %152 = arith.mulf %147, %151 : vector<4x16x16xf32>
    %153 = arith.truncf %152 : vector<4x16x16xf32> to vector<4x16x16xbf16>
    %154 = arith.truncf %133 : vector<4x16x8xf32> to vector<4x16x8xbf16>
    "tpu.trace_start"() <{level = 10 : i32, message = "wnm,wmd->wnd"}> : () -> ()
    %cst_48 = arith.constant dense<0.000000e+00> : vector<4x16x8xf32>
    %155 = tpu.matmul %153, %154, %cst_48 {dimension_numbers = #tpu.dot_dimension_numbers<[2], [1], [1], [2], [0, 0, 0, 1, 1, 2], [0], [0]>} : vector<4x16x16xbf16>, vector<4x16x8xbf16>, vector<4x16x8xf32> -> vector<4x16x8xf32>
    "tpu.trace_stop"() : () -> ()
    %156 = vector.shape_cast %155 : vector<4x16x8xf32> to vector<64x8xf32>
    %157 = arith.truncf %156 : vector<64x8xf32> to vector<64x8xbf16>
    %c3 = arith.constant 3 : index
    %c0_49 = arith.constant 0 : index
    %c0_50 = arith.constant 0 : index
    %158 = vector.load %arg8[%c3, %c0_49, %c0_50] : memref<4x8x32xbf16, #tpu.memory_space<vmem>>, vector<1x8x32xbf16>
    %159 = vector.shape_cast %158 : vector<1x8x32xbf16> to vector<8x32xbf16>
    %cst_51 = arith.constant dense<0.000000e+00> : vector<64x32xf32>
    %160 = tpu.matmul %157, %159, %cst_51 {dimension_numbers = #tpu.dot_dimension_numbers<[1], [0], [0], [1], [0, 0, 1, 1], [], []>} : vector<64x8xbf16>, vector<8x32xbf16>, vector<64x32xf32> -> vector<64x32xf32>
    %161 = arith.addf %130, %160 : vector<64x32xf32>
    %162 = vector.shape_cast %161 : vector<64x32xf32> to vector<4x16x32xf32>
    %c0_52 = arith.constant 0 : index
    %c0_53 = arith.constant 0 : index
    %c0_54 = arith.constant 0 : index
    %163 = vector.load %arg10[%c0_52, %c0_53, %c0_54] : memref<4x16x32xf32, #tpu.memory_space<vmem>>, vector<4x16x32xf32>
    tpu.vector_store %arg10[%c0_52, %c0_53, %c0_54], %162 {strides = array<i32>} : memref<4x16x32xf32, #tpu.memory_space<vmem>>, vector<4x16x32xf32>,
    return
  }
  func.func @transform_0(%arg0: i32) -> (i32, i32, i32) {
    %c0_i32 = arith.constant 0 : i32
    %c0_i32_0 = arith.constant 0 : i32
    %c0_i32_1 = arith.constant 0 : i32
    return %arg0, %c0_i32, %c0_i32_0 : i32, i32, i32
  }
  func.func @transform_1(%arg0: i32) -> (i32, i32, i32) {
    %c0_i32 = arith.constant 0 : i32
    %c0_i32_0 = arith.constant 0 : i32
    %c0_i32_1 = arith.constant 0 : i32
    %c0_i32_2 = arith.constant 0 : i32
    return %c0_i32, %c0_i32_0, %c0_i32_1 : i32, i32, i32
  }
  func.func @transform_2(%arg0: i32) -> (i32, i32, i32) {
    %c1_i32 = arith.constant 1 : i32
    %c0_i32 = arith.constant 0 : i32
    %0 = arith.cmpi eq, %c1_i32, %c0_i32 : i32
    %c1_i32_0 = arith.constant 1 : i32
    %1 = arith.select %0, %c1_i32_0, %c1_i32 : i32
    %2 = arith.remsi %arg0, %1 : i32
    %c0_i32_1 = arith.constant 0 : i32
    %3 = arith.cmpi ne, %2, %c0_i32_1 : i32
    %c0_i32_2 = arith.constant 0 : i32
    %4 = arith.cmpi slt, %2, %c0_i32_2 : i32
    %c0_i32_3 = arith.constant 0 : i32
    %5 = arith.cmpi slt, %1, %c0_i32_3 : i32
    %6 = arith.xori %4, %5 : i1
    %7 = arith.andi %6, %3 : i1
    %8 = arith.addi %2, %1 : i32
    %9 = arith.select %7, %8, %2 : i32
    %c0_i32_4 = arith.constant 0 : i32
    %c0_i32_5 = arith.constant 0 : i32
    %c0_i32_6 = arith.constant 0 : i32
    return %9, %c0_i32_4, %c0_i32_5 : i32, i32, i32
  }
  func.func @transform_3(%arg0: i32) -> (i32, i32) {
    %c0_i32 = arith.constant 0 : i32
    %c0_i32_0 = arith.constant 0 : i32
    %c0_i32_1 = arith.constant 0 : i32
    return %c0_i32, %c0_i32_0 : i32, i32
  }
  func.func @transform_4(%arg0: i32) -> (i32, i32) {
    %c0_i32 = arith.constant 0 : i32
    %c0_i32_0 = arith.constant 0 : i32
    %c0_i32_1 = arith.constant 0 : i32
    return %c0_i32, %c0_i32_0 : i32, i32
  }
  func.func @transform_5(%arg0: i32) -> (i32, i32) {
    %c0_i32 = arith.constant 0 : i32
    %c0_i32_0 = arith.constant 0 : i32
    %c0_i32_1 = arith.constant 0 : i32
    return %c0_i32, %c0_i32_0 : i32, i32
  }
  func.func @transform_6(%arg0: i32) -> (i32, i32) {
    %c0_i32 = arith.constant 0 : i32
    %c0_i32_0 = arith.constant 0 : i32
    %c0_i32_1 = arith.constant 0 : i32
    return %c0_i32, %c0_i32_0 : i32, i32
  }
  func.func @transform_7(%arg0: i32) -> (i32, i32, i32) {
    %c0_i32 = arith.constant 0 : i32
    %c0_i32_0 = arith.constant 0 : i32
    %c0_i32_1 = arith.constant 0 : i32
    %c0_i32_2 = arith.constant 0 : i32
    return %c0_i32, %c0_i32_0, %c0_i32_1 : i32, i32, i32
  }
  func.func @transform_8(%arg0: i32) -> (i32, i32) {
    %c0_i32 = arith.constant 0 : i32
    %c0_i32_0 = arith.constant 0 : i32
    %c0_i32_1 = arith.constant 0 : i32
    return %c0_i32, %c0_i32_0 : i32, i32
  }
  func.func @transform_9(%arg0: i32) -> (i32, i32, i32) {
    %c0_i32 = arith.constant 0 : i32
    %c0_i32_0 = arith.constant 0 : i32
    %c0_i32_1 = arith.constant 0 : i32
    return %arg0, %c0_i32, %c0_i32_0 : i32, i32, i32
  }
}

</mosaic_0001>

<llo_original>
// kernel: basic_layer_forward.5
$region0: #{basic_layer_forward.5}
  #allocation0 [shape = 'u32[]', space=smem, size = 0x4, offset = 0x4, fixed_abs, tag = 'smem constant byte address 0x4 - core index']
  #allocation1 [shape = 'u32[144,128]{1,0:T(1,128)}', space=vmem, size = 0x12000, scoped, tag = 'internal scratch']
  %s0 = inlined_call_operand.vmem [shape: f32[128,32], index: 0, kind: input, shape index: {}]
  %s1 = inlined_call_operand.vmem [shape: f32[1,32], index: 1, kind: input, shape index: {}]
  %s2 = inlined_call_operand.vmem [shape: f32[1,32], index: 2, kind: input, shape index: {}]
  %s3 = inlined_call_operand.vmem [shape: bf16[32,128], index: 3, kind: input, shape index: {}]
  %s4 = inlined_call_operand.vmem [shape: f32[1,128], index: 4, kind: input, shape index: {}]
  %s5 = inlined_call_operand.vmem [shape: bf16[128,32], index: 5, kind: input, shape index: {}]
  %s6 = inlined_call_operand.vmem [shape: f32[1,32], index: 6, kind: input, shape index: {}]
  %s7 = inlined_call_operand.vmem [shape: f32[128,32], index: 7, kind: output, shape index: {}]
  %s8 = sld [smem:[#allocation0]]
  $region61: #{basic_layer_forward.5} parent=0
    _
  %s10 = ssub.s32 1, %s8
  %s11 = scalar_select 0, %s10, %s8
  loop: start=0, step=1, limit=4
  $region2: #{basic_layer_forward.5} parent=0 // loop_pre_header
    _
  $region3: #{basic_layer_forward.5} parent=0 // loop_header
    %s13 = sphi 0, %s17
    %p14 = scmp.ge.s32.totalorder %s13, 4
    %s23 = sphi 0, %s25
    %s26 = sphi 0, %s23
    %s27 = sphi 0, %s26
    %s43 = sphi 0, %s27
    %s47 = sphi 0, %s47
    %s49 = sphi 0, %s47
    %s50 = sphi 0, %s49
    %s64 = sphi 0, %s50
    %s68 = sphi 0, %s68
    %s70 = sphi 0, %s68
    %s71 = sphi 0, %s70
    %s85 = sphi 0, %s71
    %s89 = sphi 0, %s89
    %s91 = sphi 0, %s89
    %s92 = sphi 0, %s91
    %s106 = sphi 0, %s92
    %s110 = sphi 0, %s110
    %s112 = sphi 0, %s110
    %s113 = sphi 0, %s112
    %s127 = sphi 0, %s113
    %s131 = sphi 0, %s131
    %s133 = sphi 0, %s131
    %s134 = sphi 0, %s133
    %s148 = sphi 0, %s134
    %s152 = sphi 0, %s152
    %s154 = sphi 0, %s152
    %s155 = sphi 0, %s154
    %s169 = sphi 0, %s155
    %s175 = sphi 0, %s177
    %s178 = sphi 0, %s175
    %s179 = sphi 0, %s178
    %s195 = sphi 0, %s179
  $region4: #{basic_layer_forward.5} parent=0 // loop_header_branch
    %16 = sbr.rel (%p14) target = $region8
  $region5: #{basic_layer_forward.5} parent=0 // loop_body
    %s18 = ssub.s32 %s13, 1
    %s19 = ssub.s32 %s13, 2
    %s20 = sadd.s32 %s13, 1
    %s21 = ssub.s32 %s13, %s20
    %p22 = scmp.eq.s32.totalorder %s21, 0
    %s24 = sadd.s32 %s23, 1
    %s25 = scalar_select %p22, %s23, %s24
    %p28 = pneg %p22
    %p29 = scmp.eq.s32.totalorder %s13, 1
    %p30 = por %p28, %p29
    %p31 = scmp.ne.s32.totalorder %s23, %s26
    %p32 = scmp.eq.s32.totalorder %s13, 0
    %p33 = por %p31, %p32
    %p34 = scmp.ne.s32.totalorder %s23, %s26
    %p35 = scmp.eq.s32.totalorder %s18, 1
    %p36 = por %p34, %p35
    %p37 = scmp.ne.s32.totalorder %s26, %s27
    %p38 = scmp.eq.s32.totalorder %s18, 0
    %p39 = por %p37, %p38
    %p40 = scmp.ne.s32.totalorder %s26, %s27
    %p41 = scmp.eq.s32.totalorder %s19, 1
    %p42 = por %p40, %p41
    %p44 = scmp.ne.s32.totalorder %s27, %s43
    %p45 = scmp.eq.s32.totalorder %s19, 0
    %p46 = por %p44, %p45
    %s48 = sadd.s32 %s47, 1
    %p51 = scmp.eq.s32.totalorder %s13, 1
    %p52 = scmp.ne.s32.totalorder %s47, %s49
    %p53 = scmp.eq.s32.totalorder %s13, 0
    %p54 = por %p52, %p53
    %p55 = scmp.ne.s32.totalorder %s47, %s49
    %p56 = scmp.eq.s32.totalorder %s18, 1
    %p57 = por %p55, %p56
    %p58 = scmp.ne.s32.totalorder %s49, %s50
    %p59 = scmp.eq.s32.totalorder %s18, 0
    %p60 = por %p58, %p59
    %p61 = scmp.ne.s32.totalorder %s49, %s50
    %p62 = scmp.eq.s32.totalorder %s19, 1
    %p63 = por %p61, %p62
    %p65 = scmp.ne.s32.totalorder %s50, %s64
    %p66 = scmp.eq.s32.totalorder %s19, 0
    %p67 = por %p65, %p66
    %s69 = sadd.s32 %s68, 1
    %p72 = scmp.eq.s32.totalorder %s13, 1
    %p73 = scmp.ne.s32.totalorder %s68, %s70
    %p74 = scmp.eq.s32.totalorder %s13, 0
    %p75 = por %p73, %p74
    %p76 = scmp.ne.s32.totalorder %s68, %s70
    %p77 = scmp.eq.s32.totalorder %s18, 1
    %p78 = por %p76, %p77
    %p79 = scmp.ne.s32.totalorder %s70, %s71
    %p80 = scmp.eq.s32.totalorder %s18, 0
    %p81 = por %p79, %p80
    %p82 = scmp.ne.s32.totalorder %s70, %s71
    %p83 = scmp.eq.s32.totalorder %s19, 1
    %p84 = por %p82, %p83
    %p86 = scmp.ne.s32.totalorder %s71, %s85
    %p87 = scmp.eq.s32.totalorder %s19, 0
    %p88 = por %p86, %p87
    %s90 = sadd.s32 %s89, 1
    %p93 = scmp.eq.s32.totalorder %s13, 1
    %p94 = scmp.ne.s32.totalorder %s89, %s91
    %p95 = scmp.eq.s32.totalorder %s13, 0
    %p96 = por %p94, %p95
    %p97 = scmp.ne.s32.totalorder %s89, %s91
    %p98 = scmp.eq.s32.totalorder %s18, 1
    %p99 = por %p97, %p98
    %p100 = scmp.ne.s32.totalorder %s91, %s92
    %p101 = scmp.eq.s32.totalorder %s18, 0
    %p102 = por %p100, %p101
    %p103 = scmp.ne.s32.totalorder %s91, %s92
    %p104 = scmp.eq.s32.totalorder %s19, 1
    %p105 = por %p103, %p104
    %p107 = scmp.ne.s32.totalorder %s92, %s106
    %p108 = scmp.eq.s32.totalorder %s19, 0
    %p109 = por %p107, %p108
    %s111 = sadd.s32 %s110, 1
    %p114 = scmp.eq.s32.totalorder %s13, 1
    %p115 = scmp.ne.s32.totalorder %s110, %s112
    %p116 = scmp.eq.s32.totalorder %s13, 0
    %p117 = por %p115, %p116
    %p118 = scmp.ne.s32.totalorder %s110, %s112
    %p119 = scmp.eq.s32.totalorder %s18, 1
    %p120 = por %p118, %p119
    %p121 = scmp.ne.s32.totalorder %s112, %s113
    %p122 = scmp.eq.s32.totalorder %s18, 0
    %p123 = por %p121, %p122
    %p124 = scmp.ne.s32.totalorder %s112, %s113
    %p125 = scmp.eq.s32.totalorder %s19, 1
    %p126 = por %p124, %p125
    %p128 = scmp.ne.s32.totalorder %s113, %s127
    %p129 = scmp.eq.s32.totalorder %s19, 0
    %p130 = por %p128, %p129
    %s132 = sadd.s32 %s131, 1
    %p135 = scmp.eq.s32.totalorder %s13, 1
    %p136 = scmp.ne.s32.totalorder %s131, %s133
    %p137 = scmp.eq.s32.totalorder %s13, 0
    %p138 = por %p136, %p137
    %p139 = scmp.ne.s32.totalorder %s131, %s133
    %p140 = scmp.eq.s32.totalorder %s18, 1
    %p141 = por %p139, %p140
    %p142 = scmp.ne.s32.totalorder %s133, %s134
    %p143 = scmp.eq.s32.totalorder %s18, 0
    %p144 = por %p142, %p143
    %p145 = scmp.ne.s32.totalorder %s133, %s134
    %p146 = scmp.eq.s32.totalorder %s19, 1
    %p147 = por %p145, %p146
    %p149 = scmp.ne.s32.totalorder %s134, %s148
    %p150 = scmp.eq.s32.totalorder %s19, 0
    %p151 = por %p149, %p150
    %s153 = sadd.s32 %s152, 1
    %p156 = scmp.eq.s32.totalorder %s13, 1
    %p157 = scmp.ne.s32.totalorder %s152, %s154
    %p158 = scmp.eq.s32.totalorder %s13, 0
    %p159 = por %p157, %p158
    %p160 = scmp.ne.s32.totalorder %s152, %s154
    %p161 = scmp.eq.s32.totalorder %s18, 1
    %p162 = por %p160, %p161
    %p163 = scmp.ne.s32.totalorder %s154, %s155
    %p164 = scmp.eq.s32.totalorder %s18, 0
    %p165 = por %p163, %p164
    %p166 = scmp.ne.s32.totalorder %s154, %s155
    %p167 = scmp.eq.s32.totalorder %s19, 1
    %p168 = por %p166, %p167
    %p170 = scmp.ne.s32.totalorder %s155, %s169
    %p171 = scmp.eq.s32.totalorder %s19, 0
    %p172 = por %p170, %p171
    %s173 = ssub.s32 %s13, %s20
    %p174 = scmp.eq.s32.totalorder %s173, 0
    %s176 = sadd.s32 %s175, 1
    %s177 = scalar_select %p174, %s175, %s176
    %p180 = pneg %p174
    %p181 = scmp.eq.s32.totalorder %s13, 1
    %p182 = por %p180, %p181
    %p183 = scmp.ne.s32.totalorder %s175, %s178
    %p184 = scmp.eq.s32.totalorder %s13, 0
    %p185 = por %p183, %p184
    %p186 = scmp.ne.s32.totalorder %s175, %s178
    %p187 = scmp.eq.s32.totalorder %s18, 1
    %p188 = por %p186, %p187
    %p189 = scmp.ne.s32.totalorder %s178, %s179
    %p190 = scmp.eq.s32.totalorder %s18, 0
    %p191 = por %p189, %p190
    %p192 = scmp.ne.s32.totalorder %s178, %s179
    %p193 = scmp.eq.s32.totalorder %s19, 1
    %p194 = por %p192, %p193
    %p196 = scmp.ne.s32.totalorder %s179, %s195
    %p197 = scmp.eq.s32.totalorder %s19, 0
    %p198 = por %p196, %p197
    %p199 = scmp.le.s32.totalorder 1, %s13
    %p200 = scmp.lt.s32.totalorder %s13, 3
    %p201 = pnand %p199, %p200
    %p202 = pneg %p201
    // Predicated region
    $region9: #{basic_layer_forward.5} parent=5 // pred_check
      _
    $region10: #{basic_layer_forward.5} parent=5 // pred_check_branch
      %204 = sbr.rel (%p201) target = $region12
    $region11: #{basic_layer_forward.5} parent=5 // pred_region
      %s205 = ssub.s32 %s13, 1
      // Predicated region
      $region13: #{basic_layer_forward.5} parent=11 // pred_check
        %p206 = pneg %p60
      $region14: #{basic_layer_forward.5} parent=11 // pred_check_branch
        %208 = sbr.rel (%p206) target = $region16
      $region15: #{basic_layer_forward.5} parent=11 // pred_region
        _
      $region16: #{basic_layer_forward.5} parent=11 // pred_fallthru
        _
      // Predicated region
      $region17: #{basic_layer_forward.5} parent=11 // pred_check
        %p209 = pneg %p81
      $region18: #{basic_layer_forward.5} parent=11 // pred_check_branch
        %211 = sbr.rel (%p209) target = $region20
      $region19: #{basic_layer_forward.5} parent=11 // pred_region
        _
      $region20: #{basic_layer_forward.5} parent=11 // pred_fallthru
        _
      // Predicated region
      $region21: #{basic_layer_forward.5} parent=11 // pred_check
        %p212 = pneg %p102
      $region22: #{basic_layer_forward.5} parent=11 // pred_check_branch
        %214 = sbr.rel (%p212) target = $region24
      $region23: #{basic_layer_forward.5} parent=11 // pred_region
        _
      $region24: #{basic_layer_forward.5} parent=11 // pred_fallthru
        _
      // Predicated region
      $region25: #{basic_layer_forward.5} parent=11 // pred_check
        %p215 = pneg %p123
      $region26: #{basic_layer_forward.5} parent=11 // pred_check_branch
        %217 = sbr.rel (%p215) target = $region28
      $region27: #{basic_layer_forward.5} parent=11 // pred_region
        _
      $region28: #{basic_layer_forward.5} parent=11 // pred_fallthru
        _
      // Predicated region
      $region29: #{basic_layer_forward.5} parent=11 // pred_check
        %p218 = pneg %p144
      $region30: #{basic_layer_forward.5} parent=11 // pred_check_branch
        %220 = sbr.rel (%p218) target = $region32
      $region31: #{basic_layer_forward.5} parent=11 // pred_region
        _
      $region32: #{basic_layer_forward.5} parent=11 // pred_fallthru
        _
      // Predicated region
      $region33: #{basic_layer_forward.5} parent=11 // pred_check
        %p221 = pneg %p165
      $region34: #{basic_layer_forward.5} parent=11 // pred_check_branch
        %223 = sbr.rel (%p221) target = $region36
      $region35: #{basic_layer_forward.5} parent=11 // pred_region
        _
      $region36: #{basic_layer_forward.5} parent=11 // pred_fallthru
        _
    $region12: #{basic_layer_forward.5} parent=5 // pred_fallthru
      _
    %p224 = scmp.lt.s32.totalorder %s13, 2
    // Predicated region
    $region37: #{basic_layer_forward.5} parent=5 // pred_check
      %p225 = pneg %p224
    $region38: #{basic_layer_forward.5} parent=5 // pred_check_branch
      %227 = sbr.rel (%p225) target = $region40
    $region39: #{basic_layer_forward.5} parent=5 // pred_region
      // Predicated region
      $region41: #{basic_layer_forward.5} parent=39 // pred_check
        %p228 = pneg %p33
      $region42: #{basic_layer_forward.5} parent=39 // pred_check_branch
        %230 = sbr.rel (%p228) target = $region44
      $region43: #{basic_layer_forward.5} parent=39 // pred_region
        %s231 = smul.u32 8, %s13
        %p232 = scmp.lt.s32.totalorder %s231, 15
        %s233 = scalar_select %p232, %s231, 15
        %s234 = smul.addr %s233, 8
        %s235 = scalar_lea.vmem %s0, %s234
        %s236 = smul.u32 8, %s13
      $region44: #{basic_layer_forward.5} parent=39 // pred_fallthru
        _
    $region40: #{basic_layer_forward.5} parent=5 // pred_fallthru
      _
    %p237 = scmp.le.s32.totalorder 1, %s13
    %p238 = scmp.lt.s32.totalorder %s13, 3
    %p239 = pnand %p237, %p238
    %p240 = pneg %p239
    // Predicated region
    $region45: #{basic_layer_forward.5} parent=5 // pred_check
      _
    $region46: #{basic_layer_forward.5} parent=5 // pred_check_branch
      %242 = sbr.rel (%p239) target = $region48
    $region47: #{basic_layer_forward.5} parent=5 // pred_region
      %s243 = ssub.s32 %s13, 1
      %s244 = smul.u32 8, %s18
      %p245 = scmp.lt.s32.totalorder %s244, 15
      %s246 = scalar_select %p245, %s244, 15
      %s247 = smul.addr %s246, 8
      %s248 = scalar_lea.vmem %s0, %s247
      %p249 = pneg %p39
      %p250 = pneg %p36
      %p251 = pneg %p60
      %p252 = pneg %p57
      %p253 = pneg %p81
      %p254 = pneg %p78
      %p255 = pneg %p102
      %p256 = pneg %p99
      %p257 = pneg %p123
      %p258 = pneg %p120
      %p259 = pneg %p144
      %p260 = pneg %p141
      %p261 = pneg %p165
      %p262 = pneg %p162
      %p263 = pneg %p191
      %p264 = pneg %p188
      %s265 = smul.u32 8, %s18
      %p266 = scmp.lt.s32.totalorder %s265, 15
      %s267 = scalar_select %p266, %s265, 15
      %s268 = smul.addr %s267, 8
      %s269 = scalar_lea.vmem %s7, %s268
      %s270 = smul.u32 8, %s18
      %p271 = scmp.lt.s32.totalorder %s270, 15
      %s272 = scalar_select %p271, %s270, 15
      %s273 = smul.addr %s272, 8
      %s274 = scalar_lea.vmem %s0, %s273
      %s275 = smul.u32 8, %s18
      %s276 = smul.u32 8, %s18
      %p277 = scmp.lt.s32.totalorder %s276, 15
      %s278 = scalar_select %p277, %s276, 15
      %s279 = smul.addr %s278, 8
      %s280 = scalar_lea.vmem %s7, %s279
      %s281 = smul.u32 8, %s18
      %v283 = vld [vmem:[%s274] sm:$0xff]
      %v284 = vld [vmem:[%s274 + $0x8] sm:$0xff]
      %v285 = vld [vmem:[%s274 + $0x10] sm:$0xff]
      %v286 = vld [vmem:[%s274 + $0x18] sm:$0xff]
      %v287 = vld [vmem:[%s274 + $0x20] sm:$0xff]
      %v288 = vld [vmem:[%s274 + $0x28] sm:$0xff]
      %v289 = vld [vmem:[%s274 + $0x30] sm:$0xff]
      %v290 = vld [vmem:[%s274 + $0x38] sm:$0xff]
      %vm291 = vcmask 261120
      %v292 = vsel %vm291, %v283, 0.0
      %293 = vadd.xlane.f32.xlu0 %v292
      %v294 = vpop.xlane.xlu0 %293
      %v295 = vsel %vm291, %v284, 0.0
      %296 = vadd.xlane.f32.xlu0 %v295
      %v297 = vpop.xlane.xlu0 %296
      %v298 = vsel %vm291, %v285, 0.0
      %299 = vadd.xlane.f32.xlu0 %v298
      %v300 = vpop.xlane.xlu0 %299
      %v301 = vsel %vm291, %v286, 0.0
      %302 = vadd.xlane.f32.xlu0 %v301
      %v303 = vpop.xlane.xlu0 %302
      %v304 = vsel %vm291, %v287, 0.0
      %305 = vadd.xlane.f32.xlu0 %v304
      %v306 = vpop.xlane.xlu0 %305
      %v307 = vsel %vm291, %v288, 0.0
      %308 = vadd.xlane.f32.xlu0 %v307
      %v309 = vpop.xlane.xlu0 %308
      %v310 = vsel %vm291, %v289, 0.0
      %311 = vadd.xlane.f32.xlu0 %v310
      %v312 = vpop.xlane.xlu0 %311
      %v313 = vsel %vm291, %v290, 0.0
      %314 = vadd.xlane.f32.xlu0 %v313
      %v315 = vpop.xlane.xlu0 %314
      %v316 = vrcp.pop 32.0
      %v317 = vmul.f32 %v294, %v316
      %v318 = vmul.f32 %v297, %v316
      %v319 = vmul.f32 %v300, %v316
      %v320 = vmul.f32 %v303, %v316
      %v321 = vmul.f32 %v306, %v316
      %v322 = vmul.f32 %v309, %v316
      %v323 = vmul.f32 %v312, %v316
      %v324 = vmul.f32 %v315, %v316
      %v325 = vsub.f32 %v283, %v317
      %v326 = vsub.f32 %v284, %v318
      %v327 = vsub.f32 %v285, %v319
      %v328 = vsub.f32 %v286, %v320
      %v329 = vsub.f32 %v287, %v321
      %v330 = vsub.f32 %v288, %v322
      %v331 = vsub.f32 %v289, %v323
      %v332 = vsub.f32 %v290, %v324
      %v333 = vmul.f32 %v325, %v325
      %v334 = vmul.f32 %v326, %v326
      %v335 = vmul.f32 %v327, %v327
      %v336 = vmul.f32 %v328, %v328
      %v337 = vmul.f32 %v329, %v329
      %v338 = vmul.f32 %v330, %v330
      %v339 = vmul.f32 %v331, %v331
      %v340 = vmul.f32 %v332, %v332
      %v341 = vsel %vm291, %v333, 0.0
      %342 = vadd.xlane.f32.xlu0 %v341
      %v343 = vpop.xlane.xlu0 %342
      %v344 = vsel %vm291, %v334, 0.0
      %345 = vadd.xlane.f32.xlu0 %v344
      %v346 = vpop.xlane.xlu0 %345
      %v347 = vsel %vm291, %v335, 0.0
      %348 = vadd.xlane.f32.xlu0 %v347
      %v349 = vpop.xlane.xlu0 %348
      %v350 = vsel %vm291, %v336, 0.0
      %351 = vadd.xlane.f32.xlu0 %v350
      %v352 = vpop.xlane.xlu0 %351
      %v353 = vsel %vm291, %v337, 0.0
      %354 = vadd.xlane.f32.xlu0 %v353
      %v355 = vpop.xlane.xlu0 %354
      %v356 = vsel %vm291, %v338, 0.0
      %357 = vadd.xlane.f32.xlu0 %v356
      %v358 = vpop.xlane.xlu0 %357
      %v359 = vsel %vm291, %v339, 0.0
      %360 = vadd.xlane.f32.xlu0 %v359
      %v361 = vpop.xlane.xlu0 %360
      %v362 = vsel %vm291, %v340, 0.0
      %363 = vadd.xlane.f32.xlu0 %v362
      %v364 = vpop.xlane.xlu0 %363
      %v365 = vmul.f32 %v343, %v316
      %v366 = vmul.f32 %v346, %v316
      %v367 = vmul.f32 %v349, %v316
      %v368 = vmul.f32 %v352, %v316
      %v369 = vmul.f32 %v355, %v316
      %v370 = vmul.f32 %v358, %v316
      %v371 = vmul.f32 %v361, %v316
      %v372 = vmul.f32 %v364, %v316
      %v373 = vadd.f32 %v365, 1e-05
      %v374 = vadd.f32 %v366, 1e-05
      %v375 = vadd.f32 %v367, 1e-05
      %v376 = vadd.f32 %v368, 1e-05
      %v377 = vadd.f32 %v369, 1e-05
      %v378 = vadd.f32 %v370, 1e-05
      %v379 = vadd.f32 %v371, 1e-05
      %v380 = vadd.f32 %v372, 1e-05
      %v381 = vrsqrt.pop %v373
      %v382 = vrsqrt.pop %v374
      %v383 = vrsqrt.pop %v375
      %v384 = vrsqrt.pop %v376
      %v385 = vrsqrt.pop %v377
      %v386 = vrsqrt.pop %v378
      %v387 = vrsqrt.pop %v379
      %v388 = vrsqrt.pop %v380
      %v389 = vmul.f32 %v325, %v381
      %v390 = vmul.f32 %v326, %v382
      %v391 = vmul.f32 %v327, %v383
      %v392 = vmul.f32 %v328, %v384
      %v393 = vmul.f32 %v329, %v385
      %v394 = vmul.f32 %v330, %v386
      %v395 = vmul.f32 %v331, %v387
      %v396 = vmul.f32 %v332, %v388
      %v397 = vld [vmem:[%s1] sm:$0x1]
      %v399 = vlaneseq
      %v400 = vshrl.u32 %v399, 7
      %v401 = vsub.s32 0, %v400
      %v402 = vrot.slane %v397, %v401
      %v404 = vmul.f32 %v389, %v402
      %v405 = vmul.f32 %v390, %v402
      %v406 = vmul.f32 %v391, %v402
      %v407 = vmul.f32 %v392, %v402
      %v408 = vmul.f32 %v393, %v402
      %v409 = vmul.f32 %v394, %v402
      %v410 = vmul.f32 %v395, %v402
      %v411 = vmul.f32 %v396, %v402
      %v412 = vld [vmem:[%s2] sm:$0x1]
      %v414 = vlaneseq
      %v415 = vshrl.u32 %v414, 7
      %v416 = vsub.s32 0, %v415
      %v417 = vrot.slane %v412, %v416
      %v419 = vadd.f32 %v404, %v417
      %v420 = vadd.f32 %v405, %v417
      %v421 = vadd.f32 %v406, %v417
      %v422 = vadd.f32 %v407, %v417
      %v423 = vadd.f32 %v408, %v417
      %v424 = vadd.f32 %v409, %v417
      %v425 = vadd.f32 %v410, %v417
      %v426 = vadd.f32 %v411, %v417
      %v427 = vpack.c.bf16 %v420, %v419
      %v428 = vpack.c.bf16 %v422, %v421
      %v429 = vpack.c.bf16 %v424, %v423
      %v430 = vpack.c.bf16 %v426, %v425
      %v431 = vld [vmem:[%s3] sm:$0xf]
      %v432 = vld [vmem:[%s3 + $0x4] sm:$0xf]
      %v433 = vld [vmem:[%s3 + $0x8] sm:$0xf]
      %v434 = vld [vmem:[%s3 + $0xc] sm:$0xf]
      %v435 = vld [vmem:[%s4] sm:$0x1]
      %v437 = vlaneseq
      %v438 = vshrl.u32 %v437, 7
      %v439 = vsub.s32 0, %v438
      %v440 = vrot.slane %v435, %v439
      %v446 = vunpack.c.l.b16 %v431
      %v447 = vunpack.c.l.b16 %v432
      %v448 = vunpack.c.l.b16 %v433
      %v449 = vunpack.c.l.b16 %v434
      %v450 = vpack.c.b16 %v447, %v446
      %v451 = vpack.c.b16 %v449, %v448
      %v455 = vsel %vm291, %v427, 0
      %v458 = vsel %vm291, %v428, 0
      %v461 = vsel %vm291, %v429, 0
      %v464 = vsel %vm291, %v430, 0
      %466 = vmatprep.subr.bf16.mxu0 0
      %467 = vmatpush1.bf16.msra.mxu0 0
      %468 = vmatprep.subr.bf16.mxu0 0
      %469 = vmatpush1.bf16.msra.mxu0 0
      %470 = vmatprep.subr.bf16.mxu0 0
      %471 = vmatpush1.bf16.msra.mxu0 0
      %472 = vmatprep.subr.bf16.mxu0 0
      %473 = vmatpush1.bf16.msra.mxu0 0
      %474 = vmatprep.subr.bf16.mxu0 0
      %475 = vmatpush1.bf16.msra.mxu0 0
      %476 = vmatprep.subr.bf16.mxu0 0
      %477 = vmatpush1.bf16.msra.mxu0 0
      %478 = vmatprep.subr.bf16.mxu0 0
      %479 = vmatpush1.bf16.msra.mxu0 %v451
      %480 = vmatprep.subr.bf16.mxu0 0
      %481 = vmatpush1.bf16.msra.mxu0 %v450
      %482 = vmatprep.subr.bf16.mxu0 0
      %483 = vmatpush2.bf16.msra.mxu0 0
      %484 = vmatprep.subr.bf16.mxu0 0
      %485 = vmatpush2.bf16.msra.mxu0 0
      %486 = vmatprep.subr.bf16.mxu0 0
      %487 = vmatpush2.bf16.msra.mxu0 0
      %488 = vmatprep.subr.bf16.mxu0 0
      %489 = vmatpush2.bf16.msra.mxu0 0
      %490 = vmatprep.subr.bf16.mxu0 0
      %491 = vmatpush2.bf16.msra.mxu0 0
      %492 = vmatprep.subr.bf16.mxu0 0
      %493 = vmatpush2.bf16.msra.mxu0 0
      %494 = vmatprep.subr.bf16.mxu0 0
      %495 = vmatpush2.bf16.msra.mxu0 0
      %496 = vmatprep.subr.bf16.mxu0 0
      %497 = vmatpush2.bf16.msra.mxu0 0
      %498 = vmatprep.mubr.bf16.mxu0 0
      %499 = vmatmul.mubr.bf16.gmra.mxu0 %v455
      %v500 = vpop.f32.mrf.mxu0
      %v501 = vadd.f32 %v440, %v500
      %v502 = vpop.f32.mrf.mxu0
      %v503 = vpop.f32.mrf.mxu0
      %v504 = vadd.f32 %v440, %v503
      %v505 = vpop.f32.mrf.mxu0
      %506 = vmatprep.mubr.bf16.mxu0 0
      %507 = vmatmul.mubr.bf16.gmra.mxu0 %v458
      %v508 = vpop.f32.mrf.mxu0
      %v509 = vadd.f32 %v440, %v508
      %v510 = vpop.f32.mrf.mxu0
      %v511 = vpop.f32.mrf.mxu0
      %v512 = vadd.f32 %v440, %v511
      %v513 = vpop.f32.mrf.mxu0
      %514 = vmatprep.mubr.bf16.mxu0 0
      %515 = vmatmul.mubr.bf16.gmra.mxu0 %v461
      %v516 = vpop.f32.mrf.mxu0
      %v517 = vadd.f32 %v440, %v516
      %v518 = vpop.f32.mrf.mxu0
      %v519 = vpop.f32.mrf.mxu0
      %v520 = vadd.f32 %v440, %v519
      %v521 = vpop.f32.mrf.mxu0
      %522 = vmatprep.mubr.bf16.mxu0 0
      %523 = vmatmul.mubr.bf16.gmra.mxu0 %v464
      %v524 = vpop.f32.mrf.mxu0
      %v525 = vadd.f32 %v440, %v524
      %v526 = vpop.f32.mrf.mxu0
      %v527 = vpop.f32.mrf.mxu0
      %v528 = vadd.f32 %v440, %v527
      %v529 = vpop.f32.mrf.mxu0
      %530 = vdwg.mxu0
      %v531 = vmul.f32 %v501, 0.5
      %v532 = vmul.f32 %v504, 0.5
      %v533 = vmul.f32 %v509, 0.5
      %v534 = vmul.f32 %v512, 0.5
      %v535 = vmul.f32 %v517, 0.5
      %v536 = vmul.f32 %v520, 0.5
      %v537 = vmul.f32 %v525, 0.5
      %v538 = vmul.f32 %v528, 0.5
      %v539 = vmul.f32 %v501, 0.70710677
      %v540 = vmul.f32 %v504, 0.70710677
      %v541 = vmul.f32 %v509, 0.70710677
      %v542 = vmul.f32 %v512, 0.70710677
      %v543 = vmul.f32 %v517, 0.70710677
      %v544 = vmul.f32 %v520, 0.70710677
      %v545 = vmul.f32 %v525, 0.70710677
      %v546 = vmul.f32 %v528, 0.70710677
      %v547 = verf.f32.pop %v539
      %v548 = verf.f32.pop %v540
      %v549 = verf.f32.pop %v541
      %v550 = verf.f32.pop %v542
      %v551 = verf.f32.pop %v543
      %v552 = verf.f32.pop %v544
      %v553 = verf.f32.pop %v545
      %v554 = verf.f32.pop %v546
      %v555 = vadd.f32 %v547, 1.0
      %v556 = vadd.f32 %v548, 1.0
      %v557 = vadd.f32 %v549, 1.0
      %v558 = vadd.f32 %v550, 1.0
      %v559 = vadd.f32 %v551, 1.0
      %v560 = vadd.f32 %v552, 1.0
      %v561 = vadd.f32 %v553, 1.0
      %v562 = vadd.f32 %v554, 1.0
      %v563 = vmul.f32 %v531, %v555
      %v564 = vmul.f32 %v532, %v556
      %v565 = vmul.f32 %v533, %v557
      %v566 = vmul.f32 %v534, %v558
      %v567 = vmul.f32 %v535, %v559
      %v568 = vmul.f32 %v536, %v560
      %v569 = vmul.f32 %v537, %v561
      %v570 = vmul.f32 %v538, %v562
      %v571 = vpack.c.bf16 %v564, %v563
      %v572 = vpack.c.bf16 %v566, %v565
      %v573 = vpack.c.bf16 %v568, %v567
      %v574 = vpack.c.bf16 %v570, %v569
      %v575 = vld [vmem:[%s5] sm:$0xf]
      %v576 = vld [vmem:[%s5 + $0x4] sm:$0xf]
      %v577 = vld [vmem:[%s5 + $0x8] sm:$0xf]
      %v578 = vld [vmem:[%s5 + $0xc] sm:$0xf]
      %v579 = vld [vmem:[%s5 + $0x10] sm:$0xf]
      %v580 = vld [vmem:[%s5 + $0x14] sm:$0xf]
      %v581 = vld [vmem:[%s5 + $0x18] sm:$0xf]
      %v582 = vld [vmem:[%s5 + $0x1c] sm:$0xf]
      %v583 = vld [vmem:[%s5 + $0x20] sm:$0xf]
      %v584 = vld [vmem:[%s5 + $0x24] sm:$0xf]
      %v585 = vld [vmem:[%s5 + $0x28] sm:$0xf]
      %v586 = vld [vmem:[%s5 + $0x2c] sm:$0xf]
      %v587 = vld [vmem:[%s5 + $0x30] sm:$0xf]
      %v588 = vld [vmem:[%s5 + $0x34] sm:$0xf]
      %v589 = vld [vmem:[%s5 + $0x38] sm:$0xf]
      %v590 = vld [vmem:[%s5 + $0x3c] sm:$0xf]
      %v591 = vld [vmem:[%s6] sm:$0x1]
      %v593 = vlaneseq
      %v594 = vshrl.u32 %v593, 7
      %v595 = vsub.s32 0, %v594
      %v596 = vrot.slane %v591, %v595
      %v614 = vunpack.c.l.b16 %v575
      %v615 = vunpack.c.l.b16 %v576
      %v616 = vunpack.c.l.b16 %v577
      %v617 = vunpack.c.l.b16 %v578
      %v618 = vunpack.c.l.b16 %v579
      %v619 = vunpack.c.l.b16 %v580
      %v620 = vunpack.c.l.b16 %v581
      %v621 = vunpack.c.l.b16 %v582
      %v622 = vunpack.c.l.b16 %v583
      %v623 = vunpack.c.l.b16 %v584
      %v624 = vunpack.c.l.b16 %v585
      %v625 = vunpack.c.l.b16 %v586
      %v626 = vunpack.c.l.b16 %v587
      %v627 = vunpack.c.l.b16 %v588
      %v628 = vunpack.c.l.b16 %v589
      %v629 = vunpack.c.l.b16 %v590
      %v630 = vpack.c.b16 %v615, %v614
      %v631 = vpack.c.b16 %v617, %v616
      %v632 = vpack.c.b16 %v619, %v618
      %v633 = vpack.c.b16 %v621, %v620
      %v634 = vpack.c.b16 %v623, %v622
      %v635 = vpack.c.b16 %v625, %v624
      %v636 = vpack.c.b16 %v627, %v626
      %v637 = vpack.c.b16 %v629, %v628
      %646 = vmatprep.subr.bf16.mxu0 0
      %647 = vmatpush1.bf16.msra.mxu0 %v637
      %648 = vmatprep.subr.bf16.mxu0 0
      %649 = vmatpush1.bf16.msra.mxu0 %v636
      %650 = vmatprep.subr.bf16.mxu0 0
      %651 = vmatpush1.bf16.msra.mxu0 %v635
      %652 = vmatprep.subr.bf16.mxu0 0
      %653 = vmatpush1.bf16.msra.mxu0 %v634
      %654 = vmatprep.subr.bf16.mxu0 0
      %655 = vmatpush1.bf16.msra.mxu0 %v633
      %656 = vmatprep.subr.bf16.mxu0 0
      %657 = vmatpush1.bf16.msra.mxu0 %v632
      %658 = vmatprep.subr.bf16.mxu0 0
      %659 = vmatpush1.bf16.msra.mxu0 %v631
      %660 = vmatprep.subr.bf16.mxu0 0
      %661 = vmatpush1.bf16.msra.mxu0 %v630
      %662 = vmatprep.subr.bf16.mxu0 0
      %663 = vmatpush2.bf16.msra.mxu0 0
      %664 = vmatprep.subr.bf16.mxu0 0
      %665 = vmatpush2.bf16.msra.mxu0 0
      %666 = vmatprep.subr.bf16.mxu0 0
      %667 = vmatpush2.bf16.msra.mxu0 0
      %668 = vmatprep.subr.bf16.mxu0 0
      %669 = vmatpush2.bf16.msra.mxu0 0
      %670 = vmatprep.subr.bf16.mxu0 0
      %671 = vmatpush2.bf16.msra.mxu0 0
      %672 = vmatprep.subr.bf16.mxu0 0
      %673 = vmatpush2.bf16.msra.mxu0 0
      %674 = vmatprep.subr.bf16.mxu0 0
      %675 = vmatpush2.bf16.msra.mxu0 0
      %676 = vmatprep.subr.bf16.mxu0 0
      %677 = vmatpush2.bf16.msra.mxu0 0
      %678 = vmatprep.mubr.bf16.mxu0 0
      %679 = vmatmul.mubr.bf16.gmra.mxu0 %v571
      %v680 = vpop.f32.mrf.mxu0
      %v681 = vadd.f32 %v596, %v680
      %v682 = vpop.f32.mrf.mxu0
      %v683 = vpop.f32.mrf.mxu0
      %v684 = vadd.f32 %v596, %v683
      %v685 = vpop.f32.mrf.mxu0
      %686 = vmatprep.mubr.bf16.mxu0 0
      %687 = vmatmul.mubr.bf16.gmra.mxu0 %v572
      %v688 = vpop.f32.mrf.mxu0
      %v689 = vadd.f32 %v596, %v688
      %v690 = vpop.f32.mrf.mxu0
      %v691 = vpop.f32.mrf.mxu0
      %v692 = vadd.f32 %v596, %v691
      %v693 = vpop.f32.mrf.mxu0
      %694 = vmatprep.mubr.bf16.mxu0 0
      %695 = vmatmul.mubr.bf16.gmra.mxu0 %v573
      %v696 = vpop.f32.mrf.mxu0
      %v697 = vadd.f32 %v596, %v696
      %v698 = vpop.f32.mrf.mxu0
      %v699 = vpop.f32.mrf.mxu0
      %v700 = vadd.f32 %v596, %v699
      %v701 = vpop.f32.mrf.mxu0
      %702 = vmatprep.mubr.bf16.mxu0 0
      %703 = vmatmul.mubr.bf16.gmra.mxu0 %v574
      %v704 = vpop.f32.mrf.mxu0
      %v705 = vadd.f32 %v596, %v704
      %v706 = vpop.f32.mrf.mxu0
      %v707 = vpop.f32.mrf.mxu0
      %v708 = vadd.f32 %v596, %v707
      %v709 = vpop.f32.mrf.mxu0
      %710 = vdwg.mxu0
      %v711 = vadd.f32 %v283, %v681
      %v712 = vadd.f32 %v284, %v684
      %v713 = vadd.f32 %v285, %v689
      %v714 = vadd.f32 %v286, %v692
      %v715 = vadd.f32 %v287, %v697
      %v716 = vadd.f32 %v288, %v700
      %v717 = vadd.f32 %v289, %v705
      %v718 = vadd.f32 %v290, %v708
      %719 = vst.msk [vmem:[%s280] sm:$0xff] %vm291, %v711
      %720 = vst.msk [vmem:[%s280 + $0x8] sm:$0xff] %vm291, %v712
      %721 = vst.msk [vmem:[%s280 + $0x10] sm:$0xff] %vm291, %v713
      %722 = vst.msk [vmem:[%s280 + $0x18] sm:$0xff] %vm291, %v714
      %723 = vst.msk [vmem:[%s280 + $0x20] sm:$0xff] %vm291, %v715
      %724 = vst.msk [vmem:[%s280 + $0x28] sm:$0xff] %vm291, %v716
      %725 = vst.msk [vmem:[%s280 + $0x30] sm:$0xff] %vm291, %v717
      %726 = vst.msk [vmem:[%s280 + $0x38] sm:$0xff] %vm291, %v718
      %s727 = smul.u32 8, %s18
      %p728 = scmp.lt.s32.totalorder %s727, 15
      %s729 = scalar_select %p728, %s727, 15
      %s730 = smul.addr %s729, 8
      %s731 = scalar_lea.vmem %s7, %s730
      // Predicated region
      $region49: #{basic_layer_forward.5} parent=47 // pred_check
        %p732 = pneg %p188
      $region50: #{basic_layer_forward.5} parent=47 // pred_check_branch
        %734 = sbr.rel (%p732) target = $region52
      $region51: #{basic_layer_forward.5} parent=47 // pred_region
        %s735 = smul.u32 8, %s18
      $region52: #{basic_layer_forward.5} parent=47 // pred_fallthru
        _
    $region48: #{basic_layer_forward.5} parent=5 // pred_fallthru
      _
    %p736 = scmp.le.s32.totalorder 2, %s13
    // Predicated region
    $region53: #{basic_layer_forward.5} parent=5 // pred_check
      %p737 = pneg %p736
    $region54: #{basic_layer_forward.5} parent=5 // pred_check_branch
      %739 = sbr.rel (%p737) target = $region56
    $region55: #{basic_layer_forward.5} parent=5 // pred_region
      %s740 = ssub.s32 %s13, 2
      // Predicated region
      $region57: #{basic_layer_forward.5} parent=55 // pred_check
        %p741 = pneg %p194
      $region58: #{basic_layer_forward.5} parent=55 // pred_check_branch
        %743 = sbr.rel (%p741) target = $region60
      $region59: #{basic_layer_forward.5} parent=55 // pred_region
        %s744 = smul.u32 8, %s19
        %p745 = scmp.lt.s32.totalorder %s744, 15
        %s746 = scalar_select %p745, %s744, 15
        %s747 = smul.addr %s746, 8
        %s748 = scalar_lea.vmem %s7, %s747
      $region60: #{basic_layer_forward.5} parent=55 // pred_fallthru
        _
    $region56: #{basic_layer_forward.5} parent=5 // pred_fallthru
      _
  $region6: #{basic_layer_forward.5} parent=0 // loop_footer
    %s17 = sadd.s32 1, %s13
  $region7: #{basic_layer_forward.5} parent=0 // loop_footer_branch
    %12 = sbr.rel target = $region3
  $region8: #{basic_layer_forward.5} parent=0 // loop_exit
    _

// kernel: basic_layer_forward.4
$region0: #{basic_layer_forward.4}
  #allocation0 [shape = 'u32[]', space=smem, size = 0x4, offset = 0x4, fixed_abs, tag = 'smem constant byte address 0x4 - core index']
  #allocation1 [shape = 'u32[144,128]{1,0:T(1,128)}', space=vmem, size = 0x12000, scoped, tag = 'internal scratch']
  %s0 = inlined_call_operand.vmem [shape: f32[8,16,32], index: 0, kind: input, shape index: {}]
  %s1 = inlined_call_operand.vmem [shape: f32[4,16,16], index: 1, kind: input, shape index: {}]
  %s2 = inlined_call_operand.vmem [shape: f32[1,32], index: 2, kind: input, shape index: {}]
  %s3 = inlined_call_operand.vmem [shape: f32[1,32], index: 3, kind: input, shape index: {}]
  %s4 = inlined_call_operand.vmem [shape: bf16[32,96], index: 4, kind: input, shape index: {}]
  %s5 = inlined_call_operand.vmem [shape: f32[1,96], index: 5, kind: input, shape index: {}]
  %s6 = inlined_call_operand.vmem [shape: bf16[4,8,32], index: 6, kind: input, shape index: {}]
  %s7 = inlined_call_operand.vmem [shape: f32[1,32], index: 7, kind: input, shape index: {}]
  %s8 = inlined_call_operand.vmem [shape: f32[8,16,32], index: 8, kind: output, shape index: {}]
  %s9 = sld [smem:[#allocation0]]
  $region65: #{basic_layer_forward.4} parent=0
    _
  %s11 = ssub.s32 1, %s9
  %s12 = scalar_select 0, %s11, %s9
  loop: start=0, step=1, limit=4
  $region2: #{basic_layer_forward.4} parent=0 // loop_pre_header
    _
  $region3: #{basic_layer_forward.4} parent=0 // loop_header
    %s14 = sphi 0, %s18
    %p15 = scmp.ge.s32.totalorder %s14, 4
    %s24 = sphi 0, %s26
    %s27 = sphi 0, %s24
    %s28 = sphi 0, %s27
    %s44 = sphi 0, %s28
    %s48 = sphi 0, %s48
    %s50 = sphi 0, %s48
    %s51 = sphi 0, %s50
    %s65 = sphi 0, %s51
    %s69 = sphi 0, %s69
    %s71 = sphi 0, %s69
    %s72 = sphi 0, %s71
    %s86 = sphi 0, %s72
    %s90 = sphi 0, %s90
    %s92 = sphi 0, %s90
    %s93 = sphi 0, %s92
    %s107 = sphi 0, %s93
    %s111 = sphi 0, %s111
    %s113 = sphi 0, %s111
    %s114 = sphi 0, %s113
    %s128 = sphi 0, %s114
    %s132 = sphi 0, %s132
    %s134 = sphi 0, %s132
    %s135 = sphi 0, %s134
    %s149 = sphi 0, %s135
    %s153 = sphi 0, %s153
    %s155 = sphi 0, %s153
    %s156 = sphi 0, %s155
    %s170 = sphi 0, %s156
    %s174 = sphi 0, %s174
    %s176 = sphi 0, %s174
    %s177 = sphi 0, %s176
    %s191 = sphi 0, %s177
    %s197 = sphi 0, %s199
    %s200 = sphi 0, %s197
    %s201 = sphi 0, %s200
    %s217 = sphi 0, %s201
  $region4: #{basic_layer_forward.4} parent=0 // loop_header_branch
    %17 = sbr.rel (%p15) target = $region8
  $region5: #{basic_layer_forward.4} parent=0 // loop_body
    %s19 = ssub.s32 %s14, 1
    %s20 = ssub.s32 %s14, 2
    %s21 = sadd.s32 %s14, 1
    %s22 = ssub.s32 %s14, %s21
    %p23 = scmp.eq.s32.totalorder %s22, 0
    %s25 = sadd.s32 %s24, 1
    %s26 = scalar_select %p23, %s24, %s25
    %p29 = pneg %p23
    %p30 = scmp.eq.s32.totalorder %s14, 1
    %p31 = por %p29, %p30
    %p32 = scmp.ne.s32.totalorder %s24, %s27
    %p33 = scmp.eq.s32.totalorder %s14, 0
    %p34 = por %p32, %p33
    %p35 = scmp.ne.s32.totalorder %s24, %s27
    %p36 = scmp.eq.s32.totalorder %s19, 1
    %p37 = por %p35, %p36
    %p38 = scmp.ne.s32.totalorder %s27, %s28
    %p39 = scmp.eq.s32.totalorder %s19, 0
    %p40 = por %p38, %p39
    %p41 = scmp.ne.s32.totalorder %s27, %s28
    %p42 = scmp.eq.s32.totalorder %s20, 1
    %p43 = por %p41, %p42
    %p45 = scmp.ne.s32.totalorder %s28, %s44
    %p46 = scmp.eq.s32.totalorder %s20, 0
    %p47 = por %p45, %p46
    %s49 = sadd.s32 %s48, 1
    %p52 = scmp.eq.s32.totalorder %s14, 1
    %p53 = scmp.ne.s32.totalorder %s48, %s50
    %p54 = scmp.eq.s32.totalorder %s14, 0
    %p55 = por %p53, %p54
    %p56 = scmp.ne.s32.totalorder %s48, %s50
    %p57 = scmp.eq.s32.totalorder %s19, 1
    %p58 = por %p56, %p57
    %p59 = scmp.ne.s32.totalorder %s50, %s51
    %p60 = scmp.eq.s32.totalorder %s19, 0
    %p61 = por %p59, %p60
    %p62 = scmp.ne.s32.totalorder %s50, %s51
    %p63 = scmp.eq.s32.totalorder %s20, 1
    %p64 = por %p62, %p63
    %p66 = scmp.ne.s32.totalorder %s51, %s65
    %p67 = scmp.eq.s32.totalorder %s20, 0
    %p68 = por %p66, %p67
    %s70 = sadd.s32 %s69, 1
    %p73 = scmp.eq.s32.totalorder %s14, 1
    %p74 = scmp.ne.s32.totalorder %s69, %s71
    %p75 = scmp.eq.s32.totalorder %s14, 0
    %p76 = por %p74, %p75
    %p77 = scmp.ne.s32.totalorder %s69, %s71
    %p78 = scmp.eq.s32.totalorder %s19, 1
    %p79 = por %p77, %p78
    %p80 = scmp.ne.s32.totalorder %s71, %s72
    %p81 = scmp.eq.s32.totalorder %s19, 0
    %p82 = por %p80, %p81
    %p83 = scmp.ne.s32.totalorder %s71, %s72
    %p84 = scmp.eq.s32.totalorder %s20, 1
    %p85 = por %p83, %p84
    %p87 = scmp.ne.s32.totalorder %s72, %s86
    %p88 = scmp.eq.s32.totalorder %s20, 0
    %p89 = por %p87, %p88
    %s91 = sadd.s32 %s90, 1
    %p94 = scmp.eq.s32.totalorder %s14, 1
    %p95 = scmp.ne.s32.totalorder %s90, %s92
    %p96 = scmp.eq.s32.totalorder %s14, 0
    %p97 = por %p95, %p96
    %p98 = scmp.ne.s32.totalorder %s90, %s92
    %p99 = scmp.eq.s32.totalorder %s19, 1
    %p100 = por %p98, %p99
    %p101 = scmp.ne.s32.totalorder %s92, %s93
    %p102 = scmp.eq.s32.totalorder %s19, 0
    %p103 = por %p101, %p102
    %p104 = scmp.ne.s32.totalorder %s92, %s93
    %p105 = scmp.eq.s32.totalorder %s20, 1
    %p106 = por %p104, %p105
    %p108 = scmp.ne.s32.totalorder %s93, %s107
    %p109 = scmp.eq.s32.totalorder %s20, 0
    %p110 = por %p108, %p109
    %s112 = sadd.s32 %s111, 1
    %p115 = scmp.eq.s32.totalorder %s14, 1
    %p116 = scmp.ne.s32.totalorder %s111, %s113
    %p117 = scmp.eq.s32.totalorder %s14, 0
    %p118 = por %p116, %p117
    %p119 = scmp.ne.s32.totalorder %s111, %s113
    %p120 = scmp.eq.s32.totalorder %s19, 1
    %p121 = por %p119, %p120
    %p122 = scmp.ne.s32.totalorder %s113, %s114
    %p123 = scmp.eq.s32.totalorder %s19, 0
    %p124 = por %p122, %p123
    %p125 = scmp.ne.s32.totalorder %s113, %s114
    %p126 = scmp.eq.s32.totalorder %s20, 1
    %p127 = por %p125, %p126
    %p129 = scmp.ne.s32.totalorder %s114, %s128
    %p130 = scmp.eq.s32.totalorder %s20, 0
    %p131 = por %p129, %p130
    %s133 = sadd.s32 %s132, 1
    %p136 = scmp.eq.s32.totalorder %s14, 1
    %p137 = scmp.ne.s32.totalorder %s132, %s134
    %p138 = scmp.eq.s32.totalorder %s14, 0
    %p139 = por %p137, %p138
    %p140 = scmp.ne.s32.totalorder %s132, %s134
    %p141 = scmp.eq.s32.totalorder %s19, 1
    %p142 = por %p140, %p141
    %p143 = scmp.ne.s32.totalorder %s134, %s135
    %p144 = scmp.eq.s32.totalorder %s19, 0
    %p145 = por %p143, %p144
    %p146 = scmp.ne.s32.totalorder %s134, %s135
    %p147 = scmp.eq.s32.totalorder %s20, 1
    %p148 = por %p146, %p147
    %p150 = scmp.ne.s32.totalorder %s135, %s149
    %p151 = scmp.eq.s32.totalorder %s20, 0
    %p152 = por %p150, %p151
    %s154 = sadd.s32 %s153, 1
    %p157 = scmp.eq.s32.totalorder %s14, 1
    %p158 = scmp.ne.s32.totalorder %s153, %s155
    %p159 = scmp.eq.s32.totalorder %s14, 0
    %p160 = por %p158, %p159
    %p161 = scmp.ne.s32.totalorder %s153, %s155
    %p162 = scmp.eq.s32.totalorder %s19, 1
    %p163 = por %p161, %p162
    %p164 = scmp.ne.s32.totalorder %s155, %s156
    %p165 = scmp.eq.s32.totalorder %s19, 0
    %p166 = por %p164, %p165
    %p167 = scmp.ne.s32.totalorder %s155, %s156
    %p168 = scmp.eq.s32.totalorder %s20, 1
    %p169 = por %p167, %p168
    %p171 = scmp.ne.s32.totalorder %s156, %s170
    %p172 = scmp.eq.s32.totalorder %s20, 0
    %p173 = por %p171, %p172
    %s175 = sadd.s32 %s174, 1
    %p178 = scmp.eq.s32.totalorder %s14, 1
    %p179 = scmp.ne.s32.totalorder %s174, %s176
    %p180 = scmp.eq.s32.totalorder %s14, 0
    %p181 = por %p179, %p180
    %p182 = scmp.ne.s32.totalorder %s174, %s176
    %p183 = scmp.eq.s32.totalorder %s19, 1
    %p184 = por %p182, %p183
    %p185 = scmp.ne.s32.totalorder %s176, %s177
    %p186 = scmp.eq.s32.totalorder %s19, 0
    %p187 = por %p185, %p186
    %p188 = scmp.ne.s32.totalorder %s176, %s177
    %p189 = scmp.eq.s32.totalorder %s20, 1
    %p190 = por %p188, %p189
    %p192 = scmp.ne.s32.totalorder %s177, %s191
    %p193 = scmp.eq.s32.totalorder %s20, 0
    %p194 = por %p192, %p193
    %s195 = ssub.s32 %s14, %s21
    %p196 = scmp.eq.s32.totalorder %s195, 0
    %s198 = sadd.s32 %s197, 1
    %s199 = scalar_select %p196, %s197, %s198
    %p202 = pneg %p196
    %p203 = scmp.eq.s32.totalorder %s14, 1
    %p204 = por %p202, %p203
    %p205 = scmp.ne.s32.totalorder %s197, %s200
    %p206 = scmp.eq.s32.totalorder %s14, 0
    %p207 = por %p205, %p206
    %p208 = scmp.ne.s32.totalorder %s197, %s200
    %p209 = scmp.eq.s32.totalorder %s19, 1
    %p210 = por %p208, %p209
    %p211 = scmp.ne.s32.totalorder %s200, %s201
    %p212 = scmp.eq.s32.totalorder %s19, 0
    %p213 = por %p211, %p212
    %p214 = scmp.ne.s32.totalorder %s200, %s201
    %p215 = scmp.eq.s32.totalorder %s20, 1
    %p216 = por %p214, %p215
    %p218 = scmp.ne.s32.totalorder %s201, %s217
    %p219 = scmp.eq.s32.totalorder %s20, 0
    %p220 = por %p218, %p219
    %p221 = scmp.le.s32.totalorder 1, %s14
    %p222 = scmp.lt.s32.totalorder %s14, 3
    %p223 = pnand %p221, %p222
    %p224 = pneg %p223
    // Predicated region
    $region9: #{basic_layer_forward.4} parent=5 // pred_check
      _
    $region10: #{basic_layer_forward.4} parent=5 // pred_check_branch
      %226 = sbr.rel (%p223) target = $region12
    $region11: #{basic_layer_forward.4} parent=5 // pred_region
      %s227 = ssub.s32 %s14, 1
      // Predicated region
      $region13: #{basic_layer_forward.4} parent=11 // pred_check
        %p228 = pneg %p61
      $region14: #{basic_layer_forward.4} parent=11 // pred_check_branch
        %230 = sbr.rel (%p228) target = $region16
      $region15: #{basic_layer_forward.4} parent=11 // pred_region
        _
      $region16: #{basic_layer_forward.4} parent=11 // pred_fallthru
        _
      // Predicated region
      $region17: #{basic_layer_forward.4} parent=11 // pred_check
        %p231 = pneg %p82
      $region18: #{basic_layer_forward.4} parent=11 // pred_check_branch
        %233 = sbr.rel (%p231) target = $region20
      $region19: #{basic_layer_forward.4} parent=11 // pred_region
        _
      $region20: #{basic_layer_forward.4} parent=11 // pred_fallthru
        _
      // Predicated region
      $region21: #{basic_layer_forward.4} parent=11 // pred_check
        %p234 = pneg %p103
      $region22: #{basic_layer_forward.4} parent=11 // pred_check_branch
        %236 = sbr.rel (%p234) target = $region24
      $region23: #{basic_layer_forward.4} parent=11 // pred_region
        _
      $region24: #{basic_layer_forward.4} parent=11 // pred_fallthru
        _
      // Predicated region
      $region25: #{basic_layer_forward.4} parent=11 // pred_check
        %p237 = pneg %p124
      $region26: #{basic_layer_forward.4} parent=11 // pred_check_branch
        %239 = sbr.rel (%p237) target = $region28
      $region27: #{basic_layer_forward.4} parent=11 // pred_region
        _
      $region28: #{basic_layer_forward.4} parent=11 // pred_fallthru
        _
      // Predicated region
      $region29: #{basic_layer_forward.4} parent=11 // pred_check
        %p240 = pneg %p145
      $region30: #{basic_layer_forward.4} parent=11 // pred_check_branch
        %242 = sbr.rel (%p240) target = $region32
      $region31: #{basic_layer_forward.4} parent=11 // pred_region
        _
      $region32: #{basic_layer_forward.4} parent=11 // pred_fallthru
        _
      // Predicated region
      $region33: #{basic_layer_forward.4} parent=11 // pred_check
        %p243 = pneg %p166
      $region34: #{basic_layer_forward.4} parent=11 // pred_check_branch
        %245 = sbr.rel (%p243) target = $region36
      $region35: #{basic_layer_forward.4} parent=11 // pred_region
        _
      $region36: #{basic_layer_forward.4} parent=11 // pred_fallthru
        _
      // Predicated region
      $region37: #{basic_layer_forward.4} parent=11 // pred_check
        %p246 = pneg %p187
      $region38: #{basic_layer_forward.4} parent=11 // pred_check_branch
        %248 = sbr.rel (%p246) target = $region40
      $region39: #{basic_layer_forward.4} parent=11 // pred_region
        _
      $region40: #{basic_layer_forward.4} parent=11 // pred_fallthru
        _
    $region12: #{basic_layer_forward.4} parent=5 // pred_fallthru
      _
    %p249 = scmp.lt.s32.totalorder %s14, 2
    // Predicated region
    $region41: #{basic_layer_forward.4} parent=5 // pred_check
      %p250 = pneg %p249
    $region42: #{basic_layer_forward.4} parent=5 // pred_check_branch
      %252 = sbr.rel (%p250) target = $region44
    $region43: #{basic_layer_forward.4} parent=5 // pred_region
      // Predicated region
      $region45: #{basic_layer_forward.4} parent=43 // pred_check
        %p253 = pneg %p34
      $region46: #{basic_layer_forward.4} parent=43 // pred_check_branch
        %255 = sbr.rel (%p253) target = $region48
      $region47: #{basic_layer_forward.4} parent=43 // pred_region
        %s256 = smul.u32 4, %s14
        %p257 = scmp.lt.s32.totalorder %s256, 7
        %s258 = scalar_select %p257, %s256, 7
        %s259 = smul.addr %s258, 2
        %s260 = smul.addr %s259, 8
        %s261 = scalar_lea.vmem %s0, %s260
        %s262 = smul.u32 4, %s14
      $region48: #{basic_layer_forward.4} parent=43 // pred_fallthru
        _
    $region44: #{basic_layer_forward.4} parent=5 // pred_fallthru
      _
    %p263 = scmp.le.s32.totalorder 1, %s14
    %p264 = scmp.lt.s32.totalorder %s14, 3
    %p265 = pnand %p263, %p264
    %p266 = pneg %p265
    // Predicated region
    $region49: #{basic_layer_forward.4} parent=5 // pred_check
      _
    $region50: #{basic_layer_forward.4} parent=5 // pred_check_branch
      %268 = sbr.rel (%p265) target = $region52
    $region51: #{basic_layer_forward.4} parent=5 // pred_region
      %s269 = ssub.s32 %s14, 1
      %s270 = smul.u32 4, %s19
      %p271 = scmp.lt.s32.totalorder %s270, 7
      %s272 = scalar_select %p271, %s270, 7
      %s273 = smul.addr %s272, 2
      %s274 = smul.addr %s273, 8
      %s275 = scalar_lea.vmem %s0, %s274
      %p276 = pneg %p40
      %p277 = pneg %p37
      %p278 = pneg %p61
      %p279 = pneg %p58
      %p280 = pneg %p82
      %p281 = pneg %p79
      %p282 = pneg %p103
      %p283 = pneg %p100
      %p284 = pneg %p124
      %p285 = pneg %p121
      %p286 = pneg %p145
      %p287 = pneg %p142
      %p288 = pneg %p166
      %p289 = pneg %p163
      %p290 = pneg %p187
      %p291 = pneg %p184
      %p292 = pneg %p213
      %p293 = pneg %p210
      %s294 = smul.u32 4, %s19
      %p295 = scmp.lt.s32.totalorder %s294, 7
      %s296 = scalar_select %p295, %s294, 7
      %s297 = smul.addr %s296, 2
      %s298 = smul.addr %s297, 8
      %s299 = scalar_lea.vmem %s8, %s298
      %s300 = smul.u32 4, %s19
      %p301 = scmp.lt.s32.totalorder %s300, 7
      %s302 = scalar_select %p301, %s300, 7
      %s303 = smul.addr %s302, 2
      %s304 = smul.addr %s303, 8
      %s305 = scalar_lea.vmem %s0, %s304
      %s306 = smul.u32 4, %s19
      %s307 = smul.u32 4, %s19
      %p308 = scmp.lt.s32.totalorder %s307, 7
      %s309 = scalar_select %p308, %s307, 7
      %s310 = smul.addr %s309, 2
      %s311 = smul.addr %s310, 8
      %s312 = scalar_lea.vmem %s8, %s311
      %s313 = smul.u32 4, %s19
      %v315 = vld [vmem:[%s305] sm:$0xff]
      %v316 = vld [vmem:[%s305 + $0x8] sm:$0xff]
      %v317 = vld [vmem:[%s305 + $0x10] sm:$0xff]
      %v318 = vld [vmem:[%s305 + $0x18] sm:$0xff]
      %v319 = vld [vmem:[%s305 + $0x20] sm:$0xff]
      %v320 = vld [vmem:[%s305 + $0x28] sm:$0xff]
      %v321 = vld [vmem:[%s305 + $0x30] sm:$0xff]
      %v322 = vld [vmem:[%s305 + $0x38] sm:$0xff]
      %vm323 = vcmask 261120
      %v324 = vsel %vm323, %v315, 0.0
      %325 = vadd.xlane.f32.xlu0 %v324
      %v326 = vpop.xlane.xlu0 %325
      %v327 = vsel %vm323, %v316, 0.0
      %328 = vadd.xlane.f32.xlu0 %v327
      %v329 = vpop.xlane.xlu0 %328
      %v330 = vsel %vm323, %v317, 0.0
      %331 = vadd.xlane.f32.xlu0 %v330
      %v332 = vpop.xlane.xlu0 %331
      %v333 = vsel %vm323, %v318, 0.0
      %334 = vadd.xlane.f32.xlu0 %v333
      %v335 = vpop.xlane.xlu0 %334
      %v336 = vsel %vm323, %v319, 0.0
      %337 = vadd.xlane.f32.xlu0 %v336
      %v338 = vpop.xlane.xlu0 %337
      %v339 = vsel %vm323, %v320, 0.0
      %340 = vadd.xlane.f32.xlu0 %v339
      %v341 = vpop.xlane.xlu0 %340
      %v342 = vsel %vm323, %v321, 0.0
      %343 = vadd.xlane.f32.xlu0 %v342
      %v344 = vpop.xlane.xlu0 %343
      %v345 = vsel %vm323, %v322, 0.0
      %346 = vadd.xlane.f32.xlu0 %v345
      %v347 = vpop.xlane.xlu0 %346
      %v348 = vrcp.pop 32.0
      %v349 = vmul.f32 %v326, %v348
      %v350 = vmul.f32 %v329, %v348
      %v351 = vmul.f32 %v332, %v348
      %v352 = vmul.f32 %v335, %v348
      %v353 = vmul.f32 %v338, %v348
      %v354 = vmul.f32 %v341, %v348
      %v355 = vmul.f32 %v344, %v348
      %v356 = vmul.f32 %v347, %v348
      %v357 = vsub.f32 %v315, %v349
      %v358 = vsub.f32 %v316, %v350
      %v359 = vsub.f32 %v317, %v351
      %v360 = vsub.f32 %v318, %v352
      %v361 = vsub.f32 %v319, %v353
      %v362 = vsub.f32 %v320, %v354
      %v363 = vsub.f32 %v321, %v355
      %v364 = vsub.f32 %v322, %v356
      %v365 = vmul.f32 %v357, %v357
      %v366 = vmul.f32 %v358, %v358
      %v367 = vmul.f32 %v359, %v359
      %v368 = vmul.f32 %v360, %v360
      %v369 = vmul.f32 %v361, %v361
      %v370 = vmul.f32 %v362, %v362
      %v371 = vmul.f32 %v363, %v363
      %v372 = vmul.f32 %v364, %v364
      %v373 = vsel %vm323, %v365, 0.0
      %374 = vadd.xlane.f32.xlu0 %v373
      %v375 = vpop.xlane.xlu0 %374
      %v376 = vsel %vm323, %v366, 0.0
      %377 = vadd.xlane.f32.xlu0 %v376
      %v378 = vpop.xlane.xlu0 %377
      %v379 = vsel %vm323, %v367, 0.0
      %380 = vadd.xlane.f32.xlu0 %v379
      %v381 = vpop.xlane.xlu0 %380
      %v382 = vsel %vm323, %v368, 0.0
      %383 = vadd.xlane.f32.xlu0 %v382
      %v384 = vpop.xlane.xlu0 %383
      %v385 = vsel %vm323, %v369, 0.0
      %386 = vadd.xlane.f32.xlu0 %v385
      %v387 = vpop.xlane.xlu0 %386
      %v388 = vsel %vm323, %v370, 0.0
      %389 = vadd.xlane.f32.xlu0 %v388
      %v390 = vpop.xlane.xlu0 %389
      %v391 = vsel %vm323, %v371, 0.0
      %392 = vadd.xlane.f32.xlu0 %v391
      %v393 = vpop.xlane.xlu0 %392
      %v394 = vsel %vm323, %v372, 0.0
      %395 = vadd.xlane.f32.xlu0 %v394
      %v396 = vpop.xlane.xlu0 %395
      %v397 = vmul.f32 %v375, %v348
      %v398 = vmul.f32 %v378, %v348
      %v399 = vmul.f32 %v381, %v348
      %v400 = vmul.f32 %v384, %v348
      %v401 = vmul.f32 %v387, %v348
      %v402 = vmul.f32 %v390, %v348
      %v403 = vmul.f32 %v393, %v348
      %v404 = vmul.f32 %v396, %v348
      %v405 = vadd.f32 %v397, 1e-05
      %v406 = vadd.f32 %v398, 1e-05
      %v407 = vadd.f32 %v399, 1e-05
      %v408 = vadd.f32 %v400, 1e-05
      %v409 = vadd.f32 %v401, 1e-05
      %v410 = vadd.f32 %v402, 1e-05
      %v411 = vadd.f32 %v403, 1e-05
      %v412 = vadd.f32 %v404, 1e-05
      %v413 = vrsqrt.pop %v405
      %v414 = vrsqrt.pop %v406
      %v415 = vrsqrt.pop %v407
      %v416 = vrsqrt.pop %v408
      %v417 = vrsqrt.pop %v409
      %v418 = vrsqrt.pop %v410
      %v419 = vrsqrt.pop %v411
      %v420 = vrsqrt.pop %v412
      %v421 = vmul.f32 %v357, %v413
      %v422 = vmul.f32 %v358, %v414
      %v423 = vmul.f32 %v359, %v415
      %v424 = vmul.f32 %v360, %v416
      %v425 = vmul.f32 %v361, %v417
      %v426 = vmul.f32 %v362, %v418
      %v427 = vmul.f32 %v363, %v419
      %v428 = vmul.f32 %v364, %v420
      %v429 = vld [vmem:[%s2] sm:$0x1]
      %v431 = vlaneseq
      %v432 = vshrl.u32 %v431, 7
      %v433 = vsub.s32 0, %v432
      %v434 = vrot.slane %v429, %v433
      %v436 = vmul.f32 %v421, %v434
      %v437 = vmul.f32 %v422, %v434
      %v438 = vmul.f32 %v423, %v434
      %v439 = vmul.f32 %v424, %v434
      %v440 = vmul.f32 %v425, %v434
      %v441 = vmul.f32 %v426, %v434
      %v442 = vmul.f32 %v427, %v434
      %v443 = vmul.f32 %v428, %v434
      %v444 = vld [vmem:[%s3] sm:$0x1]
      %v446 = vlaneseq
      %v447 = vshrl.u32 %v446, 7
      %v448 = vsub.s32 0, %v447
      %v449 = vrot.slane %v444, %v448
      %v451 = vadd.f32 %v436, %v449
      %v452 = vadd.f32 %v437, %v449
      %v453 = vadd.f32 %v438, %v449
      %v454 = vadd.f32 %v439, %v449
      %v455 = vadd.f32 %v440, %v449
      %v456 = vadd.f32 %v441, %v449
      %v457 = vadd.f32 %v442, %v449
      %v458 = vadd.f32 %v443, %v449
      %v459 = vpack.c.bf16 %v452, %v451
      %v460 = vpack.c.bf16 %v454, %v453
      %v461 = vpack.c.bf16 %v456, %v455
      %v462 = vpack.c.bf16 %v458, %v457
      %v463 = vld [vmem:[%s4] sm:$0xf]
      %v464 = vld [vmem:[%s4 + $0x4] sm:$0xf]
      %v465 = vld [vmem:[%s4 + $0x8] sm:$0xf]
      %v466 = vld [vmem:[%s4 + $0xc] sm:$0xf]
      %v467 = vld [vmem:[%s5] sm:$0x1]
      %v469 = vlaneseq
      %v470 = vshrl.u32 %v469, 7
      %v471 = vsub.s32 0, %v470
      %v472 = vrot.slane %v467, %v471
      %v478 = vunpack.c.l.b16 %v463
      %v479 = vunpack.c.l.b16 %v464
      %v480 = vunpack.c.l.b16 %v465
      %v481 = vunpack.c.l.b16 %v466
      %v482 = vpack.c.b16 %v479, %v478
      %v483 = vpack.c.b16 %v481, %v480
      %v487 = vsel %vm323, %v459, 0
      %v490 = vsel %vm323, %v460, 0
      %v493 = vsel %vm323, %v461, 0
      %v496 = vsel %vm323, %v462, 0
      %498 = vmatprep.subr.bf16.mxu0 0
      %499 = vmatpush1.bf16.msra.mxu0 0
      %500 = vmatprep.subr.bf16.mxu0 0
      %501 = vmatpush1.bf16.msra.mxu0 0
      %502 = vmatprep.subr.bf16.mxu0 0
      %503 = vmatpush1.bf16.msra.mxu0 0
      %504 = vmatprep.subr.bf16.mxu0 0
      %505 = vmatpush1.bf16.msra.mxu0 0
      %506 = vmatprep.subr.bf16.mxu0 0
      %507 = vmatpush1.bf16.msra.mxu0 0
      %508 = vmatprep.subr.bf16.mxu0 0
      %509 = vmatpush1.bf16.msra.mxu0 0
      %510 = vmatprep.subr.bf16.mxu0 0
      %511 = vmatpush1.bf16.msra.mxu0 %v483
      %512 = vmatprep.subr.bf16.mxu0 0
      %513 = vmatpush1.bf16.msra.mxu0 %v482
      %514 = vmatprep.subr.bf16.mxu0 0
      %515 = vmatpush2.bf16.msra.mxu0 0
      %516 = vmatprep.subr.bf16.mxu0 0
      %517 = vmatpush2.bf16.msra.mxu0 0
      %518 = vmatprep.subr.bf16.mxu0 0
      %519 = vmatpush2.bf16.msra.mxu0 0
      %520 = vmatprep.subr.bf16.mxu0 0
      %521 = vmatpush2.bf16.msra.mxu0 0
      %522 = vmatprep.subr.bf16.mxu0 0
      %523 = vmatpush2.bf16.msra.mxu0 0
      %524 = vmatprep.subr.bf16.mxu0 0
      %525 = vmatpush2.bf16.msra.mxu0 0
      %526 = vmatprep.subr.bf16.mxu0 0
      %527 = vmatpush2.bf16.msra.mxu0 0
      %528 = vmatprep.subr.bf16.mxu0 0
      %529 = vmatpush2.bf16.msra.mxu0 0
      %530 = vmatprep.mubr.bf16.mxu0 0
      %531 = vmatmul.mubr.bf16.gmra.mxu0 %v487
      %v532 = vpop.f32.mrf.mxu0
      %v533 = vadd.f32 %v472, %v532
      %v534 = vpop.f32.mrf.mxu0
      %v535 = vpop.f32.mrf.mxu0
      %v536 = vadd.f32 %v472, %v535
      %v537 = vpop.f32.mrf.mxu0
      %538 = vmatprep.mubr.bf16.mxu0 0
      %539 = vmatmul.mubr.bf16.gmra.mxu0 %v490
      %v540 = vpop.f32.mrf.mxu0
      %v541 = vadd.f32 %v472, %v540
      %v542 = vpop.f32.mrf.mxu0
      %v543 = vpop.f32.mrf.mxu0
      %v544 = vadd.f32 %v472, %v543
      %v545 = vpop.f32.mrf.mxu0
      %546 = vmatprep.mubr.bf16.mxu0 0
      %547 = vmatmul.mubr.bf16.gmra.mxu0 %v493
      %v548 = vpop.f32.mrf.mxu0
      %v549 = vadd.f32 %v472, %v548
      %v550 = vpop.f32.mrf.mxu0
      %v551 = vpop.f32.mrf.mxu0
      %v552 = vadd.f32 %v472, %v551
      %v553 = vpop.f32.mrf.mxu0
      %554 = vmatprep.mubr.bf16.mxu0 0
      %555 = vmatmul.mubr.bf16.gmra.mxu0 %v496
      %v556 = vpop.f32.mrf.mxu0
      %v557 = vadd.f32 %v472, %v556
      %v558 = vpop.f32.mrf.mxu0
      %v559 = vpop.f32.mrf.mxu0
      %v560 = vadd.f32 %v472, %v559
      %v561 = vpop.f32.mrf.mxu0
      %562 = vdwg.mxu0
      %v563 = vld [vmem:[%s1] sm:$0xff]
      %v564 = vld [vmem:[%s1 + $0x8] sm:$0xff]
      %v565 = vld [vmem:[%s1 + $0x10] sm:$0xff]
      %v566 = vld [vmem:[%s1 + $0x18] sm:$0xff]
      %v567 = vld [vmem:[%s1 + $0x20] sm:$0xff]
      %v568 = vld [vmem:[%s1 + $0x28] sm:$0xff]
      %v569 = vld [vmem:[%s1 + $0x30] sm:$0xff]
      %v570 = vld [vmem:[%s1 + $0x38] sm:$0xff]
      %v571 = vld [vmem:[%s7] sm:$0x1]
      %v573 = vlaneseq
      %v574 = vshrl.u32 %v573, 7
      %v575 = vsub.s32 0, %v574
      %v576 = vrot.slane %v571, %v575
      %v578 = vadd.f32 %v315, %v576
      %v579 = vadd.f32 %v316, %v576
      %v580 = vadd.f32 %v317, %v576
      %v581 = vadd.f32 %v318, %v576
      %v582 = vadd.f32 %v319, %v576
      %v583 = vadd.f32 %v320, %v576
      %v584 = vadd.f32 %v321, %v576
      %v585 = vadd.f32 %v322, %v576
      %v586 = vpack.c.bf16 %v536, %v533
      %v587 = vpack.c.bf16 %v544, %v541
      %v588 = vpack.c.bf16 %v552, %v549
      %v589 = vpack.c.bf16 %v560, %v557
      %591 = vrot.lane.b32.xlu0 %v586, 96
      %v592 = vpop.permute.xlu0 %591
      %vm593 = vcmask 64512
      %v595 = vsel %vm593, %v586, 0
      %v598 = vsel %vm593, %v592, 0
      %600 = vmatprep.subr.bf16.mxu0 0
      %601 = vmatpush1.bf16.xpose.msra.mxu0 0
      %602 = vmatprep.subr.bf16.mxu0 0
      %603 = vmatpush1.bf16.xpose.msra.mxu0 0
      %604 = vmatprep.subr.bf16.mxu0 0
      %605 = vmatpush1.bf16.xpose.msra.mxu0 0
      %606 = vmatprep.subr.bf16.mxu0 0
      %607 = vmatpush1.bf16.xpose.msra.mxu0 0
      %608 = vmatprep.subr.bf16.mxu0 0
      %609 = vmatpush1.bf16.xpose.msra.mxu0 0
      %610 = vmatprep.subr.bf16.mxu0 0
      %611 = vmatpush1.bf16.xpose.msra.mxu0 0
      %612 = vmatprep.subr.bf16.mxu0 0
      %613 = vmatpush1.bf16.xpose.msra.mxu0 0
      %614 = vmatprep.subr.bf16.mxu0 0
      %615 = vmatpush1.bf16.xpose.msra.mxu0 %v598
      %616 = vmatprep.subr.bf16.mxu0 0
      %617 = vmatpush2.bf16.xpose.msra.mxu0 0
      %618 = vmatprep.subr.bf16.mxu0 0
      %619 = vmatpush2.bf16.xpose.msra.mxu0 0
      %620 = vmatprep.subr.bf16.mxu0 0
      %621 = vmatpush2.bf16.xpose.msra.mxu0 0
      %622 = vmatprep.subr.bf16.mxu0 0
      %623 = vmatpush2.bf16.xpose.msra.mxu0 0
      %624 = vmatprep.subr.bf16.mxu0 0
      %625 = vmatpush2.bf16.xpose.msra.mxu0 0
      %626 = vmatprep.subr.bf16.mxu0 0
      %627 = vmatpush2.bf16.xpose.msra.mxu0 0
      %628 = vmatprep.subr.bf16.mxu0 0
      %629 = vmatpush2.bf16.xpose.msra.mxu0 0
      %630 = vmatprep.subr.bf16.mxu0 0
      %631 = vmatpush2.bf16.xpose.msra.mxu0 0
      %632 = vmatprep.mubr.bf16.mxu0 0
      %633 = vmatmul.mubr.bf16.gmra.mxu0 %v595
      %v634 = vpop.f32.mrf.mxu0
      %v635 = vadd.f32 %v563, %v634
      %v636 = vpop.f32.mrf.mxu0
      %v637 = vpop.f32.mrf.mxu0
      %v638 = vadd.f32 %v564, %v637
      %v639 = vpop.f32.mrf.mxu0
      %640 = vdwg.mxu0
      %642 = vrot.lane.b32.xlu0 %v587, 96
      %v643 = vpop.permute.xlu0 %642
      %v645 = vsel %vm593, %v587, 0
      %v648 = vsel %vm593, %v643, 0
      %650 = vmatprep.subr.bf16.mxu0 0
      %651 = vmatpush1.bf16.xpose.msra.mxu0 0
      %652 = vmatprep.subr.bf16.mxu0 0
      %653 = vmatpush1.bf16.xpose.msra.mxu0 0
      %654 = vmatprep.subr.bf16.mxu0 0
      %655 = vmatpush1.bf16.xpose.msra.mxu0 0
      %656 = vmatprep.subr.bf16.mxu0 0
      %657 = vmatpush1.bf16.xpose.msra.mxu0 0
      %658 = vmatprep.subr.bf16.mxu0 0
      %659 = vmatpush1.bf16.xpose.msra.mxu0 0
      %660 = vmatprep.subr.bf16.mxu0 0
      %661 = vmatpush1.bf16.xpose.msra.mxu0 0
      %662 = vmatprep.subr.bf16.mxu0 0
      %663 = vmatpush1.bf16.xpose.msra.mxu0 0
      %664 = vmatprep.subr.bf16.mxu0 0
      %665 = vmatpush1.bf16.xpose.msra.mxu0 %v648
      %666 = vmatprep.subr.bf16.mxu0 0
      %667 = vmatpush2.bf16.xpose.msra.mxu0 0
      %668 = vmatprep.subr.bf16.mxu0 0
      %669 = vmatpush2.bf16.xpose.msra.mxu0 0
      %670 = vmatprep.subr.bf16.mxu0 0
      %671 = vmatpush2.bf16.xpose.msra.mxu0 0
      %672 = vmatprep.subr.bf16.mxu0 0
      %673 = vmatpush2.bf16.xpose.msra.mxu0 0
      %674 = vmatprep.subr.bf16.mxu0 0
      %675 = vmatpush2.bf16.xpose.msra.mxu0 0
      %676 = vmatprep.subr.bf16.mxu0 0
      %677 = vmatpush2.bf16.xpose.msra.mxu0 0
      %678 = vmatprep.subr.bf16.mxu0 0
      %679 = vmatpush2.bf16.xpose.msra.mxu0 0
      %680 = vmatprep.subr.bf16.mxu0 0
      %681 = vmatpush2.bf16.xpose.msra.mxu0 0
      %682 = vmatprep.mubr.bf16.mxu0 0
      %683 = vmatmul.mubr.bf16.gmra.mxu0 %v645
      %v684 = vpop.f32.mrf.mxu0
      %v685 = vadd.f32 %v563, %v684
      %v686 = vpop.f32.mrf.mxu0
      %v687 = vpop.f32.mrf.mxu0
      %v688 = vadd.f32 %v564, %v687
      %v689 = vpop.f32.mrf.mxu0
      %690 = vdwg.mxu0
      %692 = vrot.lane.b32.xlu0 %v588, 96
      %v693 = vpop.permute.xlu0 %692
      %v695 = vsel %vm593, %v588, 0
      %v698 = vsel %vm593, %v693, 0
      %700 = vmatprep.subr.bf16.mxu0 0
      %701 = vmatpush1.bf16.xpose.msra.mxu0 0
      %702 = vmatprep.subr.bf16.mxu0 0
      %703 = vmatpush1.bf16.xpose.msra.mxu0 0
      %704 = vmatprep.subr.bf16.mxu0 0
      %705 = vmatpush1.bf16.xpose.msra.mxu0 0
      %706 = vmatprep.subr.bf16.mxu0 0
      %707 = vmatpush1.bf16.xpose.msra.mxu0 0
      %708 = vmatprep.subr.bf16.mxu0 0
      %709 = vmatpush1.bf16.xpose.msra.mxu0 0
      %710 = vmatprep.subr.bf16.mxu0 0
      %711 = vmatpush1.bf16.xpose.msra.mxu0 0
      %712 = vmatprep.subr.bf16.mxu0 0
      %713 = vmatpush1.bf16.xpose.msra.mxu0 0
      %714 = vmatprep.subr.bf16.mxu0 0
      %715 = vmatpush1.bf16.xpose.msra.mxu0 %v698
      %716 = vmatprep.subr.bf16.mxu0 0
      %717 = vmatpush2.bf16.xpose.msra.mxu0 0
      %718 = vmatprep.subr.bf16.mxu0 0
      %719 = vmatpush2.bf16.xpose.msra.mxu0 0
      %720 = vmatprep.subr.bf16.mxu0 0
      %721 = vmatpush2.bf16.xpose.msra.mxu0 0
      %722 = vmatprep.subr.bf16.mxu0 0
      %723 = vmatpush2.bf16.xpose.msra.mxu0 0
      %724 = vmatprep.subr.bf16.mxu0 0
      %725 = vmatpush2.bf16.xpose.msra.mxu0 0
      %726 = vmatprep.subr.bf16.mxu0 0
      %727 = vmatpush2.bf16.xpose.msra.mxu0 0
      %728 = vmatprep.subr.bf16.mxu0 0
      %729 = vmatpush2.bf16.xpose.msra.mxu0 0
      %730 = vmatprep.subr.bf16.mxu0 0
      %731 = vmatpush2.bf16.xpose.msra.mxu0 0
      %732 = vmatprep.mubr.bf16.mxu0 0
      %733 = vmatmul.mubr.bf16.gmra.mxu0 %v695
      %v734 = vpop.f32.mrf.mxu0
      %v735 = vadd.f32 %v563, %v734
      %v736 = vpop.f32.mrf.mxu0
      %v737 = vpop.f32.mrf.mxu0
      %v738 = vadd.f32 %v564, %v737
      %v739 = vpop.f32.mrf.mxu0
      %740 = vdwg.mxu0
      %742 = vrot.lane.b32.xlu0 %v589, 96
      %v743 = vpop.permute.xlu0 %742
      %v745 = vsel %vm593, %v589, 0
      %v748 = vsel %vm593, %v743, 0
      %750 = vmatprep.subr.bf16.mxu0 0
      %751 = vmatpush1.bf16.xpose.msra.mxu0 0
      %752 = vmatprep.subr.bf16.mxu0 0
      %753 = vmatpush1.bf16.xpose.msra.mxu0 0
      %754 = vmatprep.subr.bf16.mxu0 0
      %755 = vmatpush1.bf16.xpose.msra.mxu0 0
      %756 = vmatprep.subr.bf16.mxu0 0
      %757 = vmatpush1.bf16.xpose.msra.mxu0 0
      %758 = vmatprep.subr.bf16.mxu0 0
      %759 = vmatpush1.bf16.xpose.msra.mxu0 0
      %760 = vmatprep.subr.bf16.mxu0 0
      %761 = vmatpush1.bf16.xpose.msra.mxu0 0
      %762 = vmatprep.subr.bf16.mxu0 0
      %763 = vmatpush1.bf16.xpose.msra.mxu0 0
      %764 = vmatprep.subr.bf16.mxu0 0
      %765 = vmatpush1.bf16.xpose.msra.mxu0 %v748
      %766 = vmatprep.subr.bf16.mxu0 0
      %767 = vmatpush2.bf16.xpose.msra.mxu0 0
      %768 = vmatprep.subr.bf16.mxu0 0
      %769 = vmatpush2.bf16.xpose.msra.mxu0 0
      %770 = vmatprep.subr.bf16.mxu0 0
      %771 = vmatpush2.bf16.xpose.msra.mxu0 0
      %772 = vmatprep.subr.bf16.mxu0 0
      %773 = vmatpush2.bf16.xpose.msra.mxu0 0
      %774 = vmatprep.subr.bf16.mxu0 0
      %775 = vmatpush2.bf16.xpose.msra.mxu0 0
      %776 = vmatprep.subr.bf16.mxu0 0
      %777 = vmatpush2.bf16.xpose.msra.mxu0 0
      %778 = vmatprep.subr.bf16.mxu0 0
      %779 = vmatpush2.bf16.xpose.msra.mxu0 0
      %780 = vmatprep.subr.bf16.mxu0 0
      %781 = vmatpush2.bf16.xpose.msra.mxu0 0
      %782 = vmatprep.mubr.bf16.mxu0 0
      %783 = vmatmul.mubr.bf16.gmra.mxu0 %v745
      %v784 = vpop.f32.mrf.mxu0
      %v785 = vadd.f32 %v563, %v784
      %v786 = vpop.f32.mrf.mxu0
      %v787 = vpop.f32.mrf.mxu0
      %v788 = vadd.f32 %v564, %v787
      %v789 = vpop.f32.mrf.mxu0
      %790 = vdwg.mxu0
      %vm791 = vcmask 130048
      %v792 = vsel %vm791, %v635, -inf
      %793 = vmax.xlane.f32.xlu0 %v792
      %v794 = vpop.xlane.xlu0 %793
      %v795 = vsel %vm791, %v638, -inf
      %796 = vmax.xlane.f32.xlu0 %v795
      %v797 = vpop.xlane.xlu0 %796
      %v798 = vsel %vm791, %v685, -inf
      %799 = vmax.xlane.f32.xlu0 %v798
      %v800 = vpop.xlane.xlu0 %799
      %v801 = vsel %vm791, %v688, -inf
      %802 = vmax.xlane.f32.xlu0 %v801
      %v803 = vpop.xlane.xlu0 %802
      %v804 = vsel %vm791, %v735, -inf
      %805 = vmax.xlane.f32.xlu0 %v804
      %v806 = vpop.xlane.xlu0 %805
      %v807 = vsel %vm791, %v738, -inf
      %808 = vmax.xlane.f32.xlu0 %v807
      %v809 = vpop.xlane.xlu0 %808
      %v810 = vsel %vm791, %v785, -inf
      %811 = vmax.xlane.f32.xlu0 %v810
      %v812 = vpop.xlane.xlu0 %811
      %v813 = vsel %vm791, %v788, -inf
      %814 = vmax.xlane.f32.xlu0 %v813
      %v815 = vpop.xlane.xlu0 %814
      %v816 = vsub.f32 %v635, %v794
      %v817 = vsub.f32 %v638, %v797
      %v818 = vsub.f32 %v685, %v800
      %v819 = vsub.f32 %v688, %v803
      %v820 = vsub.f32 %v735, %v806
      %v821 = vsub.f32 %v738, %v809
      %v822 = vsub.f32 %v785, %v812
      %v823 = vsub.f32 %v788, %v815
      %v824 = vmul.f32 %v816, 1.442695
      %v825 = vpow.pop %v824
      %v826 = vmul.f32 %v817, 1.442695
      %v827 = vpow.pop %v826
      %v828 = vmul.f32 %v818, 1.442695
      %v829 = vpow.pop %v828
      %v830 = vmul.f32 %v819, 1.442695
      %v831 = vpow.pop %v830
      %v832 = vmul.f32 %v820, 1.442695
      %v833 = vpow.pop %v832
      %v834 = vmul.f32 %v821, 1.442695
      %v835 = vpow.pop %v834
      %v836 = vmul.f32 %v822, 1.442695
      %v837 = vpow.pop %v836
      %v838 = vmul.f32 %v823, 1.442695
      %v839 = vpow.pop %v838
      %v840 = vsel %vm791, %v825, 0.0
      %841 = vadd.xlane.f32.xlu0 %v840
      %v842 = vpop.xlane.xlu0 %841
      %v843 = vsel %vm791, %v827, 0.0
      %844 = vadd.xlane.f32.xlu0 %v843
      %v845 = vpop.xlane.xlu0 %844
      %v846 = vsel %vm791, %v829, 0.0
      %847 = vadd.xlane.f32.xlu0 %v846
      %v848 = vpop.xlane.xlu0 %847
      %v849 = vsel %vm791, %v831, 0.0
      %850 = vadd.xlane.f32.xlu0 %v849
      %v851 = vpop.xlane.xlu0 %850
      %v852 = vsel %vm791, %v833, 0.0
      %853 = vadd.xlane.f32.xlu0 %v852
      %v854 = vpop.xlane.xlu0 %853
      %v855 = vsel %vm791, %v835, 0.0
      %856 = vadd.xlane.f32.xlu0 %v855
      %v857 = vpop.xlane.xlu0 %856
      %v858 = vsel %vm791, %v837, 0.0
      %859 = vadd.xlane.f32.xlu0 %v858
      %v860 = vpop.xlane.xlu0 %859
      %v861 = vsel %vm791, %v839, 0.0
      %862 = vadd.xlane.f32.xlu0 %v861
      %v863 = vpop.xlane.xlu0 %862
      %v864 = vrcp.pop %v842
      %v865 = vrcp.pop %v845
      %v866 = vrcp.pop %v848
      %v867 = vrcp.pop %v851
      %v868 = vrcp.pop %v854
      %v869 = vrcp.pop %v857
      %v870 = vrcp.pop %v860
      %v871 = vrcp.pop %v863
      %v872 = vmul.f32 %v825, %v864
      %v873 = vmul.f32 %v827, %v865
      %v874 = vmul.f32 %v829, %v866
      %v875 = vmul.f32 %v831, %v867
      %v876 = vmul.f32 %v833, %v868
      %v877 = vmul.f32 %v835, %v869
      %v878 = vmul.f32 %v837, %v870
      %v879 = vmul.f32 %v839, %v871
      %v880 = vpack.c.bf16 %v873, %v872
      %v881 = vpack.c.bf16 %v875, %v874
      %v882 = vpack.c.bf16 %v877, %v876
      %v883 = vpack.c.bf16 %v879, %v878
      %884 = vrot.lane.b32.xlu0 %v586, 64
      %v885 = vpop.permute.xlu0 %884
      %v888 = vsel %vm791, %v880, 0
      %890 = vmatprep.subr.bf16.mxu0 0
      %891 = vmatpush1.bf16.msra.mxu0 0
      %892 = vmatprep.subr.bf16.mxu0 0
      %893 = vmatpush1.bf16.msra.mxu0 0
      %894 = vmatprep.subr.bf16.mxu0 0
      %895 = vmatpush1.bf16.msra.mxu0 0
      %896 = vmatprep.subr.bf16.mxu0 0
      %897 = vmatpush1.bf16.msra.mxu0 0
      %898 = vmatprep.subr.bf16.mxu0 0
      %899 = vmatpush1.bf16.msra.mxu0 0
      %900 = vmatprep.subr.bf16.mxu0 0
      %901 = vmatpush1.bf16.msra.mxu0 0
      %902 = vmatprep.subr.bf16.mxu0 0
      %903 = vmatpush1.bf16.msra.mxu0 0
      %904 = vmatprep.subr.bf16.mxu0 0
      %905 = vmatpush1.bf16.msra.mxu0 %v885
      %906 = vmatprep.subr.bf16.mxu0 0
      %907 = vmatpush2.bf16.msra.mxu0 0
      %908 = vmatprep.subr.bf16.mxu0 0
      %909 = vmatpush2.bf16.msra.mxu0 0
      %910 = vmatprep.subr.bf16.mxu0 0
      %911 = vmatpush2.bf16.msra.mxu0 0
      %912 = vmatprep.subr.bf16.mxu0 0
      %913 = vmatpush2.bf16.msra.mxu0 0
      %914 = vmatprep.subr.bf16.mxu0 0
      %915 = vmatpush2.bf16.msra.mxu0 0
      %916 = vmatprep.subr.bf16.mxu0 0
      %917 = vmatpush2.bf16.msra.mxu0 0
      %918 = vmatprep.subr.bf16.mxu0 0
      %919 = vmatpush2.bf16.msra.mxu0 0
      %920 = vmatprep.subr.bf16.mxu0 0
      %921 = vmatpush2.bf16.msra.mxu0 0
      %922 = vmatprep.mubr.bf16.mxu0 0
      %923 = vmatmul.mubr.bf16.gmra.mxu0 %v888
      %v924 = vpop.f32.mrf.mxu0
      %v925 = vadd.f32 0.0, %v924
      %v926 = vpop.f32.mrf.mxu0
      %v927 = vpop.f32.mrf.mxu0
      %v928 = vadd.f32 0.0, %v927
      %v929 = vpop.f32.mrf.mxu0
      %930 = vdwg.mxu0
      %931 = vrot.lane.b32.xlu0 %v587, 64
      %v932 = vpop.permute.xlu0 %931
      %v935 = vsel %vm791, %v881, 0
      %937 = vmatprep.subr.bf16.mxu0 0
      %938 = vmatpush1.bf16.msra.mxu0 0
      %939 = vmatprep.subr.bf16.mxu0 0
      %940 = vmatpush1.bf16.msra.mxu0 0
      %941 = vmatprep.subr.bf16.mxu0 0
      %942 = vmatpush1.bf16.msra.mxu0 0
      %943 = vmatprep.subr.bf16.mxu0 0
      %944 = vmatpush1.bf16.msra.mxu0 0
      %945 = vmatprep.subr.bf16.mxu0 0
      %946 = vmatpush1.bf16.msra.mxu0 0
      %947 = vmatprep.subr.bf16.mxu0 0
      %948 = vmatpush1.bf16.msra.mxu0 0
      %949 = vmatprep.subr.bf16.mxu0 0
      %950 = vmatpush1.bf16.msra.mxu0 0
      %951 = vmatprep.subr.bf16.mxu0 0
      %952 = vmatpush1.bf16.msra.mxu0 %v932
      %953 = vmatprep.subr.bf16.mxu0 0
      %954 = vmatpush2.bf16.msra.mxu0 0
      %955 = vmatprep.subr.bf16.mxu0 0
      %956 = vmatpush2.bf16.msra.mxu0 0
      %957 = vmatprep.subr.bf16.mxu0 0
      %958 = vmatpush2.bf16.msra.mxu0 0
      %959 = vmatprep.subr.bf16.mxu0 0
      %960 = vmatpush2.bf16.msra.mxu0 0
      %961 = vmatprep.subr.bf16.mxu0 0
      %962 = vmatpush2.bf16.msra.mxu0 0
      %963 = vmatprep.subr.bf16.mxu0 0
      %964 = vmatpush2.bf16.msra.mxu0 0
      %965 = vmatprep.subr.bf16.mxu0 0
      %966 = vmatpush2.bf16.msra.mxu0 0
      %967 = vmatprep.subr.bf16.mxu0 0
      %968 = vmatpush2.bf16.msra.mxu0 0
      %969 = vmatprep.mubr.bf16.mxu0 0
      %970 = vmatmul.mubr.bf16.gmra.mxu0 %v935
      %v971 = vpop.f32.mrf.mxu0
      %v972 = vadd.f32 0.0, %v971
      %v973 = vpop.f32.mrf.mxu0
      %v974 = vpop.f32.mrf.mxu0
      %v975 = vadd.f32 0.0, %v974
      %v976 = vpop.f32.mrf.mxu0
      %977 = vdwg.mxu0
      %978 = vrot.lane.b32.xlu0 %v588, 64
      %v979 = vpop.permute.xlu0 %978
      %v982 = vsel %vm791, %v882, 0
      %984 = vmatprep.subr.bf16.mxu0 0
      %985 = vmatpush1.bf16.msra.mxu0 0
      %986 = vmatprep.subr.bf16.mxu0 0
      %987 = vmatpush1.bf16.msra.mxu0 0
      %988 = vmatprep.subr.bf16.mxu0 0
      %989 = vmatpush1.bf16.msra.mxu0 0
      %990 = vmatprep.subr.bf16.mxu0 0
      %991 = vmatpush1.bf16.msra.mxu0 0
      %992 = vmatprep.subr.bf16.mxu0 0
      %993 = vmatpush1.bf16.msra.mxu0 0
      %994 = vmatprep.subr.bf16.mxu0 0
      %995 = vmatpush1.bf16.msra.mxu0 0
      %996 = vmatprep.subr.bf16.mxu0 0
      %997 = vmatpush1.bf16.msra.mxu0 0
      %998 = vmatprep.subr.bf16.mxu0 0
      %999 = vmatpush1.bf16.msra.mxu0 %v979
      %1000 = vmatprep.subr.bf16.mxu0 0
      %1001 = vmatpush2.bf16.msra.mxu0 0
      %1002 = vmatprep.subr.bf16.mxu0 0
      %1003 = vmatpush2.bf16.msra.mxu0 0
      %1004 = vmatprep.subr.bf16.mxu0 0
      %1005 = vmatpush2.bf16.msra.mxu0 0
      %1006 = vmatprep.subr.bf16.mxu0 0
      %1007 = vmatpush2.bf16.msra.mxu0 0
      %1008 = vmatprep.subr.bf16.mxu0 0
      %1009 = vmatpush2.bf16.msra.mxu0 0
      %1010 = vmatprep.subr.bf16.mxu0 0
      %1011 = vmatpush2.bf16.msra.mxu0 0
      %1012 = vmatprep.subr.bf16.mxu0 0
      %1013 = vmatpush2.bf16.msra.mxu0 0
      %1014 = vmatprep.subr.bf16.mxu0 0
      %1015 = vmatpush2.bf16.msra.mxu0 0
      %1016 = vmatprep.mubr.bf16.mxu0 0
      %1017 = vmatmul.mubr.bf16.gmra.mxu0 %v982
      %v1018 = vpop.f32.mrf.mxu0
      %v1019 = vadd.f32 0.0, %v1018
      %v1020 = vpop.f32.mrf.mxu0
      %v1021 = vpop.f32.mrf.mxu0
      %v1022 = vadd.f32 0.0, %v1021
      %v1023 = vpop.f32.mrf.mxu0
      %1024 = vdwg.mxu0
      %1025 = vrot.lane.b32.xlu0 %v589, 64
      %v1026 = vpop.permute.xlu0 %1025
      %v1029 = vsel %vm791, %v883, 0
      %1031 = vmatprep.subr.bf16.mxu0 0
      %1032 = vmatpush1.bf16.msra.mxu0 0
      %1033 = vmatprep.subr.bf16.mxu0 0
      %1034 = vmatpush1.bf16.msra.mxu0 0
      %1035 = vmatprep.subr.bf16.mxu0 0
      %1036 = vmatpush1.bf16.msra.mxu0 0
      %1037 = vmatprep.subr.bf16.mxu0 0
      %1038 = vmatpush1.bf16.msra.mxu0 0
      %1039 = vmatprep.subr.bf16.mxu0 0
      %1040 = vmatpush1.bf16.msra.mxu0 0
      %1041 = vmatprep.subr.bf16.mxu0 0
      %1042 = vmatpush1.bf16.msra.mxu0 0
      %1043 = vmatprep.subr.bf16.mxu0 0
      %1044 = vmatpush1.bf16.msra.mxu0 0
      %1045 = vmatprep.subr.bf16.mxu0 0
      %1046 = vmatpush1.bf16.msra.mxu0 %v1026
      %1047 = vmatprep.subr.bf16.mxu0 0
      %1048 = vmatpush2.bf16.msra.mxu0 0
      %1049 = vmatprep.subr.bf16.mxu0 0
      %1050 = vmatpush2.bf16.msra.mxu0 0
      %1051 = vmatprep.subr.bf16.mxu0 0
      %1052 = vmatpush2.bf16.msra.mxu0 0
      %1053 = vmatprep.subr.bf16.mxu0 0
      %1054 = vmatpush2.bf16.msra.mxu0 0
      %1055 = vmatprep.subr.bf16.mxu0 0
      %1056 = vmatpush2.bf16.msra.mxu0 0
      %1057 = vmatprep.subr.bf16.mxu0 0
      %1058 = vmatpush2.bf16.msra.mxu0 0
      %1059 = vmatprep.subr.bf16.mxu0 0
      %1060 = vmatpush2.bf16.msra.mxu0 0
      %1061 = vmatprep.subr.bf16.mxu0 0
      %1062 = vmatpush2.bf16.msra.mxu0 0
      %1063 = vmatprep.mubr.bf16.mxu0 0
      %1064 = vmatmul.mubr.bf16.gmra.mxu0 %v1029
      %v1065 = vpop.f32.mrf.mxu0
      %v1066 = vadd.f32 0.0, %v1065
      %v1067 = vpop.f32.mrf.mxu0
      %v1068 = vpop.f32.mrf.mxu0
      %v1069 = vadd.f32 0.0, %v1068
      %v1070 = vpop.f32.mrf.mxu0
      %1071 = vdwg.mxu0
      %v1072 = vpack.c.bf16 %v928, %v925
      %v1073 = vpack.c.bf16 %v975, %v972
      %v1074 = vpack.c.bf16 %v1022, %v1019
      %v1075 = vpack.c.bf16 %v1069, %v1066
      %v1076 = vld [vmem:[%s6] sm:$0xf]
      %v1078 = vsel %vm593, %v1072, 0
      %v1081 = vsel %vm593, %v1073, 0
      %v1084 = vsel %vm593, %v1074, 0
      %v1087 = vsel %vm593, %v1075, 0
      %vm1089 = vcmask 1043456
      %v1091 = vsel %vm1089, %v1076, 0
      %1093 = vmatprep.subr.bf16.mxu0 0
      %1094 = vmatpush1.bf16.msra.mxu0 0
      %1095 = vmatprep.subr.bf16.mxu0 0
      %1096 = vmatpush1.bf16.msra.mxu0 0
      %1097 = vmatprep.subr.bf16.mxu0 0
      %1098 = vmatpush1.bf16.msra.mxu0 0
      %1099 = vmatprep.subr.bf16.mxu0 0
      %1100 = vmatpush1.bf16.msra.mxu0 0
      %1101 = vmatprep.subr.bf16.mxu0 0
      %1102 = vmatpush1.bf16.msra.mxu0 0
      %1103 = vmatprep.subr.bf16.mxu0 0
      %1104 = vmatpush1.bf16.msra.mxu0 0
      %1105 = vmatprep.subr.bf16.mxu0 0
      %1106 = vmatpush1.bf16.msra.mxu0 0
      %1107 = vmatprep.subr.bf16.mxu0 0
      %1108 = vmatpush1.bf16.msra.mxu0 %v1091
      %1109 = vmatprep.subr.bf16.mxu0 0
      %1110 = vmatpush2.bf16.msra.mxu0 0
      %1111 = vmatprep.subr.bf16.mxu0 0
      %1112 = vmatpush2.bf16.msra.mxu0 0
      %1113 = vmatprep.subr.bf16.mxu0 0
      %1114 = vmatpush2.bf16.msra.mxu0 0
      %1115 = vmatprep.subr.bf16.mxu0 0
      %1116 = vmatpush2.bf16.msra.mxu0 0
      %1117 = vmatprep.subr.bf16.mxu0 0
      %1118 = vmatpush2.bf16.msra.mxu0 0
      %1119 = vmatprep.subr.bf16.mxu0 0
      %1120 = vmatpush2.bf16.msra.mxu0 0
      %1121 = vmatprep.subr.bf16.mxu0 0
      %1122 = vmatpush2.bf16.msra.mxu0 0
      %1123 = vmatprep.subr.bf16.mxu0 0
      %1124 = vmatpush2.bf16.msra.mxu0 0
      %1125 = vmatprep.mubr.bf16.mxu0 0
      %1126 = vmatmul.mubr.bf16.gmra.mxu0 %v1078
      %v1127 = vpop.f32.mrf.mxu0
      %v1128 = vadd.f32 0.0, %v1127
      %v1129 = vpop.f32.mrf.mxu0
      %v1130 = vpop.f32.mrf.mxu0
      %v1131 = vadd.f32 0.0, %v1130
      %v1132 = vpop.f32.mrf.mxu0
      %1133 = vmatprep.mubr.bf16.mxu0 0
      %1134 = vmatmul.mubr.bf16.gmra.mxu0 %v1081
      %v1135 = vpop.f32.mrf.mxu0
      %v1136 = vadd.f32 0.0, %v1135
      %v1137 = vpop.f32.mrf.mxu0
      %v1138 = vpop.f32.mrf.mxu0
      %v1139 = vadd.f32 0.0, %v1138
      %v1140 = vpop.f32.mrf.mxu0
      %1141 = vmatprep.mubr.bf16.mxu0 0
      %1142 = vmatmul.mubr.bf16.gmra.mxu0 %v1084
      %v1143 = vpop.f32.mrf.mxu0
      %v1144 = vadd.f32 0.0, %v1143
      %v1145 = vpop.f32.mrf.mxu0
      %v1146 = vpop.f32.mrf.mxu0
      %v1147 = vadd.f32 0.0, %v1146
      %v1148 = vpop.f32.mrf.mxu0
      %1149 = vmatprep.mubr.bf16.mxu0 0
      %1150 = vmatmul.mubr.bf16.gmra.mxu0 %v1087
      %v1151 = vpop.f32.mrf.mxu0
      %v1152 = vadd.f32 0.0, %v1151
      %v1153 = vpop.f32.mrf.mxu0
      %v1154 = vpop.f32.mrf.mxu0
      %v1155 = vadd.f32 0.0, %v1154
      %v1156 = vpop.f32.mrf.mxu0
      %1157 = vdwg.mxu0
      %v1158 = vadd.f32 %v578, %v1128
      %v1159 = vadd.f32 %v579, %v1131
      %v1160 = vadd.f32 %v580, %v1136
      %v1161 = vadd.f32 %v581, %v1139
      %v1162 = vadd.f32 %v582, %v1144
      %v1163 = vadd.f32 %v583, %v1147
      %v1164 = vadd.f32 %v584, %v1152
      %v1165 = vadd.f32 %v585, %v1155
      %1166 = vrot.lane.b32.xlu0 %v586, 120
      %v1167 = vpop.permute.xlu0 %1166
      %1168 = vrot.lane.b32.xlu0 %v586, 88
      %v1169 = vpop.permute.xlu0 %1168
      %v1171 = vsel %vm593, %v1167, 0
      %v1174 = vsel %vm593, %v1169, 0
      %1176 = vmatprep.subr.bf16.mxu0 0
      %1177 = vmatpush1.bf16.xpose.msra.mxu0 0
      %1178 = vmatprep.subr.bf16.mxu0 0
      %1179 = vmatpush1.bf16.xpose.msra.mxu0 0
      %1180 = vmatprep.subr.bf16.mxu0 0
      %1181 = vmatpush1.bf16.xpose.msra.mxu0 0
      %1182 = vmatprep.subr.bf16.mxu0 0
      %1183 = vmatpush1.bf16.xpose.msra.mxu0 0
      %1184 = vmatprep.subr.bf16.mxu0 0
      %1185 = vmatpush1.bf16.xpose.msra.mxu0 0
      %1186 = vmatprep.subr.bf16.mxu0 0
      %1187 = vmatpush1.bf16.xpose.msra.mxu0 0
      %1188 = vmatprep.subr.bf16.mxu0 0
      %1189 = vmatpush1.bf16.xpose.msra.mxu0 0
      %1190 = vmatprep.subr.bf16.mxu0 0
      %1191 = vmatpush1.bf16.xpose.msra.mxu0 %v1174
      %1192 = vmatprep.subr.bf16.mxu0 0
      %1193 = vmatpush2.bf16.xpose.msra.mxu0 0
      %1194 = vmatprep.subr.bf16.mxu0 0
      %1195 = vmatpush2.bf16.xpose.msra.mxu0 0
      %1196 = vmatprep.subr.bf16.mxu0 0
      %1197 = vmatpush2.bf16.xpose.msra.mxu0 0
      %1198 = vmatprep.subr.bf16.mxu0 0
      %1199 = vmatpush2.bf16.xpose.msra.mxu0 0
      %1200 = vmatprep.subr.bf16.mxu0 0
      %1201 = vmatpush2.bf16.xpose.msra.mxu0 0
      %1202 = vmatprep.subr.bf16.mxu0 0
      %1203 = vmatpush2.bf16.xpose.msra.mxu0 0
      %1204 = vmatprep.subr.bf16.mxu0 0
      %1205 = vmatpush2.bf16.xpose.msra.mxu0 0
      %1206 = vmatprep.subr.bf16.mxu0 0
      %1207 = vmatpush2.bf16.xpose.msra.mxu0 0
      %1208 = vmatprep.mubr.bf16.mxu0 0
      %1209 = vmatmul.mubr.bf16.gmra.mxu0 %v1171
      %v1210 = vpop.f32.mrf.mxu0
      %v1211 = vadd.f32 %v565, %v1210
      %v1212 = vpop.f32.mrf.mxu0
      %v1213 = vpop.f32.mrf.mxu0
      %v1214 = vadd.f32 %v566, %v1213
      %v1215 = vpop.f32.mrf.mxu0
      %1216 = vdwg.mxu0
      %1217 = vrot.lane.b32.xlu0 %v587, 120
      %v1218 = vpop.permute.xlu0 %1217
      %1219 = vrot.lane.b32.xlu0 %v587, 88
      %v1220 = vpop.permute.xlu0 %1219
      %v1222 = vsel %vm593, %v1218, 0
      %v1225 = vsel %vm593, %v1220, 0
      %1227 = vmatprep.subr.bf16.mxu0 0
      %1228 = vmatpush1.bf16.xpose.msra.mxu0 0
      %1229 = vmatprep.subr.bf16.mxu0 0
      %1230 = vmatpush1.bf16.xpose.msra.mxu0 0
      %1231 = vmatprep.subr.bf16.mxu0 0
      %1232 = vmatpush1.bf16.xpose.msra.mxu0 0
      %1233 = vmatprep.subr.bf16.mxu0 0
      %1234 = vmatpush1.bf16.xpose.msra.mxu0 0
      %1235 = vmatprep.subr.bf16.mxu0 0
      %1236 = vmatpush1.bf16.xpose.msra.mxu0 0
      %1237 = vmatprep.subr.bf16.mxu0 0
      %1238 = vmatpush1.bf16.xpose.msra.mxu0 0
      %1239 = vmatprep.subr.bf16.mxu0 0
      %1240 = vmatpush1.bf16.xpose.msra.mxu0 0
      %1241 = vmatprep.subr.bf16.mxu0 0
      %1242 = vmatpush1.bf16.xpose.msra.mxu0 %v1225
      %1243 = vmatprep.subr.bf16.mxu0 0
      %1244 = vmatpush2.bf16.xpose.msra.mxu0 0
      %1245 = vmatprep.subr.bf16.mxu0 0
      %1246 = vmatpush2.bf16.xpose.msra.mxu0 0
      %1247 = vmatprep.subr.bf16.mxu0 0
      %1248 = vmatpush2.bf16.xpose.msra.mxu0 0
      %1249 = vmatprep.subr.bf16.mxu0 0
      %1250 = vmatpush2.bf16.xpose.msra.mxu0 0
      %1251 = vmatprep.subr.bf16.mxu0 0
      %1252 = vmatpush2.bf16.xpose.msra.mxu0 0
      %1253 = vmatprep.subr.bf16.mxu0 0
      %1254 = vmatpush2.bf16.xpose.msra.mxu0 0
      %1255 = vmatprep.subr.bf16.mxu0 0
      %1256 = vmatpush2.bf16.xpose.msra.mxu0 0
      %1257 = vmatprep.subr.bf16.mxu0 0
      %1258 = vmatpush2.bf16.xpose.msra.mxu0 0
      %1259 = vmatprep.mubr.bf16.mxu0 0
      %1260 = vmatmul.mubr.bf16.gmra.mxu0 %v1222
      %v1261 = vpop.f32.mrf.mxu0
      %v1262 = vadd.f32 %v565, %v1261
      %v1263 = vpop.f32.mrf.mxu0
      %v1264 = vpop.f32.mrf.mxu0
      %v1265 = vadd.f32 %v566, %v1264
      %v1266 = vpop.f32.mrf.mxu0
      %1267 = vdwg.mxu0
      %1268 = vrot.lane.b32.xlu0 %v588, 120
      %v1269 = vpop.permute.xlu0 %1268
      %1270 = vrot.lane.b32.xlu0 %v588, 88
      %v1271 = vpop.permute.xlu0 %1270
      %v1273 = vsel %vm593, %v1269, 0
      %v1276 = vsel %vm593, %v1271, 0
      %1278 = vmatprep.subr.bf16.mxu0 0
      %1279 = vmatpush1.bf16.xpose.msra.mxu0 0
      %1280 = vmatprep.subr.bf16.mxu0 0
      %1281 = vmatpush1.bf16.xpose.msra.mxu0 0
      %1282 = vmatprep.subr.bf16.mxu0 0
      %1283 = vmatpush1.bf16.xpose.msra.mxu0 0
      %1284 = vmatprep.subr.bf16.mxu0 0
      %1285 = vmatpush1.bf16.xpose.msra.mxu0 0
      %1286 = vmatprep.subr.bf16.mxu0 0
      %1287 = vmatpush1.bf16.xpose.msra.mxu0 0
      %1288 = vmatprep.subr.bf16.mxu0 0
      %1289 = vmatpush1.bf16.xpose.msra.mxu0 0
      %1290 = vmatprep.subr.bf16.mxu0 0
      %1291 = vmatpush1.bf16.xpose.msra.mxu0 0
      %1292 = vmatprep.subr.bf16.mxu0 0
      %1293 = vmatpush1.bf16.xpose.msra.mxu0 %v1276
      %1294 = vmatprep.subr.bf16.mxu0 0
      %1295 = vmatpush2.bf16.xpose.msra.mxu0 0
      %1296 = vmatprep.subr.bf16.mxu0 0
      %1297 = vmatpush2.bf16.xpose.msra.mxu0 0
      %1298 = vmatprep.subr.bf16.mxu0 0
      %1299 = vmatpush2.bf16.xpose.msra.mxu0 0
      %1300 = vmatprep.subr.bf16.mxu0 0
      %1301 = vmatpush2.bf16.xpose.msra.mxu0 0
      %1302 = vmatprep.subr.bf16.mxu0 0
      %1303 = vmatpush2.bf16.xpose.msra.mxu0 0
      %1304 = vmatprep.subr.bf16.mxu0 0
      %1305 = vmatpush2.bf16.xpose.msra.mxu0 0
      %1306 = vmatprep.subr.bf16.mxu0 0
      %1307 = vmatpush2.bf16.xpose.msra.mxu0 0
      %1308 = vmatprep.subr.bf16.mxu0 0
      %1309 = vmatpush2.bf16.xpose.msra.mxu0 0
      %1310 = vmatprep.mubr.bf16.mxu0 0
      %1311 = vmatmul.mubr.bf16.gmra.mxu0 %v1273
      %v1312 = vpop.f32.mrf.mxu0
      %v1313 = vadd.f32 %v565, %v1312
      %v1314 = vpop.f32.mrf.mxu0
      %v1315 = vpop.f32.mrf.mxu0
      %v1316 = vadd.f32 %v566, %v1315
      %v1317 = vpop.f32.mrf.mxu0
      %1318 = vdwg.mxu0
      %1319 = vrot.lane.b32.xlu0 %v589, 120
      %v1320 = vpop.permute.xlu0 %1319
      %1321 = vrot.lane.b32.xlu0 %v589, 88
      %v1322 = vpop.permute.xlu0 %1321
      %v1324 = vsel %vm593, %v1320, 0
      %v1327 = vsel %vm593, %v1322, 0
      %1329 = vmatprep.subr.bf16.mxu0 0
      %1330 = vmatpush1.bf16.xpose.msra.mxu0 0
      %1331 = vmatprep.subr.bf16.mxu0 0
      %1332 = vmatpush1.bf16.xpose.msra.mxu0 0
      %1333 = vmatprep.subr.bf16.mxu0 0
      %1334 = vmatpush1.bf16.xpose.msra.mxu0 0
      %1335 = vmatprep.subr.bf16.mxu0 0
      %1336 = vmatpush1.bf16.xpose.msra.mxu0 0
      %1337 = vmatprep.subr.bf16.mxu0 0
      %1338 = vmatpush1.bf16.xpose.msra.mxu0 0
      %1339 = vmatprep.subr.bf16.mxu0 0
      %1340 = vmatpush1.bf16.xpose.msra.mxu0 0
      %1341 = vmatprep.subr.bf16.mxu0 0
      %1342 = vmatpush1.bf16.xpose.msra.mxu0 0
      %1343 = vmatprep.subr.bf16.mxu0 0
      %1344 = vmatpush1.bf16.xpose.msra.mxu0 %v1327
      %1345 = vmatprep.subr.bf16.mxu0 0
      %1346 = vmatpush2.bf16.xpose.msra.mxu0 0
      %1347 = vmatprep.subr.bf16.mxu0 0
      %1348 = vmatpush2.bf16.xpose.msra.mxu0 0
      %1349 = vmatprep.subr.bf16.mxu0 0
      %1350 = vmatpush2.bf16.xpose.msra.mxu0 0
      %1351 = vmatprep.subr.bf16.mxu0 0
      %1352 = vmatpush2.bf16.xpose.msra.mxu0 0
      %1353 = vmatprep.subr.bf16.mxu0 0
      %1354 = vmatpush2.bf16.xpose.msra.mxu0 0
      %1355 = vmatprep.subr.bf16.mxu0 0
      %1356 = vmatpush2.bf16.xpose.msra.mxu0 0
      %1357 = vmatprep.subr.bf16.mxu0 0
      %1358 = vmatpush2.bf16.xpose.msra.mxu0 0
      %1359 = vmatprep.subr.bf16.mxu0 0
      %1360 = vmatpush2.bf16.xpose.msra.mxu0 0
      %1361 = vmatprep.mubr.bf16.mxu0 0
      %1362 = vmatmul.mubr.bf16.gmra.mxu0 %v1324
      %v1363 = vpop.f32.mrf.mxu0
      %v1364 = vadd.f32 %v565, %v1363
      %v1365 = vpop.f32.mrf.mxu0
      %v1366 = vpop.f32.mrf.mxu0
      %v1367 = vadd.f32 %v566, %v1366
      %v1368 = vpop.f32.mrf.mxu0
      %1369 = vdwg.mxu0
      %v1370 = vsel %vm791, %v1211, -inf
      %1371 = vmax.xlane.f32.xlu0 %v1370
      %v1372 = vpop.xlane.xlu0 %1371
      %v1373 = vsel %vm791, %v1214, -inf
      %1374 = vmax.xlane.f32.xlu0 %v1373
      %v1375 = vpop.xlane.xlu0 %1374
      %v1376 = vsel %vm791, %v1262, -inf
      %1377 = vmax.xlane.f32.xlu0 %v1376
      %v1378 = vpop.xlane.xlu0 %1377
      %v1379 = vsel %vm791, %v1265, -inf
      %1380 = vmax.xlane.f32.xlu0 %v1379
      %v1381 = vpop.xlane.xlu0 %1380
      %v1382 = vsel %vm791, %v1313, -inf
      %1383 = vmax.xlane.f32.xlu0 %v1382
      %v1384 = vpop.xlane.xlu0 %1383
      %v1385 = vsel %vm791, %v1316, -inf
      %1386 = vmax.xlane.f32.xlu0 %v1385
      %v1387 = vpop.xlane.xlu0 %1386
      %v1388 = vsel %vm791, %v1364, -inf
      %1389 = vmax.xlane.f32.xlu0 %v1388
      %v1390 = vpop.xlane.xlu0 %1389
      %v1391 = vsel %vm791, %v1367, -inf
      %1392 = vmax.xlane.f32.xlu0 %v1391
      %v1393 = vpop.xlane.xlu0 %1392
      %v1394 = vsub.f32 %v1211, %v1372
      %v1395 = vsub.f32 %v1214, %v1375
      %v1396 = vsub.f32 %v1262, %v1378
      %v1397 = vsub.f32 %v1265, %v1381
      %v1398 = vsub.f32 %v1313, %v1384
      %v1399 = vsub.f32 %v1316, %v1387
      %v1400 = vsub.f32 %v1364, %v1390
      %v1401 = vsub.f32 %v1367, %v1393
      %v1402 = vmul.f32 %v1394, 1.442695
      %v1403 = vpow.pop %v1402
      %v1404 = vmul.f32 %v1395, 1.442695
      %v1405 = vpow.pop %v1404
      %v1406 = vmul.f32 %v1396, 1.442695
      %v1407 = vpow.pop %v1406
      %v1408 = vmul.f32 %v1397, 1.442695
      %v1409 = vpow.pop %v1408
      %v1410 = vmul.f32 %v1398, 1.442695
      %v1411 = vpow.pop %v1410
      %v1412 = vmul.f32 %v1399, 1.442695
      %v1413 = vpow.pop %v1412
      %v1414 = vmul.f32 %v1400, 1.442695
      %v1415 = vpow.pop %v1414
      %v1416 = vmul.f32 %v1401, 1.442695
      %v1417 = vpow.pop %v1416
      %v1418 = vsel %vm791, %v1403, 0.0
      %1419 = vadd.xlane.f32.xlu0 %v1418
      %v1420 = vpop.xlane.xlu0 %1419
      %v1421 = vsel %vm791, %v1405, 0.0
      %1422 = vadd.xlane.f32.xlu0 %v1421
      %v1423 = vpop.xlane.xlu0 %1422
      %v1424 = vsel %vm791, %v1407, 0.0
      %1425 = vadd.xlane.f32.xlu0 %v1424
      %v1426 = vpop.xlane.xlu0 %1425
      %v1427 = vsel %vm791, %v1409, 0.0
      %1428 = vadd.xlane.f32.xlu0 %v1427
      %v1429 = vpop.xlane.xlu0 %1428
      %v1430 = vsel %vm791, %v1411, 0.0
      %1431 = vadd.xlane.f32.xlu0 %v1430
      %v1432 = vpop.xlane.xlu0 %1431
      %v1433 = vsel %vm791, %v1413, 0.0
      %1434 = vadd.xlane.f32.xlu0 %v1433
      %v1435 = vpop.xlane.xlu0 %1434
      %v1436 = vsel %vm791, %v1415, 0.0
      %1437 = vadd.xlane.f32.xlu0 %v1436
      %v1438 = vpop.xlane.xlu0 %1437
      %v1439 = vsel %vm791, %v1417, 0.0
      %1440 = vadd.xlane.f32.xlu0 %v1439
      %v1441 = vpop.xlane.xlu0 %1440
      %v1442 = vrcp.pop %v1420
      %v1443 = vrcp.pop %v1423
      %v1444 = vrcp.pop %v1426
      %v1445 = vrcp.pop %v1429
      %v1446 = vrcp.pop %v1432
      %v1447 = vrcp.pop %v1435
      %v1448 = vrcp.pop %v1438
      %v1449 = vrcp.pop %v1441
      %v1450 = vmul.f32 %v1403, %v1442
      %v1451 = vmul.f32 %v1405, %v1443
      %v1452 = vmul.f32 %v1407, %v1444
      %v1453 = vmul.f32 %v1409, %v1445
      %v1454 = vmul.f32 %v1411, %v1446
      %v1455 = vmul.f32 %v1413, %v1447
      %v1456 = vmul.f32 %v1415, %v1448
      %v1457 = vmul.f32 %v1417, %v1449
      %v1458 = vpack.c.bf16 %v1451, %v1450
      %v1459 = vpack.c.bf16 %v1453, %v1452
      %v1460 = vpack.c.bf16 %v1455, %v1454
      %v1461 = vpack.c.bf16 %v1457, %v1456
      %1462 = vrot.lane.b32.xlu0 %v586, 56
      %v1463 = vpop.permute.xlu0 %1462
      %v1466 = vsel %vm791, %v1458, 0
      %1468 = vmatprep.subr.bf16.mxu0 0
      %1469 = vmatpush1.bf16.msra.mxu0 0
      %1470 = vmatprep.subr.bf16.mxu0 0
      %1471 = vmatpush1.bf16.msra.mxu0 0
      %1472 = vmatprep.subr.bf16.mxu0 0
      %1473 = vmatpush1.bf16.msra.mxu0 0
      %1474 = vmatprep.subr.bf16.mxu0 0
      %1475 = vmatpush1.bf16.msra.mxu0 0
      %1476 = vmatprep.subr.bf16.mxu0 0
      %1477 = vmatpush1.bf16.msra.mxu0 0
      %1478 = vmatprep.subr.bf16.mxu0 0
      %1479 = vmatpush1.bf16.msra.mxu0 0
      %1480 = vmatprep.subr.bf16.mxu0 0
      %1481 = vmatpush1.bf16.msra.mxu0 0
      %1482 = vmatprep.subr.bf16.mxu0 0
      %1483 = vmatpush1.bf16.msra.mxu0 %v1463
      %1484 = vmatprep.subr.bf16.mxu0 0
      %1485 = vmatpush2.bf16.msra.mxu0 0
      %1486 = vmatprep.subr.bf16.mxu0 0
      %1487 = vmatpush2.bf16.msra.mxu0 0
      %1488 = vmatprep.subr.bf16.mxu0 0
      %1489 = vmatpush2.bf16.msra.mxu0 0
      %1490 = vmatprep.subr.bf16.mxu0 0
      %1491 = vmatpush2.bf16.msra.mxu0 0
      %1492 = vmatprep.subr.bf16.mxu0 0
      %1493 = vmatpush2.bf16.msra.mxu0 0
      %1494 = vmatprep.subr.bf16.mxu0 0
      %1495 = vmatpush2.bf16.msra.mxu0 0
      %1496 = vmatprep.subr.bf16.mxu0 0
      %1497 = vmatpush2.bf16.msra.mxu0 0
      %1498 = vmatprep.subr.bf16.mxu0 0
      %1499 = vmatpush2.bf16.msra.mxu0 0
      %1500 = vmatprep.mubr.bf16.mxu0 0
      %1501 = vmatmul.mubr.bf16.gmra.mxu0 %v1466
      %v1502 = vpop.f32.mrf.mxu0
      %v1503 = vadd.f32 0.0, %v1502
      %v1504 = vpop.f32.mrf.mxu0
      %v1505 = vpop.f32.mrf.mxu0
      %v1506 = vadd.f32 0.0, %v1505
      %v1507 = vpop.f32.mrf.mxu0
      %1508 = vdwg.mxu0
      %1509 = vrot.lane.b32.xlu0 %v587, 56
      %v1510 = vpop.permute.xlu0 %1509
      %v1513 = vsel %vm791, %v1459, 0
      %1515 = vmatprep.subr.bf16.mxu0 0
      %1516 = vmatpush1.bf16.msra.mxu0 0
      %1517 = vmatprep.subr.bf16.mxu0 0
      %1518 = vmatpush1.bf16.msra.mxu0 0
      %1519 = vmatprep.subr.bf16.mxu0 0
      %1520 = vmatpush1.bf16.msra.mxu0 0
      %1521 = vmatprep.subr.bf16.mxu0 0
      %1522 = vmatpush1.bf16.msra.mxu0 0
      %1523 = vmatprep.subr.bf16.mxu0 0
      %1524 = vmatpush1.bf16.msra.mxu0 0
      %1525 = vmatprep.subr.bf16.mxu0 0
      %1526 = vmatpush1.bf16.msra.mxu0 0
      %1527 = vmatprep.subr.bf16.mxu0 0
      %1528 = vmatpush1.bf16.msra.mxu0 0
      %1529 = vmatprep.subr.bf16.mxu0 0
      %1530 = vmatpush1.bf16.msra.mxu0 %v1510
      %1531 = vmatprep.subr.bf16.mxu0 0
      %1532 = vmatpush2.bf16.msra.mxu0 0
      %1533 = vmatprep.subr.bf16.mxu0 0
      %1534 = vmatpush2.bf16.msra.mxu0 0
      %1535 = vmatprep.subr.bf16.mxu0 0
      %1536 = vmatpush2.bf16.msra.mxu0 0
      %1537 = vmatprep.subr.bf16.mxu0 0
      %1538 = vmatpush2.bf16.msra.mxu0 0
      %1539 = vmatprep.subr.bf16.mxu0 0
      %1540 = vmatpush2.bf16.msra.mxu0 0
      %1541 = vmatprep.subr.bf16.mxu0 0
      %1542 = vmatpush2.bf16.msra.mxu0 0
      %1543 = vmatprep.subr.bf16.mxu0 0
      %1544 = vmatpush2.bf16.msra.mxu0 0
      %1545 = vmatprep.subr.bf16.mxu0 0
      %1546 = vmatpush2.bf16.msra.mxu0 0
      %1547 = vmatprep.mubr.bf16.mxu0 0
      %1548 = vmatmul.mubr.bf16.gmra.mxu0 %v1513
      %v1549 = vpop.f32.mrf.mxu0
      %v1550 = vadd.f32 0.0, %v1549
      %v1551 = vpop.f32.mrf.mxu0
      %v1552 = vpop.f32.mrf.mxu0
      %v1553 = vadd.f32 0.0, %v1552
      %v1554 = vpop.f32.mrf.mxu0
      %1555 = vdwg.mxu0
      %1556 = vrot.lane.b32.xlu0 %v588, 56
      %v1557 = vpop.permute.xlu0 %1556
      %v1560 = vsel %vm791, %v1460, 0
      %1562 = vmatprep.subr.bf16.mxu0 0
      %1563 = vmatpush1.bf16.msra.mxu0 0
      %1564 = vmatprep.subr.bf16.mxu0 0
      %1565 = vmatpush1.bf16.msra.mxu0 0
      %1566 = vmatprep.subr.bf16.mxu0 0
      %1567 = vmatpush1.bf16.msra.mxu0 0
      %1568 = vmatprep.subr.bf16.mxu0 0
      %1569 = vmatpush1.bf16.msra.mxu0 0
      %1570 = vmatprep.subr.bf16.mxu0 0
      %1571 = vmatpush1.bf16.msra.mxu0 0
      %1572 = vmatprep.subr.bf16.mxu0 0
      %1573 = vmatpush1.bf16.msra.mxu0 0
      %1574 = vmatprep.subr.bf16.mxu0 0
      %1575 = vmatpush1.bf16.msra.mxu0 0
      %1576 = vmatprep.subr.bf16.mxu0 0
      %1577 = vmatpush1.bf16.msra.mxu0 %v1557
      %1578 = vmatprep.subr.bf16.mxu0 0
      %1579 = vmatpush2.bf16.msra.mxu0 0
      %1580 = vmatprep.subr.bf16.mxu0 0
      %1581 = vmatpush2.bf16.msra.mxu0 0
      %1582 = vmatprep.subr.bf16.mxu0 0
      %1583 = vmatpush2.bf16.msra.mxu0 0
      %1584 = vmatprep.subr.bf16.mxu0 0
      %1585 = vmatpush2.bf16.msra.mxu0 0
      %1586 = vmatprep.subr.bf16.mxu0 0
      %1587 = vmatpush2.bf16.msra.mxu0 0
      %1588 = vmatprep.subr.bf16.mxu0 0
      %1589 = vmatpush2.bf16.msra.mxu0 0
      %1590 = vmatprep.subr.bf16.mxu0 0
      %1591 = vmatpush2.bf16.msra.mxu0 0
      %1592 = vmatprep.subr.bf16.mxu0 0
      %1593 = vmatpush2.bf16.msra.mxu0 0
      %1594 = vmatprep.mubr.bf16.mxu0 0
      %1595 = vmatmul.mubr.bf16.gmra.mxu0 %v1560
      %v1596 = vpop.f32.mrf.mxu0
      %v1597 = vadd.f32 0.0, %v1596
      %v1598 = vpop.f32.mrf.mxu0
      %v1599 = vpop.f32.mrf.mxu0
      %v1600 = vadd.f32 0.0, %v1599
      %v1601 = vpop.f32.mrf.mxu0
      %1602 = vdwg.mxu0
      %1603 = vrot.lane.b32.xlu0 %v589, 56
      %v1604 = vpop.permute.xlu0 %1603
      %v1607 = vsel %vm791, %v1461, 0
      %1609 = vmatprep.subr.bf16.mxu0 0
      %1610 = vmatpush1.bf16.msra.mxu0 0
      %1611 = vmatprep.subr.bf16.mxu0 0
      %1612 = vmatpush1.bf16.msra.mxu0 0
      %1613 = vmatprep.subr.bf16.mxu0 0
      %1614 = vmatpush1.bf16.msra.mxu0 0
      %1615 = vmatprep.subr.bf16.mxu0 0
      %1616 = vmatpush1.bf16.msra.mxu0 0
      %1617 = vmatprep.subr.bf16.mxu0 0
      %1618 = vmatpush1.bf16.msra.mxu0 0
      %1619 = vmatprep.subr.bf16.mxu0 0
      %1620 = vmatpush1.bf16.msra.mxu0 0
      %1621 = vmatprep.subr.bf16.mxu0 0
      %1622 = vmatpush1.bf16.msra.mxu0 0
      %1623 = vmatprep.subr.bf16.mxu0 0
      %1624 = vmatpush1.bf16.msra.mxu0 %v1604
      %1625 = vmatprep.subr.bf16.mxu0 0
      %1626 = vmatpush2.bf16.msra.mxu0 0
      %1627 = vmatprep.subr.bf16.mxu0 0
      %1628 = vmatpush2.bf16.msra.mxu0 0
      %1629 = vmatprep.subr.bf16.mxu0 0
      %1630 = vmatpush2.bf16.msra.mxu0 0
      %1631 = vmatprep.subr.bf16.mxu0 0
      %1632 = vmatpush2.bf16.msra.mxu0 0
      %1633 = vmatprep.subr.bf16.mxu0 0
      %1634 = vmatpush2.bf16.msra.mxu0 0
      %1635 = vmatprep.subr.bf16.mxu0 0
      %1636 = vmatpush2.bf16.msra.mxu0 0
      %1637 = vmatprep.subr.bf16.mxu0 0
      %1638 = vmatpush2.bf16.msra.mxu0 0
      %1639 = vmatprep.subr.bf16.mxu0 0
      %1640 = vmatpush2.bf16.msra.mxu0 0
      %1641 = vmatprep.mubr.bf16.mxu0 0
      %1642 = vmatmul.mubr.bf16.gmra.mxu0 %v1607
      %v1643 = vpop.f32.mrf.mxu0
      %v1644 = vadd.f32 0.0, %v1643
      %v1645 = vpop.f32.mrf.mxu0
      %v1646 = vpop.f32.mrf.mxu0
      %v1647 = vadd.f32 0.0, %v1646
      %v1648 = vpop.f32.mrf.mxu0
      %1649 = vdwg.mxu0
      %v1650 = vpack.c.bf16 %v1506, %v1503
      %v1651 = vpack.c.bf16 %v1553, %v1550
      %v1652 = vpack.c.bf16 %v1600, %v1597
      %v1653 = vpack.c.bf16 %v1647, %v1644
      %s1654 = scalar_lea.vmem %s6, 4
      %v1655 = vld [vmem:[%s1654] sm:$0xf]
      %v1657 = vsel %vm593, %v1650, 0
      %v1660 = vsel %vm593, %v1651, 0
      %v1663 = vsel %vm593, %v1652, 0
      %v1666 = vsel %vm593, %v1653, 0
      %v1669 = vsel %vm1089, %v1655, 0
      %1671 = vmatprep.subr.bf16.mxu0 0
      %1672 = vmatpush1.bf16.msra.mxu0 0
      %1673 = vmatprep.subr.bf16.mxu0 0
      %1674 = vmatpush1.bf16.msra.mxu0 0
      %1675 = vmatprep.subr.bf16.mxu0 0
      %1676 = vmatpush1.bf16.msra.mxu0 0
      %1677 = vmatprep.subr.bf16.mxu0 0
      %1678 = vmatpush1.bf16.msra.mxu0 0
      %1679 = vmatprep.subr.bf16.mxu0 0
      %1680 = vmatpush1.bf16.msra.mxu0 0
      %1681 = vmatprep.subr.bf16.mxu0 0
      %1682 = vmatpush1.bf16.msra.mxu0 0
      %1683 = vmatprep.subr.bf16.mxu0 0
      %1684 = vmatpush1.bf16.msra.mxu0 0
      %1685 = vmatprep.subr.bf16.mxu0 0
      %1686 = vmatpush1.bf16.msra.mxu0 %v1669
      %1687 = vmatprep.subr.bf16.mxu0 0
      %1688 = vmatpush2.bf16.msra.mxu0 0
      %1689 = vmatprep.subr.bf16.mxu0 0
      %1690 = vmatpush2.bf16.msra.mxu0 0
      %1691 = vmatprep.subr.bf16.mxu0 0
      %1692 = vmatpush2.bf16.msra.mxu0 0
      %1693 = vmatprep.subr.bf16.mxu0 0
      %1694 = vmatpush2.bf16.msra.mxu0 0
      %1695 = vmatprep.subr.bf16.mxu0 0
      %1696 = vmatpush2.bf16.msra.mxu0 0
      %1697 = vmatprep.subr.bf16.mxu0 0
      %1698 = vmatpush2.bf16.msra.mxu0 0
      %1699 = vmatprep.subr.bf16.mxu0 0
      %1700 = vmatpush2.bf16.msra.mxu0 0
      %1701 = vmatprep.subr.bf16.mxu0 0
      %1702 = vmatpush2.bf16.msra.mxu0 0
      %1703 = vmatprep.mubr.bf16.mxu0 0
      %1704 = vmatmul.mubr.bf16.gmra.mxu0 %v1657
      %v1705 = vpop.f32.mrf.mxu0
      %v1706 = vadd.f32 0.0, %v1705
      %v1707 = vpop.f32.mrf.mxu0
      %v1708 = vpop.f32.mrf.mxu0
      %v1709 = vadd.f32 0.0, %v1708
      %v1710 = vpop.f32.mrf.mxu0
      %1711 = vmatprep.mubr.bf16.mxu0 0
      %1712 = vmatmul.mubr.bf16.gmra.mxu0 %v1660
      %v1713 = vpop.f32.mrf.mxu0
      %v1714 = vadd.f32 0.0, %v1713
      %v1715 = vpop.f32.mrf.mxu0
      %v1716 = vpop.f32.mrf.mxu0
      %v1717 = vadd.f32 0.0, %v1716
      %v1718 = vpop.f32.mrf.mxu0
      %1719 = vmatprep.mubr.bf16.mxu0 0
      %1720 = vmatmul.mubr.bf16.gmra.mxu0 %v1663
      %v1721 = vpop.f32.mrf.mxu0
      %v1722 = vadd.f32 0.0, %v1721
      %v1723 = vpop.f32.mrf.mxu0
      %v1724 = vpop.f32.mrf.mxu0
      %v1725 = vadd.f32 0.0, %v1724
      %v1726 = vpop.f32.mrf.mxu0
      %1727 = vmatprep.mubr.bf16.mxu0 0
      %1728 = vmatmul.mubr.bf16.gmra.mxu0 %v1666
      %v1729 = vpop.f32.mrf.mxu0
      %v1730 = vadd.f32 0.0, %v1729
      %v1731 = vpop.f32.mrf.mxu0
      %v1732 = vpop.f32.mrf.mxu0
      %v1733 = vadd.f32 0.0, %v1732
      %v1734 = vpop.f32.mrf.mxu0
      %1735 = vdwg.mxu0
      %v1736 = vadd.f32 %v1158, %v1706
      %v1737 = vadd.f32 %v1159, %v1709
      %v1738 = vadd.f32 %v1160, %v1714
      %v1739 = vadd.f32 %v1161, %v1717
      %v1740 = vadd.f32 %v1162, %v1722
      %v1741 = vadd.f32 %v1163, %v1725
      %v1742 = vadd.f32 %v1164, %v1730
      %v1743 = vadd.f32 %v1165, %v1733
      %1744 = vrot.lane.b32.xlu0 %v586, 112
      %v1745 = vpop.permute.xlu0 %1744
      %1746 = vrot.lane.b32.xlu0 %v586, 80
      %v1747 = vpop.permute.xlu0 %1746
      %v1749 = vsel %vm593, %v1745, 0
      %v1752 = vsel %vm593, %v1747, 0
      %1754 = vmatprep.subr.bf16.mxu0 0
      %1755 = vmatpush1.bf16.xpose.msra.mxu0 0
      %1756 = vmatprep.subr.bf16.mxu0 0
      %1757 = vmatpush1.bf16.xpose.msra.mxu0 0
      %1758 = vmatprep.subr.bf16.mxu0 0
      %1759 = vmatpush1.bf16.xpose.msra.mxu0 0
      %1760 = vmatprep.subr.bf16.mxu0 0
      %1761 = vmatpush1.bf16.xpose.msra.mxu0 0
      %1762 = vmatprep.subr.bf16.mxu0 0
      %1763 = vmatpush1.bf16.xpose.msra.mxu0 0
      %1764 = vmatprep.subr.bf16.mxu0 0
      %1765 = vmatpush1.bf16.xpose.msra.mxu0 0
      %1766 = vmatprep.subr.bf16.mxu0 0
      %1767 = vmatpush1.bf16.xpose.msra.mxu0 0
      %1768 = vmatprep.subr.bf16.mxu0 0
      %1769 = vmatpush1.bf16.xpose.msra.mxu0 %v1752
      %1770 = vmatprep.subr.bf16.mxu0 0
      %1771 = vmatpush2.bf16.xpose.msra.mxu0 0
      %1772 = vmatprep.subr.bf16.mxu0 0
      %1773 = vmatpush2.bf16.xpose.msra.mxu0 0
      %1774 = vmatprep.subr.bf16.mxu0 0
      %1775 = vmatpush2.bf16.xpose.msra.mxu0 0
      %1776 = vmatprep.subr.bf16.mxu0 0
      %1777 = vmatpush2.bf16.xpose.msra.mxu0 0
      %1778 = vmatprep.subr.bf16.mxu0 0
      %1779 = vmatpush2.bf16.xpose.msra.mxu0 0
      %1780 = vmatprep.subr.bf16.mxu0 0
      %1781 = vmatpush2.bf16.xpose.msra.mxu0 0
      %1782 = vmatprep.subr.bf16.mxu0 0
      %1783 = vmatpush2.bf16.xpose.msra.mxu0 0
      %1784 = vmatprep.subr.bf16.mxu0 0
      %1785 = vmatpush2.bf16.xpose.msra.mxu0 0
      %1786 = vmatprep.mubr.bf16.mxu0 0
      %1787 = vmatmul.mubr.bf16.gmra.mxu0 %v1749
      %v1788 = vpop.f32.mrf.mxu0
      %v1789 = vadd.f32 %v567, %v1788
      %v1790 = vpop.f32.mrf.mxu0
      %v1791 = vpop.f32.mrf.mxu0
      %v1792 = vadd.f32 %v568, %v1791
      %v1793 = vpop.f32.mrf.mxu0
      %1794 = vdwg.mxu0
      %1795 = vrot.lane.b32.xlu0 %v587, 112
      %v1796 = vpop.permute.xlu0 %1795
      %1797 = vrot.lane.b32.xlu0 %v587, 80
      %v1798 = vpop.permute.xlu0 %1797
      %v1800 = vsel %vm593, %v1796, 0
      %v1803 = vsel %vm593, %v1798, 0
      %1805 = vmatprep.subr.bf16.mxu0 0
      %1806 = vmatpush1.bf16.xpose.msra.mxu0 0
      %1807 = vmatprep.subr.bf16.mxu0 0
      %1808 = vmatpush1.bf16.xpose.msra.mxu0 0
      %1809 = vmatprep.subr.bf16.mxu0 0
      %1810 = vmatpush1.bf16.xpose.msra.mxu0 0
      %1811 = vmatprep.subr.bf16.mxu0 0
      %1812 = vmatpush1.bf16.xpose.msra.mxu0 0
      %1813 = vmatprep.subr.bf16.mxu0 0
      %1814 = vmatpush1.bf16.xpose.msra.mxu0 0
      %1815 = vmatprep.subr.bf16.mxu0 0
      %1816 = vmatpush1.bf16.xpose.msra.mxu0 0
      %1817 = vmatprep.subr.bf16.mxu0 0
      %1818 = vmatpush1.bf16.xpose.msra.mxu0 0
      %1819 = vmatprep.subr.bf16.mxu0 0
      %1820 = vmatpush1.bf16.xpose.msra.mxu0 %v1803
      %1821 = vmatprep.subr.bf16.mxu0 0
      %1822 = vmatpush2.bf16.xpose.msra.mxu0 0
      %1823 = vmatprep.subr.bf16.mxu0 0
      %1824 = vmatpush2.bf16.xpose.msra.mxu0 0
      %1825 = vmatprep.subr.bf16.mxu0 0
      %1826 = vmatpush2.bf16.xpose.msra.mxu0 0
      %1827 = vmatprep.subr.bf16.mxu0 0
      %1828 = vmatpush2.bf16.xpose.msra.mxu0 0
      %1829 = vmatprep.subr.bf16.mxu0 0
      %1830 = vmatpush2.bf16.xpose.msra.mxu0 0
      %1831 = vmatprep.subr.bf16.mxu0 0
      %1832 = vmatpush2.bf16.xpose.msra.mxu0 0
      %1833 = vmatprep.subr.bf16.mxu0 0
      %1834 = vmatpush2.bf16.xpose.msra.mxu0 0
      %1835 = vmatprep.subr.bf16.mxu0 0
      %1836 = vmatpush2.bf16.xpose.msra.mxu0 0
      %1837 = vmatprep.mubr.bf16.mxu0 0
      %1838 = vmatmul.mubr.bf16.gmra.mxu0 %v1800
      %v1839 = vpop.f32.mrf.mxu0
      %v1840 = vadd.f32 %v567, %v1839
      %v1841 = vpop.f32.mrf.mxu0
      %v1842 = vpop.f32.mrf.mxu0
      %v1843 = vadd.f32 %v568, %v1842
      %v1844 = vpop.f32.mrf.mxu0
      %1845 = vdwg.mxu0
      %1846 = vrot.lane.b32.xlu0 %v588, 112
      %v1847 = vpop.permute.xlu0 %1846
      %1848 = vrot.lane.b32.xlu0 %v588, 80
      %v1849 = vpop.permute.xlu0 %1848
      %v1851 = vsel %vm593, %v1847, 0
      %v1854 = vsel %vm593, %v1849, 0
      %1856 = vmatprep.subr.bf16.mxu0 0
      %1857 = vmatpush1.bf16.xpose.msra.mxu0 0
      %1858 = vmatprep.subr.bf16.mxu0 0
      %1859 = vmatpush1.bf16.xpose.msra.mxu0 0
      %1860 = vmatprep.subr.bf16.mxu0 0
      %1861 = vmatpush1.bf16.xpose.msra.mxu0 0
      %1862 = vmatprep.subr.bf16.mxu0 0
      %1863 = vmatpush1.bf16.xpose.msra.mxu0 0
      %1864 = vmatprep.subr.bf16.mxu0 0
      %1865 = vmatpush1.bf16.xpose.msra.mxu0 0
      %1866 = vmatprep.subr.bf16.mxu0 0
      %1867 = vmatpush1.bf16.xpose.msra.mxu0 0
      %1868 = vmatprep.subr.bf16.mxu0 0
      %1869 = vmatpush1.bf16.xpose.msra.mxu0 0
      %1870 = vmatprep.subr.bf16.mxu0 0
      %1871 = vmatpush1.bf16.xpose.msra.mxu0 %v1854
      %1872 = vmatprep.subr.bf16.mxu0 0
      %1873 = vmatpush2.bf16.xpose.msra.mxu0 0
      %1874 = vmatprep.subr.bf16.mxu0 0
      %1875 = vmatpush2.bf16.xpose.msra.mxu0 0
      %1876 = vmatprep.subr.bf16.mxu0 0
      %1877 = vmatpush2.bf16.xpose.msra.mxu0 0
      %1878 = vmatprep.subr.bf16.mxu0 0
      %1879 = vmatpush2.bf16.xpose.msra.mxu0 0
      %1880 = vmatprep.subr.bf16.mxu0 0
      %1881 = vmatpush2.bf16.xpose.msra.mxu0 0
      %1882 = vmatprep.subr.bf16.mxu0 0
      %1883 = vmatpush2.bf16.xpose.msra.mxu0 0
      %1884 = vmatprep.subr.bf16.mxu0 0
      %1885 = vmatpush2.bf16.xpose.msra.mxu0 0
      %1886 = vmatprep.subr.bf16.mxu0 0
      %1887 = vmatpush2.bf16.xpose.msra.mxu0 0
      %1888 = vmatprep.mubr.bf16.mxu0 0
      %1889 = vmatmul.mubr.bf16.gmra.mxu0 %v1851
      %v1890 = vpop.f32.mrf.mxu0
      %v1891 = vadd.f32 %v567, %v1890
      %v1892 = vpop.f32.mrf.mxu0
      %v1893 = vpop.f32.mrf.mxu0
      %v1894 = vadd.f32 %v568, %v1893
      %v1895 = vpop.f32.mrf.mxu0
      %1896 = vdwg.mxu0
      %1897 = vrot.lane.b32.xlu0 %v589, 112
      %v1898 = vpop.permute.xlu0 %1897
      %1899 = vrot.lane.b32.xlu0 %v589, 80
      %v1900 = vpop.permute.xlu0 %1899
      %v1902 = vsel %vm593, %v1898, 0
      %v1905 = vsel %vm593, %v1900, 0
      %1907 = vmatprep.subr.bf16.mxu0 0
      %1908 = vmatpush1.bf16.xpose.msra.mxu0 0
      %1909 = vmatprep.subr.bf16.mxu0 0
      %1910 = vmatpush1.bf16.xpose.msra.mxu0 0
      %1911 = vmatprep.subr.bf16.mxu0 0
      %1912 = vmatpush1.bf16.xpose.msra.mxu0 0
      %1913 = vmatprep.subr.bf16.mxu0 0
      %1914 = vmatpush1.bf16.xpose.msra.mxu0 0
      %1915 = vmatprep.subr.bf16.mxu0 0
      %1916 = vmatpush1.bf16.xpose.msra.mxu0 0
      %1917 = vmatprep.subr.bf16.mxu0 0
      %1918 = vmatpush1.bf16.xpose.msra.mxu0 0
      %1919 = vmatprep.subr.bf16.mxu0 0
      %1920 = vmatpush1.bf16.xpose.msra.mxu0 0
      %1921 = vmatprep.subr.bf16.mxu0 0
      %1922 = vmatpush1.bf16.xpose.msra.mxu0 %v1905
      %1923 = vmatprep.subr.bf16.mxu0 0
      %1924 = vmatpush2.bf16.xpose.msra.mxu0 0
      %1925 = vmatprep.subr.bf16.mxu0 0
      %1926 = vmatpush2.bf16.xpose.msra.mxu0 0
      %1927 = vmatprep.subr.bf16.mxu0 0
      %1928 = vmatpush2.bf16.xpose.msra.mxu0 0
      %1929 = vmatprep.subr.bf16.mxu0 0
      %1930 = vmatpush2.bf16.xpose.msra.mxu0 0
      %1931 = vmatprep.subr.bf16.mxu0 0
      %1932 = vmatpush2.bf16.xpose.msra.mxu0 0
      %1933 = vmatprep.subr.bf16.mxu0 0
      %1934 = vmatpush2.bf16.xpose.msra.mxu0 0
      %1935 = vmatprep.subr.bf16.mxu0 0
      %1936 = vmatpush2.bf16.xpose.msra.mxu0 0
      %1937 = vmatprep.subr.bf16.mxu0 0
      %1938 = vmatpush2.bf16.xpose.msra.mxu0 0
      %1939 = vmatprep.mubr.bf16.mxu0 0
      %1940 = vmatmul.mubr.bf16.gmra.mxu0 %v1902
      %v1941 = vpop.f32.mrf.mxu0
      %v1942 = vadd.f32 %v567, %v1941
      %v1943 = vpop.f32.mrf.mxu0
      %v1944 = vpop.f32.mrf.mxu0
      %v1945 = vadd.f32 %v568, %v1944
      %v1946 = vpop.f32.mrf.mxu0
      %1947 = vdwg.mxu0
      %v1948 = vsel %vm791, %v1789, -inf
      %1949 = vmax.xlane.f32.xlu0 %v1948
      %v1950 = vpop.xlane.xlu0 %1949
      %v1951 = vsel %vm791, %v1792, -inf
      %1952 = vmax.xlane.f32.xlu0 %v1951
      %v1953 = vpop.xlane.xlu0 %1952
      %v1954 = vsel %vm791, %v1840, -inf
      %1955 = vmax.xlane.f32.xlu0 %v1954
      %v1956 = vpop.xlane.xlu0 %1955
      %v1957 = vsel %vm791, %v1843, -inf
      %1958 = vmax.xlane.f32.xlu0 %v1957
      %v1959 = vpop.xlane.xlu0 %1958
      %v1960 = vsel %vm791, %v1891, -inf
      %1961 = vmax.xlane.f32.xlu0 %v1960
      %v1962 = vpop.xlane.xlu0 %1961
      %v1963 = vsel %vm791, %v1894, -inf
      %1964 = vmax.xlane.f32.xlu0 %v1963
      %v1965 = vpop.xlane.xlu0 %1964
      %v1966 = vsel %vm791, %v1942, -inf
      %1967 = vmax.xlane.f32.xlu0 %v1966
      %v1968 = vpop.xlane.xlu0 %1967
      %v1969 = vsel %vm791, %v1945, -inf
      %1970 = vmax.xlane.f32.xlu0 %v1969
      %v1971 = vpop.xlane.xlu0 %1970
      %v1972 = vsub.f32 %v1789, %v1950
      %v1973 = vsub.f32 %v1792, %v1953
      %v1974 = vsub.f32 %v1840, %v1956
      %v1975 = vsub.f32 %v1843, %v1959
      %v1976 = vsub.f32 %v1891, %v1962
      %v1977 = vsub.f32 %v1894, %v1965
      %v1978 = vsub.f32 %v1942, %v1968
      %v1979 = vsub.f32 %v1945, %v1971
      %v1980 = vmul.f32 %v1972, 1.442695
      %v1981 = vpow.pop %v1980
      %v1982 = vmul.f32 %v1973, 1.442695
      %v1983 = vpow.pop %v1982
      %v1984 = vmul.f32 %v1974, 1.442695
      %v1985 = vpow.pop %v1984
      %v1986 = vmul.f32 %v1975, 1.442695
      %v1987 = vpow.pop %v1986
      %v1988 = vmul.f32 %v1976, 1.442695
      %v1989 = vpow.pop %v1988
      %v1990 = vmul.f32 %v1977, 1.442695
      %v1991 = vpow.pop %v1990
      %v1992 = vmul.f32 %v1978, 1.442695
      %v1993 = vpow.pop %v1992
      %v1994 = vmul.f32 %v1979, 1.442695
      %v1995 = vpow.pop %v1994
      %v1996 = vsel %vm791, %v1981, 0.0
      %1997 = vadd.xlane.f32.xlu0 %v1996
      %v1998 = vpop.xlane.xlu0 %1997
      %v1999 = vsel %vm791, %v1983, 0.0
      %2000 = vadd.xlane.f32.xlu0 %v1999
      %v2001 = vpop.xlane.xlu0 %2000
      %v2002 = vsel %vm791, %v1985, 0.0
      %2003 = vadd.xlane.f32.xlu0 %v2002
      %v2004 = vpop.xlane.xlu0 %2003
      %v2005 = vsel %vm791, %v1987, 0.0
      %2006 = vadd.xlane.f32.xlu0 %v2005
      %v2007 = vpop.xlane.xlu0 %2006
      %v2008 = vsel %vm791, %v1989, 0.0
      %2009 = vadd.xlane.f32.xlu0 %v2008
      %v2010 = vpop.xlane.xlu0 %2009
      %v2011 = vsel %vm791, %v1991, 0.0
      %2012 = vadd.xlane.f32.xlu0 %v2011
      %v2013 = vpop.xlane.xlu0 %2012
      %v2014 = vsel %vm791, %v1993, 0.0
      %2015 = vadd.xlane.f32.xlu0 %v2014
      %v2016 = vpop.xlane.xlu0 %2015
      %v2017 = vsel %vm791, %v1995, 0.0
      %2018 = vadd.xlane.f32.xlu0 %v2017
      %v2019 = vpop.xlane.xlu0 %2018
      %v2020 = vrcp.pop %v1998
      %v2021 = vrcp.pop %v2001
      %v2022 = vrcp.pop %v2004
      %v2023 = vrcp.pop %v2007
      %v2024 = vrcp.pop %v2010
      %v2025 = vrcp.pop %v2013
      %v2026 = vrcp.pop %v2016
      %v2027 = vrcp.pop %v2019
      %v2028 = vmul.f32 %v1981, %v2020
      %v2029 = vmul.f32 %v1983, %v2021
      %v2030 = vmul.f32 %v1985, %v2022
      %v2031 = vmul.f32 %v1987, %v2023
      %v2032 = vmul.f32 %v1989, %v2024
      %v2033 = vmul.f32 %v1991, %v2025
      %v2034 = vmul.f32 %v1993, %v2026
      %v2035 = vmul.f32 %v1995, %v2027
      %v2036 = vpack.c.bf16 %v2029, %v2028
      %v2037 = vpack.c.bf16 %v2031, %v2030
      %v2038 = vpack.c.bf16 %v2033, %v2032
      %v2039 = vpack.c.bf16 %v2035, %v2034
      %2040 = vrot.lane.b32.xlu0 %v586, 48
      %v2041 = vpop.permute.xlu0 %2040
      %v2044 = vsel %vm791, %v2036, 0
      %2046 = vmatprep.subr.bf16.mxu0 0
      %2047 = vmatpush1.bf16.msra.mxu0 0
      %2048 = vmatprep.subr.bf16.mxu0 0
      %2049 = vmatpush1.bf16.msra.mxu0 0
      %2050 = vmatprep.subr.bf16.mxu0 0
      %2051 = vmatpush1.bf16.msra.mxu0 0
      %2052 = vmatprep.subr.bf16.mxu0 0
      %2053 = vmatpush1.bf16.msra.mxu0 0
      %2054 = vmatprep.subr.bf16.mxu0 0
      %2055 = vmatpush1.bf16.msra.mxu0 0
      %2056 = vmatprep.subr.bf16.mxu0 0
      %2057 = vmatpush1.bf16.msra.mxu0 0
      %2058 = vmatprep.subr.bf16.mxu0 0
      %2059 = vmatpush1.bf16.msra.mxu0 0
      %2060 = vmatprep.subr.bf16.mxu0 0
      %2061 = vmatpush1.bf16.msra.mxu0 %v2041
      %2062 = vmatprep.subr.bf16.mxu0 0
      %2063 = vmatpush2.bf16.msra.mxu0 0
      %2064 = vmatprep.subr.bf16.mxu0 0
      %2065 = vmatpush2.bf16.msra.mxu0 0
      %2066 = vmatprep.subr.bf16.mxu0 0
      %2067 = vmatpush2.bf16.msra.mxu0 0
      %2068 = vmatprep.subr.bf16.mxu0 0
      %2069 = vmatpush2.bf16.msra.mxu0 0
      %2070 = vmatprep.subr.bf16.mxu0 0
      %2071 = vmatpush2.bf16.msra.mxu0 0
      %2072 = vmatprep.subr.bf16.mxu0 0
      %2073 = vmatpush2.bf16.msra.mxu0 0
      %2074 = vmatprep.subr.bf16.mxu0 0
      %2075 = vmatpush2.bf16.msra.mxu0 0
      %2076 = vmatprep.subr.bf16.mxu0 0
      %2077 = vmatpush2.bf16.msra.mxu0 0
      %2078 = vmatprep.mubr.bf16.mxu0 0
      %2079 = vmatmul.mubr.bf16.gmra.mxu0 %v2044
      %v2080 = vpop.f32.mrf.mxu0
      %v2081 = vadd.f32 0.0, %v2080
      %v2082 = vpop.f32.mrf.mxu0
      %v2083 = vpop.f32.mrf.mxu0
      %v2084 = vadd.f32 0.0, %v2083
      %v2085 = vpop.f32.mrf.mxu0
      %2086 = vdwg.mxu0
      %2087 = vrot.lane.b32.xlu0 %v587, 48
      %v2088 = vpop.permute.xlu0 %2087
      %v2091 = vsel %vm791, %v2037, 0
      %2093 = vmatprep.subr.bf16.mxu0 0
      %2094 = vmatpush1.bf16.msra.mxu0 0
      %2095 = vmatprep.subr.bf16.mxu0 0
      %2096 = vmatpush1.bf16.msra.mxu0 0
      %2097 = vmatprep.subr.bf16.mxu0 0
      %2098 = vmatpush1.bf16.msra.mxu0 0
      %2099 = vmatprep.subr.bf16.mxu0 0
      %2100 = vmatpush1.bf16.msra.mxu0 0
      %2101 = vmatprep.subr.bf16.mxu0 0
      %2102 = vmatpush1.bf16.msra.mxu0 0
      %2103 = vmatprep.subr.bf16.mxu0 0
      %2104 = vmatpush1.bf16.msra.mxu0 0
      %2105 = vmatprep.subr.bf16.mxu0 0
      %2106 = vmatpush1.bf16.msra.mxu0 0
      %2107 = vmatprep.subr.bf16.mxu0 0
      %2108 = vmatpush1.bf16.msra.mxu0 %v2088
      %2109 = vmatprep.subr.bf16.mxu0 0
      %2110 = vmatpush2.bf16.msra.mxu0 0
      %2111 = vmatprep.subr.bf16.mxu0 0
      %2112 = vmatpush2.bf16.msra.mxu0 0
      %2113 = vmatprep.subr.bf16.mxu0 0
      %2114 = vmatpush2.bf16.msra.mxu0 0
      %2115 = vmatprep.subr.bf16.mxu0 0
      %2116 = vmatpush2.bf16.msra.mxu0 0
      %2117 = vmatprep.subr.bf16.mxu0 0
      %2118 = vmatpush2.bf16.msra.mxu0 0
      %2119 = vmatprep.subr.bf16.mxu0 0
      %2120 = vmatpush2.bf16.msra.mxu0 0
      %2121 = vmatprep.subr.bf16.mxu0 0
      %2122 = vmatpush2.bf16.msra.mxu0 0
      %2123 = vmatprep.subr.bf16.mxu0 0
      %2124 = vmatpush2.bf16.msra.mxu0 0
      %2125 = vmatprep.mubr.bf16.mxu0 0
      %2126 = vmatmul.mubr.bf16.gmra.mxu0 %v2091
      %v2127 = vpop.f32.mrf.mxu0
      %v2128 = vadd.f32 0.0, %v2127
      %v2129 = vpop.f32.mrf.mxu0
      %v2130 = vpop.f32.mrf.mxu0
      %v2131 = vadd.f32 0.0, %v2130
      %v2132 = vpop.f32.mrf.mxu0
      %2133 = vdwg.mxu0
      %2134 = vrot.lane.b32.xlu0 %v588, 48
      %v2135 = vpop.permute.xlu0 %2134
      %v2138 = vsel %vm791, %v2038, 0
      %2140 = vmatprep.subr.bf16.mxu0 0
      %2141 = vmatpush1.bf16.msra.mxu0 0
      %2142 = vmatprep.subr.bf16.mxu0 0
      %2143 = vmatpush1.bf16.msra.mxu0 0
      %2144 = vmatprep.subr.bf16.mxu0 0
      %2145 = vmatpush1.bf16.msra.mxu0 0
      %2146 = vmatprep.subr.bf16.mxu0 0
      %2147 = vmatpush1.bf16.msra.mxu0 0
      %2148 = vmatprep.subr.bf16.mxu0 0
      %2149 = vmatpush1.bf16.msra.mxu0 0
      %2150 = vmatprep.subr.bf16.mxu0 0
      %2151 = vmatpush1.bf16.msra.mxu0 0
      %2152 = vmatprep.subr.bf16.mxu0 0
      %2153 = vmatpush1.bf16.msra.mxu0 0
      %2154 = vmatprep.subr.bf16.mxu0 0
      %2155 = vmatpush1.bf16.msra.mxu0 %v2135
      %2156 = vmatprep.subr.bf16.mxu0 0
      %2157 = vmatpush2.bf16.msra.mxu0 0
      %2158 = vmatprep.subr.bf16.mxu0 0
      %2159 = vmatpush2.bf16.msra.mxu0 0
      %2160 = vmatprep.subr.bf16.mxu0 0
      %2161 = vmatpush2.bf16.msra.mxu0 0
      %2162 = vmatprep.subr.bf16.mxu0 0
      %2163 = vmatpush2.bf16.msra.mxu0 0
      %2164 = vmatprep.subr.bf16.mxu0 0
      %2165 = vmatpush2.bf16.msra.mxu0 0
      %2166 = vmatprep.subr.bf16.mxu0 0
      %2167 = vmatpush2.bf16.msra.mxu0 0
      %2168 = vmatprep.subr.bf16.mxu0 0
      %2169 = vmatpush2.bf16.msra.mxu0 0
      %2170 = vmatprep.subr.bf16.mxu0 0
      %2171 = vmatpush2.bf16.msra.mxu0 0
      %2172 = vmatprep.mubr.bf16.mxu0 0
      %2173 = vmatmul.mubr.bf16.gmra.mxu0 %v2138
      %v2174 = vpop.f32.mrf.mxu0
      %v2175 = vadd.f32 0.0, %v2174
      %v2176 = vpop.f32.mrf.mxu0
      %v2177 = vpop.f32.mrf.mxu0
      %v2178 = vadd.f32 0.0, %v2177
      %v2179 = vpop.f32.mrf.mxu0
      %2180 = vdwg.mxu0
      %2181 = vrot.lane.b32.xlu0 %v589, 48
      %v2182 = vpop.permute.xlu0 %2181
      %v2185 = vsel %vm791, %v2039, 0
      %2187 = vmatprep.subr.bf16.mxu0 0
      %2188 = vmatpush1.bf16.msra.mxu0 0
      %2189 = vmatprep.subr.bf16.mxu0 0
      %2190 = vmatpush1.bf16.msra.mxu0 0
      %2191 = vmatprep.subr.bf16.mxu0 0
      %2192 = vmatpush1.bf16.msra.mxu0 0
      %2193 = vmatprep.subr.bf16.mxu0 0
      %2194 = vmatpush1.bf16.msra.mxu0 0
      %2195 = vmatprep.subr.bf16.mxu0 0
      %2196 = vmatpush1.bf16.msra.mxu0 0
      %2197 = vmatprep.subr.bf16.mxu0 0
      %2198 = vmatpush1.bf16.msra.mxu0 0
      %2199 = vmatprep.subr.bf16.mxu0 0
      %2200 = vmatpush1.bf16.msra.mxu0 0
      %2201 = vmatprep.subr.bf16.mxu0 0
      %2202 = vmatpush1.bf16.msra.mxu0 %v2182
      %2203 = vmatprep.subr.bf16.mxu0 0
      %2204 = vmatpush2.bf16.msra.mxu0 0
      %2205 = vmatprep.subr.bf16.mxu0 0
      %2206 = vmatpush2.bf16.msra.mxu0 0
      %2207 = vmatprep.subr.bf16.mxu0 0
      %2208 = vmatpush2.bf16.msra.mxu0 0
      %2209 = vmatprep.subr.bf16.mxu0 0
      %2210 = vmatpush2.bf16.msra.mxu0 0
      %2211 = vmatprep.subr.bf16.mxu0 0
      %2212 = vmatpush2.bf16.msra.mxu0 0
      %2213 = vmatprep.subr.bf16.mxu0 0
      %2214 = vmatpush2.bf16.msra.mxu0 0
      %2215 = vmatprep.subr.bf16.mxu0 0
      %2216 = vmatpush2.bf16.msra.mxu0 0
      %2217 = vmatprep.subr.bf16.mxu0 0
      %2218 = vmatpush2.bf16.msra.mxu0 0
      %2219 = vmatprep.mubr.bf16.mxu0 0
      %2220 = vmatmul.mubr.bf16.gmra.mxu0 %v2185
      %v2221 = vpop.f32.mrf.mxu0
      %v2222 = vadd.f32 0.0, %v2221
      %v2223 = vpop.f32.mrf.mxu0
      %v2224 = vpop.f32.mrf.mxu0
      %v2225 = vadd.f32 0.0, %v2224
      %v2226 = vpop.f32.mrf.mxu0
      %2227 = vdwg.mxu0
      %v2228 = vpack.c.bf16 %v2084, %v2081
      %v2229 = vpack.c.bf16 %v2131, %v2128
      %v2230 = vpack.c.bf16 %v2178, %v2175
      %v2231 = vpack.c.bf16 %v2225, %v2222
      %s2232 = scalar_lea.vmem %s6, 8
      %v2233 = vld [vmem:[%s2232] sm:$0xf]
      %v2235 = vsel %vm593, %v2228, 0
      %v2238 = vsel %vm593, %v2229, 0
      %v2241 = vsel %vm593, %v2230, 0
      %v2244 = vsel %vm593, %v2231, 0
      %v2247 = vsel %vm1089, %v2233, 0
      %2249 = vmatprep.subr.bf16.mxu0 0
      %2250 = vmatpush1.bf16.msra.mxu0 0
      %2251 = vmatprep.subr.bf16.mxu0 0
      %2252 = vmatpush1.bf16.msra.mxu0 0
      %2253 = vmatprep.subr.bf16.mxu0 0
      %2254 = vmatpush1.bf16.msra.mxu0 0
      %2255 = vmatprep.subr.bf16.mxu0 0
      %2256 = vmatpush1.bf16.msra.mxu0 0
      %2257 = vmatprep.subr.bf16.mxu0 0
      %2258 = vmatpush1.bf16.msra.mxu0 0
      %2259 = vmatprep.subr.bf16.mxu0 0
      %2260 = vmatpush1.bf16.msra.mxu0 0
      %2261 = vmatprep.subr.bf16.mxu0 0
      %2262 = vmatpush1.bf16.msra.mxu0 0
      %2263 = vmatprep.subr.bf16.mxu0 0
      %2264 = vmatpush1.bf16.msra.mxu0 %v2247
      %2265 = vmatprep.subr.bf16.mxu0 0
      %2266 = vmatpush2.bf16.msra.mxu0 0
      %2267 = vmatprep.subr.bf16.mxu0 0
      %2268 = vmatpush2.bf16.msra.mxu0 0
      %2269 = vmatprep.subr.bf16.mxu0 0
      %2270 = vmatpush2.bf16.msra.mxu0 0
      %2271 = vmatprep.subr.bf16.mxu0 0
      %2272 = vmatpush2.bf16.msra.mxu0 0
      %2273 = vmatprep.subr.bf16.mxu0 0
      %2274 = vmatpush2.bf16.msra.mxu0 0
      %2275 = vmatprep.subr.bf16.mxu0 0
      %2276 = vmatpush2.bf16.msra.mxu0 0
      %2277 = vmatprep.subr.bf16.mxu0 0
      %2278 = vmatpush2.bf16.msra.mxu0 0
      %2279 = vmatprep.subr.bf16.mxu0 0
      %2280 = vmatpush2.bf16.msra.mxu0 0
      %2281 = vmatprep.mubr.bf16.mxu0 0
      %2282 = vmatmul.mubr.bf16.gmra.mxu0 %v2235
      %v2283 = vpop.f32.mrf.mxu0
      %v2284 = vadd.f32 0.0, %v2283
      %v2285 = vpop.f32.mrf.mxu0
      %v2286 = vpop.f32.mrf.mxu0
      %v2287 = vadd.f32 0.0, %v2286
      %v2288 = vpop.f32.mrf.mxu0
      %2289 = vmatprep.mubr.bf16.mxu0 0
      %2290 = vmatmul.mubr.bf16.gmra.mxu0 %v2238
      %v2291 = vpop.f32.mrf.mxu0
      %v2292 = vadd.f32 0.0, %v2291
      %v2293 = vpop.f32.mrf.mxu0
      %v2294 = vpop.f32.mrf.mxu0
      %v2295 = vadd.f32 0.0, %v2294
      %v2296 = vpop.f32.mrf.mxu0
      %2297 = vmatprep.mubr.bf16.mxu0 0
      %2298 = vmatmul.mubr.bf16.gmra.mxu0 %v2241
      %v2299 = vpop.f32.mrf.mxu0
      %v2300 = vadd.f32 0.0, %v2299
      %v2301 = vpop.f32.mrf.mxu0
      %v2302 = vpop.f32.mrf.mxu0
      %v2303 = vadd.f32 0.0, %v2302
      %v2304 = vpop.f32.mrf.mxu0
      %2305 = vmatprep.mubr.bf16.mxu0 0
      %2306 = vmatmul.mubr.bf16.gmra.mxu0 %v2244
      %v2307 = vpop.f32.mrf.mxu0
      %v2308 = vadd.f32 0.0, %v2307
      %v2309 = vpop.f32.mrf.mxu0
      %v2310 = vpop.f32.mrf.mxu0
      %v2311 = vadd.f32 0.0, %v2310
      %v2312 = vpop.f32.mrf.mxu0
      %2313 = vdwg.mxu0
      %v2314 = vadd.f32 %v1736, %v2284
      %v2315 = vadd.f32 %v1737, %v2287
      %v2316 = vadd.f32 %v1738, %v2292
      %v2317 = vadd.f32 %v1739, %v2295
      %v2318 = vadd.f32 %v1740, %v2300
      %v2319 = vadd.f32 %v1741, %v2303
      %v2320 = vadd.f32 %v1742, %v2308
      %v2321 = vadd.f32 %v1743, %v2311
      %2322 = vrot.lane.b32.xlu0 %v586, 104
      %v2323 = vpop.permute.xlu0 %2322
      %2324 = vrot.lane.b32.xlu0 %v586, 72
      %v2325 = vpop.permute.xlu0 %2324
      %v2327 = vsel %vm593, %v2323, 0
      %v2330 = vsel %vm593, %v2325, 0
      %2332 = vmatprep.subr.bf16.mxu0 0
      %2333 = vmatpush1.bf16.xpose.msra.mxu0 0
      %2334 = vmatprep.subr.bf16.mxu0 0
      %2335 = vmatpush1.bf16.xpose.msra.mxu0 0
      %2336 = vmatprep.subr.bf16.mxu0 0
      %2337 = vmatpush1.bf16.xpose.msra.mxu0 0
      %2338 = vmatprep.subr.bf16.mxu0 0
      %2339 = vmatpush1.bf16.xpose.msra.mxu0 0
      %2340 = vmatprep.subr.bf16.mxu0 0
      %2341 = vmatpush1.bf16.xpose.msra.mxu0 0
      %2342 = vmatprep.subr.bf16.mxu0 0
      %2343 = vmatpush1.bf16.xpose.msra.mxu0 0
      %2344 = vmatprep.subr.bf16.mxu0 0
      %2345 = vmatpush1.bf16.xpose.msra.mxu0 0
      %2346 = vmatprep.subr.bf16.mxu0 0
      %2347 = vmatpush1.bf16.xpose.msra.mxu0 %v2330
      %2348 = vmatprep.subr.bf16.mxu0 0
      %2349 = vmatpush2.bf16.xpose.msra.mxu0 0
      %2350 = vmatprep.subr.bf16.mxu0 0
      %2351 = vmatpush2.bf16.xpose.msra.mxu0 0
      %2352 = vmatprep.subr.bf16.mxu0 0
      %2353 = vmatpush2.bf16.xpose.msra.mxu0 0
      %2354 = vmatprep.subr.bf16.mxu0 0
      %2355 = vmatpush2.bf16.xpose.msra.mxu0 0
      %2356 = vmatprep.subr.bf16.mxu0 0
      %2357 = vmatpush2.bf16.xpose.msra.mxu0 0
      %2358 = vmatprep.subr.bf16.mxu0 0
      %2359 = vmatpush2.bf16.xpose.msra.mxu0 0
      %2360 = vmatprep.subr.bf16.mxu0 0
      %2361 = vmatpush2.bf16.xpose.msra.mxu0 0
      %2362 = vmatprep.subr.bf16.mxu0 0
      %2363 = vmatpush2.bf16.xpose.msra.mxu0 0
      %2364 = vmatprep.mubr.bf16.mxu0 0
      %2365 = vmatmul.mubr.bf16.gmra.mxu0 %v2327
      %v2366 = vpop.f32.mrf.mxu0
      %v2367 = vadd.f32 %v569, %v2366
      %v2368 = vpop.f32.mrf.mxu0
      %v2369 = vpop.f32.mrf.mxu0
      %v2370 = vadd.f32 %v570, %v2369
      %v2371 = vpop.f32.mrf.mxu0
      %2372 = vdwg.mxu0
      %2373 = vrot.lane.b32.xlu0 %v587, 104
      %v2374 = vpop.permute.xlu0 %2373
      %2375 = vrot.lane.b32.xlu0 %v587, 72
      %v2376 = vpop.permute.xlu0 %2375
      %v2378 = vsel %vm593, %v2374, 0
      %v2381 = vsel %vm593, %v2376, 0
      %2383 = vmatprep.subr.bf16.mxu0 0
      %2384 = vmatpush1.bf16.xpose.msra.mxu0 0
      %2385 = vmatprep.subr.bf16.mxu0 0
      %2386 = vmatpush1.bf16.xpose.msra.mxu0 0
      %2387 = vmatprep.subr.bf16.mxu0 0
      %2388 = vmatpush1.bf16.xpose.msra.mxu0 0
      %2389 = vmatprep.subr.bf16.mxu0 0
      %2390 = vmatpush1.bf16.xpose.msra.mxu0 0
      %2391 = vmatprep.subr.bf16.mxu0 0
      %2392 = vmatpush1.bf16.xpose.msra.mxu0 0
      %2393 = vmatprep.subr.bf16.mxu0 0
      %2394 = vmatpush1.bf16.xpose.msra.mxu0 0
      %2395 = vmatprep.subr.bf16.mxu0 0
      %2396 = vmatpush1.bf16.xpose.msra.mxu0 0
      %2397 = vmatprep.subr.bf16.mxu0 0
      %2398 = vmatpush1.bf16.xpose.msra.mxu0 %v2381
      %2399 = vmatprep.subr.bf16.mxu0 0
      %2400 = vmatpush2.bf16.xpose.msra.mxu0 0
      %2401 = vmatprep.subr.bf16.mxu0 0
      %2402 = vmatpush2.bf16.xpose.msra.mxu0 0
      %2403 = vmatprep.subr.bf16.mxu0 0
      %2404 = vmatpush2.bf16.xpose.msra.mxu0 0
      %2405 = vmatprep.subr.bf16.mxu0 0
      %2406 = vmatpush2.bf16.xpose.msra.mxu0 0
      %2407 = vmatprep.subr.bf16.mxu0 0
      %2408 = vmatpush2.bf16.xpose.msra.mxu0 0
      %2409 = vmatprep.subr.bf16.mxu0 0
      %2410 = vmatpush2.bf16.xpose.msra.mxu0 0
      %2411 = vmatprep.subr.bf16.mxu0 0
      %2412 = vmatpush2.bf16.xpose.msra.mxu0 0
      %2413 = vmatprep.subr.bf16.mxu0 0
      %2414 = vmatpush2.bf16.xpose.msra.mxu0 0
      %2415 = vmatprep.mubr.bf16.mxu0 0
      %2416 = vmatmul.mubr.bf16.gmra.mxu0 %v2378
      %v2417 = vpop.f32.mrf.mxu0
      %v2418 = vadd.f32 %v569, %v2417
      %v2419 = vpop.f32.mrf.mxu0
      %v2420 = vpop.f32.mrf.mxu0
      %v2421 = vadd.f32 %v570, %v2420
      %v2422 = vpop.f32.mrf.mxu0
      %2423 = vdwg.mxu0
      %2424 = vrot.lane.b32.xlu0 %v588, 104
      %v2425 = vpop.permute.xlu0 %2424
      %2426 = vrot.lane.b32.xlu0 %v588, 72
      %v2427 = vpop.permute.xlu0 %2426
      %v2429 = vsel %vm593, %v2425, 0
      %v2432 = vsel %vm593, %v2427, 0
      %2434 = vmatprep.subr.bf16.mxu0 0
      %2435 = vmatpush1.bf16.xpose.msra.mxu0 0
      %2436 = vmatprep.subr.bf16.mxu0 0
      %2437 = vmatpush1.bf16.xpose.msra.mxu0 0
      %2438 = vmatprep.subr.bf16.mxu0 0
      %2439 = vmatpush1.bf16.xpose.msra.mxu0 0
      %2440 = vmatprep.subr.bf16.mxu0 0
      %2441 = vmatpush1.bf16.xpose.msra.mxu0 0
      %2442 = vmatprep.subr.bf16.mxu0 0
      %2443 = vmatpush1.bf16.xpose.msra.mxu0 0
      %2444 = vmatprep.subr.bf16.mxu0 0
      %2445 = vmatpush1.bf16.xpose.msra.mxu0 0
      %2446 = vmatprep.subr.bf16.mxu0 0
      %2447 = vmatpush1.bf16.xpose.msra.mxu0 0
      %2448 = vmatprep.subr.bf16.mxu0 0
      %2449 = vmatpush1.bf16.xpose.msra.mxu0 %v2432
      %2450 = vmatprep.subr.bf16.mxu0 0
      %2451 = vmatpush2.bf16.xpose.msra.mxu0 0
      %2452 = vmatprep.subr.bf16.mxu0 0
      %2453 = vmatpush2.bf16.xpose.msra.mxu0 0
      %2454 = vmatprep.subr.bf16.mxu0 0
      %2455 = vmatpush2.bf16.xpose.msra.mxu0 0
      %2456 = vmatprep.subr.bf16.mxu0 0
      %2457 = vmatpush2.bf16.xpose.msra.mxu0 0
      %2458 = vmatprep.subr.bf16.mxu0 0
      %2459 = vmatpush2.bf16.xpose.msra.mxu0 0
      %2460 = vmatprep.subr.bf16.mxu0 0
      %2461 = vmatpush2.bf16.xpose.msra.mxu0 0
      %2462 = vmatprep.subr.bf16.mxu0 0
      %2463 = vmatpush2.bf16.xpose.msra.mxu0 0
      %2464 = vmatprep.subr.bf16.mxu0 0
      %2465 = vmatpush2.bf16.xpose.msra.mxu0 0
      %2466 = vmatprep.mubr.bf16.mxu0 0
      %2467 = vmatmul.mubr.bf16.gmra.mxu0 %v2429
      %v2468 = vpop.f32.mrf.mxu0
      %v2469 = vadd.f32 %v569, %v2468
      %v2470 = vpop.f32.mrf.mxu0
      %v2471 = vpop.f32.mrf.mxu0
      %v2472 = vadd.f32 %v570, %v2471
      %v2473 = vpop.f32.mrf.mxu0
      %2474 = vdwg.mxu0
      %2475 = vrot.lane.b32.xlu0 %v589, 104
      %v2476 = vpop.permute.xlu0 %2475
      %2477 = vrot.lane.b32.xlu0 %v589, 72
      %v2478 = vpop.permute.xlu0 %2477
      %v2480 = vsel %vm593, %v2476, 0
      %v2483 = vsel %vm593, %v2478, 0
      %2485 = vmatprep.subr.bf16.mxu0 0
      %2486 = vmatpush1.bf16.xpose.msra.mxu0 0
      %2487 = vmatprep.subr.bf16.mxu0 0
      %2488 = vmatpush1.bf16.xpose.msra.mxu0 0
      %2489 = vmatprep.subr.bf16.mxu0 0
      %2490 = vmatpush1.bf16.xpose.msra.mxu0 0
      %2491 = vmatprep.subr.bf16.mxu0 0
      %2492 = vmatpush1.bf16.xpose.msra.mxu0 0
      %2493 = vmatprep.subr.bf16.mxu0 0
      %2494 = vmatpush1.bf16.xpose.msra.mxu0 0
      %2495 = vmatprep.subr.bf16.mxu0 0
      %2496 = vmatpush1.bf16.xpose.msra.mxu0 0
      %2497 = vmatprep.subr.bf16.mxu0 0
      %2498 = vmatpush1.bf16.xpose.msra.mxu0 0
      %2499 = vmatprep.subr.bf16.mxu0 0
      %2500 = vmatpush1.bf16.xpose.msra.mxu0 %v2483
      %2501 = vmatprep.subr.bf16.mxu0 0
      %2502 = vmatpush2.bf16.xpose.msra.mxu0 0
      %2503 = vmatprep.subr.bf16.mxu0 0
      %2504 = vmatpush2.bf16.xpose.msra.mxu0 0
      %2505 = vmatprep.subr.bf16.mxu0 0
      %2506 = vmatpush2.bf16.xpose.msra.mxu0 0
      %2507 = vmatprep.subr.bf16.mxu0 0
      %2508 = vmatpush2.bf16.xpose.msra.mxu0 0
      %2509 = vmatprep.subr.bf16.mxu0 0
      %2510 = vmatpush2.bf16.xpose.msra.mxu0 0
      %2511 = vmatprep.subr.bf16.mxu0 0
      %2512 = vmatpush2.bf16.xpose.msra.mxu0 0
      %2513 = vmatprep.subr.bf16.mxu0 0
      %2514 = vmatpush2.bf16.xpose.msra.mxu0 0
      %2515 = vmatprep.subr.bf16.mxu0 0
      %2516 = vmatpush2.bf16.xpose.msra.mxu0 0
      %2517 = vmatprep.mubr.bf16.mxu0 0
      %2518 = vmatmul.mubr.bf16.gmra.mxu0 %v2480
      %v2519 = vpop.f32.mrf.mxu0
      %v2520 = vadd.f32 %v569, %v2519
      %v2521 = vpop.f32.mrf.mxu0
      %v2522 = vpop.f32.mrf.mxu0
      %v2523 = vadd.f32 %v570, %v2522
      %v2524 = vpop.f32.mrf.mxu0
      %2525 = vdwg.mxu0
      %v2526 = vsel %vm791, %v2367, -inf
      %2527 = vmax.xlane.f32.xlu0 %v2526
      %v2528 = vpop.xlane.xlu0 %2527
      %v2529 = vsel %vm791, %v2370, -inf
      %2530 = vmax.xlane.f32.xlu0 %v2529
      %v2531 = vpop.xlane.xlu0 %2530
      %v2532 = vsel %vm791, %v2418, -inf
      %2533 = vmax.xlane.f32.xlu0 %v2532
      %v2534 = vpop.xlane.xlu0 %2533
      %v2535 = vsel %vm791, %v2421, -inf
      %2536 = vmax.xlane.f32.xlu0 %v2535
      %v2537 = vpop.xlane.xlu0 %2536
      %v2538 = vsel %vm791, %v2469, -inf
      %2539 = vmax.xlane.f32.xlu0 %v2538
      %v2540 = vpop.xlane.xlu0 %2539
      %v2541 = vsel %vm791, %v2472, -inf
      %2542 = vmax.xlane.f32.xlu0 %v2541
      %v2543 = vpop.xlane.xlu0 %2542
      %v2544 = vsel %vm791, %v2520, -inf
      %2545 = vmax.xlane.f32.xlu0 %v2544
      %v2546 = vpop.xlane.xlu0 %2545
      %v2547 = vsel %vm791, %v2523, -inf
      %2548 = vmax.xlane.f32.xlu0 %v2547
      %v2549 = vpop.xlane.xlu0 %2548
      %v2550 = vsub.f32 %v2367, %v2528
      %v2551 = vsub.f32 %v2370, %v2531
      %v2552 = vsub.f32 %v2418, %v2534
      %v2553 = vsub.f32 %v2421, %v2537
      %v2554 = vsub.f32 %v2469, %v2540
      %v2555 = vsub.f32 %v2472, %v2543
      %v2556 = vsub.f32 %v2520, %v2546
      %v2557 = vsub.f32 %v2523, %v2549
      %v2558 = vmul.f32 %v2550, 1.442695
      %v2559 = vpow.pop %v2558
      %v2560 = vmul.f32 %v2551, 1.442695
      %v2561 = vpow.pop %v2560
      %v2562 = vmul.f32 %v2552, 1.442695
      %v2563 = vpow.pop %v2562
      %v2564 = vmul.f32 %v2553, 1.442695
      %v2565 = vpow.pop %v2564
      %v2566 = vmul.f32 %v2554, 1.442695
      %v2567 = vpow.pop %v2566
      %v2568 = vmul.f32 %v2555, 1.442695
      %v2569 = vpow.pop %v2568
      %v2570 = vmul.f32 %v2556, 1.442695
      %v2571 = vpow.pop %v2570
      %v2572 = vmul.f32 %v2557, 1.442695
      %v2573 = vpow.pop %v2572
      %v2574 = vsel %vm791, %v2559, 0.0
      %2575 = vadd.xlane.f32.xlu0 %v2574
      %v2576 = vpop.xlane.xlu0 %2575
      %v2577 = vsel %vm791, %v2561, 0.0
      %2578 = vadd.xlane.f32.xlu0 %v2577
      %v2579 = vpop.xlane.xlu0 %2578
      %v2580 = vsel %vm791, %v2563, 0.0
      %2581 = vadd.xlane.f32.xlu0 %v2580
      %v2582 = vpop.xlane.xlu0 %2581
      %v2583 = vsel %vm791, %v2565, 0.0
      %2584 = vadd.xlane.f32.xlu0 %v2583
      %v2585 = vpop.xlane.xlu0 %2584
      %v2586 = vsel %vm791, %v2567, 0.0
      %2587 = vadd.xlane.f32.xlu0 %v2586
      %v2588 = vpop.xlane.xlu0 %2587
      %v2589 = vsel %vm791, %v2569, 0.0
      %2590 = vadd.xlane.f32.xlu0 %v2589
      %v2591 = vpop.xlane.xlu0 %2590
      %v2592 = vsel %vm791, %v2571, 0.0
      %2593 = vadd.xlane.f32.xlu0 %v2592
      %v2594 = vpop.xlane.xlu0 %2593
      %v2595 = vsel %vm791, %v2573, 0.0
      %2596 = vadd.xlane.f32.xlu0 %v2595
      %v2597 = vpop.xlane.xlu0 %2596
      %v2598 = vrcp.pop %v2576
      %v2599 = vrcp.pop %v2579
      %v2600 = vrcp.pop %v2582
      %v2601 = vrcp.pop %v2585
      %v2602 = vrcp.pop %v2588
      %v2603 = vrcp.pop %v2591
      %v2604 = vrcp.pop %v2594
      %v2605 = vrcp.pop %v2597
      %v2606 = vmul.f32 %v2559, %v2598
      %v2607 = vmul.f32 %v2561, %v2599
      %v2608 = vmul.f32 %v2563, %v2600
      %v2609 = vmul.f32 %v2565, %v2601
      %v2610 = vmul.f32 %v2567, %v2602
      %v2611 = vmul.f32 %v2569, %v2603
      %v2612 = vmul.f32 %v2571, %v2604
      %v2613 = vmul.f32 %v2573, %v2605
      %v2614 = vpack.c.bf16 %v2607, %v2606
      %v2615 = vpack.c.bf16 %v2609, %v2608
      %v2616 = vpack.c.bf16 %v2611, %v2610
      %v2617 = vpack.c.bf16 %v2613, %v2612
      %2618 = vrot.lane.b32.xlu0 %v586, 40
      %v2619 = vpop.permute.xlu0 %2618
      %v2622 = vsel %vm791, %v2614, 0
      %2624 = vmatprep.subr.bf16.mxu0 0
      %2625 = vmatpush1.bf16.msra.mxu0 0
      %2626 = vmatprep.subr.bf16.mxu0 0
      %2627 = vmatpush1.bf16.msra.mxu0 0
      %2628 = vmatprep.subr.bf16.mxu0 0
      %2629 = vmatpush1.bf16.msra.mxu0 0
      %2630 = vmatprep.subr.bf16.mxu0 0
      %2631 = vmatpush1.bf16.msra.mxu0 0
      %2632 = vmatprep.subr.bf16.mxu0 0
      %2633 = vmatpush1.bf16.msra.mxu0 0
      %2634 = vmatprep.subr.bf16.mxu0 0
      %2635 = vmatpush1.bf16.msra.mxu0 0
      %2636 = vmatprep.subr.bf16.mxu0 0
      %2637 = vmatpush1.bf16.msra.mxu0 0
      %2638 = vmatprep.subr.bf16.mxu0 0
      %2639 = vmatpush1.bf16.msra.mxu0 %v2619
      %2640 = vmatprep.subr.bf16.mxu0 0
      %2641 = vmatpush2.bf16.msra.mxu0 0
      %2642 = vmatprep.subr.bf16.mxu0 0
      %2643 = vmatpush2.bf16.msra.mxu0 0
      %2644 = vmatprep.subr.bf16.mxu0 0
      %2645 = vmatpush2.bf16.msra.mxu0 0
      %2646 = vmatprep.subr.bf16.mxu0 0
      %2647 = vmatpush2.bf16.msra.mxu0 0
      %2648 = vmatprep.subr.bf16.mxu0 0
      %2649 = vmatpush2.bf16.msra.mxu0 0
      %2650 = vmatprep.subr.bf16.mxu0 0
      %2651 = vmatpush2.bf16.msra.mxu0 0
      %2652 = vmatprep.subr.bf16.mxu0 0
      %2653 = vmatpush2.bf16.msra.mxu0 0
      %2654 = vmatprep.subr.bf16.mxu0 0
      %2655 = vmatpush2.bf16.msra.mxu0 0
      %2656 = vmatprep.mubr.bf16.mxu0 0
      %2657 = vmatmul.mubr.bf16.gmra.mxu0 %v2622
      %v2658 = vpop.f32.mrf.mxu0
      %v2659 = vadd.f32 0.0, %v2658
      %v2660 = vpop.f32.mrf.mxu0
      %v2661 = vpop.f32.mrf.mxu0
      %v2662 = vadd.f32 0.0, %v2661
      %v2663 = vpop.f32.mrf.mxu0
      %2664 = vdwg.mxu0
      %2665 = vrot.lane.b32.xlu0 %v587, 40
      %v2666 = vpop.permute.xlu0 %2665
      %v2669 = vsel %vm791, %v2615, 0
      %2671 = vmatprep.subr.bf16.mxu0 0
      %2672 = vmatpush1.bf16.msra.mxu0 0
      %2673 = vmatprep.subr.bf16.mxu0 0
      %2674 = vmatpush1.bf16.msra.mxu0 0
      %2675 = vmatprep.subr.bf16.mxu0 0
      %2676 = vmatpush1.bf16.msra.mxu0 0
      %2677 = vmatprep.subr.bf16.mxu0 0
      %2678 = vmatpush1.bf16.msra.mxu0 0
      %2679 = vmatprep.subr.bf16.mxu0 0
      %2680 = vmatpush1.bf16.msra.mxu0 0
      %2681 = vmatprep.subr.bf16.mxu0 0
      %2682 = vmatpush1.bf16.msra.mxu0 0
      %2683 = vmatprep.subr.bf16.mxu0 0
      %2684 = vmatpush1.bf16.msra.mxu0 0
      %2685 = vmatprep.subr.bf16.mxu0 0
      %2686 = vmatpush1.bf16.msra.mxu0 %v2666
      %2687 = vmatprep.subr.bf16.mxu0 0
      %2688 = vmatpush2.bf16.msra.mxu0 0
      %2689 = vmatprep.subr.bf16.mxu0 0
      %2690 = vmatpush2.bf16.msra.mxu0 0
      %2691 = vmatprep.subr.bf16.mxu0 0
      %2692 = vmatpush2.bf16.msra.mxu0 0
      %2693 = vmatprep.subr.bf16.mxu0 0
      %2694 = vmatpush2.bf16.msra.mxu0 0
      %2695 = vmatprep.subr.bf16.mxu0 0
      %2696 = vmatpush2.bf16.msra.mxu0 0
      %2697 = vmatprep.subr.bf16.mxu0 0
      %2698 = vmatpush2.bf16.msra.mxu0 0
      %2699 = vmatprep.subr.bf16.mxu0 0
      %2700 = vmatpush2.bf16.msra.mxu0 0
      %2701 = vmatprep.subr.bf16.mxu0 0
      %2702 = vmatpush2.bf16.msra.mxu0 0
      %2703 = vmatprep.mubr.bf16.mxu0 0
      %2704 = vmatmul.mubr.bf16.gmra.mxu0 %v2669
      %v2705 = vpop.f32.mrf.mxu0
      %v2706 = vadd.f32 0.0, %v2705
      %v2707 = vpop.f32.mrf.mxu0
      %v2708 = vpop.f32.mrf.mxu0
      %v2709 = vadd.f32 0.0, %v2708
      %v2710 = vpop.f32.mrf.mxu0
      %2711 = vdwg.mxu0
      %2712 = vrot.lane.b32.xlu0 %v588, 40
      %v2713 = vpop.permute.xlu0 %2712
      %v2716 = vsel %vm791, %v2616, 0
      %2718 = vmatprep.subr.bf16.mxu0 0
      %2719 = vmatpush1.bf16.msra.mxu0 0
      %2720 = vmatprep.subr.bf16.mxu0 0
      %2721 = vmatpush1.bf16.msra.mxu0 0
      %2722 = vmatprep.subr.bf16.mxu0 0
      %2723 = vmatpush1.bf16.msra.mxu0 0
      %2724 = vmatprep.subr.bf16.mxu0 0
      %2725 = vmatpush1.bf16.msra.mxu0 0
      %2726 = vmatprep.subr.bf16.mxu0 0
      %2727 = vmatpush1.bf16.msra.mxu0 0
      %2728 = vmatprep.subr.bf16.mxu0 0
      %2729 = vmatpush1.bf16.msra.mxu0 0
      %2730 = vmatprep.subr.bf16.mxu0 0
      %2731 = vmatpush1.bf16.msra.mxu0 0
      %2732 = vmatprep.subr.bf16.mxu0 0
      %2733 = vmatpush1.bf16.msra.mxu0 %v2713
      %2734 = vmatprep.subr.bf16.mxu0 0
      %2735 = vmatpush2.bf16.msra.mxu0 0
      %2736 = vmatprep.subr.bf16.mxu0 0
      %2737 = vmatpush2.bf16.msra.mxu0 0
      %2738 = vmatprep.subr.bf16.mxu0 0
      %2739 = vmatpush2.bf16.msra.mxu0 0
      %2740 = vmatprep.subr.bf16.mxu0 0
      %2741 = vmatpush2.bf16.msra.mxu0 0
      %2742 = vmatprep.subr.bf16.mxu0 0
      %2743 = vmatpush2.bf16.msra.mxu0 0
      %2744 = vmatprep.subr.bf16.mxu0 0
      %2745 = vmatpush2.bf16.msra.mxu0 0
      %2746 = vmatprep.subr.bf16.mxu0 0
      %2747 = vmatpush2.bf16.msra.mxu0 0
      %2748 = vmatprep.subr.bf16.mxu0 0
      %2749 = vmatpush2.bf16.msra.mxu0 0
      %2750 = vmatprep.mubr.bf16.mxu0 0
      %2751 = vmatmul.mubr.bf16.gmra.mxu0 %v2716
      %v2752 = vpop.f32.mrf.mxu0
      %v2753 = vadd.f32 0.0, %v2752
      %v2754 = vpop.f32.mrf.mxu0
      %v2755 = vpop.f32.mrf.mxu0
      %v2756 = vadd.f32 0.0, %v2755
      %v2757 = vpop.f32.mrf.mxu0
      %2758 = vdwg.mxu0
      %2759 = vrot.lane.b32.xlu0 %v589, 40
      %v2760 = vpop.permute.xlu0 %2759
      %v2763 = vsel %vm791, %v2617, 0
      %2765 = vmatprep.subr.bf16.mxu0 0
      %2766 = vmatpush1.bf16.msra.mxu0 0
      %2767 = vmatprep.subr.bf16.mxu0 0
      %2768 = vmatpush1.bf16.msra.mxu0 0
      %2769 = vmatprep.subr.bf16.mxu0 0
      %2770 = vmatpush1.bf16.msra.mxu0 0
      %2771 = vmatprep.subr.bf16.mxu0 0
      %2772 = vmatpush1.bf16.msra.mxu0 0
      %2773 = vmatprep.subr.bf16.mxu0 0
      %2774 = vmatpush1.bf16.msra.mxu0 0
      %2775 = vmatprep.subr.bf16.mxu0 0
      %2776 = vmatpush1.bf16.msra.mxu0 0
      %2777 = vmatprep.subr.bf16.mxu0 0
      %2778 = vmatpush1.bf16.msra.mxu0 0
      %2779 = vmatprep.subr.bf16.mxu0 0
      %2780 = vmatpush1.bf16.msra.mxu0 %v2760
      %2781 = vmatprep.subr.bf16.mxu0 0
      %2782 = vmatpush2.bf16.msra.mxu0 0
      %2783 = vmatprep.subr.bf16.mxu0 0
      %2784 = vmatpush2.bf16.msra.mxu0 0
      %2785 = vmatprep.subr.bf16.mxu0 0
      %2786 = vmatpush2.bf16.msra.mxu0 0
      %2787 = vmatprep.subr.bf16.mxu0 0
      %2788 = vmatpush2.bf16.msra.mxu0 0
      %2789 = vmatprep.subr.bf16.mxu0 0
      %2790 = vmatpush2.bf16.msra.mxu0 0
      %2791 = vmatprep.subr.bf16.mxu0 0
      %2792 = vmatpush2.bf16.msra.mxu0 0
      %2793 = vmatprep.subr.bf16.mxu0 0
      %2794 = vmatpush2.bf16.msra.mxu0 0
      %2795 = vmatprep.subr.bf16.mxu0 0
      %2796 = vmatpush2.bf16.msra.mxu0 0
      %2797 = vmatprep.mubr.bf16.mxu0 0
      %2798 = vmatmul.mubr.bf16.gmra.mxu0 %v2763
      %v2799 = vpop.f32.mrf.mxu0
      %v2800 = vadd.f32 0.0, %v2799
      %v2801 = vpop.f32.mrf.mxu0
      %v2802 = vpop.f32.mrf.mxu0
      %v2803 = vadd.f32 0.0, %v2802
      %v2804 = vpop.f32.mrf.mxu0
      %2805 = vdwg.mxu0
      %v2806 = vpack.c.bf16 %v2662, %v2659
      %v2807 = vpack.c.bf16 %v2709, %v2706
      %v2808 = vpack.c.bf16 %v2756, %v2753
      %v2809 = vpack.c.bf16 %v2803, %v2800
      %s2810 = scalar_lea.vmem %s6, 12
      %v2811 = vld [vmem:[%s2810] sm:$0xf]
      %v2813 = vsel %vm593, %v2806, 0
      %v2816 = vsel %vm593, %v2807, 0
      %v2819 = vsel %vm593, %v2808, 0
      %v2822 = vsel %vm593, %v2809, 0
      %v2825 = vsel %vm1089, %v2811, 0
      %2827 = vmatprep.subr.bf16.mxu0 0
      %2828 = vmatpush1.bf16.msra.mxu0 0
      %2829 = vmatprep.subr.bf16.mxu0 0
      %2830 = vmatpush1.bf16.msra.mxu0 0
      %2831 = vmatprep.subr.bf16.mxu0 0
      %2832 = vmatpush1.bf16.msra.mxu0 0
      %2833 = vmatprep.subr.bf16.mxu0 0
      %2834 = vmatpush1.bf16.msra.mxu0 0
      %2835 = vmatprep.subr.bf16.mxu0 0
      %2836 = vmatpush1.bf16.msra.mxu0 0
      %2837 = vmatprep.subr.bf16.mxu0 0
      %2838 = vmatpush1.bf16.msra.mxu0 0
      %2839 = vmatprep.subr.bf16.mxu0 0
      %2840 = vmatpush1.bf16.msra.mxu0 0
      %2841 = vmatprep.subr.bf16.mxu0 0
      %2842 = vmatpush1.bf16.msra.mxu0 %v2825
      %2843 = vmatprep.subr.bf16.mxu0 0
      %2844 = vmatpush2.bf16.msra.mxu0 0
      %2845 = vmatprep.subr.bf16.mxu0 0
      %2846 = vmatpush2.bf16.msra.mxu0 0
      %2847 = vmatprep.subr.bf16.mxu0 0
      %2848 = vmatpush2.bf16.msra.mxu0 0
      %2849 = vmatprep.subr.bf16.mxu0 0
      %2850 = vmatpush2.bf16.msra.mxu0 0
      %2851 = vmatprep.subr.bf16.mxu0 0
      %2852 = vmatpush2.bf16.msra.mxu0 0
      %2853 = vmatprep.subr.bf16.mxu0 0
      %2854 = vmatpush2.bf16.msra.mxu0 0
      %2855 = vmatprep.subr.bf16.mxu0 0
      %2856 = vmatpush2.bf16.msra.mxu0 0
      %2857 = vmatprep.subr.bf16.mxu0 0
      %2858 = vmatpush2.bf16.msra.mxu0 0
      %2859 = vmatprep.mubr.bf16.mxu0 0
      %2860 = vmatmul.mubr.bf16.gmra.mxu0 %v2813
      %v2861 = vpop.f32.mrf.mxu0
      %v2862 = vadd.f32 0.0, %v2861
      %v2863 = vpop.f32.mrf.mxu0
      %v2864 = vpop.f32.mrf.mxu0
      %v2865 = vadd.f32 0.0, %v2864
      %v2866 = vpop.f32.mrf.mxu0
      %2867 = vmatprep.mubr.bf16.mxu0 0
      %2868 = vmatmul.mubr.bf16.gmra.mxu0 %v2816
      %v2869 = vpop.f32.mrf.mxu0
      %v2870 = vadd.f32 0.0, %v2869
      %v2871 = vpop.f32.mrf.mxu0
      %v2872 = vpop.f32.mrf.mxu0
      %v2873 = vadd.f32 0.0, %v2872
      %v2874 = vpop.f32.mrf.mxu0
      %2875 = vmatprep.mubr.bf16.mxu0 0
      %2876 = vmatmul.mubr.bf16.gmra.mxu0 %v2819
      %v2877 = vpop.f32.mrf.mxu0
      %v2878 = vadd.f32 0.0, %v2877
      %v2879 = vpop.f32.mrf.mxu0
      %v2880 = vpop.f32.mrf.mxu0
      %v2881 = vadd.f32 0.0, %v2880
      %v2882 = vpop.f32.mrf.mxu0
      %2883 = vmatprep.mubr.bf16.mxu0 0
      %2884 = vmatmul.mubr.bf16.gmra.mxu0 %v2822
      %v2885 = vpop.f32.mrf.mxu0
      %v2886 = vadd.f32 0.0, %v2885
      %v2887 = vpop.f32.mrf.mxu0
      %v2888 = vpop.f32.mrf.mxu0
      %v2889 = vadd.f32 0.0, %v2888
      %v2890 = vpop.f32.mrf.mxu0
      %2891 = vdwg.mxu0
      %v2892 = vadd.f32 %v2314, %v2862
      %v2893 = vadd.f32 %v2315, %v2865
      %v2894 = vadd.f32 %v2316, %v2870
      %v2895 = vadd.f32 %v2317, %v2873
      %v2896 = vadd.f32 %v2318, %v2878
      %v2897 = vadd.f32 %v2319, %v2881
      %v2898 = vadd.f32 %v2320, %v2886
      %v2899 = vadd.f32 %v2321, %v2889
      %2900 = vst.msk [vmem:[%s312] sm:$0xff] %vm323, %v2892
      %2901 = vst.msk [vmem:[%s312 + $0x8] sm:$0xff] %vm323, %v2893
      %2902 = vst.msk [vmem:[%s312 + $0x10] sm:$0xff] %vm323, %v2894
      %2903 = vst.msk [vmem:[%s312 + $0x18] sm:$0xff] %vm323, %v2895
      %2904 = vst.msk [vmem:[%s312 + $0x20] sm:$0xff] %vm323, %v2896
      %2905 = vst.msk [vmem:[%s312 + $0x28] sm:$0xff] %vm323, %v2897
      %2906 = vst.msk [vmem:[%s312 + $0x30] sm:$0xff] %vm323, %v2898
      %2907 = vst.msk [vmem:[%s312 + $0x38] sm:$0xff] %vm323, %v2899
      %s2908 = smul.u32 4, %s19
      %p2909 = scmp.lt.s32.totalorder %s2908, 7
      %s2910 = scalar_select %p2909, %s2908, 7
      %s2911 = smul.addr %s2910, 2
      %s2912 = smul.addr %s2911, 8
      %s2913 = scalar_lea.vmem %s8, %s2912
      // Predicated region
      $region53: #{basic_layer_forward.4} parent=51 // pred_check
        %p2914 = pneg %p210
      $region54: #{basic_layer_forward.4} parent=51 // pred_check_branch
        %2916 = sbr.rel (%p2914) target = $region56
      $region55: #{basic_layer_forward.4} parent=51 // pred_region
        %s2917 = smul.u32 4, %s19
      $region56: #{basic_layer_forward.4} parent=51 // pred_fallthru
        _
    $region52: #{basic_layer_forward.4} parent=5 // pred_fallthru
      _
    %p2918 = scmp.le.s32.totalorder 2, %s14
    // Predicated region
    $region57: #{basic_layer_forward.4} parent=5 // pred_check
      %p2919 = pneg %p2918
    $region58: #{basic_layer_forward.4} parent=5 // pred_check_branch
      %2921 = sbr.rel (%p2919) target = $region60
    $region59: #{basic_layer_forward.4} parent=5 // pred_region
      %s2922 = ssub.s32 %s14, 2
      // Predicated region
      $region61: #{basic_layer_forward.4} parent=59 // pred_check
        %p2923 = pneg %p216
      $region62: #{basic_layer_forward.4} parent=59 // pred_check_branch
        %2925 = sbr.rel (%p2923) target = $region64
      $region63: #{basic_layer_forward.4} parent=59 // pred_region
        %s2926 = smul.u32 4, %s20
        %p2927 = scmp.lt.s32.totalorder %s2926, 7
        %s2928 = scalar_select %p2927, %s2926, 7
        %s2929 = smul.addr %s2928, 2
        %s2930 = smul.addr %s2929, 8
        %s2931 = scalar_lea.vmem %s8, %s2930
      $region64: #{basic_layer_forward.4} parent=59 // pred_fallthru
        _
    $region60: #{basic_layer_forward.4} parent=5 // pred_fallthru
      _
  $region6: #{basic_layer_forward.4} parent=0 // loop_footer
    %s18 = sadd.s32 1, %s14
  $region7: #{basic_layer_forward.4} parent=0 // loop_footer_branch
    %13 = sbr.rel target = $region3
  $region8: #{basic_layer_forward.4} parent=0 // loop_exit
    _

// kernel: basic_layer_forward.6
$region0: #{basic_layer_forward.6}
  #allocation0 [shape = 'u32[]', space=smem, size = 0x4, offset = 0x4, fixed_abs, tag = 'smem constant byte address 0x4 - core index']
  #allocation1 [shape = 'u32[144,128]{1,0:T(1,128)}', space=vmem, size = 0x12000, scoped, tag = 'internal scratch']
  %s0 = inlined_call_operand.vmem [shape: f32[8,16,32], index: 0, kind: input, shape index: {}]
  %s1 = inlined_call_operand.vmem [shape: f32[4,16,16], index: 1, kind: input, shape index: {}]
  %s2 = inlined_call_operand.vmem [shape: f32[4,16,16], index: 2, kind: input, shape index: {}]
  %s3 = inlined_call_operand.vmem [shape: f32[1,32], index: 3, kind: input, shape index: {}]
  %s4 = inlined_call_operand.vmem [shape: f32[1,32], index: 4, kind: input, shape index: {}]
  %s5 = inlined_call_operand.vmem [shape: bf16[32,96], index: 5, kind: input, shape index: {}]
  %s6 = inlined_call_operand.vmem [shape: f32[1,96], index: 6, kind: input, shape index: {}]
  %s7 = inlined_call_operand.vmem [shape: bf16[4,8,32], index: 7, kind: input, shape index: {}]
  %s8 = inlined_call_operand.vmem [shape: f32[1,32], index: 8, kind: input, shape index: {}]
  %s9 = inlined_call_operand.vmem [shape: f32[8,16,32], index: 9, kind: output, shape index: {}]
  %s10 = sld [smem:[#allocation0]]
  $region69: #{basic_layer_forward.6} parent=0
    _
  %s12 = ssub.s32 1, %s10
  %s13 = scalar_select 0, %s12, %s10
  loop: start=0, step=1, limit=4
  $region2: #{basic_layer_forward.6} parent=0 // loop_pre_header
    _
  $region3: #{basic_layer_forward.6} parent=0 // loop_header
    %s15 = sphi 0, %s19
    %p16 = scmp.ge.s32.totalorder %s15, 4
    %s25 = sphi 0, %s27
    %s28 = sphi 0, %s25
    %s29 = sphi 0, %s28
    %s45 = sphi 0, %s29
    %s49 = sphi 0, %s49
    %s51 = sphi 0, %s49
    %s52 = sphi 0, %s51
    %s66 = sphi 0, %s52
    %s70 = sphi 0, %s70
    %s72 = sphi 0, %s70
    %s73 = sphi 0, %s72
    %s87 = sphi 0, %s73
    %s91 = sphi 0, %s91
    %s93 = sphi 0, %s91
    %s94 = sphi 0, %s93
    %s108 = sphi 0, %s94
    %s112 = sphi 0, %s112
    %s114 = sphi 0, %s112
    %s115 = sphi 0, %s114
    %s129 = sphi 0, %s115
    %s133 = sphi 0, %s133
    %s135 = sphi 0, %s133
    %s136 = sphi 0, %s135
    %s150 = sphi 0, %s136
    %s154 = sphi 0, %s154
    %s156 = sphi 0, %s154
    %s157 = sphi 0, %s156
    %s171 = sphi 0, %s157
    %s175 = sphi 0, %s175
    %s177 = sphi 0, %s175
    %s178 = sphi 0, %s177
    %s192 = sphi 0, %s178
    %s196 = sphi 0, %s196
    %s198 = sphi 0, %s196
    %s199 = sphi 0, %s198
    %s213 = sphi 0, %s199
    %s219 = sphi 0, %s221
    %s222 = sphi 0, %s219
    %s223 = sphi 0, %s222
    %s239 = sphi 0, %s223
  $region4: #{basic_layer_forward.6} parent=0 // loop_header_branch
    %18 = sbr.rel (%p16) target = $region8
  $region5: #{basic_layer_forward.6} parent=0 // loop_body
    %s20 = ssub.s32 %s15, 1
    %s21 = ssub.s32 %s15, 2
    %s22 = sadd.s32 %s15, 1
    %s23 = ssub.s32 %s15, %s22
    %p24 = scmp.eq.s32.totalorder %s23, 0
    %s26 = sadd.s32 %s25, 1
    %s27 = scalar_select %p24, %s25, %s26
    %p30 = pneg %p24
    %p31 = scmp.eq.s32.totalorder %s15, 1
    %p32 = por %p30, %p31
    %p33 = scmp.ne.s32.totalorder %s25, %s28
    %p34 = scmp.eq.s32.totalorder %s15, 0
    %p35 = por %p33, %p34
    %p36 = scmp.ne.s32.totalorder %s25, %s28
    %p37 = scmp.eq.s32.totalorder %s20, 1
    %p38 = por %p36, %p37
    %p39 = scmp.ne.s32.totalorder %s28, %s29
    %p40 = scmp.eq.s32.totalorder %s20, 0
    %p41 = por %p39, %p40
    %p42 = scmp.ne.s32.totalorder %s28, %s29
    %p43 = scmp.eq.s32.totalorder %s21, 1
    %p44 = por %p42, %p43
    %p46 = scmp.ne.s32.totalorder %s29, %s45
    %p47 = scmp.eq.s32.totalorder %s21, 0
    %p48 = por %p46, %p47
    %s50 = sadd.s32 %s49, 1
    %p53 = scmp.eq.s32.totalorder %s15, 1
    %p54 = scmp.ne.s32.totalorder %s49, %s51
    %p55 = scmp.eq.s32.totalorder %s15, 0
    %p56 = por %p54, %p55
    %p57 = scmp.ne.s32.totalorder %s49, %s51
    %p58 = scmp.eq.s32.totalorder %s20, 1
    %p59 = por %p57, %p58
    %p60 = scmp.ne.s32.totalorder %s51, %s52
    %p61 = scmp.eq.s32.totalorder %s20, 0
    %p62 = por %p60, %p61
    %p63 = scmp.ne.s32.totalorder %s51, %s52
    %p64 = scmp.eq.s32.totalorder %s21, 1
    %p65 = por %p63, %p64
    %p67 = scmp.ne.s32.totalorder %s52, %s66
    %p68 = scmp.eq.s32.totalorder %s21, 0
    %p69 = por %p67, %p68
    %s71 = sadd.s32 %s70, 1
    %p74 = scmp.eq.s32.totalorder %s15, 1
    %p75 = scmp.ne.s32.totalorder %s70, %s72
    %p76 = scmp.eq.s32.totalorder %s15, 0
    %p77 = por %p75, %p76
    %p78 = scmp.ne.s32.totalorder %s70, %s72
    %p79 = scmp.eq.s32.totalorder %s20, 1
    %p80 = por %p78, %p79
    %p81 = scmp.ne.s32.totalorder %s72, %s73
    %p82 = scmp.eq.s32.totalorder %s20, 0
    %p83 = por %p81, %p82
    %p84 = scmp.ne.s32.totalorder %s72, %s73
    %p85 = scmp.eq.s32.totalorder %s21, 1
    %p86 = por %p84, %p85
    %p88 = scmp.ne.s32.totalorder %s73, %s87
    %p89 = scmp.eq.s32.totalorder %s21, 0
    %p90 = por %p88, %p89
    %s92 = sadd.s32 %s91, 1
    %p95 = scmp.eq.s32.totalorder %s15, 1
    %p96 = scmp.ne.s32.totalorder %s91, %s93
    %p97 = scmp.eq.s32.totalorder %s15, 0
    %p98 = por %p96, %p97
    %p99 = scmp.ne.s32.totalorder %s91, %s93
    %p100 = scmp.eq.s32.totalorder %s20, 1
    %p101 = por %p99, %p100
    %p102 = scmp.ne.s32.totalorder %s93, %s94
    %p103 = scmp.eq.s32.totalorder %s20, 0
    %p104 = por %p102, %p103
    %p105 = scmp.ne.s32.totalorder %s93, %s94
    %p106 = scmp.eq.s32.totalorder %s21, 1
    %p107 = por %p105, %p106
    %p109 = scmp.ne.s32.totalorder %s94, %s108
    %p110 = scmp.eq.s32.totalorder %s21, 0
    %p111 = por %p109, %p110
    %s113 = sadd.s32 %s112, 1
    %p116 = scmp.eq.s32.totalorder %s15, 1
    %p117 = scmp.ne.s32.totalorder %s112, %s114
    %p118 = scmp.eq.s32.totalorder %s15, 0
    %p119 = por %p117, %p118
    %p120 = scmp.ne.s32.totalorder %s112, %s114
    %p121 = scmp.eq.s32.totalorder %s20, 1
    %p122 = por %p120, %p121
    %p123 = scmp.ne.s32.totalorder %s114, %s115
    %p124 = scmp.eq.s32.totalorder %s20, 0
    %p125 = por %p123, %p124
    %p126 = scmp.ne.s32.totalorder %s114, %s115
    %p127 = scmp.eq.s32.totalorder %s21, 1
    %p128 = por %p126, %p127
    %p130 = scmp.ne.s32.totalorder %s115, %s129
    %p131 = scmp.eq.s32.totalorder %s21, 0
    %p132 = por %p130, %p131
    %s134 = sadd.s32 %s133, 1
    %p137 = scmp.eq.s32.totalorder %s15, 1
    %p138 = scmp.ne.s32.totalorder %s133, %s135
    %p139 = scmp.eq.s32.totalorder %s15, 0
    %p140 = por %p138, %p139
    %p141 = scmp.ne.s32.totalorder %s133, %s135
    %p142 = scmp.eq.s32.totalorder %s20, 1
    %p143 = por %p141, %p142
    %p144 = scmp.ne.s32.totalorder %s135, %s136
    %p145 = scmp.eq.s32.totalorder %s20, 0
    %p146 = por %p144, %p145
    %p147 = scmp.ne.s32.totalorder %s135, %s136
    %p148 = scmp.eq.s32.totalorder %s21, 1
    %p149 = por %p147, %p148
    %p151 = scmp.ne.s32.totalorder %s136, %s150
    %p152 = scmp.eq.s32.totalorder %s21, 0
    %p153 = por %p151, %p152
    %s155 = sadd.s32 %s154, 1
    %p158 = scmp.eq.s32.totalorder %s15, 1
    %p159 = scmp.ne.s32.totalorder %s154, %s156
    %p160 = scmp.eq.s32.totalorder %s15, 0
    %p161 = por %p159, %p160
    %p162 = scmp.ne.s32.totalorder %s154, %s156
    %p163 = scmp.eq.s32.totalorder %s20, 1
    %p164 = por %p162, %p163
    %p165 = scmp.ne.s32.totalorder %s156, %s157
    %p166 = scmp.eq.s32.totalorder %s20, 0
    %p167 = por %p165, %p166
    %p168 = scmp.ne.s32.totalorder %s156, %s157
    %p169 = scmp.eq.s32.totalorder %s21, 1
    %p170 = por %p168, %p169
    %p172 = scmp.ne.s32.totalorder %s157, %s171
    %p173 = scmp.eq.s32.totalorder %s21, 0
    %p174 = por %p172, %p173
    %s176 = sadd.s32 %s175, 1
    %p179 = scmp.eq.s32.totalorder %s15, 1
    %p180 = scmp.ne.s32.totalorder %s175, %s177
    %p181 = scmp.eq.s32.totalorder %s15, 0
    %p182 = por %p180, %p181
    %p183 = scmp.ne.s32.totalorder %s175, %s177
    %p184 = scmp.eq.s32.totalorder %s20, 1
    %p185 = por %p183, %p184
    %p186 = scmp.ne.s32.totalorder %s177, %s178
    %p187 = scmp.eq.s32.totalorder %s20, 0
    %p188 = por %p186, %p187
    %p189 = scmp.ne.s32.totalorder %s177, %s178
    %p190 = scmp.eq.s32.totalorder %s21, 1
    %p191 = por %p189, %p190
    %p193 = scmp.ne.s32.totalorder %s178, %s192
    %p194 = scmp.eq.s32.totalorder %s21, 0
    %p195 = por %p193, %p194
    %s197 = sadd.s32 %s196, 1
    %p200 = scmp.eq.s32.totalorder %s15, 1
    %p201 = scmp.ne.s32.totalorder %s196, %s198
    %p202 = scmp.eq.s32.totalorder %s15, 0
    %p203 = por %p201, %p202
    %p204 = scmp.ne.s32.totalorder %s196, %s198
    %p205 = scmp.eq.s32.totalorder %s20, 1
    %p206 = por %p204, %p205
    %p207 = scmp.ne.s32.totalorder %s198, %s199
    %p208 = scmp.eq.s32.totalorder %s20, 0
    %p209 = por %p207, %p208
    %p210 = scmp.ne.s32.totalorder %s198, %s199
    %p211 = scmp.eq.s32.totalorder %s21, 1
    %p212 = por %p210, %p211
    %p214 = scmp.ne.s32.totalorder %s199, %s213
    %p215 = scmp.eq.s32.totalorder %s21, 0
    %p216 = por %p214, %p215
    %s217 = ssub.s32 %s15, %s22
    %p218 = scmp.eq.s32.totalorder %s217, 0
    %s220 = sadd.s32 %s219, 1
    %s221 = scalar_select %p218, %s219, %s220
    %p224 = pneg %p218
    %p225 = scmp.eq.s32.totalorder %s15, 1
    %p226 = por %p224, %p225
    %p227 = scmp.ne.s32.totalorder %s219, %s222
    %p228 = scmp.eq.s32.totalorder %s15, 0
    %p229 = por %p227, %p228
    %p230 = scmp.ne.s32.totalorder %s219, %s222
    %p231 = scmp.eq.s32.totalorder %s20, 1
    %p232 = por %p230, %p231
    %p233 = scmp.ne.s32.totalorder %s222, %s223
    %p234 = scmp.eq.s32.totalorder %s20, 0
    %p235 = por %p233, %p234
    %p236 = scmp.ne.s32.totalorder %s222, %s223
    %p237 = scmp.eq.s32.totalorder %s21, 1
    %p238 = por %p236, %p237
    %p240 = scmp.ne.s32.totalorder %s223, %s239
    %p241 = scmp.eq.s32.totalorder %s21, 0
    %p242 = por %p240, %p241
    %p243 = scmp.le.s32.totalorder 1, %s15
    %p244 = scmp.lt.s32.totalorder %s15, 3
    %p245 = pnand %p243, %p244
    %p246 = pneg %p245
    // Predicated region
    $region9: #{basic_layer_forward.6} parent=5 // pred_check
      _
    $region10: #{basic_layer_forward.6} parent=5 // pred_check_branch
      %248 = sbr.rel (%p245) target = $region12
    $region11: #{basic_layer_forward.6} parent=5 // pred_region
      %s249 = ssub.s32 %s15, 1
      // Predicated region
      $region13: #{basic_layer_forward.6} parent=11 // pred_check
        %p250 = pneg %p62
      $region14: #{basic_layer_forward.6} parent=11 // pred_check_branch
        %252 = sbr.rel (%p250) target = $region16
      $region15: #{basic_layer_forward.6} parent=11 // pred_region
        _
      $region16: #{basic_layer_forward.6} parent=11 // pred_fallthru
        _
      // Predicated region
      $region17: #{basic_layer_forward.6} parent=11 // pred_check
        %p253 = pneg %p83
      $region18: #{basic_layer_forward.6} parent=11 // pred_check_branch
        %255 = sbr.rel (%p253) target = $region20
      $region19: #{basic_layer_forward.6} parent=11 // pred_region
        _
      $region20: #{basic_layer_forward.6} parent=11 // pred_fallthru
        _
      // Predicated region
      $region21: #{basic_layer_forward.6} parent=11 // pred_check
        %p256 = pneg %p104
      $region22: #{basic_layer_forward.6} parent=11 // pred_check_branch
        %258 = sbr.rel (%p256) target = $region24
      $region23: #{basic_layer_forward.6} parent=11 // pred_region
        _
      $region24: #{basic_layer_forward.6} parent=11 // pred_fallthru
        _
      // Predicated region
      $region25: #{basic_layer_forward.6} parent=11 // pred_check
        %p259 = pneg %p125
      $region26: #{basic_layer_forward.6} parent=11 // pred_check_branch
        %261 = sbr.rel (%p259) target = $region28
      $region27: #{basic_layer_forward.6} parent=11 // pred_region
        _
      $region28: #{basic_layer_forward.6} parent=11 // pred_fallthru
        _
      // Predicated region
      $region29: #{basic_layer_forward.6} parent=11 // pred_check
        %p262 = pneg %p146
      $region30: #{basic_layer_forward.6} parent=11 // pred_check_branch
        %264 = sbr.rel (%p262) target = $region32
      $region31: #{basic_layer_forward.6} parent=11 // pred_region
        _
      $region32: #{basic_layer_forward.6} parent=11 // pred_fallthru
        _
      // Predicated region
      $region33: #{basic_layer_forward.6} parent=11 // pred_check
        %p265 = pneg %p167
      $region34: #{basic_layer_forward.6} parent=11 // pred_check_branch
        %267 = sbr.rel (%p265) target = $region36
      $region35: #{basic_layer_forward.6} parent=11 // pred_region
        _
      $region36: #{basic_layer_forward.6} parent=11 // pred_fallthru
        _
      // Predicated region
      $region37: #{basic_layer_forward.6} parent=11 // pred_check
        %p268 = pneg %p188
      $region38: #{basic_layer_forward.6} parent=11 // pred_check_branch
        %270 = sbr.rel (%p268) target = $region40
      $region39: #{basic_layer_forward.6} parent=11 // pred_region
        _
      $region40: #{basic_layer_forward.6} parent=11 // pred_fallthru
        _
      // Predicated region
      $region41: #{basic_layer_forward.6} parent=11 // pred_check
        %p271 = pneg %p209
      $region42: #{basic_layer_forward.6} parent=11 // pred_check_branch
        %273 = sbr.rel (%p271) target = $region44
      $region43: #{basic_layer_forward.6} parent=11 // pred_region
        _
      $region44: #{basic_layer_forward.6} parent=11 // pred_fallthru
        _
    $region12: #{basic_layer_forward.6} parent=5 // pred_fallthru
      _
    %p274 = scmp.lt.s32.totalorder %s15, 2
    // Predicated region
    $region45: #{basic_layer_forward.6} parent=5 // pred_check
      %p275 = pneg %p274
    $region46: #{basic_layer_forward.6} parent=5 // pred_check_branch
      %277 = sbr.rel (%p275) target = $region48
    $region47: #{basic_layer_forward.6} parent=5 // pred_region
      // Predicated region
      $region49: #{basic_layer_forward.6} parent=47 // pred_check
        %p278 = pneg %p35
      $region50: #{basic_layer_forward.6} parent=47 // pred_check_branch
        %280 = sbr.rel (%p278) target = $region52
      $region51: #{basic_layer_forward.6} parent=47 // pred_region
        %s281 = smul.u32 4, %s15
        %p282 = scmp.lt.s32.totalorder %s281, 7
        %s283 = scalar_select %p282, %s281, 7
        %s284 = smul.addr %s283, 2
        %s285 = smul.addr %s284, 8
        %s286 = scalar_lea.vmem %s0, %s285
        %s287 = smul.u32 4, %s15
      $region52: #{basic_layer_forward.6} parent=47 // pred_fallthru
        _
    $region48: #{basic_layer_forward.6} parent=5 // pred_fallthru
      _
    %p288 = scmp.le.s32.totalorder 1, %s15
    %p289 = scmp.lt.s32.totalorder %s15, 3
    %p290 = pnand %p288, %p289
    %p291 = pneg %p290
    // Predicated region
    $region53: #{basic_layer_forward.6} parent=5 // pred_check
      _
    $region54: #{basic_layer_forward.6} parent=5 // pred_check_branch
      %293 = sbr.rel (%p290) target = $region56
    $region55: #{basic_layer_forward.6} parent=5 // pred_region
      %s294 = ssub.s32 %s15, 1
      %s295 = smul.u32 4, %s20
      %p296 = scmp.lt.s32.totalorder %s295, 7
      %s297 = scalar_select %p296, %s295, 7
      %s298 = smul.addr %s297, 2
      %s299 = smul.addr %s298, 8
      %s300 = scalar_lea.vmem %s0, %s299
      %p301 = pneg %p41
      %p302 = pneg %p38
      %p303 = pneg %p62
      %p304 = pneg %p59
      %p305 = pneg %p83
      %p306 = pneg %p80
      %p307 = pneg %p104
      %p308 = pneg %p101
      %p309 = pneg %p125
      %p310 = pneg %p122
      %p311 = pneg %p146
      %p312 = pneg %p143
      %p313 = pneg %p167
      %p314 = pneg %p164
      %p315 = pneg %p188
      %p316 = pneg %p185
      %p317 = pneg %p209
      %p318 = pneg %p206
      %p319 = pneg %p235
      %p320 = pneg %p232
      %s321 = smul.u32 4, %s20
      %p322 = scmp.lt.s32.totalorder %s321, 7
      %s323 = scalar_select %p322, %s321, 7
      %s324 = smul.addr %s323, 2
      %s325 = smul.addr %s324, 8
      %s326 = scalar_lea.vmem %s9, %s325
      %s327 = smul.u32 4, %s20
      %p328 = scmp.lt.s32.totalorder %s327, 7
      %s329 = scalar_select %p328, %s327, 7
      %s330 = smul.addr %s329, 2
      %s331 = smul.addr %s330, 8
      %s332 = scalar_lea.vmem %s0, %s331
      %s333 = smul.u32 4, %s20
      %s334 = smul.u32 4, %s20
      %p335 = scmp.lt.s32.totalorder %s334, 7
      %s336 = scalar_select %p335, %s334, 7
      %s337 = smul.addr %s336, 2
      %s338 = smul.addr %s337, 8
      %s339 = scalar_lea.vmem %s9, %s338
      %s340 = smul.u32 4, %s20
      %v342 = vld [vmem:[%s332] sm:$0xff]
      %v343 = vld [vmem:[%s332 + $0x8] sm:$0xff]
      %v344 = vld [vmem:[%s332 + $0x10] sm:$0xff]
      %v345 = vld [vmem:[%s332 + $0x18] sm:$0xff]
      %v346 = vld [vmem:[%s332 + $0x20] sm:$0xff]
      %v347 = vld [vmem:[%s332 + $0x28] sm:$0xff]
      %v348 = vld [vmem:[%s332 + $0x30] sm:$0xff]
      %v349 = vld [vmem:[%s332 + $0x38] sm:$0xff]
      %vm350 = vcmask 261120
      %v351 = vsel %vm350, %v342, 0.0
      %352 = vadd.xlane.f32.xlu0 %v351
      %v353 = vpop.xlane.xlu0 %352
      %v354 = vsel %vm350, %v343, 0.0
      %355 = vadd.xlane.f32.xlu0 %v354
      %v356 = vpop.xlane.xlu0 %355
      %v357 = vsel %vm350, %v344, 0.0
      %358 = vadd.xlane.f32.xlu0 %v357
      %v359 = vpop.xlane.xlu0 %358
      %v360 = vsel %vm350, %v345, 0.0
      %361 = vadd.xlane.f32.xlu0 %v360
      %v362 = vpop.xlane.xlu0 %361
      %v363 = vsel %vm350, %v346, 0.0
      %364 = vadd.xlane.f32.xlu0 %v363
      %v365 = vpop.xlane.xlu0 %364
      %v366 = vsel %vm350, %v347, 0.0
      %367 = vadd.xlane.f32.xlu0 %v366
      %v368 = vpop.xlane.xlu0 %367
      %v369 = vsel %vm350, %v348, 0.0
      %370 = vadd.xlane.f32.xlu0 %v369
      %v371 = vpop.xlane.xlu0 %370
      %v372 = vsel %vm350, %v349, 0.0
      %373 = vadd.xlane.f32.xlu0 %v372
      %v374 = vpop.xlane.xlu0 %373
      %v375 = vrcp.pop 32.0
      %v376 = vmul.f32 %v353, %v375
      %v377 = vmul.f32 %v356, %v375
      %v378 = vmul.f32 %v359, %v375
      %v379 = vmul.f32 %v362, %v375
      %v380 = vmul.f32 %v365, %v375
      %v381 = vmul.f32 %v368, %v375
      %v382 = vmul.f32 %v371, %v375
      %v383 = vmul.f32 %v374, %v375
      %v384 = vsub.f32 %v342, %v376
      %v385 = vsub.f32 %v343, %v377
      %v386 = vsub.f32 %v344, %v378
      %v387 = vsub.f32 %v345, %v379
      %v388 = vsub.f32 %v346, %v380
      %v389 = vsub.f32 %v347, %v381
      %v390 = vsub.f32 %v348, %v382
      %v391 = vsub.f32 %v349, %v383
      %v392 = vmul.f32 %v384, %v384
      %v393 = vmul.f32 %v385, %v385
      %v394 = vmul.f32 %v386, %v386
      %v395 = vmul.f32 %v387, %v387
      %v396 = vmul.f32 %v388, %v388
      %v397 = vmul.f32 %v389, %v389
      %v398 = vmul.f32 %v390, %v390
      %v399 = vmul.f32 %v391, %v391
      %v400 = vsel %vm350, %v392, 0.0
      %401 = vadd.xlane.f32.xlu0 %v400
      %v402 = vpop.xlane.xlu0 %401
      %v403 = vsel %vm350, %v393, 0.0
      %404 = vadd.xlane.f32.xlu0 %v403
      %v405 = vpop.xlane.xlu0 %404
      %v406 = vsel %vm350, %v394, 0.0
      %407 = vadd.xlane.f32.xlu0 %v406
      %v408 = vpop.xlane.xlu0 %407
      %v409 = vsel %vm350, %v395, 0.0
      %410 = vadd.xlane.f32.xlu0 %v409
      %v411 = vpop.xlane.xlu0 %410
      %v412 = vsel %vm350, %v396, 0.0
      %413 = vadd.xlane.f32.xlu0 %v412
      %v414 = vpop.xlane.xlu0 %413
      %v415 = vsel %vm350, %v397, 0.0
      %416 = vadd.xlane.f32.xlu0 %v415
      %v417 = vpop.xlane.xlu0 %416
      %v418 = vsel %vm350, %v398, 0.0
      %419 = vadd.xlane.f32.xlu0 %v418
      %v420 = vpop.xlane.xlu0 %419
      %v421 = vsel %vm350, %v399, 0.0
      %422 = vadd.xlane.f32.xlu0 %v421
      %v423 = vpop.xlane.xlu0 %422
      %v424 = vmul.f32 %v402, %v375
      %v425 = vmul.f32 %v405, %v375
      %v426 = vmul.f32 %v408, %v375
      %v427 = vmul.f32 %v411, %v375
      %v428 = vmul.f32 %v414, %v375
      %v429 = vmul.f32 %v417, %v375
      %v430 = vmul.f32 %v420, %v375
      %v431 = vmul.f32 %v423, %v375
      %v432 = vadd.f32 %v424, 1e-05
      %v433 = vadd.f32 %v425, 1e-05
      %v434 = vadd.f32 %v426, 1e-05
      %v435 = vadd.f32 %v427, 1e-05
      %v436 = vadd.f32 %v428, 1e-05
      %v437 = vadd.f32 %v429, 1e-05
      %v438 = vadd.f32 %v430, 1e-05
      %v439 = vadd.f32 %v431, 1e-05
      %v440 = vrsqrt.pop %v432
      %v441 = vrsqrt.pop %v433
      %v442 = vrsqrt.pop %v434
      %v443 = vrsqrt.pop %v435
      %v444 = vrsqrt.pop %v436
      %v445 = vrsqrt.pop %v437
      %v446 = vrsqrt.pop %v438
      %v447 = vrsqrt.pop %v439
      %v448 = vmul.f32 %v384, %v440
      %v449 = vmul.f32 %v385, %v441
      %v450 = vmul.f32 %v386, %v442
      %v451 = vmul.f32 %v387, %v443
      %v452 = vmul.f32 %v388, %v444
      %v453 = vmul.f32 %v389, %v445
      %v454 = vmul.f32 %v390, %v446
      %v455 = vmul.f32 %v391, %v447
      %v456 = vld [vmem:[%s3] sm:$0x1]
      %v458 = vlaneseq
      %v459 = vshrl.u32 %v458, 7
      %v460 = vsub.s32 0, %v459
      %v461 = vrot.slane %v456, %v460
      %v463 = vmul.f32 %v448, %v461
      %v464 = vmul.f32 %v449, %v461
      %v465 = vmul.f32 %v450, %v461
      %v466 = vmul.f32 %v451, %v461
      %v467 = vmul.f32 %v452, %v461
      %v468 = vmul.f32 %v453, %v461
      %v469 = vmul.f32 %v454, %v461
      %v470 = vmul.f32 %v455, %v461
      %v471 = vld [vmem:[%s4] sm:$0x1]
      %v473 = vlaneseq
      %v474 = vshrl.u32 %v473, 7
      %v475 = vsub.s32 0, %v474
      %v476 = vrot.slane %v471, %v475
      %v478 = vadd.f32 %v463, %v476
      %v479 = vadd.f32 %v464, %v476
      %v480 = vadd.f32 %v465, %v476
      %v481 = vadd.f32 %v466, %v476
      %v482 = vadd.f32 %v467, %v476
      %v483 = vadd.f32 %v468, %v476
      %v484 = vadd.f32 %v469, %v476
      %v485 = vadd.f32 %v470, %v476
      %v486 = vpack.c.bf16 %v479, %v478
      %v487 = vpack.c.bf16 %v481, %v480
      %v488 = vpack.c.bf16 %v483, %v482
      %v489 = vpack.c.bf16 %v485, %v484
      %v490 = vld [vmem:[%s5] sm:$0xf]
      %v491 = vld [vmem:[%s5 + $0x4] sm:$0xf]
      %v492 = vld [vmem:[%s5 + $0x8] sm:$0xf]
      %v493 = vld [vmem:[%s5 + $0xc] sm:$0xf]
      %v494 = vld [vmem:[%s6] sm:$0x1]
      %v496 = vlaneseq
      %v497 = vshrl.u32 %v496, 7
      %v498 = vsub.s32 0, %v497
      %v499 = vrot.slane %v494, %v498
      %v505 = vunpack.c.l.b16 %v490
      %v506 = vunpack.c.l.b16 %v491
      %v507 = vunpack.c.l.b16 %v492
      %v508 = vunpack.c.l.b16 %v493
      %v509 = vpack.c.b16 %v506, %v505
      %v510 = vpack.c.b16 %v508, %v507
      %v514 = vsel %vm350, %v486, 0
      %v517 = vsel %vm350, %v487, 0
      %v520 = vsel %vm350, %v488, 0
      %v523 = vsel %vm350, %v489, 0
      %525 = vmatprep.subr.bf16.mxu0 0
      %526 = vmatpush1.bf16.msra.mxu0 0
      %527 = vmatprep.subr.bf16.mxu0 0
      %528 = vmatpush1.bf16.msra.mxu0 0
      %529 = vmatprep.subr.bf16.mxu0 0
      %530 = vmatpush1.bf16.msra.mxu0 0
      %531 = vmatprep.subr.bf16.mxu0 0
      %532 = vmatpush1.bf16.msra.mxu0 0
      %533 = vmatprep.subr.bf16.mxu0 0
      %534 = vmatpush1.bf16.msra.mxu0 0
      %535 = vmatprep.subr.bf16.mxu0 0
      %536 = vmatpush1.bf16.msra.mxu0 0
      %537 = vmatprep.subr.bf16.mxu0 0
      %538 = vmatpush1.bf16.msra.mxu0 %v510
      %539 = vmatprep.subr.bf16.mxu0 0
      %540 = vmatpush1.bf16.msra.mxu0 %v509
      %541 = vmatprep.subr.bf16.mxu0 0
      %542 = vmatpush2.bf16.msra.mxu0 0
      %543 = vmatprep.subr.bf16.mxu0 0
      %544 = vmatpush2.bf16.msra.mxu0 0
      %545 = vmatprep.subr.bf16.mxu0 0
      %546 = vmatpush2.bf16.msra.mxu0 0
      %547 = vmatprep.subr.bf16.mxu0 0
      %548 = vmatpush2.bf16.msra.mxu0 0
      %549 = vmatprep.subr.bf16.mxu0 0
      %550 = vmatpush2.bf16.msra.mxu0 0
      %551 = vmatprep.subr.bf16.mxu0 0
      %552 = vmatpush2.bf16.msra.mxu0 0
      %553 = vmatprep.subr.bf16.mxu0 0
      %554 = vmatpush2.bf16.msra.mxu0 0
      %555 = vmatprep.subr.bf16.mxu0 0
      %556 = vmatpush2.bf16.msra.mxu0 0
      %557 = vmatprep.mubr.bf16.mxu0 0
      %558 = vmatmul.mubr.bf16.gmra.mxu0 %v514
      %v559 = vpop.f32.mrf.mxu0
      %v560 = vadd.f32 %v499, %v559
      %v561 = vpop.f32.mrf.mxu0
      %v562 = vpop.f32.mrf.mxu0
      %v563 = vadd.f32 %v499, %v562
      %v564 = vpop.f32.mrf.mxu0
      %565 = vmatprep.mubr.bf16.mxu0 0
      %566 = vmatmul.mubr.bf16.gmra.mxu0 %v517
      %v567 = vpop.f32.mrf.mxu0
      %v568 = vadd.f32 %v499, %v567
      %v569 = vpop.f32.mrf.mxu0
      %v570 = vpop.f32.mrf.mxu0
      %v571 = vadd.f32 %v499, %v570
      %v572 = vpop.f32.mrf.mxu0
      %573 = vmatprep.mubr.bf16.mxu0 0
      %574 = vmatmul.mubr.bf16.gmra.mxu0 %v520
      %v575 = vpop.f32.mrf.mxu0
      %v576 = vadd.f32 %v499, %v575
      %v577 = vpop.f32.mrf.mxu0
      %v578 = vpop.f32.mrf.mxu0
      %v579 = vadd.f32 %v499, %v578
      %v580 = vpop.f32.mrf.mxu0
      %581 = vmatprep.mubr.bf16.mxu0 0
      %582 = vmatmul.mubr.bf16.gmra.mxu0 %v523
      %v583 = vpop.f32.mrf.mxu0
      %v584 = vadd.f32 %v499, %v583
      %v585 = vpop.f32.mrf.mxu0
      %v586 = vpop.f32.mrf.mxu0
      %v587 = vadd.f32 %v499, %v586
      %v588 = vpop.f32.mrf.mxu0
      %589 = vdwg.mxu0
      %v590 = vld [vmem:[%s1] sm:$0xff]
      %v591 = vld [vmem:[%s1 + $0x8] sm:$0xff]
      %v592 = vld [vmem:[%s1 + $0x10] sm:$0xff]
      %v593 = vld [vmem:[%s1 + $0x18] sm:$0xff]
      %v594 = vld [vmem:[%s1 + $0x20] sm:$0xff]
      %v595 = vld [vmem:[%s1 + $0x28] sm:$0xff]
      %v596 = vld [vmem:[%s1 + $0x30] sm:$0xff]
      %v597 = vld [vmem:[%s1 + $0x38] sm:$0xff]
      %v598 = vld [vmem:[%s2] sm:$0xff]
      %v599 = vld [vmem:[%s2 + $0x8] sm:$0xff]
      %v600 = vld [vmem:[%s2 + $0x10] sm:$0xff]
      %v601 = vld [vmem:[%s2 + $0x18] sm:$0xff]
      %v602 = vld [vmem:[%s2 + $0x20] sm:$0xff]
      %v603 = vld [vmem:[%s2 + $0x28] sm:$0xff]
      %v604 = vld [vmem:[%s2 + $0x30] sm:$0xff]
      %v605 = vld [vmem:[%s2 + $0x38] sm:$0xff]
      %v606 = vld [vmem:[%s8] sm:$0x1]
      %v608 = vlaneseq
      %v609 = vshrl.u32 %v608, 7
      %v610 = vsub.s32 0, %v609
      %v611 = vrot.slane %v606, %v610
      %v613 = vadd.f32 %v342, %v611
      %v614 = vadd.f32 %v343, %v611
      %v615 = vadd.f32 %v344, %v611
      %v616 = vadd.f32 %v345, %v611
      %v617 = vadd.f32 %v346, %v611
      %v618 = vadd.f32 %v347, %v611
      %v619 = vadd.f32 %v348, %v611
      %v620 = vadd.f32 %v349, %v611
      %v621 = vpack.c.bf16 %v563, %v560
      %v622 = vpack.c.bf16 %v571, %v568
      %v623 = vpack.c.bf16 %v579, %v576
      %v624 = vpack.c.bf16 %v587, %v584
      %626 = vrot.lane.b32.xlu0 %v621, 96
      %v627 = vpop.permute.xlu0 %626
      %vm628 = vcmask 64512
      %v630 = vsel %vm628, %v621, 0
      %v633 = vsel %vm628, %v627, 0
      %635 = vmatprep.subr.bf16.mxu0 0
      %636 = vmatpush1.bf16.xpose.msra.mxu0 0
      %637 = vmatprep.subr.bf16.mxu0 0
      %638 = vmatpush1.bf16.xpose.msra.mxu0 0
      %639 = vmatprep.subr.bf16.mxu0 0
      %640 = vmatpush1.bf16.xpose.msra.mxu0 0
      %641 = vmatprep.subr.bf16.mxu0 0
      %642 = vmatpush1.bf16.xpose.msra.mxu0 0
      %643 = vmatprep.subr.bf16.mxu0 0
      %644 = vmatpush1.bf16.xpose.msra.mxu0 0
      %645 = vmatprep.subr.bf16.mxu0 0
      %646 = vmatpush1.bf16.xpose.msra.mxu0 0
      %647 = vmatprep.subr.bf16.mxu0 0
      %648 = vmatpush1.bf16.xpose.msra.mxu0 0
      %649 = vmatprep.subr.bf16.mxu0 0
      %650 = vmatpush1.bf16.xpose.msra.mxu0 %v633
      %651 = vmatprep.subr.bf16.mxu0 0
      %652 = vmatpush2.bf16.xpose.msra.mxu0 0
      %653 = vmatprep.subr.bf16.mxu0 0
      %654 = vmatpush2.bf16.xpose.msra.mxu0 0
      %655 = vmatprep.subr.bf16.mxu0 0
      %656 = vmatpush2.bf16.xpose.msra.mxu0 0
      %657 = vmatprep.subr.bf16.mxu0 0
      %658 = vmatpush2.bf16.xpose.msra.mxu0 0
      %659 = vmatprep.subr.bf16.mxu0 0
      %660 = vmatpush2.bf16.xpose.msra.mxu0 0
      %661 = vmatprep.subr.bf16.mxu0 0
      %662 = vmatpush2.bf16.xpose.msra.mxu0 0
      %663 = vmatprep.subr.bf16.mxu0 0
      %664 = vmatpush2.bf16.xpose.msra.mxu0 0
      %665 = vmatprep.subr.bf16.mxu0 0
      %666 = vmatpush2.bf16.xpose.msra.mxu0 0
      %667 = vmatprep.mubr.bf16.mxu0 0
      %668 = vmatmul.mubr.bf16.gmra.mxu0 %v630
      %v669 = vpop.f32.mrf.mxu0
      %v670 = vadd.f32 %v590, %v669
      %v671 = vpop.f32.mrf.mxu0
      %v672 = vpop.f32.mrf.mxu0
      %v673 = vadd.f32 %v591, %v672
      %v674 = vpop.f32.mrf.mxu0
      %675 = vdwg.mxu0
      %677 = vrot.lane.b32.xlu0 %v622, 96
      %v678 = vpop.permute.xlu0 %677
      %v680 = vsel %vm628, %v622, 0
      %v683 = vsel %vm628, %v678, 0
      %685 = vmatprep.subr.bf16.mxu0 0
      %686 = vmatpush1.bf16.xpose.msra.mxu0 0
      %687 = vmatprep.subr.bf16.mxu0 0
      %688 = vmatpush1.bf16.xpose.msra.mxu0 0
      %689 = vmatprep.subr.bf16.mxu0 0
      %690 = vmatpush1.bf16.xpose.msra.mxu0 0
      %691 = vmatprep.subr.bf16.mxu0 0
      %692 = vmatpush1.bf16.xpose.msra.mxu0 0
      %693 = vmatprep.subr.bf16.mxu0 0
      %694 = vmatpush1.bf16.xpose.msra.mxu0 0
      %695 = vmatprep.subr.bf16.mxu0 0
      %696 = vmatpush1.bf16.xpose.msra.mxu0 0
      %697 = vmatprep.subr.bf16.mxu0 0
      %698 = vmatpush1.bf16.xpose.msra.mxu0 0
      %699 = vmatprep.subr.bf16.mxu0 0
      %700 = vmatpush1.bf16.xpose.msra.mxu0 %v683
      %701 = vmatprep.subr.bf16.mxu0 0
      %702 = vmatpush2.bf16.xpose.msra.mxu0 0
      %703 = vmatprep.subr.bf16.mxu0 0
      %704 = vmatpush2.bf16.xpose.msra.mxu0 0
      %705 = vmatprep.subr.bf16.mxu0 0
      %706 = vmatpush2.bf16.xpose.msra.mxu0 0
      %707 = vmatprep.subr.bf16.mxu0 0
      %708 = vmatpush2.bf16.xpose.msra.mxu0 0
      %709 = vmatprep.subr.bf16.mxu0 0
      %710 = vmatpush2.bf16.xpose.msra.mxu0 0
      %711 = vmatprep.subr.bf16.mxu0 0
      %712 = vmatpush2.bf16.xpose.msra.mxu0 0
      %713 = vmatprep.subr.bf16.mxu0 0
      %714 = vmatpush2.bf16.xpose.msra.mxu0 0
      %715 = vmatprep.subr.bf16.mxu0 0
      %716 = vmatpush2.bf16.xpose.msra.mxu0 0
      %717 = vmatprep.mubr.bf16.mxu0 0
      %718 = vmatmul.mubr.bf16.gmra.mxu0 %v680
      %v719 = vpop.f32.mrf.mxu0
      %v720 = vadd.f32 %v590, %v719
      %v721 = vpop.f32.mrf.mxu0
      %v722 = vpop.f32.mrf.mxu0
      %v723 = vadd.f32 %v591, %v722
      %v724 = vpop.f32.mrf.mxu0
      %725 = vdwg.mxu0
      %727 = vrot.lane.b32.xlu0 %v623, 96
      %v728 = vpop.permute.xlu0 %727
      %v730 = vsel %vm628, %v623, 0
      %v733 = vsel %vm628, %v728, 0
      %735 = vmatprep.subr.bf16.mxu0 0
      %736 = vmatpush1.bf16.xpose.msra.mxu0 0
      %737 = vmatprep.subr.bf16.mxu0 0
      %738 = vmatpush1.bf16.xpose.msra.mxu0 0
      %739 = vmatprep.subr.bf16.mxu0 0
      %740 = vmatpush1.bf16.xpose.msra.mxu0 0
      %741 = vmatprep.subr.bf16.mxu0 0
      %742 = vmatpush1.bf16.xpose.msra.mxu0 0
      %743 = vmatprep.subr.bf16.mxu0 0
      %744 = vmatpush1.bf16.xpose.msra.mxu0 0
      %745 = vmatprep.subr.bf16.mxu0 0
      %746 = vmatpush1.bf16.xpose.msra.mxu0 0
      %747 = vmatprep.subr.bf16.mxu0 0
      %748 = vmatpush1.bf16.xpose.msra.mxu0 0
      %749 = vmatprep.subr.bf16.mxu0 0
      %750 = vmatpush1.bf16.xpose.msra.mxu0 %v733
      %751 = vmatprep.subr.bf16.mxu0 0
      %752 = vmatpush2.bf16.xpose.msra.mxu0 0
      %753 = vmatprep.subr.bf16.mxu0 0
      %754 = vmatpush2.bf16.xpose.msra.mxu0 0
      %755 = vmatprep.subr.bf16.mxu0 0
      %756 = vmatpush2.bf16.xpose.msra.mxu0 0
      %757 = vmatprep.subr.bf16.mxu0 0
      %758 = vmatpush2.bf16.xpose.msra.mxu0 0
      %759 = vmatprep.subr.bf16.mxu0 0
      %760 = vmatpush2.bf16.xpose.msra.mxu0 0
      %761 = vmatprep.subr.bf16.mxu0 0
      %762 = vmatpush2.bf16.xpose.msra.mxu0 0
      %763 = vmatprep.subr.bf16.mxu0 0
      %764 = vmatpush2.bf16.xpose.msra.mxu0 0
      %765 = vmatprep.subr.bf16.mxu0 0
      %766 = vmatpush2.bf16.xpose.msra.mxu0 0
      %767 = vmatprep.mubr.bf16.mxu0 0
      %768 = vmatmul.mubr.bf16.gmra.mxu0 %v730
      %v769 = vpop.f32.mrf.mxu0
      %v770 = vadd.f32 %v590, %v769
      %v771 = vpop.f32.mrf.mxu0
      %v772 = vpop.f32.mrf.mxu0
      %v773 = vadd.f32 %v591, %v772
      %v774 = vpop.f32.mrf.mxu0
      %775 = vdwg.mxu0
      %777 = vrot.lane.b32.xlu0 %v624, 96
      %v778 = vpop.permute.xlu0 %777
      %v780 = vsel %vm628, %v624, 0
      %v783 = vsel %vm628, %v778, 0
      %785 = vmatprep.subr.bf16.mxu0 0
      %786 = vmatpush1.bf16.xpose.msra.mxu0 0
      %787 = vmatprep.subr.bf16.mxu0 0
      %788 = vmatpush1.bf16.xpose.msra.mxu0 0
      %789 = vmatprep.subr.bf16.mxu0 0
      %790 = vmatpush1.bf16.xpose.msra.mxu0 0
      %791 = vmatprep.subr.bf16.mxu0 0
      %792 = vmatpush1.bf16.xpose.msra.mxu0 0
      %793 = vmatprep.subr.bf16.mxu0 0
      %794 = vmatpush1.bf16.xpose.msra.mxu0 0
      %795 = vmatprep.subr.bf16.mxu0 0
      %796 = vmatpush1.bf16.xpose.msra.mxu0 0
      %797 = vmatprep.subr.bf16.mxu0 0
      %798 = vmatpush1.bf16.xpose.msra.mxu0 0
      %799 = vmatprep.subr.bf16.mxu0 0
      %800 = vmatpush1.bf16.xpose.msra.mxu0 %v783
      %801 = vmatprep.subr.bf16.mxu0 0
      %802 = vmatpush2.bf16.xpose.msra.mxu0 0
      %803 = vmatprep.subr.bf16.mxu0 0
      %804 = vmatpush2.bf16.xpose.msra.mxu0 0
      %805 = vmatprep.subr.bf16.mxu0 0
      %806 = vmatpush2.bf16.xpose.msra.mxu0 0
      %807 = vmatprep.subr.bf16.mxu0 0
      %808 = vmatpush2.bf16.xpose.msra.mxu0 0
      %809 = vmatprep.subr.bf16.mxu0 0
      %810 = vmatpush2.bf16.xpose.msra.mxu0 0
      %811 = vmatprep.subr.bf16.mxu0 0
      %812 = vmatpush2.bf16.xpose.msra.mxu0 0
      %813 = vmatprep.subr.bf16.mxu0 0
      %814 = vmatpush2.bf16.xpose.msra.mxu0 0
      %815 = vmatprep.subr.bf16.mxu0 0
      %816 = vmatpush2.bf16.xpose.msra.mxu0 0
      %817 = vmatprep.mubr.bf16.mxu0 0
      %818 = vmatmul.mubr.bf16.gmra.mxu0 %v780
      %v819 = vpop.f32.mrf.mxu0
      %v820 = vadd.f32 %v590, %v819
      %v821 = vpop.f32.mrf.mxu0
      %v822 = vpop.f32.mrf.mxu0
      %v823 = vadd.f32 %v591, %v822
      %v824 = vpop.f32.mrf.mxu0
      %825 = vdwg.mxu0
      %v826 = vadd.f32 %v670, %v598
      %v827 = vadd.f32 %v673, %v599
      %v828 = vadd.f32 %v720, %v600
      %v829 = vadd.f32 %v723, %v601
      %v830 = vadd.f32 %v770, %v602
      %v831 = vadd.f32 %v773, %v603
      %v832 = vadd.f32 %v820, %v604
      %v833 = vadd.f32 %v823, %v605
      %vm834 = vcmask 130048
      %v835 = vsel %vm834, %v826, -inf
      %836 = vmax.xlane.f32.xlu0 %v835
      %v837 = vpop.xlane.xlu0 %836
      %v838 = vsel %vm834, %v827, -inf
      %839 = vmax.xlane.f32.xlu0 %v838
      %v840 = vpop.xlane.xlu0 %839
      %v841 = vsel %vm834, %v828, -inf
      %842 = vmax.xlane.f32.xlu0 %v841
      %v843 = vpop.xlane.xlu0 %842
      %v844 = vsel %vm834, %v829, -inf
      %845 = vmax.xlane.f32.xlu0 %v844
      %v846 = vpop.xlane.xlu0 %845
      %v847 = vsel %vm834, %v830, -inf
      %848 = vmax.xlane.f32.xlu0 %v847
      %v849 = vpop.xlane.xlu0 %848
      %v850 = vsel %vm834, %v831, -inf
      %851 = vmax.xlane.f32.xlu0 %v850
      %v852 = vpop.xlane.xlu0 %851
      %v853 = vsel %vm834, %v832, -inf
      %854 = vmax.xlane.f32.xlu0 %v853
      %v855 = vpop.xlane.xlu0 %854
      %v856 = vsel %vm834, %v833, -inf
      %857 = vmax.xlane.f32.xlu0 %v856
      %v858 = vpop.xlane.xlu0 %857
      %v859 = vsub.f32 %v826, %v837
      %v860 = vsub.f32 %v827, %v840
      %v861 = vsub.f32 %v828, %v843
      %v862 = vsub.f32 %v829, %v846
      %v863 = vsub.f32 %v830, %v849
      %v864 = vsub.f32 %v831, %v852
      %v865 = vsub.f32 %v832, %v855
      %v866 = vsub.f32 %v833, %v858
      %v867 = vmul.f32 %v859, 1.442695
      %v868 = vpow.pop %v867
      %v869 = vmul.f32 %v860, 1.442695
      %v870 = vpow.pop %v869
      %v871 = vmul.f32 %v861, 1.442695
      %v872 = vpow.pop %v871
      %v873 = vmul.f32 %v862, 1.442695
      %v874 = vpow.pop %v873
      %v875 = vmul.f32 %v863, 1.442695
      %v876 = vpow.pop %v875
      %v877 = vmul.f32 %v864, 1.442695
      %v878 = vpow.pop %v877
      %v879 = vmul.f32 %v865, 1.442695
      %v880 = vpow.pop %v879
      %v881 = vmul.f32 %v866, 1.442695
      %v882 = vpow.pop %v881
      %v883 = vsel %vm834, %v868, 0.0
      %884 = vadd.xlane.f32.xlu0 %v883
      %v885 = vpop.xlane.xlu0 %884
      %v886 = vsel %vm834, %v870, 0.0
      %887 = vadd.xlane.f32.xlu0 %v886
      %v888 = vpop.xlane.xlu0 %887
      %v889 = vsel %vm834, %v872, 0.0
      %890 = vadd.xlane.f32.xlu0 %v889
      %v891 = vpop.xlane.xlu0 %890
      %v892 = vsel %vm834, %v874, 0.0
      %893 = vadd.xlane.f32.xlu0 %v892
      %v894 = vpop.xlane.xlu0 %893
      %v895 = vsel %vm834, %v876, 0.0
      %896 = vadd.xlane.f32.xlu0 %v895
      %v897 = vpop.xlane.xlu0 %896
      %v898 = vsel %vm834, %v878, 0.0
      %899 = vadd.xlane.f32.xlu0 %v898
      %v900 = vpop.xlane.xlu0 %899
      %v901 = vsel %vm834, %v880, 0.0
      %902 = vadd.xlane.f32.xlu0 %v901
      %v903 = vpop.xlane.xlu0 %902
      %v904 = vsel %vm834, %v882, 0.0
      %905 = vadd.xlane.f32.xlu0 %v904
      %v906 = vpop.xlane.xlu0 %905
      %v907 = vrcp.pop %v885
      %v908 = vrcp.pop %v888
      %v909 = vrcp.pop %v891
      %v910 = vrcp.pop %v894
      %v911 = vrcp.pop %v897
      %v912 = vrcp.pop %v900
      %v913 = vrcp.pop %v903
      %v914 = vrcp.pop %v906
      %v915 = vmul.f32 %v868, %v907
      %v916 = vmul.f32 %v870, %v908
      %v917 = vmul.f32 %v872, %v909
      %v918 = vmul.f32 %v874, %v910
      %v919 = vmul.f32 %v876, %v911
      %v920 = vmul.f32 %v878, %v912
      %v921 = vmul.f32 %v880, %v913
      %v922 = vmul.f32 %v882, %v914
      %v923 = vpack.c.bf16 %v916, %v915
      %v924 = vpack.c.bf16 %v918, %v917
      %v925 = vpack.c.bf16 %v920, %v919
      %v926 = vpack.c.bf16 %v922, %v921
      %927 = vrot.lane.b32.xlu0 %v621, 64
      %v928 = vpop.permute.xlu0 %927
      %v931 = vsel %vm834, %v923, 0
      %933 = vmatprep.subr.bf16.mxu0 0
      %934 = vmatpush1.bf16.msra.mxu0 0
      %935 = vmatprep.subr.bf16.mxu0 0
      %936 = vmatpush1.bf16.msra.mxu0 0
      %937 = vmatprep.subr.bf16.mxu0 0
      %938 = vmatpush1.bf16.msra.mxu0 0
      %939 = vmatprep.subr.bf16.mxu0 0
      %940 = vmatpush1.bf16.msra.mxu0 0
      %941 = vmatprep.subr.bf16.mxu0 0
      %942 = vmatpush1.bf16.msra.mxu0 0
      %943 = vmatprep.subr.bf16.mxu0 0
      %944 = vmatpush1.bf16.msra.mxu0 0
      %945 = vmatprep.subr.bf16.mxu0 0
      %946 = vmatpush1.bf16.msra.mxu0 0
      %947 = vmatprep.subr.bf16.mxu0 0
      %948 = vmatpush1.bf16.msra.mxu0 %v928
      %949 = vmatprep.subr.bf16.mxu0 0
      %950 = vmatpush2.bf16.msra.mxu0 0
      %951 = vmatprep.subr.bf16.mxu0 0
      %952 = vmatpush2.bf16.msra.mxu0 0
      %953 = vmatprep.subr.bf16.mxu0 0
      %954 = vmatpush2.bf16.msra.mxu0 0
      %955 = vmatprep.subr.bf16.mxu0 0
      %956 = vmatpush2.bf16.msra.mxu0 0
      %957 = vmatprep.subr.bf16.mxu0 0
      %958 = vmatpush2.bf16.msra.mxu0 0
      %959 = vmatprep.subr.bf16.mxu0 0
      %960 = vmatpush2.bf16.msra.mxu0 0
      %961 = vmatprep.subr.bf16.mxu0 0
      %962 = vmatpush2.bf16.msra.mxu0 0
      %963 = vmatprep.subr.bf16.mxu0 0
      %964 = vmatpush2.bf16.msra.mxu0 0
      %965 = vmatprep.mubr.bf16.mxu0 0
      %966 = vmatmul.mubr.bf16.gmra.mxu0 %v931
      %v967 = vpop.f32.mrf.mxu0
      %v968 = vadd.f32 0.0, %v967
      %v969 = vpop.f32.mrf.mxu0
      %v970 = vpop.f32.mrf.mxu0
      %v971 = vadd.f32 0.0, %v970
      %v972 = vpop.f32.mrf.mxu0
      %973 = vdwg.mxu0
      %974 = vrot.lane.b32.xlu0 %v622, 64
      %v975 = vpop.permute.xlu0 %974
      %v978 = vsel %vm834, %v924, 0
      %980 = vmatprep.subr.bf16.mxu0 0
      %981 = vmatpush1.bf16.msra.mxu0 0
      %982 = vmatprep.subr.bf16.mxu0 0
      %983 = vmatpush1.bf16.msra.mxu0 0
      %984 = vmatprep.subr.bf16.mxu0 0
      %985 = vmatpush1.bf16.msra.mxu0 0
      %986 = vmatprep.subr.bf16.mxu0 0
      %987 = vmatpush1.bf16.msra.mxu0 0
      %988 = vmatprep.subr.bf16.mxu0 0
      %989 = vmatpush1.bf16.msra.mxu0 0
      %990 = vmatprep.subr.bf16.mxu0 0
      %991 = vmatpush1.bf16.msra.mxu0 0
      %992 = vmatprep.subr.bf16.mxu0 0
      %993 = vmatpush1.bf16.msra.mxu0 0
      %994 = vmatprep.subr.bf16.mxu0 0
      %995 = vmatpush1.bf16.msra.mxu0 %v975
      %996 = vmatprep.subr.bf16.mxu0 0
      %997 = vmatpush2.bf16.msra.mxu0 0
      %998 = vmatprep.subr.bf16.mxu0 0
      %999 = vmatpush2.bf16.msra.mxu0 0
      %1000 = vmatprep.subr.bf16.mxu0 0
      %1001 = vmatpush2.bf16.msra.mxu0 0
      %1002 = vmatprep.subr.bf16.mxu0 0
      %1003 = vmatpush2.bf16.msra.mxu0 0
      %1004 = vmatprep.subr.bf16.mxu0 0
      %1005 = vmatpush2.bf16.msra.mxu0 0
      %1006 = vmatprep.subr.bf16.mxu0 0
      %1007 = vmatpush2.bf16.msra.mxu0 0
      %1008 = vmatprep.subr.bf16.mxu0 0
      %1009 = vmatpush2.bf16.msra.mxu0 0
      %1010 = vmatprep.subr.bf16.mxu0 0
      %1011 = vmatpush2.bf16.msra.mxu0 0
      %1012 = vmatprep.mubr.bf16.mxu0 0
      %1013 = vmatmul.mubr.bf16.gmra.mxu0 %v978
      %v1014 = vpop.f32.mrf.mxu0
      %v1015 = vadd.f32 0.0, %v1014
      %v1016 = vpop.f32.mrf.mxu0
      %v1017 = vpop.f32.mrf.mxu0
      %v1018 = vadd.f32 0.0, %v1017
      %v1019 = vpop.f32.mrf.mxu0
      %1020 = vdwg.mxu0
      %1021 = vrot.lane.b32.xlu0 %v623, 64
      %v1022 = vpop.permute.xlu0 %1021
      %v1025 = vsel %vm834, %v925, 0
      %1027 = vmatprep.subr.bf16.mxu0 0
      %1028 = vmatpush1.bf16.msra.mxu0 0
      %1029 = vmatprep.subr.bf16.mxu0 0
      %1030 = vmatpush1.bf16.msra.mxu0 0
      %1031 = vmatprep.subr.bf16.mxu0 0
      %1032 = vmatpush1.bf16.msra.mxu0 0
      %1033 = vmatprep.subr.bf16.mxu0 0
      %1034 = vmatpush1.bf16.msra.mxu0 0
      %1035 = vmatprep.subr.bf16.mxu0 0
      %1036 = vmatpush1.bf16.msra.mxu0 0
      %1037 = vmatprep.subr.bf16.mxu0 0
      %1038 = vmatpush1.bf16.msra.mxu0 0
      %1039 = vmatprep.subr.bf16.mxu0 0
      %1040 = vmatpush1.bf16.msra.mxu0 0
      %1041 = vmatprep.subr.bf16.mxu0 0
      %1042 = vmatpush1.bf16.msra.mxu0 %v1022
      %1043 = vmatprep.subr.bf16.mxu0 0
      %1044 = vmatpush2.bf16.msra.mxu0 0
      %1045 = vmatprep.subr.bf16.mxu0 0
      %1046 = vmatpush2.bf16.msra.mxu0 0
      %1047 = vmatprep.subr.bf16.mxu0 0
      %1048 = vmatpush2.bf16.msra.mxu0 0
      %1049 = vmatprep.subr.bf16.mxu0 0
      %1050 = vmatpush2.bf16.msra.mxu0 0
      %1051 = vmatprep.subr.bf16.mxu0 0
      %1052 = vmatpush2.bf16.msra.mxu0 0
      %1053 = vmatprep.subr.bf16.mxu0 0
      %1054 = vmatpush2.bf16.msra.mxu0 0
      %1055 = vmatprep.subr.bf16.mxu0 0
      %1056 = vmatpush2.bf16.msra.mxu0 0
      %1057 = vmatprep.subr.bf16.mxu0 0
      %1058 = vmatpush2.bf16.msra.mxu0 0
      %1059 = vmatprep.mubr.bf16.mxu0 0
      %1060 = vmatmul.mubr.bf16.gmra.mxu0 %v1025
      %v1061 = vpop.f32.mrf.mxu0
      %v1062 = vadd.f32 0.0, %v1061
      %v1063 = vpop.f32.mrf.mxu0
      %v1064 = vpop.f32.mrf.mxu0
      %v1065 = vadd.f32 0.0, %v1064
      %v1066 = vpop.f32.mrf.mxu0
      %1067 = vdwg.mxu0
      %1068 = vrot.lane.b32.xlu0 %v624, 64
      %v1069 = vpop.permute.xlu0 %1068
      %v1072 = vsel %vm834, %v926, 0
      %1074 = vmatprep.subr.bf16.mxu0 0
      %1075 = vmatpush1.bf16.msra.mxu0 0
      %1076 = vmatprep.subr.bf16.mxu0 0
      %1077 = vmatpush1.bf16.msra.mxu0 0
      %1078 = vmatprep.subr.bf16.mxu0 0
      %1079 = vmatpush1.bf16.msra.mxu0 0
      %1080 = vmatprep.subr.bf16.mxu0 0
      %1081 = vmatpush1.bf16.msra.mxu0 0
      %1082 = vmatprep.subr.bf16.mxu0 0
      %1083 = vmatpush1.bf16.msra.mxu0 0
      %1084 = vmatprep.subr.bf16.mxu0 0
      %1085 = vmatpush1.bf16.msra.mxu0 0
      %1086 = vmatprep.subr.bf16.mxu0 0
      %1087 = vmatpush1.bf16.msra.mxu0 0
      %1088 = vmatprep.subr.bf16.mxu0 0
      %1089 = vmatpush1.bf16.msra.mxu0 %v1069
      %1090 = vmatprep.subr.bf16.mxu0 0
      %1091 = vmatpush2.bf16.msra.mxu0 0
      %1092 = vmatprep.subr.bf16.mxu0 0
      %1093 = vmatpush2.bf16.msra.mxu0 0
      %1094 = vmatprep.subr.bf16.mxu0 0
      %1095 = vmatpush2.bf16.msra.mxu0 0
      %1096 = vmatprep.subr.bf16.mxu0 0
      %1097 = vmatpush2.bf16.msra.mxu0 0
      %1098 = vmatprep.subr.bf16.mxu0 0
      %1099 = vmatpush2.bf16.msra.mxu0 0
      %1100 = vmatprep.subr.bf16.mxu0 0
      %1101 = vmatpush2.bf16.msra.mxu0 0
      %1102 = vmatprep.subr.bf16.mxu0 0
      %1103 = vmatpush2.bf16.msra.mxu0 0
      %1104 = vmatprep.subr.bf16.mxu0 0
      %1105 = vmatpush2.bf16.msra.mxu0 0
      %1106 = vmatprep.mubr.bf16.mxu0 0
      %1107 = vmatmul.mubr.bf16.gmra.mxu0 %v1072
      %v1108 = vpop.f32.mrf.mxu0
      %v1109 = vadd.f32 0.0, %v1108
      %v1110 = vpop.f32.mrf.mxu0
      %v1111 = vpop.f32.mrf.mxu0
      %v1112 = vadd.f32 0.0, %v1111
      %v1113 = vpop.f32.mrf.mxu0
      %1114 = vdwg.mxu0
      %v1115 = vpack.c.bf16 %v971, %v968
      %v1116 = vpack.c.bf16 %v1018, %v1015
      %v1117 = vpack.c.bf16 %v1065, %v1062
      %v1118 = vpack.c.bf16 %v1112, %v1109
      %v1119 = vld [vmem:[%s7] sm:$0xf]
      %v1121 = vsel %vm628, %v1115, 0
      %v1124 = vsel %vm628, %v1116, 0
      %v1127 = vsel %vm628, %v1117, 0
      %v1130 = vsel %vm628, %v1118, 0
      %vm1132 = vcmask 1043456
      %v1134 = vsel %vm1132, %v1119, 0
      %1136 = vmatprep.subr.bf16.mxu0 0
      %1137 = vmatpush1.bf16.msra.mxu0 0
      %1138 = vmatprep.subr.bf16.mxu0 0
      %1139 = vmatpush1.bf16.msra.mxu0 0
      %1140 = vmatprep.subr.bf16.mxu0 0
      %1141 = vmatpush1.bf16.msra.mxu0 0
      %1142 = vmatprep.subr.bf16.mxu0 0
      %1143 = vmatpush1.bf16.msra.mxu0 0
      %1144 = vmatprep.subr.bf16.mxu0 0
      %1145 = vmatpush1.bf16.msra.mxu0 0
      %1146 = vmatprep.subr.bf16.mxu0 0
      %1147 = vmatpush1.bf16.msra.mxu0 0
      %1148 = vmatprep.subr.bf16.mxu0 0
      %1149 = vmatpush1.bf16.msra.mxu0 0
      %1150 = vmatprep.subr.bf16.mxu0 0
      %1151 = vmatpush1.bf16.msra.mxu0 %v1134
      %1152 = vmatprep.subr.bf16.mxu0 0
      %1153 = vmatpush2.bf16.msra.mxu0 0
      %1154 = vmatprep.subr.bf16.mxu0 0
      %1155 = vmatpush2.bf16.msra.mxu0 0
      %1156 = vmatprep.subr.bf16.mxu0 0
      %1157 = vmatpush2.bf16.msra.mxu0 0
      %1158 = vmatprep.subr.bf16.mxu0 0
      %1159 = vmatpush2.bf16.msra.mxu0 0
      %1160 = vmatprep.subr.bf16.mxu0 0
      %1161 = vmatpush2.bf16.msra.mxu0 0
      %1162 = vmatprep.subr.bf16.mxu0 0
      %1163 = vmatpush2.bf16.msra.mxu0 0
      %1164 = vmatprep.subr.bf16.mxu0 0
      %1165 = vmatpush2.bf16.msra.mxu0 0
      %1166 = vmatprep.subr.bf16.mxu0 0
      %1167 = vmatpush2.bf16.msra.mxu0 0
      %1168 = vmatprep.mubr.bf16.mxu0 0
      %1169 = vmatmul.mubr.bf16.gmra.mxu0 %v1121
      %v1170 = vpop.f32.mrf.mxu0
      %v1171 = vadd.f32 0.0, %v1170
      %v1172 = vpop.f32.mrf.mxu0
      %v1173 = vpop.f32.mrf.mxu0
      %v1174 = vadd.f32 0.0, %v1173
      %v1175 = vpop.f32.mrf.mxu0
      %1176 = vmatprep.mubr.bf16.mxu0 0
      %1177 = vmatmul.mubr.bf16.gmra.mxu0 %v1124
      %v1178 = vpop.f32.mrf.mxu0
      %v1179 = vadd.f32 0.0, %v1178
      %v1180 = vpop.f32.mrf.mxu0
      %v1181 = vpop.f32.mrf.mxu0
      %v1182 = vadd.f32 0.0, %v1181
      %v1183 = vpop.f32.mrf.mxu0
      %1184 = vmatprep.mubr.bf16.mxu0 0
      %1185 = vmatmul.mubr.bf16.gmra.mxu0 %v1127
      %v1186 = vpop.f32.mrf.mxu0
      %v1187 = vadd.f32 0.0, %v1186
      %v1188 = vpop.f32.mrf.mxu0
      %v1189 = vpop.f32.mrf.mxu0
      %v1190 = vadd.f32 0.0, %v1189
      %v1191 = vpop.f32.mrf.mxu0
      %1192 = vmatprep.mubr.bf16.mxu0 0
      %1193 = vmatmul.mubr.bf16.gmra.mxu0 %v1130
      %v1194 = vpop.f32.mrf.mxu0
      %v1195 = vadd.f32 0.0, %v1194
      %v1196 = vpop.f32.mrf.mxu0
      %v1197 = vpop.f32.mrf.mxu0
      %v1198 = vadd.f32 0.0, %v1197
      %v1199 = vpop.f32.mrf.mxu0
      %1200 = vdwg.mxu0
      %v1201 = vadd.f32 %v613, %v1171
      %v1202 = vadd.f32 %v614, %v1174
      %v1203 = vadd.f32 %v615, %v1179
      %v1204 = vadd.f32 %v616, %v1182
      %v1205 = vadd.f32 %v617, %v1187
      %v1206 = vadd.f32 %v618, %v1190
      %v1207 = vadd.f32 %v619, %v1195
      %v1208 = vadd.f32 %v620, %v1198
      %1209 = vrot.lane.b32.xlu0 %v621, 120
      %v1210 = vpop.permute.xlu0 %1209
      %1211 = vrot.lane.b32.xlu0 %v621, 88
      %v1212 = vpop.permute.xlu0 %1211
      %v1214 = vsel %vm628, %v1210, 0
      %v1217 = vsel %vm628, %v1212, 0
      %1219 = vmatprep.subr.bf16.mxu0 0
      %1220 = vmatpush1.bf16.xpose.msra.mxu0 0
      %1221 = vmatprep.subr.bf16.mxu0 0
      %1222 = vmatpush1.bf16.xpose.msra.mxu0 0
      %1223 = vmatprep.subr.bf16.mxu0 0
      %1224 = vmatpush1.bf16.xpose.msra.mxu0 0
      %1225 = vmatprep.subr.bf16.mxu0 0
      %1226 = vmatpush1.bf16.xpose.msra.mxu0 0
      %1227 = vmatprep.subr.bf16.mxu0 0
      %1228 = vmatpush1.bf16.xpose.msra.mxu0 0
      %1229 = vmatprep.subr.bf16.mxu0 0
      %1230 = vmatpush1.bf16.xpose.msra.mxu0 0
      %1231 = vmatprep.subr.bf16.mxu0 0
      %1232 = vmatpush1.bf16.xpose.msra.mxu0 0
      %1233 = vmatprep.subr.bf16.mxu0 0
      %1234 = vmatpush1.bf16.xpose.msra.mxu0 %v1217
      %1235 = vmatprep.subr.bf16.mxu0 0
      %1236 = vmatpush2.bf16.xpose.msra.mxu0 0
      %1237 = vmatprep.subr.bf16.mxu0 0
      %1238 = vmatpush2.bf16.xpose.msra.mxu0 0
      %1239 = vmatprep.subr.bf16.mxu0 0
      %1240 = vmatpush2.bf16.xpose.msra.mxu0 0
      %1241 = vmatprep.subr.bf16.mxu0 0
      %1242 = vmatpush2.bf16.xpose.msra.mxu0 0
      %1243 = vmatprep.subr.bf16.mxu0 0
      %1244 = vmatpush2.bf16.xpose.msra.mxu0 0
      %1245 = vmatprep.subr.bf16.mxu0 0
      %1246 = vmatpush2.bf16.xpose.msra.mxu0 0
      %1247 = vmatprep.subr.bf16.mxu0 0
      %1248 = vmatpush2.bf16.xpose.msra.mxu0 0
      %1249 = vmatprep.subr.bf16.mxu0 0
      %1250 = vmatpush2.bf16.xpose.msra.mxu0 0
      %1251 = vmatprep.mubr.bf16.mxu0 0
      %1252 = vmatmul.mubr.bf16.gmra.mxu0 %v1214
      %v1253 = vpop.f32.mrf.mxu0
      %v1254 = vadd.f32 %v592, %v1253
      %v1255 = vpop.f32.mrf.mxu0
      %v1256 = vpop.f32.mrf.mxu0
      %v1257 = vadd.f32 %v593, %v1256
      %v1258 = vpop.f32.mrf.mxu0
      %1259 = vdwg.mxu0
      %1260 = vrot.lane.b32.xlu0 %v622, 120
      %v1261 = vpop.permute.xlu0 %1260
      %1262 = vrot.lane.b32.xlu0 %v622, 88
      %v1263 = vpop.permute.xlu0 %1262
      %v1265 = vsel %vm628, %v1261, 0
      %v1268 = vsel %vm628, %v1263, 0
      %1270 = vmatprep.subr.bf16.mxu0 0
      %1271 = vmatpush1.bf16.xpose.msra.mxu0 0
      %1272 = vmatprep.subr.bf16.mxu0 0
      %1273 = vmatpush1.bf16.xpose.msra.mxu0 0
      %1274 = vmatprep.subr.bf16.mxu0 0
      %1275 = vmatpush1.bf16.xpose.msra.mxu0 0
      %1276 = vmatprep.subr.bf16.mxu0 0
      %1277 = vmatpush1.bf16.xpose.msra.mxu0 0
      %1278 = vmatprep.subr.bf16.mxu0 0
      %1279 = vmatpush1.bf16.xpose.msra.mxu0 0
      %1280 = vmatprep.subr.bf16.mxu0 0
      %1281 = vmatpush1.bf16.xpose.msra.mxu0 0
      %1282 = vmatprep.subr.bf16.mxu0 0
      %1283 = vmatpush1.bf16.xpose.msra.mxu0 0
      %1284 = vmatprep.subr.bf16.mxu0 0
      %1285 = vmatpush1.bf16.xpose.msra.mxu0 %v1268
      %1286 = vmatprep.subr.bf16.mxu0 0
      %1287 = vmatpush2.bf16.xpose.msra.mxu0 0
      %1288 = vmatprep.subr.bf16.mxu0 0
      %1289 = vmatpush2.bf16.xpose.msra.mxu0 0
      %1290 = vmatprep.subr.bf16.mxu0 0
      %1291 = vmatpush2.bf16.xpose.msra.mxu0 0
      %1292 = vmatprep.subr.bf16.mxu0 0
      %1293 = vmatpush2.bf16.xpose.msra.mxu0 0
      %1294 = vmatprep.subr.bf16.mxu0 0
      %1295 = vmatpush2.bf16.xpose.msra.mxu0 0
      %1296 = vmatprep.subr.bf16.mxu0 0
      %1297 = vmatpush2.bf16.xpose.msra.mxu0 0
      %1298 = vmatprep.subr.bf16.mxu0 0
      %1299 = vmatpush2.bf16.xpose.msra.mxu0 0
      %1300 = vmatprep.subr.bf16.mxu0 0
      %1301 = vmatpush2.bf16.xpose.msra.mxu0 0
      %1302 = vmatprep.mubr.bf16.mxu0 0
      %1303 = vmatmul.mubr.bf16.gmra.mxu0 %v1265
      %v1304 = vpop.f32.mrf.mxu0
      %v1305 = vadd.f32 %v592, %v1304
      %v1306 = vpop.f32.mrf.mxu0
      %v1307 = vpop.f32.mrf.mxu0
      %v1308 = vadd.f32 %v593, %v1307
      %v1309 = vpop.f32.mrf.mxu0
      %1310 = vdwg.mxu0
      %1311 = vrot.lane.b32.xlu0 %v623, 120
      %v1312 = vpop.permute.xlu0 %1311
      %1313 = vrot.lane.b32.xlu0 %v623, 88
      %v1314 = vpop.permute.xlu0 %1313
      %v1316 = vsel %vm628, %v1312, 0
      %v1319 = vsel %vm628, %v1314, 0
      %1321 = vmatprep.subr.bf16.mxu0 0
      %1322 = vmatpush1.bf16.xpose.msra.mxu0 0
      %1323 = vmatprep.subr.bf16.mxu0 0
      %1324 = vmatpush1.bf16.xpose.msra.mxu0 0
      %1325 = vmatprep.subr.bf16.mxu0 0
      %1326 = vmatpush1.bf16.xpose.msra.mxu0 0
      %1327 = vmatprep.subr.bf16.mxu0 0
      %1328 = vmatpush1.bf16.xpose.msra.mxu0 0
      %1329 = vmatprep.subr.bf16.mxu0 0
      %1330 = vmatpush1.bf16.xpose.msra.mxu0 0
      %1331 = vmatprep.subr.bf16.mxu0 0
      %1332 = vmatpush1.bf16.xpose.msra.mxu0 0
      %1333 = vmatprep.subr.bf16.mxu0 0
      %1334 = vmatpush1.bf16.xpose.msra.mxu0 0
      %1335 = vmatprep.subr.bf16.mxu0 0
      %1336 = vmatpush1.bf16.xpose.msra.mxu0 %v1319
      %1337 = vmatprep.subr.bf16.mxu0 0
      %1338 = vmatpush2.bf16.xpose.msra.mxu0 0
      %1339 = vmatprep.subr.bf16.mxu0 0
      %1340 = vmatpush2.bf16.xpose.msra.mxu0 0
      %1341 = vmatprep.subr.bf16.mxu0 0
      %1342 = vmatpush2.bf16.xpose.msra.mxu0 0
      %1343 = vmatprep.subr.bf16.mxu0 0
      %1344 = vmatpush2.bf16.xpose.msra.mxu0 0
      %1345 = vmatprep.subr.bf16.mxu0 0
      %1346 = vmatpush2.bf16.xpose.msra.mxu0 0
      %1347 = vmatprep.subr.bf16.mxu0 0
      %1348 = vmatpush2.bf16.xpose.msra.mxu0 0
      %1349 = vmatprep.subr.bf16.mxu0 0
      %1350 = vmatpush2.bf16.xpose.msra.mxu0 0
      %1351 = vmatprep.subr.bf16.mxu0 0
      %1352 = vmatpush2.bf16.xpose.msra.mxu0 0
      %1353 = vmatprep.mubr.bf16.mxu0 0
      %1354 = vmatmul.mubr.bf16.gmra.mxu0 %v1316
      %v1355 = vpop.f32.mrf.mxu0
      %v1356 = vadd.f32 %v592, %v1355
      %v1357 = vpop.f32.mrf.mxu0
      %v1358 = vpop.f32.mrf.mxu0
      %v1359 = vadd.f32 %v593, %v1358
      %v1360 = vpop.f32.mrf.mxu0
      %1361 = vdwg.mxu0
      %1362 = vrot.lane.b32.xlu0 %v624, 120
      %v1363 = vpop.permute.xlu0 %1362
      %1364 = vrot.lane.b32.xlu0 %v624, 88
      %v1365 = vpop.permute.xlu0 %1364
      %v1367 = vsel %vm628, %v1363, 0
      %v1370 = vsel %vm628, %v1365, 0
      %1372 = vmatprep.subr.bf16.mxu0 0
      %1373 = vmatpush1.bf16.xpose.msra.mxu0 0
      %1374 = vmatprep.subr.bf16.mxu0 0
      %1375 = vmatpush1.bf16.xpose.msra.mxu0 0
      %1376 = vmatprep.subr.bf16.mxu0 0
      %1377 = vmatpush1.bf16.xpose.msra.mxu0 0
      %1378 = vmatprep.subr.bf16.mxu0 0
      %1379 = vmatpush1.bf16.xpose.msra.mxu0 0
      %1380 = vmatprep.subr.bf16.mxu0 0
      %1381 = vmatpush1.bf16.xpose.msra.mxu0 0
      %1382 = vmatprep.subr.bf16.mxu0 0
      %1383 = vmatpush1.bf16.xpose.msra.mxu0 0
      %1384 = vmatprep.subr.bf16.mxu0 0
      %1385 = vmatpush1.bf16.xpose.msra.mxu0 0
      %1386 = vmatprep.subr.bf16.mxu0 0
      %1387 = vmatpush1.bf16.xpose.msra.mxu0 %v1370
      %1388 = vmatprep.subr.bf16.mxu0 0
      %1389 = vmatpush2.bf16.xpose.msra.mxu0 0
      %1390 = vmatprep.subr.bf16.mxu0 0
      %1391 = vmatpush2.bf16.xpose.msra.mxu0 0
      %1392 = vmatprep.subr.bf16.mxu0 0
      %1393 = vmatpush2.bf16.xpose.msra.mxu0 0
      %1394 = vmatprep.subr.bf16.mxu0 0
      %1395 = vmatpush2.bf16.xpose.msra.mxu0 0
      %1396 = vmatprep.subr.bf16.mxu0 0
      %1397 = vmatpush2.bf16.xpose.msra.mxu0 0
      %1398 = vmatprep.subr.bf16.mxu0 0
      %1399 = vmatpush2.bf16.xpose.msra.mxu0 0
      %1400 = vmatprep.subr.bf16.mxu0 0
      %1401 = vmatpush2.bf16.xpose.msra.mxu0 0
      %1402 = vmatprep.subr.bf16.mxu0 0
      %1403 = vmatpush2.bf16.xpose.msra.mxu0 0
      %1404 = vmatprep.mubr.bf16.mxu0 0
      %1405 = vmatmul.mubr.bf16.gmra.mxu0 %v1367
      %v1406 = vpop.f32.mrf.mxu0
      %v1407 = vadd.f32 %v592, %v1406
      %v1408 = vpop.f32.mrf.mxu0
      %v1409 = vpop.f32.mrf.mxu0
      %v1410 = vadd.f32 %v593, %v1409
      %v1411 = vpop.f32.mrf.mxu0
      %1412 = vdwg.mxu0
      %v1413 = vadd.f32 %v1254, %v598
      %v1414 = vadd.f32 %v1257, %v599
      %v1415 = vadd.f32 %v1305, %v600
      %v1416 = vadd.f32 %v1308, %v601
      %v1417 = vadd.f32 %v1356, %v602
      %v1418 = vadd.f32 %v1359, %v603
      %v1419 = vadd.f32 %v1407, %v604
      %v1420 = vadd.f32 %v1410, %v605
      %v1421 = vsel %vm834, %v1413, -inf
      %1422 = vmax.xlane.f32.xlu0 %v1421
      %v1423 = vpop.xlane.xlu0 %1422
      %v1424 = vsel %vm834, %v1414, -inf
      %1425 = vmax.xlane.f32.xlu0 %v1424
      %v1426 = vpop.xlane.xlu0 %1425
      %v1427 = vsel %vm834, %v1415, -inf
      %1428 = vmax.xlane.f32.xlu0 %v1427
      %v1429 = vpop.xlane.xlu0 %1428
      %v1430 = vsel %vm834, %v1416, -inf
      %1431 = vmax.xlane.f32.xlu0 %v1430
      %v1432 = vpop.xlane.xlu0 %1431
      %v1433 = vsel %vm834, %v1417, -inf
      %1434 = vmax.xlane.f32.xlu0 %v1433
      %v1435 = vpop.xlane.xlu0 %1434
      %v1436 = vsel %vm834, %v1418, -inf
      %1437 = vmax.xlane.f32.xlu0 %v1436
      %v1438 = vpop.xlane.xlu0 %1437
      %v1439 = vsel %vm834, %v1419, -inf
      %1440 = vmax.xlane.f32.xlu0 %v1439
      %v1441 = vpop.xlane.xlu0 %1440
      %v1442 = vsel %vm834, %v1420, -inf
      %1443 = vmax.xlane.f32.xlu0 %v1442
      %v1444 = vpop.xlane.xlu0 %1443
      %v1445 = vsub.f32 %v1413, %v1423
      %v1446 = vsub.f32 %v1414, %v1426
      %v1447 = vsub.f32 %v1415, %v1429
      %v1448 = vsub.f32 %v1416, %v1432
      %v1449 = vsub.f32 %v1417, %v1435
      %v1450 = vsub.f32 %v1418, %v1438
      %v1451 = vsub.f32 %v1419, %v1441
      %v1452 = vsub.f32 %v1420, %v1444
      %v1453 = vmul.f32 %v1445, 1.442695
      %v1454 = vpow.pop %v1453
      %v1455 = vmul.f32 %v1446, 1.442695
      %v1456 = vpow.pop %v1455
      %v1457 = vmul.f32 %v1447, 1.442695
      %v1458 = vpow.pop %v1457
      %v1459 = vmul.f32 %v1448, 1.442695
      %v1460 = vpow.pop %v1459
      %v1461 = vmul.f32 %v1449, 1.442695
      %v1462 = vpow.pop %v1461
      %v1463 = vmul.f32 %v1450, 1.442695
      %v1464 = vpow.pop %v1463
      %v1465 = vmul.f32 %v1451, 1.442695
      %v1466 = vpow.pop %v1465
      %v1467 = vmul.f32 %v1452, 1.442695
      %v1468 = vpow.pop %v1467
      %v1469 = vsel %vm834, %v1454, 0.0
      %1470 = vadd.xlane.f32.xlu0 %v1469
      %v1471 = vpop.xlane.xlu0 %1470
      %v1472 = vsel %vm834, %v1456, 0.0
      %1473 = vadd.xlane.f32.xlu0 %v1472
      %v1474 = vpop.xlane.xlu0 %1473
      %v1475 = vsel %vm834, %v1458, 0.0
      %1476 = vadd.xlane.f32.xlu0 %v1475
      %v1477 = vpop.xlane.xlu0 %1476
      %v1478 = vsel %vm834, %v1460, 0.0
      %1479 = vadd.xlane.f32.xlu0 %v1478
      %v1480 = vpop.xlane.xlu0 %1479
      %v1481 = vsel %vm834, %v1462, 0.0
      %1482 = vadd.xlane.f32.xlu0 %v1481
      %v1483 = vpop.xlane.xlu0 %1482
      %v1484 = vsel %vm834, %v1464, 0.0
      %1485 = vadd.xlane.f32.xlu0 %v1484
      %v1486 = vpop.xlane.xlu0 %1485
      %v1487 = vsel %vm834, %v1466, 0.0
      %1488 = vadd.xlane.f32.xlu0 %v1487
      %v1489 = vpop.xlane.xlu0 %1488
      %v1490 = vsel %vm834, %v1468, 0.0
      %1491 = vadd.xlane.f32.xlu0 %v1490
      %v1492 = vpop.xlane.xlu0 %1491
      %v1493 = vrcp.pop %v1471
      %v1494 = vrcp.pop %v1474
      %v1495 = vrcp.pop %v1477
      %v1496 = vrcp.pop %v1480
      %v1497 = vrcp.pop %v1483
      %v1498 = vrcp.pop %v1486
      %v1499 = vrcp.pop %v1489
      %v1500 = vrcp.pop %v1492
      %v1501 = vmul.f32 %v1454, %v1493
      %v1502 = vmul.f32 %v1456, %v1494
      %v1503 = vmul.f32 %v1458, %v1495
      %v1504 = vmul.f32 %v1460, %v1496
      %v1505 = vmul.f32 %v1462, %v1497
      %v1506 = vmul.f32 %v1464, %v1498
      %v1507 = vmul.f32 %v1466, %v1499
      %v1508 = vmul.f32 %v1468, %v1500
      %v1509 = vpack.c.bf16 %v1502, %v1501
      %v1510 = vpack.c.bf16 %v1504, %v1503
      %v1511 = vpack.c.bf16 %v1506, %v1505
      %v1512 = vpack.c.bf16 %v1508, %v1507
      %1513 = vrot.lane.b32.xlu0 %v621, 56
      %v1514 = vpop.permute.xlu0 %1513
      %v1517 = vsel %vm834, %v1509, 0
      %1519 = vmatprep.subr.bf16.mxu0 0
      %1520 = vmatpush1.bf16.msra.mxu0 0
      %1521 = vmatprep.subr.bf16.mxu0 0
      %1522 = vmatpush1.bf16.msra.mxu0 0
      %1523 = vmatprep.subr.bf16.mxu0 0
      %1524 = vmatpush1.bf16.msra.mxu0 0
      %1525 = vmatprep.subr.bf16.mxu0 0
      %1526 = vmatpush1.bf16.msra.mxu0 0
      %1527 = vmatprep.subr.bf16.mxu0 0
      %1528 = vmatpush1.bf16.msra.mxu0 0
      %1529 = vmatprep.subr.bf16.mxu0 0
      %1530 = vmatpush1.bf16.msra.mxu0 0
      %1531 = vmatprep.subr.bf16.mxu0 0
      %1532 = vmatpush1.bf16.msra.mxu0 0
      %1533 = vmatprep.subr.bf16.mxu0 0
      %1534 = vmatpush1.bf16.msra.mxu0 %v1514
      %1535 = vmatprep.subr.bf16.mxu0 0
      %1536 = vmatpush2.bf16.msra.mxu0 0
      %1537 = vmatprep.subr.bf16.mxu0 0
      %1538 = vmatpush2.bf16.msra.mxu0 0
      %1539 = vmatprep.subr.bf16.mxu0 0
      %1540 = vmatpush2.bf16.msra.mxu0 0
      %1541 = vmatprep.subr.bf16.mxu0 0
      %1542 = vmatpush2.bf16.msra.mxu0 0
      %1543 = vmatprep.subr.bf16.mxu0 0
      %1544 = vmatpush2.bf16.msra.mxu0 0
      %1545 = vmatprep.subr.bf16.mxu0 0
      %1546 = vmatpush2.bf16.msra.mxu0 0
      %1547 = vmatprep.subr.bf16.mxu0 0
      %1548 = vmatpush2.bf16.msra.mxu0 0
      %1549 = vmatprep.subr.bf16.mxu0 0
      %1550 = vmatpush2.bf16.msra.mxu0 0
      %1551 = vmatprep.mubr.bf16.mxu0 0
      %1552 = vmatmul.mubr.bf16.gmra.mxu0 %v1517
      %v1553 = vpop.f32.mrf.mxu0
      %v1554 = vadd.f32 0.0, %v1553
      %v1555 = vpop.f32.mrf.mxu0
      %v1556 = vpop.f32.mrf.mxu0
      %v1557 = vadd.f32 0.0, %v1556
      %v1558 = vpop.f32.mrf.mxu0
      %1559 = vdwg.mxu0
      %1560 = vrot.lane.b32.xlu0 %v622, 56
      %v1561 = vpop.permute.xlu0 %1560
      %v1564 = vsel %vm834, %v1510, 0
      %1566 = vmatprep.subr.bf16.mxu0 0
      %1567 = vmatpush1.bf16.msra.mxu0 0
      %1568 = vmatprep.subr.bf16.mxu0 0
      %1569 = vmatpush1.bf16.msra.mxu0 0
      %1570 = vmatprep.subr.bf16.mxu0 0
      %1571 = vmatpush1.bf16.msra.mxu0 0
      %1572 = vmatprep.subr.bf16.mxu0 0
      %1573 = vmatpush1.bf16.msra.mxu0 0
      %1574 = vmatprep.subr.bf16.mxu0 0
      %1575 = vmatpush1.bf16.msra.mxu0 0
      %1576 = vmatprep.subr.bf16.mxu0 0
      %1577 = vmatpush1.bf16.msra.mxu0 0
      %1578 = vmatprep.subr.bf16.mxu0 0
      %1579 = vmatpush1.bf16.msra.mxu0 0
      %1580 = vmatprep.subr.bf16.mxu0 0
      %1581 = vmatpush1.bf16.msra.mxu0 %v1561
      %1582 = vmatprep.subr.bf16.mxu0 0
      %1583 = vmatpush2.bf16.msra.mxu0 0
      %1584 = vmatprep.subr.bf16.mxu0 0
      %1585 = vmatpush2.bf16.msra.mxu0 0
      %1586 = vmatprep.subr.bf16.mxu0 0
      %1587 = vmatpush2.bf16.msra.mxu0 0
      %1588 = vmatprep.subr.bf16.mxu0 0
      %1589 = vmatpush2.bf16.msra.mxu0 0
      %1590 = vmatprep.subr.bf16.mxu0 0
      %1591 = vmatpush2.bf16.msra.mxu0 0
      %1592 = vmatprep.subr.bf16.mxu0 0
      %1593 = vmatpush2.bf16.msra.mxu0 0
      %1594 = vmatprep.subr.bf16.mxu0 0
      %1595 = vmatpush2.bf16.msra.mxu0 0
      %1596 = vmatprep.subr.bf16.mxu0 0
      %1597 = vmatpush2.bf16.msra.mxu0 0
      %1598 = vmatprep.mubr.bf16.mxu0 0
      %1599 = vmatmul.mubr.bf16.gmra.mxu0 %v1564
      %v1600 = vpop.f32.mrf.mxu0
      %v1601 = vadd.f32 0.0, %v1600
      %v1602 = vpop.f32.mrf.mxu0
      %v1603 = vpop.f32.mrf.mxu0
      %v1604 = vadd.f32 0.0, %v1603
      %v1605 = vpop.f32.mrf.mxu0
      %1606 = vdwg.mxu0
      %1607 = vrot.lane.b32.xlu0 %v623, 56
      %v1608 = vpop.permute.xlu0 %1607
      %v1611 = vsel %vm834, %v1511, 0
      %1613 = vmatprep.subr.bf16.mxu0 0
      %1614 = vmatpush1.bf16.msra.mxu0 0
      %1615 = vmatprep.subr.bf16.mxu0 0
      %1616 = vmatpush1.bf16.msra.mxu0 0
      %1617 = vmatprep.subr.bf16.mxu0 0
      %1618 = vmatpush1.bf16.msra.mxu0 0
      %1619 = vmatprep.subr.bf16.mxu0 0
      %1620 = vmatpush1.bf16.msra.mxu0 0
      %1621 = vmatprep.subr.bf16.mxu0 0
      %1622 = vmatpush1.bf16.msra.mxu0 0
      %1623 = vmatprep.subr.bf16.mxu0 0
      %1624 = vmatpush1.bf16.msra.mxu0 0
      %1625 = vmatprep.subr.bf16.mxu0 0
      %1626 = vmatpush1.bf16.msra.mxu0 0
      %1627 = vmatprep.subr.bf16.mxu0 0
      %1628 = vmatpush1.bf16.msra.mxu0 %v1608
      %1629 = vmatprep.subr.bf16.mxu0 0
      %1630 = vmatpush2.bf16.msra.mxu0 0
      %1631 = vmatprep.subr.bf16.mxu0 0
      %1632 = vmatpush2.bf16.msra.mxu0 0
      %1633 = vmatprep.subr.bf16.mxu0 0
      %1634 = vmatpush2.bf16.msra.mxu0 0
      %1635 = vmatprep.subr.bf16.mxu0 0
      %1636 = vmatpush2.bf16.msra.mxu0 0
      %1637 = vmatprep.subr.bf16.mxu0 0
      %1638 = vmatpush2.bf16.msra.mxu0 0
      %1639 = vmatprep.subr.bf16.mxu0 0
      %1640 = vmatpush2.bf16.msra.mxu0 0
      %1641 = vmatprep.subr.bf16.mxu0 0
      %1642 = vmatpush2.bf16.msra.mxu0 0
      %1643 = vmatprep.subr.bf16.mxu0 0
      %1644 = vmatpush2.bf16.msra.mxu0 0
      %1645 = vmatprep.mubr.bf16.mxu0 0
      %1646 = vmatmul.mubr.bf16.gmra.mxu0 %v1611
      %v1647 = vpop.f32.mrf.mxu0
      %v1648 = vadd.f32 0.0, %v1647
      %v1649 = vpop.f32.mrf.mxu0
      %v1650 = vpop.f32.mrf.mxu0
      %v1651 = vadd.f32 0.0, %v1650
      %v1652 = vpop.f32.mrf.mxu0
      %1653 = vdwg.mxu0
      %1654 = vrot.lane.b32.xlu0 %v624, 56
      %v1655 = vpop.permute.xlu0 %1654
      %v1658 = vsel %vm834, %v1512, 0
      %1660 = vmatprep.subr.bf16.mxu0 0
      %1661 = vmatpush1.bf16.msra.mxu0 0
      %1662 = vmatprep.subr.bf16.mxu0 0
      %1663 = vmatpush1.bf16.msra.mxu0 0
      %1664 = vmatprep.subr.bf16.mxu0 0
      %1665 = vmatpush1.bf16.msra.mxu0 0
      %1666 = vmatprep.subr.bf16.mxu0 0
      %1667 = vmatpush1.bf16.msra.mxu0 0
      %1668 = vmatprep.subr.bf16.mxu0 0
      %1669 = vmatpush1.bf16.msra.mxu0 0
      %1670 = vmatprep.subr.bf16.mxu0 0
      %1671 = vmatpush1.bf16.msra.mxu0 0
      %1672 = vmatprep.subr.bf16.mxu0 0
      %1673 = vmatpush1.bf16.msra.mxu0 0
      %1674 = vmatprep.subr.bf16.mxu0 0
      %1675 = vmatpush1.bf16.msra.mxu0 %v1655
      %1676 = vmatprep.subr.bf16.mxu0 0
      %1677 = vmatpush2.bf16.msra.mxu0 0
      %1678 = vmatprep.subr.bf16.mxu0 0
      %1679 = vmatpush2.bf16.msra.mxu0 0
      %1680 = vmatprep.subr.bf16.mxu0 0
      %1681 = vmatpush2.bf16.msra.mxu0 0
      %1682 = vmatprep.subr.bf16.mxu0 0
      %1683 = vmatpush2.bf16.msra.mxu0 0
      %1684 = vmatprep.subr.bf16.mxu0 0
      %1685 = vmatpush2.bf16.msra.mxu0 0
      %1686 = vmatprep.subr.bf16.mxu0 0
      %1687 = vmatpush2.bf16.msra.mxu0 0
      %1688 = vmatprep.subr.bf16.mxu0 0
      %1689 = vmatpush2.bf16.msra.mxu0 0
      %1690 = vmatprep.subr.bf16.mxu0 0
      %1691 = vmatpush2.bf16.msra.mxu0 0
      %1692 = vmatprep.mubr.bf16.mxu0 0
      %1693 = vmatmul.mubr.bf16.gmra.mxu0 %v1658
      %v1694 = vpop.f32.mrf.mxu0
      %v1695 = vadd.f32 0.0, %v1694
      %v1696 = vpop.f32.mrf.mxu0
      %v1697 = vpop.f32.mrf.mxu0
      %v1698 = vadd.f32 0.0, %v1697
      %v1699 = vpop.f32.mrf.mxu0
      %1700 = vdwg.mxu0
      %v1701 = vpack.c.bf16 %v1557, %v1554
      %v1702 = vpack.c.bf16 %v1604, %v1601
      %v1703 = vpack.c.bf16 %v1651, %v1648
      %v1704 = vpack.c.bf16 %v1698, %v1695
      %s1705 = scalar_lea.vmem %s7, 4
      %v1706 = vld [vmem:[%s1705] sm:$0xf]
      %v1708 = vsel %vm628, %v1701, 0
      %v1711 = vsel %vm628, %v1702, 0
      %v1714 = vsel %vm628, %v1703, 0
      %v1717 = vsel %vm628, %v1704, 0
      %v1720 = vsel %vm1132, %v1706, 0
      %1722 = vmatprep.subr.bf16.mxu0 0
      %1723 = vmatpush1.bf16.msra.mxu0 0
      %1724 = vmatprep.subr.bf16.mxu0 0
      %1725 = vmatpush1.bf16.msra.mxu0 0
      %1726 = vmatprep.subr.bf16.mxu0 0
      %1727 = vmatpush1.bf16.msra.mxu0 0
      %1728 = vmatprep.subr.bf16.mxu0 0
      %1729 = vmatpush1.bf16.msra.mxu0 0
      %1730 = vmatprep.subr.bf16.mxu0 0
      %1731 = vmatpush1.bf16.msra.mxu0 0
      %1732 = vmatprep.subr.bf16.mxu0 0
      %1733 = vmatpush1.bf16.msra.mxu0 0
      %1734 = vmatprep.subr.bf16.mxu0 0
      %1735 = vmatpush1.bf16.msra.mxu0 0
      %1736 = vmatprep.subr.bf16.mxu0 0
      %1737 = vmatpush1.bf16.msra.mxu0 %v1720
      %1738 = vmatprep.subr.bf16.mxu0 0
      %1739 = vmatpush2.bf16.msra.mxu0 0
      %1740 = vmatprep.subr.bf16.mxu0 0
      %1741 = vmatpush2.bf16.msra.mxu0 0
      %1742 = vmatprep.subr.bf16.mxu0 0
      %1743 = vmatpush2.bf16.msra.mxu0 0
      %1744 = vmatprep.subr.bf16.mxu0 0
      %1745 = vmatpush2.bf16.msra.mxu0 0
      %1746 = vmatprep.subr.bf16.mxu0 0
      %1747 = vmatpush2.bf16.msra.mxu0 0
      %1748 = vmatprep.subr.bf16.mxu0 0
      %1749 = vmatpush2.bf16.msra.mxu0 0
      %1750 = vmatprep.subr.bf16.mxu0 0
      %1751 = vmatpush2.bf16.msra.mxu0 0
      %1752 = vmatprep.subr.bf16.mxu0 0
      %1753 = vmatpush2.bf16.msra.mxu0 0
      %1754 = vmatprep.mubr.bf16.mxu0 0
      %1755 = vmatmul.mubr.bf16.gmra.mxu0 %v1708
      %v1756 = vpop.f32.mrf.mxu0
      %v1757 = vadd.f32 0.0, %v1756
      %v1758 = vpop.f32.mrf.mxu0
      %v1759 = vpop.f32.mrf.mxu0
      %v1760 = vadd.f32 0.0, %v1759
      %v1761 = vpop.f32.mrf.mxu0
      %1762 = vmatprep.mubr.bf16.mxu0 0
      %1763 = vmatmul.mubr.bf16.gmra.mxu0 %v1711
      %v1764 = vpop.f32.mrf.mxu0
      %v1765 = vadd.f32 0.0, %v1764
      %v1766 = vpop.f32.mrf.mxu0
      %v1767 = vpop.f32.mrf.mxu0
      %v1768 = vadd.f32 0.0, %v1767
      %v1769 = vpop.f32.mrf.mxu0
      %1770 = vmatprep.mubr.bf16.mxu0 0
      %1771 = vmatmul.mubr.bf16.gmra.mxu0 %v1714
      %v1772 = vpop.f32.mrf.mxu0
      %v1773 = vadd.f32 0.0, %v1772
      %v1774 = vpop.f32.mrf.mxu0
      %v1775 = vpop.f32.mrf.mxu0
      %v1776 = vadd.f32 0.0, %v1775
      %v1777 = vpop.f32.mrf.mxu0
      %1778 = vmatprep.mubr.bf16.mxu0 0
      %1779 = vmatmul.mubr.bf16.gmra.mxu0 %v1717
      %v1780 = vpop.f32.mrf.mxu0
      %v1781 = vadd.f32 0.0, %v1780
      %v1782 = vpop.f32.mrf.mxu0
      %v1783 = vpop.f32.mrf.mxu0
      %v1784 = vadd.f32 0.0, %v1783
      %v1785 = vpop.f32.mrf.mxu0
      %1786 = vdwg.mxu0
      %v1787 = vadd.f32 %v1201, %v1757
      %v1788 = vadd.f32 %v1202, %v1760
      %v1789 = vadd.f32 %v1203, %v1765
      %v1790 = vadd.f32 %v1204, %v1768
      %v1791 = vadd.f32 %v1205, %v1773
      %v1792 = vadd.f32 %v1206, %v1776
      %v1793 = vadd.f32 %v1207, %v1781
      %v1794 = vadd.f32 %v1208, %v1784
      %1795 = vrot.lane.b32.xlu0 %v621, 112
      %v1796 = vpop.permute.xlu0 %1795
      %1797 = vrot.lane.b32.xlu0 %v621, 80
      %v1798 = vpop.permute.xlu0 %1797
      %v1800 = vsel %vm628, %v1796, 0
      %v1803 = vsel %vm628, %v1798, 0
      %1805 = vmatprep.subr.bf16.mxu0 0
      %1806 = vmatpush1.bf16.xpose.msra.mxu0 0
      %1807 = vmatprep.subr.bf16.mxu0 0
      %1808 = vmatpush1.bf16.xpose.msra.mxu0 0
      %1809 = vmatprep.subr.bf16.mxu0 0
      %1810 = vmatpush1.bf16.xpose.msra.mxu0 0
      %1811 = vmatprep.subr.bf16.mxu0 0
      %1812 = vmatpush1.bf16.xpose.msra.mxu0 0
      %1813 = vmatprep.subr.bf16.mxu0 0
      %1814 = vmatpush1.bf16.xpose.msra.mxu0 0
      %1815 = vmatprep.subr.bf16.mxu0 0
      %1816 = vmatpush1.bf16.xpose.msra.mxu0 0
      %1817 = vmatprep.subr.bf16.mxu0 0
      %1818 = vmatpush1.bf16.xpose.msra.mxu0 0
      %1819 = vmatprep.subr.bf16.mxu0 0
      %1820 = vmatpush1.bf16.xpose.msra.mxu0 %v1803
      %1821 = vmatprep.subr.bf16.mxu0 0
      %1822 = vmatpush2.bf16.xpose.msra.mxu0 0
      %1823 = vmatprep.subr.bf16.mxu0 0
      %1824 = vmatpush2.bf16.xpose.msra.mxu0 0
      %1825 = vmatprep.subr.bf16.mxu0 0
      %1826 = vmatpush2.bf16.xpose.msra.mxu0 0
      %1827 = vmatprep.subr.bf16.mxu0 0
      %1828 = vmatpush2.bf16.xpose.msra.mxu0 0
      %1829 = vmatprep.subr.bf16.mxu0 0
      %1830 = vmatpush2.bf16.xpose.msra.mxu0 0
      %1831 = vmatprep.subr.bf16.mxu0 0
      %1832 = vmatpush2.bf16.xpose.msra.mxu0 0
      %1833 = vmatprep.subr.bf16.mxu0 0
      %1834 = vmatpush2.bf16.xpose.msra.mxu0 0
      %1835 = vmatprep.subr.bf16.mxu0 0
      %1836 = vmatpush2.bf16.xpose.msra.mxu0 0
      %1837 = vmatprep.mubr.bf16.mxu0 0
      %1838 = vmatmul.mubr.bf16.gmra.mxu0 %v1800
      %v1839 = vpop.f32.mrf.mxu0
      %v1840 = vadd.f32 %v594, %v1839
      %v1841 = vpop.f32.mrf.mxu0
      %v1842 = vpop.f32.mrf.mxu0
      %v1843 = vadd.f32 %v595, %v1842
      %v1844 = vpop.f32.mrf.mxu0
      %1845 = vdwg.mxu0
      %1846 = vrot.lane.b32.xlu0 %v622, 112
      %v1847 = vpop.permute.xlu0 %1846
      %1848 = vrot.lane.b32.xlu0 %v622, 80
      %v1849 = vpop.permute.xlu0 %1848
      %v1851 = vsel %vm628, %v1847, 0
      %v1854 = vsel %vm628, %v1849, 0
      %1856 = vmatprep.subr.bf16.mxu0 0
      %1857 = vmatpush1.bf16.xpose.msra.mxu0 0
      %1858 = vmatprep.subr.bf16.mxu0 0
      %1859 = vmatpush1.bf16.xpose.msra.mxu0 0
      %1860 = vmatprep.subr.bf16.mxu0 0
      %1861 = vmatpush1.bf16.xpose.msra.mxu0 0
      %1862 = vmatprep.subr.bf16.mxu0 0
      %1863 = vmatpush1.bf16.xpose.msra.mxu0 0
      %1864 = vmatprep.subr.bf16.mxu0 0
      %1865 = vmatpush1.bf16.xpose.msra.mxu0 0
      %1866 = vmatprep.subr.bf16.mxu0 0
      %1867 = vmatpush1.bf16.xpose.msra.mxu0 0
      %1868 = vmatprep.subr.bf16.mxu0 0
      %1869 = vmatpush1.bf16.xpose.msra.mxu0 0
      %1870 = vmatprep.subr.bf16.mxu0 0
      %1871 = vmatpush1.bf16.xpose.msra.mxu0 %v1854
      %1872 = vmatprep.subr.bf16.mxu0 0
      %1873 = vmatpush2.bf16.xpose.msra.mxu0 0
      %1874 = vmatprep.subr.bf16.mxu0 0
      %1875 = vmatpush2.bf16.xpose.msra.mxu0 0
      %1876 = vmatprep.subr.bf16.mxu0 0
      %1877 = vmatpush2.bf16.xpose.msra.mxu0 0
      %1878 = vmatprep.subr.bf16.mxu0 0
      %1879 = vmatpush2.bf16.xpose.msra.mxu0 0
      %1880 = vmatprep.subr.bf16.mxu0 0
      %1881 = vmatpush2.bf16.xpose.msra.mxu0 0
      %1882 = vmatprep.subr.bf16.mxu0 0
      %1883 = vmatpush2.bf16.xpose.msra.mxu0 0
      %1884 = vmatprep.subr.bf16.mxu0 0
      %1885 = vmatpush2.bf16.xpose.msra.mxu0 0
      %1886 = vmatprep.subr.bf16.mxu0 0
      %1887 = vmatpush2.bf16.xpose.msra.mxu0 0
      %1888 = vmatprep.mubr.bf16.mxu0 0
      %1889 = vmatmul.mubr.bf16.gmra.mxu0 %v1851
      %v1890 = vpop.f32.mrf.mxu0
      %v1891 = vadd.f32 %v594, %v1890
      %v1892 = vpop.f32.mrf.mxu0
      %v1893 = vpop.f32.mrf.mxu0
      %v1894 = vadd.f32 %v595, %v1893
      %v1895 = vpop.f32.mrf.mxu0
      %1896 = vdwg.mxu0
      %1897 = vrot.lane.b32.xlu0 %v623, 112
      %v1898 = vpop.permute.xlu0 %1897
      %1899 = vrot.lane.b32.xlu0 %v623, 80
      %v1900 = vpop.permute.xlu0 %1899
      %v1902 = vsel %vm628, %v1898, 0
      %v1905 = vsel %vm628, %v1900, 0
      %1907 = vmatprep.subr.bf16.mxu0 0
      %1908 = vmatpush1.bf16.xpose.msra.mxu0 0
      %1909 = vmatprep.subr.bf16.mxu0 0
      %1910 = vmatpush1.bf16.xpose.msra.mxu0 0
      %1911 = vmatprep.subr.bf16.mxu0 0
      %1912 = vmatpush1.bf16.xpose.msra.mxu0 0
      %1913 = vmatprep.subr.bf16.mxu0 0
      %1914 = vmatpush1.bf16.xpose.msra.mxu0 0
      %1915 = vmatprep.subr.bf16.mxu0 0
      %1916 = vmatpush1.bf16.xpose.msra.mxu0 0
      %1917 = vmatprep.subr.bf16.mxu0 0
      %1918 = vmatpush1.bf16.xpose.msra.mxu0 0
      %1919 = vmatprep.subr.bf16.mxu0 0
      %1920 = vmatpush1.bf16.xpose.msra.mxu0 0
      %1921 = vmatprep.subr.bf16.mxu0 0
      %1922 = vmatpush1.bf16.xpose.msra.mxu0 %v1905
      %1923 = vmatprep.subr.bf16.mxu0 0
      %1924 = vmatpush2.bf16.xpose.msra.mxu0 0
      %1925 = vmatprep.subr.bf16.mxu0 0
      %1926 = vmatpush2.bf16.xpose.msra.mxu0 0
      %1927 = vmatprep.subr.bf16.mxu0 0
      %1928 = vmatpush2.bf16.xpose.msra.mxu0 0
      %1929 = vmatprep.subr.bf16.mxu0 0
      %1930 = vmatpush2.bf16.xpose.msra.mxu0 0
      %1931 = vmatprep.subr.bf16.mxu0 0
      %1932 = vmatpush2.bf16.xpose.msra.mxu0 0
      %1933 = vmatprep.subr.bf16.mxu0 0
      %1934 = vmatpush2.bf16.xpose.msra.mxu0 0
      %1935 = vmatprep.subr.bf16.mxu0 0
      %1936 = vmatpush2.bf16.xpose.msra.mxu0 0
      %1937 = vmatprep.subr.bf16.mxu0 0
      %1938 = vmatpush2.bf16.xpose.msra.mxu0 0
      %1939 = vmatprep.mubr.bf16.mxu0 0
      %1940 = vmatmul.mubr.bf16.gmra.mxu0 %v1902
      %v1941 = vpop.f32.mrf.mxu0
      %v1942 = vadd.f32 %v594, %v1941
      %v1943 = vpop.f32.mrf.mxu0
      %v1944 = vpop.f32.mrf.mxu0
      %v1945 = vadd.f32 %v595, %v1944
      %v1946 = vpop.f32.mrf.mxu0
      %1947 = vdwg.mxu0
      %1948 = vrot.lane.b32.xlu0 %v624, 112
      %v1949 = vpop.permute.xlu0 %1948
      %1950 = vrot.lane.b32.xlu0 %v624, 80
      %v1951 = vpop.permute.xlu0 %1950
      %v1953 = vsel %vm628, %v1949, 0
      %v1956 = vsel %vm628, %v1951, 0
      %1958 = vmatprep.subr.bf16.mxu0 0
      %1959 = vmatpush1.bf16.xpose.msra.mxu0 0
      %1960 = vmatprep.subr.bf16.mxu0 0
      %1961 = vmatpush1.bf16.xpose.msra.mxu0 0
      %1962 = vmatprep.subr.bf16.mxu0 0
      %1963 = vmatpush1.bf16.xpose.msra.mxu0 0
      %1964 = vmatprep.subr.bf16.mxu0 0
      %1965 = vmatpush1.bf16.xpose.msra.mxu0 0
      %1966 = vmatprep.subr.bf16.mxu0 0
      %1967 = vmatpush1.bf16.xpose.msra.mxu0 0
      %1968 = vmatprep.subr.bf16.mxu0 0
      %1969 = vmatpush1.bf16.xpose.msra.mxu0 0
      %1970 = vmatprep.subr.bf16.mxu0 0
      %1971 = vmatpush1.bf16.xpose.msra.mxu0 0
      %1972 = vmatprep.subr.bf16.mxu0 0
      %1973 = vmatpush1.bf16.xpose.msra.mxu0 %v1956
      %1974 = vmatprep.subr.bf16.mxu0 0
      %1975 = vmatpush2.bf16.xpose.msra.mxu0 0
      %1976 = vmatprep.subr.bf16.mxu0 0
      %1977 = vmatpush2.bf16.xpose.msra.mxu0 0
      %1978 = vmatprep.subr.bf16.mxu0 0
      %1979 = vmatpush2.bf16.xpose.msra.mxu0 0
      %1980 = vmatprep.subr.bf16.mxu0 0
      %1981 = vmatpush2.bf16.xpose.msra.mxu0 0
      %1982 = vmatprep.subr.bf16.mxu0 0
      %1983 = vmatpush2.bf16.xpose.msra.mxu0 0
      %1984 = vmatprep.subr.bf16.mxu0 0
      %1985 = vmatpush2.bf16.xpose.msra.mxu0 0
      %1986 = vmatprep.subr.bf16.mxu0 0
      %1987 = vmatpush2.bf16.xpose.msra.mxu0 0
      %1988 = vmatprep.subr.bf16.mxu0 0
      %1989 = vmatpush2.bf16.xpose.msra.mxu0 0
      %1990 = vmatprep.mubr.bf16.mxu0 0
      %1991 = vmatmul.mubr.bf16.gmra.mxu0 %v1953
      %v1992 = vpop.f32.mrf.mxu0
      %v1993 = vadd.f32 %v594, %v1992
      %v1994 = vpop.f32.mrf.mxu0
      %v1995 = vpop.f32.mrf.mxu0
      %v1996 = vadd.f32 %v595, %v1995
      %v1997 = vpop.f32.mrf.mxu0
      %1998 = vdwg.mxu0
      %v1999 = vadd.f32 %v1840, %v598
      %v2000 = vadd.f32 %v1843, %v599
      %v2001 = vadd.f32 %v1891, %v600
      %v2002 = vadd.f32 %v1894, %v601
      %v2003 = vadd.f32 %v1942, %v602
      %v2004 = vadd.f32 %v1945, %v603
      %v2005 = vadd.f32 %v1993, %v604
      %v2006 = vadd.f32 %v1996, %v605
      %v2007 = vsel %vm834, %v1999, -inf
      %2008 = vmax.xlane.f32.xlu0 %v2007
      %v2009 = vpop.xlane.xlu0 %2008
      %v2010 = vsel %vm834, %v2000, -inf
      %2011 = vmax.xlane.f32.xlu0 %v2010
      %v2012 = vpop.xlane.xlu0 %2011
      %v2013 = vsel %vm834, %v2001, -inf
      %2014 = vmax.xlane.f32.xlu0 %v2013
      %v2015 = vpop.xlane.xlu0 %2014
      %v2016 = vsel %vm834, %v2002, -inf
      %2017 = vmax.xlane.f32.xlu0 %v2016
      %v2018 = vpop.xlane.xlu0 %2017
      %v2019 = vsel %vm834, %v2003, -inf
      %2020 = vmax.xlane.f32.xlu0 %v2019
      %v2021 = vpop.xlane.xlu0 %2020
      %v2022 = vsel %vm834, %v2004, -inf
      %2023 = vmax.xlane.f32.xlu0 %v2022
      %v2024 = vpop.xlane.xlu0 %2023
      %v2025 = vsel %vm834, %v2005, -inf
      %2026 = vmax.xlane.f32.xlu0 %v2025
      %v2027 = vpop.xlane.xlu0 %2026
      %v2028 = vsel %vm834, %v2006, -inf
      %2029 = vmax.xlane.f32.xlu0 %v2028
      %v2030 = vpop.xlane.xlu0 %2029
      %v2031 = vsub.f32 %v1999, %v2009
      %v2032 = vsub.f32 %v2000, %v2012
      %v2033 = vsub.f32 %v2001, %v2015
      %v2034 = vsub.f32 %v2002, %v2018
      %v2035 = vsub.f32 %v2003, %v2021
      %v2036 = vsub.f32 %v2004, %v2024
      %v2037 = vsub.f32 %v2005, %v2027
      %v2038 = vsub.f32 %v2006, %v2030
      %v2039 = vmul.f32 %v2031, 1.442695
      %v2040 = vpow.pop %v2039
      %v2041 = vmul.f32 %v2032, 1.442695
      %v2042 = vpow.pop %v2041
      %v2043 = vmul.f32 %v2033, 1.442695
      %v2044 = vpow.pop %v2043
      %v2045 = vmul.f32 %v2034, 1.442695
      %v2046 = vpow.pop %v2045
      %v2047 = vmul.f32 %v2035, 1.442695
      %v2048 = vpow.pop %v2047
      %v2049 = vmul.f32 %v2036, 1.442695
      %v2050 = vpow.pop %v2049
      %v2051 = vmul.f32 %v2037, 1.442695
      %v2052 = vpow.pop %v2051
      %v2053 = vmul.f32 %v2038, 1.442695
      %v2054 = vpow.pop %v2053
      %v2055 = vsel %vm834, %v2040, 0.0
      %2056 = vadd.xlane.f32.xlu0 %v2055
      %v2057 = vpop.xlane.xlu0 %2056
      %v2058 = vsel %vm834, %v2042, 0.0
      %2059 = vadd.xlane.f32.xlu0 %v2058
      %v2060 = vpop.xlane.xlu0 %2059
      %v2061 = vsel %vm834, %v2044, 0.0
      %2062 = vadd.xlane.f32.xlu0 %v2061
      %v2063 = vpop.xlane.xlu0 %2062
      %v2064 = vsel %vm834, %v2046, 0.0
      %2065 = vadd.xlane.f32.xlu0 %v2064
      %v2066 = vpop.xlane.xlu0 %2065
      %v2067 = vsel %vm834, %v2048, 0.0
      %2068 = vadd.xlane.f32.xlu0 %v2067
      %v2069 = vpop.xlane.xlu0 %2068
      %v2070 = vsel %vm834, %v2050, 0.0
      %2071 = vadd.xlane.f32.xlu0 %v2070
      %v2072 = vpop.xlane.xlu0 %2071
      %v2073 = vsel %vm834, %v2052, 0.0
      %2074 = vadd.xlane.f32.xlu0 %v2073
      %v2075 = vpop.xlane.xlu0 %2074
      %v2076 = vsel %vm834, %v2054, 0.0
      %2077 = vadd.xlane.f32.xlu0 %v2076
      %v2078 = vpop.xlane.xlu0 %2077
      %v2079 = vrcp.pop %v2057
      %v2080 = vrcp.pop %v2060
      %v2081 = vrcp.pop %v2063
      %v2082 = vrcp.pop %v2066
      %v2083 = vrcp.pop %v2069
      %v2084 = vrcp.pop %v2072
      %v2085 = vrcp.pop %v2075
      %v2086 = vrcp.pop %v2078
      %v2087 = vmul.f32 %v2040, %v2079
      %v2088 = vmul.f32 %v2042, %v2080
      %v2089 = vmul.f32 %v2044, %v2081
      %v2090 = vmul.f32 %v2046, %v2082
      %v2091 = vmul.f32 %v2048, %v2083
      %v2092 = vmul.f32 %v2050, %v2084
      %v2093 = vmul.f32 %v2052, %v2085
      %v2094 = vmul.f32 %v2054, %v2086
      %v2095 = vpack.c.bf16 %v2088, %v2087
      %v2096 = vpack.c.bf16 %v2090, %v2089
      %v2097 = vpack.c.bf16 %v2092, %v2091
      %v2098 = vpack.c.bf16 %v2094, %v2093
      %2099 = vrot.lane.b32.xlu0 %v621, 48
      %v2100 = vpop.permute.xlu0 %2099
      %v2103 = vsel %vm834, %v2095, 0
      %2105 = vmatprep.subr.bf16.mxu0 0
      %2106 = vmatpush1.bf16.msra.mxu0 0
      %2107 = vmatprep.subr.bf16.mxu0 0
      %2108 = vmatpush1.bf16.msra.mxu0 0
      %2109 = vmatprep.subr.bf16.mxu0 0
      %2110 = vmatpush1.bf16.msra.mxu0 0
      %2111 = vmatprep.subr.bf16.mxu0 0
      %2112 = vmatpush1.bf16.msra.mxu0 0
      %2113 = vmatprep.subr.bf16.mxu0 0
      %2114 = vmatpush1.bf16.msra.mxu0 0
      %2115 = vmatprep.subr.bf16.mxu0 0
      %2116 = vmatpush1.bf16.msra.mxu0 0
      %2117 = vmatprep.subr.bf16.mxu0 0
      %2118 = vmatpush1.bf16.msra.mxu0 0
      %2119 = vmatprep.subr.bf16.mxu0 0
      %2120 = vmatpush1.bf16.msra.mxu0 %v2100
      %2121 = vmatprep.subr.bf16.mxu0 0
      %2122 = vmatpush2.bf16.msra.mxu0 0
      %2123 = vmatprep.subr.bf16.mxu0 0
      %2124 = vmatpush2.bf16.msra.mxu0 0
      %2125 = vmatprep.subr.bf16.mxu0 0
      %2126 = vmatpush2.bf16.msra.mxu0 0
      %2127 = vmatprep.subr.bf16.mxu0 0
      %2128 = vmatpush2.bf16.msra.mxu0 0
      %2129 = vmatprep.subr.bf16.mxu0 0
      %2130 = vmatpush2.bf16.msra.mxu0 0
      %2131 = vmatprep.subr.bf16.mxu0 0
      %2132 = vmatpush2.bf16.msra.mxu0 0
      %2133 = vmatprep.subr.bf16.mxu0 0
      %2134 = vmatpush2.bf16.msra.mxu0 0
      %2135 = vmatprep.subr.bf16.mxu0 0
      %2136 = vmatpush2.bf16.msra.mxu0 0
      %2137 = vmatprep.mubr.bf16.mxu0 0
      %2138 = vmatmul.mubr.bf16.gmra.mxu0 %v2103
      %v2139 = vpop.f32.mrf.mxu0
      %v2140 = vadd.f32 0.0, %v2139
      %v2141 = vpop.f32.mrf.mxu0
      %v2142 = vpop.f32.mrf.mxu0
      %v2143 = vadd.f32 0.0, %v2142
      %v2144 = vpop.f32.mrf.mxu0
      %2145 = vdwg.mxu0
      %2146 = vrot.lane.b32.xlu0 %v622, 48
      %v2147 = vpop.permute.xlu0 %2146
      %v2150 = vsel %vm834, %v2096, 0
      %2152 = vmatprep.subr.bf16.mxu0 0
      %2153 = vmatpush1.bf16.msra.mxu0 0
      %2154 = vmatprep.subr.bf16.mxu0 0
      %2155 = vmatpush1.bf16.msra.mxu0 0
      %2156 = vmatprep.subr.bf16.mxu0 0
      %2157 = vmatpush1.bf16.msra.mxu0 0
      %2158 = vmatprep.subr.bf16.mxu0 0
      %2159 = vmatpush1.bf16.msra.mxu0 0
      %2160 = vmatprep.subr.bf16.mxu0 0
      %2161 = vmatpush1.bf16.msra.mxu0 0
      %2162 = vmatprep.subr.bf16.mxu0 0
      %2163 = vmatpush1.bf16.msra.mxu0 0
      %2164 = vmatprep.subr.bf16.mxu0 0
      %2165 = vmatpush1.bf16.msra.mxu0 0
      %2166 = vmatprep.subr.bf16.mxu0 0
      %2167 = vmatpush1.bf16.msra.mxu0 %v2147
      %2168 = vmatprep.subr.bf16.mxu0 0
      %2169 = vmatpush2.bf16.msra.mxu0 0
      %2170 = vmatprep.subr.bf16.mxu0 0
      %2171 = vmatpush2.bf16.msra.mxu0 0
      %2172 = vmatprep.subr.bf16.mxu0 0
      %2173 = vmatpush2.bf16.msra.mxu0 0
      %2174 = vmatprep.subr.bf16.mxu0 0
      %2175 = vmatpush2.bf16.msra.mxu0 0
      %2176 = vmatprep.subr.bf16.mxu0 0
      %2177 = vmatpush2.bf16.msra.mxu0 0
      %2178 = vmatprep.subr.bf16.mxu0 0
      %2179 = vmatpush2.bf16.msra.mxu0 0
      %2180 = vmatprep.subr.bf16.mxu0 0
      %2181 = vmatpush2.bf16.msra.mxu0 0
      %2182 = vmatprep.subr.bf16.mxu0 0
      %2183 = vmatpush2.bf16.msra.mxu0 0
      %2184 = vmatprep.mubr.bf16.mxu0 0
      %2185 = vmatmul.mubr.bf16.gmra.mxu0 %v2150
      %v2186 = vpop.f32.mrf.mxu0
      %v2187 = vadd.f32 0.0, %v2186
      %v2188 = vpop.f32.mrf.mxu0
      %v2189 = vpop.f32.mrf.mxu0
      %v2190 = vadd.f32 0.0, %v2189
      %v2191 = vpop.f32.mrf.mxu0
      %2192 = vdwg.mxu0
      %2193 = vrot.lane.b32.xlu0 %v623, 48
      %v2194 = vpop.permute.xlu0 %2193
      %v2197 = vsel %vm834, %v2097, 0
      %2199 = vmatprep.subr.bf16.mxu0 0
      %2200 = vmatpush1.bf16.msra.mxu0 0
      %2201 = vmatprep.subr.bf16.mxu0 0
      %2202 = vmatpush1.bf16.msra.mxu0 0
      %2203 = vmatprep.subr.bf16.mxu0 0
      %2204 = vmatpush1.bf16.msra.mxu0 0
      %2205 = vmatprep.subr.bf16.mxu0 0
      %2206 = vmatpush1.bf16.msra.mxu0 0
      %2207 = vmatprep.subr.bf16.mxu0 0
      %2208 = vmatpush1.bf16.msra.mxu0 0
      %2209 = vmatprep.subr.bf16.mxu0 0
      %2210 = vmatpush1.bf16.msra.mxu0 0
      %2211 = vmatprep.subr.bf16.mxu0 0
      %2212 = vmatpush1.bf16.msra.mxu0 0
      %2213 = vmatprep.subr.bf16.mxu0 0
      %2214 = vmatpush1.bf16.msra.mxu0 %v2194
      %2215 = vmatprep.subr.bf16.mxu0 0
      %2216 = vmatpush2.bf16.msra.mxu0 0
      %2217 = vmatprep.subr.bf16.mxu0 0
      %2218 = vmatpush2.bf16.msra.mxu0 0
      %2219 = vmatprep.subr.bf16.mxu0 0
      %2220 = vmatpush2.bf16.msra.mxu0 0
      %2221 = vmatprep.subr.bf16.mxu0 0
      %2222 = vmatpush2.bf16.msra.mxu0 0
      %2223 = vmatprep.subr.bf16.mxu0 0
      %2224 = vmatpush2.bf16.msra.mxu0 0
      %2225 = vmatprep.subr.bf16.mxu0 0
      %2226 = vmatpush2.bf16.msra.mxu0 0
      %2227 = vmatprep.subr.bf16.mxu0 0
      %2228 = vmatpush2.bf16.msra.mxu0 0
      %2229 = vmatprep.subr.bf16.mxu0 0
      %2230 = vmatpush2.bf16.msra.mxu0 0
      %2231 = vmatprep.mubr.bf16.mxu0 0
      %2232 = vmatmul.mubr.bf16.gmra.mxu0 %v2197
      %v2233 = vpop.f32.mrf.mxu0
      %v2234 = vadd.f32 0.0, %v2233
      %v2235 = vpop.f32.mrf.mxu0
      %v2236 = vpop.f32.mrf.mxu0
      %v2237 = vadd.f32 0.0, %v2236
      %v2238 = vpop.f32.mrf.mxu0
      %2239 = vdwg.mxu0
      %2240 = vrot.lane.b32.xlu0 %v624, 48
      %v2241 = vpop.permute.xlu0 %2240
      %v2244 = vsel %vm834, %v2098, 0
      %2246 = vmatprep.subr.bf16.mxu0 0
      %2247 = vmatpush1.bf16.msra.mxu0 0
      %2248 = vmatprep.subr.bf16.mxu0 0
      %2249 = vmatpush1.bf16.msra.mxu0 0
      %2250 = vmatprep.subr.bf16.mxu0 0
      %2251 = vmatpush1.bf16.msra.mxu0 0
      %2252 = vmatprep.subr.bf16.mxu0 0
      %2253 = vmatpush1.bf16.msra.mxu0 0
      %2254 = vmatprep.subr.bf16.mxu0 0
      %2255 = vmatpush1.bf16.msra.mxu0 0
      %2256 = vmatprep.subr.bf16.mxu0 0
      %2257 = vmatpush1.bf16.msra.mxu0 0
      %2258 = vmatprep.subr.bf16.mxu0 0
      %2259 = vmatpush1.bf16.msra.mxu0 0
      %2260 = vmatprep.subr.bf16.mxu0 0
      %2261 = vmatpush1.bf16.msra.mxu0 %v2241
      %2262 = vmatprep.subr.bf16.mxu0 0
      %2263 = vmatpush2.bf16.msra.mxu0 0
      %2264 = vmatprep.subr.bf16.mxu0 0
      %2265 = vmatpush2.bf16.msra.mxu0 0
      %2266 = vmatprep.subr.bf16.mxu0 0
      %2267 = vmatpush2.bf16.msra.mxu0 0
      %2268 = vmatprep.subr.bf16.mxu0 0
      %2269 = vmatpush2.bf16.msra.mxu0 0
      %2270 = vmatprep.subr.bf16.mxu0 0
      %2271 = vmatpush2.bf16.msra.mxu0 0
      %2272 = vmatprep.subr.bf16.mxu0 0
      %2273 = vmatpush2.bf16.msra.mxu0 0
      %2274 = vmatprep.subr.bf16.mxu0 0
      %2275 = vmatpush2.bf16.msra.mxu0 0
      %2276 = vmatprep.subr.bf16.mxu0 0
      %2277 = vmatpush2.bf16.msra.mxu0 0
      %2278 = vmatprep.mubr.bf16.mxu0 0
      %2279 = vmatmul.mubr.bf16.gmra.mxu0 %v2244
      %v2280 = vpop.f32.mrf.mxu0
      %v2281 = vadd.f32 0.0, %v2280
      %v2282 = vpop.f32.mrf.mxu0
      %v2283 = vpop.f32.mrf.mxu0
      %v2284 = vadd.f32 0.0, %v2283
      %v2285 = vpop.f32.mrf.mxu0
      %2286 = vdwg.mxu0
      %v2287 = vpack.c.bf16 %v2143, %v2140
      %v2288 = vpack.c.bf16 %v2190, %v2187
      %v2289 = vpack.c.bf16 %v2237, %v2234
      %v2290 = vpack.c.bf16 %v2284, %v2281
      %s2291 = scalar_lea.vmem %s7, 8
      %v2292 = vld [vmem:[%s2291] sm:$0xf]
      %v2294 = vsel %vm628, %v2287, 0
      %v2297 = vsel %vm628, %v2288, 0
      %v2300 = vsel %vm628, %v2289, 0
      %v2303 = vsel %vm628, %v2290, 0
      %v2306 = vsel %vm1132, %v2292, 0
      %2308 = vmatprep.subr.bf16.mxu0 0
      %2309 = vmatpush1.bf16.msra.mxu0 0
      %2310 = vmatprep.subr.bf16.mxu0 0
      %2311 = vmatpush1.bf16.msra.mxu0 0
      %2312 = vmatprep.subr.bf16.mxu0 0
      %2313 = vmatpush1.bf16.msra.mxu0 0
      %2314 = vmatprep.subr.bf16.mxu0 0
      %2315 = vmatpush1.bf16.msra.mxu0 0
      %2316 = vmatprep.subr.bf16.mxu0 0
      %2317 = vmatpush1.bf16.msra.mxu0 0
      %2318 = vmatprep.subr.bf16.mxu0 0
      %2319 = vmatpush1.bf16.msra.mxu0 0
      %2320 = vmatprep.subr.bf16.mxu0 0
      %2321 = vmatpush1.bf16.msra.mxu0 0
      %2322 = vmatprep.subr.bf16.mxu0 0
      %2323 = vmatpush1.bf16.msra.mxu0 %v2306
      %2324 = vmatprep.subr.bf16.mxu0 0
      %2325 = vmatpush2.bf16.msra.mxu0 0
      %2326 = vmatprep.subr.bf16.mxu0 0
      %2327 = vmatpush2.bf16.msra.mxu0 0
      %2328 = vmatprep.subr.bf16.mxu0 0
      %2329 = vmatpush2.bf16.msra.mxu0 0
      %2330 = vmatprep.subr.bf16.mxu0 0
      %2331 = vmatpush2.bf16.msra.mxu0 0
      %2332 = vmatprep.subr.bf16.mxu0 0
      %2333 = vmatpush2.bf16.msra.mxu0 0
      %2334 = vmatprep.subr.bf16.mxu0 0
      %2335 = vmatpush2.bf16.msra.mxu0 0
      %2336 = vmatprep.subr.bf16.mxu0 0
      %2337 = vmatpush2.bf16.msra.mxu0 0
      %2338 = vmatprep.subr.bf16.mxu0 0
      %2339 = vmatpush2.bf16.msra.mxu0 0
      %2340 = vmatprep.mubr.bf16.mxu0 0
      %2341 = vmatmul.mubr.bf16.gmra.mxu0 %v2294
      %v2342 = vpop.f32.mrf.mxu0
      %v2343 = vadd.f32 0.0, %v2342
      %v2344 = vpop.f32.mrf.mxu0
      %v2345 = vpop.f32.mrf.mxu0
      %v2346 = vadd.f32 0.0, %v2345
      %v2347 = vpop.f32.mrf.mxu0
      %2348 = vmatprep.mubr.bf16.mxu0 0
      %2349 = vmatmul.mubr.bf16.gmra.mxu0 %v2297
      %v2350 = vpop.f32.mrf.mxu0
      %v2351 = vadd.f32 0.0, %v2350
      %v2352 = vpop.f32.mrf.mxu0
      %v2353 = vpop.f32.mrf.mxu0
      %v2354 = vadd.f32 0.0, %v2353
      %v2355 = vpop.f32.mrf.mxu0
      %2356 = vmatprep.mubr.bf16.mxu0 0
      %2357 = vmatmul.mubr.bf16.gmra.mxu0 %v2300
      %v2358 = vpop.f32.mrf.mxu0
      %v2359 = vadd.f32 0.0, %v2358
      %v2360 = vpop.f32.mrf.mxu0
      %v2361 = vpop.f32.mrf.mxu0
      %v2362 = vadd.f32 0.0, %v2361
      %v2363 = vpop.f32.mrf.mxu0
      %2364 = vmatprep.mubr.bf16.mxu0 0
      %2365 = vmatmul.mubr.bf16.gmra.mxu0 %v2303
      %v2366 = vpop.f32.mrf.mxu0
      %v2367 = vadd.f32 0.0, %v2366
      %v2368 = vpop.f32.mrf.mxu0
      %v2369 = vpop.f32.mrf.mxu0
      %v2370 = vadd.f32 0.0, %v2369
      %v2371 = vpop.f32.mrf.mxu0
      %2372 = vdwg.mxu0
      %v2373 = vadd.f32 %v1787, %v2343
      %v2374 = vadd.f32 %v1788, %v2346
      %v2375 = vadd.f32 %v1789, %v2351
      %v2376 = vadd.f32 %v1790, %v2354
      %v2377 = vadd.f32 %v1791, %v2359
      %v2378 = vadd.f32 %v1792, %v2362
      %v2379 = vadd.f32 %v1793, %v2367
      %v2380 = vadd.f32 %v1794, %v2370
      %2381 = vrot.lane.b32.xlu0 %v621, 104
      %v2382 = vpop.permute.xlu0 %2381
      %2383 = vrot.lane.b32.xlu0 %v621, 72
      %v2384 = vpop.permute.xlu0 %2383
      %v2386 = vsel %vm628, %v2382, 0
      %v2389 = vsel %vm628, %v2384, 0
      %2391 = vmatprep.subr.bf16.mxu0 0
      %2392 = vmatpush1.bf16.xpose.msra.mxu0 0
      %2393 = vmatprep.subr.bf16.mxu0 0
      %2394 = vmatpush1.bf16.xpose.msra.mxu0 0
      %2395 = vmatprep.subr.bf16.mxu0 0
      %2396 = vmatpush1.bf16.xpose.msra.mxu0 0
      %2397 = vmatprep.subr.bf16.mxu0 0
      %2398 = vmatpush1.bf16.xpose.msra.mxu0 0
      %2399 = vmatprep.subr.bf16.mxu0 0
      %2400 = vmatpush1.bf16.xpose.msra.mxu0 0
      %2401 = vmatprep.subr.bf16.mxu0 0
      %2402 = vmatpush1.bf16.xpose.msra.mxu0 0
      %2403 = vmatprep.subr.bf16.mxu0 0
      %2404 = vmatpush1.bf16.xpose.msra.mxu0 0
      %2405 = vmatprep.subr.bf16.mxu0 0
      %2406 = vmatpush1.bf16.xpose.msra.mxu0 %v2389
      %2407 = vmatprep.subr.bf16.mxu0 0
      %2408 = vmatpush2.bf16.xpose.msra.mxu0 0
      %2409 = vmatprep.subr.bf16.mxu0 0
      %2410 = vmatpush2.bf16.xpose.msra.mxu0 0
      %2411 = vmatprep.subr.bf16.mxu0 0
      %2412 = vmatpush2.bf16.xpose.msra.mxu0 0
      %2413 = vmatprep.subr.bf16.mxu0 0
      %2414 = vmatpush2.bf16.xpose.msra.mxu0 0
      %2415 = vmatprep.subr.bf16.mxu0 0
      %2416 = vmatpush2.bf16.xpose.msra.mxu0 0
      %2417 = vmatprep.subr.bf16.mxu0 0
      %2418 = vmatpush2.bf16.xpose.msra.mxu0 0
      %2419 = vmatprep.subr.bf16.mxu0 0
      %2420 = vmatpush2.bf16.xpose.msra.mxu0 0
      %2421 = vmatprep.subr.bf16.mxu0 0
      %2422 = vmatpush2.bf16.xpose.msra.mxu0 0
      %2423 = vmatprep.mubr.bf16.mxu0 0
      %2424 = vmatmul.mubr.bf16.gmra.mxu0 %v2386
      %v2425 = vpop.f32.mrf.mxu0
      %v2426 = vadd.f32 %v596, %v2425
      %v2427 = vpop.f32.mrf.mxu0
      %v2428 = vpop.f32.mrf.mxu0
      %v2429 = vadd.f32 %v597, %v2428
      %v2430 = vpop.f32.mrf.mxu0
      %2431 = vdwg.mxu0
      %2432 = vrot.lane.b32.xlu0 %v622, 104
      %v2433 = vpop.permute.xlu0 %2432
      %2434 = vrot.lane.b32.xlu0 %v622, 72
      %v2435 = vpop.permute.xlu0 %2434
      %v2437 = vsel %vm628, %v2433, 0
      %v2440 = vsel %vm628, %v2435, 0
      %2442 = vmatprep.subr.bf16.mxu0 0
      %2443 = vmatpush1.bf16.xpose.msra.mxu0 0
      %2444 = vmatprep.subr.bf16.mxu0 0
      %2445 = vmatpush1.bf16.xpose.msra.mxu0 0
      %2446 = vmatprep.subr.bf16.mxu0 0
      %2447 = vmatpush1.bf16.xpose.msra.mxu0 0
      %2448 = vmatprep.subr.bf16.mxu0 0
      %2449 = vmatpush1.bf16.xpose.msra.mxu0 0
      %2450 = vmatprep.subr.bf16.mxu0 0
      %2451 = vmatpush1.bf16.xpose.msra.mxu0 0
      %2452 = vmatprep.subr.bf16.mxu0 0
      %2453 = vmatpush1.bf16.xpose.msra.mxu0 0
      %2454 = vmatprep.subr.bf16.mxu0 0
      %2455 = vmatpush1.bf16.xpose.msra.mxu0 0
      %2456 = vmatprep.subr.bf16.mxu0 0
      %2457 = vmatpush1.bf16.xpose.msra.mxu0 %v2440
      %2458 = vmatprep.subr.bf16.mxu0 0
      %2459 = vmatpush2.bf16.xpose.msra.mxu0 0
      %2460 = vmatprep.subr.bf16.mxu0 0
      %2461 = vmatpush2.bf16.xpose.msra.mxu0 0
      %2462 = vmatprep.subr.bf16.mxu0 0
      %2463 = vmatpush2.bf16.xpose.msra.mxu0 0
      %2464 = vmatprep.subr.bf16.mxu0 0
      %2465 = vmatpush2.bf16.xpose.msra.mxu0 0
      %2466 = vmatprep.subr.bf16.mxu0 0
      %2467 = vmatpush2.bf16.xpose.msra.mxu0 0
      %2468 = vmatprep.subr.bf16.mxu0 0
      %2469 = vmatpush2.bf16.xpose.msra.mxu0 0
      %2470 = vmatprep.subr.bf16.mxu0 0
      %2471 = vmatpush2.bf16.xpose.msra.mxu0 0
      %2472 = vmatprep.subr.bf16.mxu0 0
      %2473 = vmatpush2.bf16.xpose.msra.mxu0 0
      %2474 = vmatprep.mubr.bf16.mxu0 0
      %2475 = vmatmul.mubr.bf16.gmra.mxu0 %v2437
      %v2476 = vpop.f32.mrf.mxu0
      %v2477 = vadd.f32 %v596, %v2476
      %v2478 = vpop.f32.mrf.mxu0
      %v2479 = vpop.f32.mrf.mxu0
      %v2480 = vadd.f32 %v597, %v2479
      %v2481 = vpop.f32.mrf.mxu0
      %2482 = vdwg.mxu0
      %2483 = vrot.lane.b32.xlu0 %v623, 104
      %v2484 = vpop.permute.xlu0 %2483
      %2485 = vrot.lane.b32.xlu0 %v623, 72
      %v2486 = vpop.permute.xlu0 %2485
      %v2488 = vsel %vm628, %v2484, 0
      %v2491 = vsel %vm628, %v2486, 0
      %2493 = vmatprep.subr.bf16.mxu0 0
      %2494 = vmatpush1.bf16.xpose.msra.mxu0 0
      %2495 = vmatprep.subr.bf16.mxu0 0
      %2496 = vmatpush1.bf16.xpose.msra.mxu0 0
      %2497 = vmatprep.subr.bf16.mxu0 0
      %2498 = vmatpush1.bf16.xpose.msra.mxu0 0
      %2499 = vmatprep.subr.bf16.mxu0 0
      %2500 = vmatpush1.bf16.xpose.msra.mxu0 0
      %2501 = vmatprep.subr.bf16.mxu0 0
      %2502 = vmatpush1.bf16.xpose.msra.mxu0 0
      %2503 = vmatprep.subr.bf16.mxu0 0
      %2504 = vmatpush1.bf16.xpose.msra.mxu0 0
      %2505 = vmatprep.subr.bf16.mxu0 0
      %2506 = vmatpush1.bf16.xpose.msra.mxu0 0
      %2507 = vmatprep.subr.bf16.mxu0 0
      %2508 = vmatpush1.bf16.xpose.msra.mxu0 %v2491
      %2509 = vmatprep.subr.bf16.mxu0 0
      %2510 = vmatpush2.bf16.xpose.msra.mxu0 0
      %2511 = vmatprep.subr.bf16.mxu0 0
      %2512 = vmatpush2.bf16.xpose.msra.mxu0 0
      %2513 = vmatprep.subr.bf16.mxu0 0
      %2514 = vmatpush2.bf16.xpose.msra.mxu0 0
      %2515 = vmatprep.subr.bf16.mxu0 0
      %2516 = vmatpush2.bf16.xpose.msra.mxu0 0
      %2517 = vmatprep.subr.bf16.mxu0 0
      %2518 = vmatpush2.bf16.xpose.msra.mxu0 0
      %2519 = vmatprep.subr.bf16.mxu0 0
      %2520 = vmatpush2.bf16.xpose.msra.mxu0 0
      %2521 = vmatprep.subr.bf16.mxu0 0
      %2522 = vmatpush2.bf16.xpose.msra.mxu0 0
      %2523 = vmatprep.subr.bf16.mxu0 0
      %2524 = vmatpush2.bf16.xpose.msra.mxu0 0
      %2525 = vmatprep.mubr.bf16.mxu0 0
      %2526 = vmatmul.mubr.bf16.gmra.mxu0 %v2488
      %v2527 = vpop.f32.mrf.mxu0
      %v2528 = vadd.f32 %v596, %v2527
      %v2529 = vpop.f32.mrf.mxu0
      %v2530 = vpop.f32.mrf.mxu0
      %v2531 = vadd.f32 %v597, %v2530
      %v2532 = vpop.f32.mrf.mxu0
      %2533 = vdwg.mxu0
      %2534 = vrot.lane.b32.xlu0 %v624, 104
      %v2535 = vpop.permute.xlu0 %2534
      %2536 = vrot.lane.b32.xlu0 %v624, 72
      %v2537 = vpop.permute.xlu0 %2536
      %v2539 = vsel %vm628, %v2535, 0
      %v2542 = vsel %vm628, %v2537, 0
      %2544 = vmatprep.subr.bf16.mxu0 0
      %2545 = vmatpush1.bf16.xpose.msra.mxu0 0
      %2546 = vmatprep.subr.bf16.mxu0 0
      %2547 = vmatpush1.bf16.xpose.msra.mxu0 0
      %2548 = vmatprep.subr.bf16.mxu0 0
      %2549 = vmatpush1.bf16.xpose.msra.mxu0 0
      %2550 = vmatprep.subr.bf16.mxu0 0
      %2551 = vmatpush1.bf16.xpose.msra.mxu0 0
      %2552 = vmatprep.subr.bf16.mxu0 0
      %2553 = vmatpush1.bf16.xpose.msra.mxu0 0
      %2554 = vmatprep.subr.bf16.mxu0 0
      %2555 = vmatpush1.bf16.xpose.msra.mxu0 0
      %2556 = vmatprep.subr.bf16.mxu0 0
      %2557 = vmatpush1.bf16.xpose.msra.mxu0 0
      %2558 = vmatprep.subr.bf16.mxu0 0
      %2559 = vmatpush1.bf16.xpose.msra.mxu0 %v2542
      %2560 = vmatprep.subr.bf16.mxu0 0
      %2561 = vmatpush2.bf16.xpose.msra.mxu0 0
      %2562 = vmatprep.subr.bf16.mxu0 0
      %2563 = vmatpush2.bf16.xpose.msra.mxu0 0
      %2564 = vmatprep.subr.bf16.mxu0 0
      %2565 = vmatpush2.bf16.xpose.msra.mxu0 0
      %2566 = vmatprep.subr.bf16.mxu0 0
      %2567 = vmatpush2.bf16.xpose.msra.mxu0 0
      %2568 = vmatprep.subr.bf16.mxu0 0
      %2569 = vmatpush2.bf16.xpose.msra.mxu0 0
      %2570 = vmatprep.subr.bf16.mxu0 0
      %2571 = vmatpush2.bf16.xpose.msra.mxu0 0
      %2572 = vmatprep.subr.bf16.mxu0 0
      %2573 = vmatpush2.bf16.xpose.msra.mxu0 0
      %2574 = vmatprep.subr.bf16.mxu0 0
      %2575 = vmatpush2.bf16.xpose.msra.mxu0 0
      %2576 = vmatprep.mubr.bf16.mxu0 0
      %2577 = vmatmul.mubr.bf16.gmra.mxu0 %v2539
      %v2578 = vpop.f32.mrf.mxu0
      %v2579 = vadd.f32 %v596, %v2578
      %v2580 = vpop.f32.mrf.mxu0
      %v2581 = vpop.f32.mrf.mxu0
      %v2582 = vadd.f32 %v597, %v2581
      %v2583 = vpop.f32.mrf.mxu0
      %2584 = vdwg.mxu0
      %v2585 = vadd.f32 %v2426, %v598
      %v2586 = vadd.f32 %v2429, %v599
      %v2587 = vadd.f32 %v2477, %v600
      %v2588 = vadd.f32 %v2480, %v601
      %v2589 = vadd.f32 %v2528, %v602
      %v2590 = vadd.f32 %v2531, %v603
      %v2591 = vadd.f32 %v2579, %v604
      %v2592 = vadd.f32 %v2582, %v605
      %v2593 = vsel %vm834, %v2585, -inf
      %2594 = vmax.xlane.f32.xlu0 %v2593
      %v2595 = vpop.xlane.xlu0 %2594
      %v2596 = vsel %vm834, %v2586, -inf
      %2597 = vmax.xlane.f32.xlu0 %v2596
      %v2598 = vpop.xlane.xlu0 %2597
      %v2599 = vsel %vm834, %v2587, -inf
      %2600 = vmax.xlane.f32.xlu0 %v2599
      %v2601 = vpop.xlane.xlu0 %2600
      %v2602 = vsel %vm834, %v2588, -inf
      %2603 = vmax.xlane.f32.xlu0 %v2602
      %v2604 = vpop.xlane.xlu0 %2603
      %v2605 = vsel %vm834, %v2589, -inf
      %2606 = vmax.xlane.f32.xlu0 %v2605
      %v2607 = vpop.xlane.xlu0 %2606
      %v2608 = vsel %vm834, %v2590, -inf
      %2609 = vmax.xlane.f32.xlu0 %v2608
      %v2610 = vpop.xlane.xlu0 %2609
      %v2611 = vsel %vm834, %v2591, -inf
      %2612 = vmax.xlane.f32.xlu0 %v2611
      %v2613 = vpop.xlane.xlu0 %2612
      %v2614 = vsel %vm834, %v2592, -inf
      %2615 = vmax.xlane.f32.xlu0 %v2614
      %v2616 = vpop.xlane.xlu0 %2615
      %v2617 = vsub.f32 %v2585, %v2595
      %v2618 = vsub.f32 %v2586, %v2598
      %v2619 = vsub.f32 %v2587, %v2601
      %v2620 = vsub.f32 %v2588, %v2604
      %v2621 = vsub.f32 %v2589, %v2607
      %v2622 = vsub.f32 %v2590, %v2610
      %v2623 = vsub.f32 %v2591, %v2613
      %v2624 = vsub.f32 %v2592, %v2616
      %v2625 = vmul.f32 %v2617, 1.442695
      %v2626 = vpow.pop %v2625
      %v2627 = vmul.f32 %v2618, 1.442695
      %v2628 = vpow.pop %v2627
      %v2629 = vmul.f32 %v2619, 1.442695
      %v2630 = vpow.pop %v2629
      %v2631 = vmul.f32 %v2620, 1.442695
      %v2632 = vpow.pop %v2631
      %v2633 = vmul.f32 %v2621, 1.442695
      %v2634 = vpow.pop %v2633
      %v2635 = vmul.f32 %v2622, 1.442695
      %v2636 = vpow.pop %v2635
      %v2637 = vmul.f32 %v2623, 1.442695
      %v2638 = vpow.pop %v2637
      %v2639 = vmul.f32 %v2624, 1.442695
      %v2640 = vpow.pop %v2639
      %v2641 = vsel %vm834, %v2626, 0.0
      %2642 = vadd.xlane.f32.xlu0 %v2641
      %v2643 = vpop.xlane.xlu0 %2642
      %v2644 = vsel %vm834, %v2628, 0.0
      %2645 = vadd.xlane.f32.xlu0 %v2644
      %v2646 = vpop.xlane.xlu0 %2645
      %v2647 = vsel %vm834, %v2630, 0.0
      %2648 = vadd.xlane.f32.xlu0 %v2647
      %v2649 = vpop.xlane.xlu0 %2648
      %v2650 = vsel %vm834, %v2632, 0.0
      %2651 = vadd.xlane.f32.xlu0 %v2650
      %v2652 = vpop.xlane.xlu0 %2651
      %v2653 = vsel %vm834, %v2634, 0.0
      %2654 = vadd.xlane.f32.xlu0 %v2653
      %v2655 = vpop.xlane.xlu0 %2654
      %v2656 = vsel %vm834, %v2636, 0.0
      %2657 = vadd.xlane.f32.xlu0 %v2656
      %v2658 = vpop.xlane.xlu0 %2657
      %v2659 = vsel %vm834, %v2638, 0.0
      %2660 = vadd.xlane.f32.xlu0 %v2659
      %v2661 = vpop.xlane.xlu0 %2660
      %v2662 = vsel %vm834, %v2640, 0.0
      %2663 = vadd.xlane.f32.xlu0 %v2662
      %v2664 = vpop.xlane.xlu0 %2663
      %v2665 = vrcp.pop %v2643
      %v2666 = vrcp.pop %v2646
      %v2667 = vrcp.pop %v2649
      %v2668 = vrcp.pop %v2652
      %v2669 = vrcp.pop %v2655
      %v2670 = vrcp.pop %v2658
      %v2671 = vrcp.pop %v2661
      %v2672 = vrcp.pop %v2664
      %v2673 = vmul.f32 %v2626, %v2665
      %v2674 = vmul.f32 %v2628, %v2666
      %v2675 = vmul.f32 %v2630, %v2667
      %v2676 = vmul.f32 %v2632, %v2668
      %v2677 = vmul.f32 %v2634, %v2669
      %v2678 = vmul.f32 %v2636, %v2670
      %v2679 = vmul.f32 %v2638, %v2671
      %v2680 = vmul.f32 %v2640, %v2672
      %v2681 = vpack.c.bf16 %v2674, %v2673
      %v2682 = vpack.c.bf16 %v2676, %v2675
      %v2683 = vpack.c.bf16 %v2678, %v2677
      %v2684 = vpack.c.bf16 %v2680, %v2679
      %2685 = vrot.lane.b32.xlu0 %v621, 40
      %v2686 = vpop.permute.xlu0 %2685
      %v2689 = vsel %vm834, %v2681, 0
      %2691 = vmatprep.subr.bf16.mxu0 0
      %2692 = vmatpush1.bf16.msra.mxu0 0
      %2693 = vmatprep.subr.bf16.mxu0 0
      %2694 = vmatpush1.bf16.msra.mxu0 0
      %2695 = vmatprep.subr.bf16.mxu0 0
      %2696 = vmatpush1.bf16.msra.mxu0 0
      %2697 = vmatprep.subr.bf16.mxu0 0
      %2698 = vmatpush1.bf16.msra.mxu0 0
      %2699 = vmatprep.subr.bf16.mxu0 0
      %2700 = vmatpush1.bf16.msra.mxu0 0
      %2701 = vmatprep.subr.bf16.mxu0 0
      %2702 = vmatpush1.bf16.msra.mxu0 0
      %2703 = vmatprep.subr.bf16.mxu0 0
      %2704 = vmatpush1.bf16.msra.mxu0 0
      %2705 = vmatprep.subr.bf16.mxu0 0
      %2706 = vmatpush1.bf16.msra.mxu0 %v2686
      %2707 = vmatprep.subr.bf16.mxu0 0
      %2708 = vmatpush2.bf16.msra.mxu0 0
      %2709 = vmatprep.subr.bf16.mxu0 0
      %2710 = vmatpush2.bf16.msra.mxu0 0
      %2711 = vmatprep.subr.bf16.mxu0 0
      %2712 = vmatpush2.bf16.msra.mxu0 0
      %2713 = vmatprep.subr.bf16.mxu0 0
      %2714 = vmatpush2.bf16.msra.mxu0 0
      %2715 = vmatprep.subr.bf16.mxu0 0
      %2716 = vmatpush2.bf16.msra.mxu0 0
      %2717 = vmatprep.subr.bf16.mxu0 0
      %2718 = vmatpush2.bf16.msra.mxu0 0
      %2719 = vmatprep.subr.bf16.mxu0 0
      %2720 = vmatpush2.bf16.msra.mxu0 0
      %2721 = vmatprep.subr.bf16.mxu0 0
      %2722 = vmatpush2.bf16.msra.mxu0 0
      %2723 = vmatprep.mubr.bf16.mxu0 0
      %2724 = vmatmul.mubr.bf16.gmra.mxu0 %v2689
      %v2725 = vpop.f32.mrf.mxu0
      %v2726 = vadd.f32 0.0, %v2725
      %v2727 = vpop.f32.mrf.mxu0
      %v2728 = vpop.f32.mrf.mxu0
      %v2729 = vadd.f32 0.0, %v2728
      %v2730 = vpop.f32.mrf.mxu0
      %2731 = vdwg.mxu0
      %2732 = vrot.lane.b32.xlu0 %v622, 40
      %v2733 = vpop.permute.xlu0 %2732
      %v2736 = vsel %vm834, %v2682, 0
      %2738 = vmatprep.subr.bf16.mxu0 0
      %2739 = vmatpush1.bf16.msra.mxu0 0
      %2740 = vmatprep.subr.bf16.mxu0 0
      %2741 = vmatpush1.bf16.msra.mxu0 0
      %2742 = vmatprep.subr.bf16.mxu0 0
      %2743 = vmatpush1.bf16.msra.mxu0 0
      %2744 = vmatprep.subr.bf16.mxu0 0
      %2745 = vmatpush1.bf16.msra.mxu0 0
      %2746 = vmatprep.subr.bf16.mxu0 0
      %2747 = vmatpush1.bf16.msra.mxu0 0
      %2748 = vmatprep.subr.bf16.mxu0 0
      %2749 = vmatpush1.bf16.msra.mxu0 0
      %2750 = vmatprep.subr.bf16.mxu0 0
      %2751 = vmatpush1.bf16.msra.mxu0 0
      %2752 = vmatprep.subr.bf16.mxu0 0
      %2753 = vmatpush1.bf16.msra.mxu0 %v2733
      %2754 = vmatprep.subr.bf16.mxu0 0
      %2755 = vmatpush2.bf16.msra.mxu0 0
      %2756 = vmatprep.subr.bf16.mxu0 0
      %2757 = vmatpush2.bf16.msra.mxu0 0
      %2758 = vmatprep.subr.bf16.mxu0 0
      %2759 = vmatpush2.bf16.msra.mxu0 0
      %2760 = vmatprep.subr.bf16.mxu0 0
      %2761 = vmatpush2.bf16.msra.mxu0 0
      %2762 = vmatprep.subr.bf16.mxu0 0
      %2763 = vmatpush2.bf16.msra.mxu0 0
      %2764 = vmatprep.subr.bf16.mxu0 0
      %2765 = vmatpush2.bf16.msra.mxu0 0
      %2766 = vmatprep.subr.bf16.mxu0 0
      %2767 = vmatpush2.bf16.msra.mxu0 0
      %2768 = vmatprep.subr.bf16.mxu0 0
      %2769 = vmatpush2.bf16.msra.mxu0 0
      %2770 = vmatprep.mubr.bf16.mxu0 0
      %2771 = vmatmul.mubr.bf16.gmra.mxu0 %v2736
      %v2772 = vpop.f32.mrf.mxu0
      %v2773 = vadd.f32 0.0, %v2772
      %v2774 = vpop.f32.mrf.mxu0
      %v2775 = vpop.f32.mrf.mxu0
      %v2776 = vadd.f32 0.0, %v2775
      %v2777 = vpop.f32.mrf.mxu0
      %2778 = vdwg.mxu0
      %2779 = vrot.lane.b32.xlu0 %v623, 40
      %v2780 = vpop.permute.xlu0 %2779
      %v2783 = vsel %vm834, %v2683, 0
      %2785 = vmatprep.subr.bf16.mxu0 0
      %2786 = vmatpush1.bf16.msra.mxu0 0
      %2787 = vmatprep.subr.bf16.mxu0 0
      %2788 = vmatpush1.bf16.msra.mxu0 0
      %2789 = vmatprep.subr.bf16.mxu0 0
      %2790 = vmatpush1.bf16.msra.mxu0 0
      %2791 = vmatprep.subr.bf16.mxu0 0
      %2792 = vmatpush1.bf16.msra.mxu0 0
      %2793 = vmatprep.subr.bf16.mxu0 0
      %2794 = vmatpush1.bf16.msra.mxu0 0
      %2795 = vmatprep.subr.bf16.mxu0 0
      %2796 = vmatpush1.bf16.msra.mxu0 0
      %2797 = vmatprep.subr.bf16.mxu0 0
      %2798 = vmatpush1.bf16.msra.mxu0 0
      %2799 = vmatprep.subr.bf16.mxu0 0
      %2800 = vmatpush1.bf16.msra.mxu0 %v2780
      %2801 = vmatprep.subr.bf16.mxu0 0
      %2802 = vmatpush2.bf16.msra.mxu0 0
      %2803 = vmatprep.subr.bf16.mxu0 0
      %2804 = vmatpush2.bf16.msra.mxu0 0
      %2805 = vmatprep.subr.bf16.mxu0 0
      %2806 = vmatpush2.bf16.msra.mxu0 0
      %2807 = vmatprep.subr.bf16.mxu0 0
      %2808 = vmatpush2.bf16.msra.mxu0 0
      %2809 = vmatprep.subr.bf16.mxu0 0
      %2810 = vmatpush2.bf16.msra.mxu0 0
      %2811 = vmatprep.subr.bf16.mxu0 0
      %2812 = vmatpush2.bf16.msra.mxu0 0
      %2813 = vmatprep.subr.bf16.mxu0 0
      %2814 = vmatpush2.bf16.msra.mxu0 0
      %2815 = vmatprep.subr.bf16.mxu0 0
      %2816 = vmatpush2.bf16.msra.mxu0 0
      %2817 = vmatprep.mubr.bf16.mxu0 0
      %2818 = vmatmul.mubr.bf16.gmra.mxu0 %v2783
      %v2819 = vpop.f32.mrf.mxu0
      %v2820 = vadd.f32 0.0, %v2819
      %v2821 = vpop.f32.mrf.mxu0
      %v2822 = vpop.f32.mrf.mxu0
      %v2823 = vadd.f32 0.0, %v2822
      %v2824 = vpop.f32.mrf.mxu0
      %2825 = vdwg.mxu0
      %2826 = vrot.lane.b32.xlu0 %v624, 40
      %v2827 = vpop.permute.xlu0 %2826
      %v2830 = vsel %vm834, %v2684, 0
      %2832 = vmatprep.subr.bf16.mxu0 0
      %2833 = vmatpush1.bf16.msra.mxu0 0
      %2834 = vmatprep.subr.bf16.mxu0 0
      %2835 = vmatpush1.bf16.msra.mxu0 0
      %2836 = vmatprep.subr.bf16.mxu0 0
      %2837 = vmatpush1.bf16.msra.mxu0 0
      %2838 = vmatprep.subr.bf16.mxu0 0
      %2839 = vmatpush1.bf16.msra.mxu0 0
      %2840 = vmatprep.subr.bf16.mxu0 0
      %2841 = vmatpush1.bf16.msra.mxu0 0
      %2842 = vmatprep.subr.bf16.mxu0 0
      %2843 = vmatpush1.bf16.msra.mxu0 0
      %2844 = vmatprep.subr.bf16.mxu0 0
      %2845 = vmatpush1.bf16.msra.mxu0 0
      %2846 = vmatprep.subr.bf16.mxu0 0
      %2847 = vmatpush1.bf16.msra.mxu0 %v2827
      %2848 = vmatprep.subr.bf16.mxu0 0
      %2849 = vmatpush2.bf16.msra.mxu0 0
      %2850 = vmatprep.subr.bf16.mxu0 0
      %2851 = vmatpush2.bf16.msra.mxu0 0
      %2852 = vmatprep.subr.bf16.mxu0 0
      %2853 = vmatpush2.bf16.msra.mxu0 0
      %2854 = vmatprep.subr.bf16.mxu0 0
      %2855 = vmatpush2.bf16.msra.mxu0 0
      %2856 = vmatprep.subr.bf16.mxu0 0
      %2857 = vmatpush2.bf16.msra.mxu0 0
      %2858 = vmatprep.subr.bf16.mxu0 0
      %2859 = vmatpush2.bf16.msra.mxu0 0
      %2860 = vmatprep.subr.bf16.mxu0 0
      %2861 = vmatpush2.bf16.msra.mxu0 0
      %2862 = vmatprep.subr.bf16.mxu0 0
      %2863 = vmatpush2.bf16.msra.mxu0 0
      %2864 = vmatprep.mubr.bf16.mxu0 0
      %2865 = vmatmul.mubr.bf16.gmra.mxu0 %v2830
      %v2866 = vpop.f32.mrf.mxu0
      %v2867 = vadd.f32 0.0, %v2866
      %v2868 = vpop.f32.mrf.mxu0
      %v2869 = vpop.f32.mrf.mxu0
      %v2870 = vadd.f32 0.0, %v2869
      %v2871 = vpop.f32.mrf.mxu0
      %2872 = vdwg.mxu0
      %v2873 = vpack.c.bf16 %v2729, %v2726
      %v2874 = vpack.c.bf16 %v2776, %v2773
      %v2875 = vpack.c.bf16 %v2823, %v2820
      %v2876 = vpack.c.bf16 %v2870, %v2867
      %s2877 = scalar_lea.vmem %s7, 12
      %v2878 = vld [vmem:[%s2877] sm:$0xf]
      %v2880 = vsel %vm628, %v2873, 0
      %v2883 = vsel %vm628, %v2874, 0
      %v2886 = vsel %vm628, %v2875, 0
      %v2889 = vsel %vm628, %v2876, 0
      %v2892 = vsel %vm1132, %v2878, 0
      %2894 = vmatprep.subr.bf16.mxu0 0
      %2895 = vmatpush1.bf16.msra.mxu0 0
      %2896 = vmatprep.subr.bf16.mxu0 0
      %2897 = vmatpush1.bf16.msra.mxu0 0
      %2898 = vmatprep.subr.bf16.mxu0 0
      %2899 = vmatpush1.bf16.msra.mxu0 0
      %2900 = vmatprep.subr.bf16.mxu0 0
      %2901 = vmatpush1.bf16.msra.mxu0 0
      %2902 = vmatprep.subr.bf16.mxu0 0
      %2903 = vmatpush1.bf16.msra.mxu0 0
      %2904 = vmatprep.subr.bf16.mxu0 0
      %2905 = vmatpush1.bf16.msra.mxu0 0
      %2906 = vmatprep.subr.bf16.mxu0 0
      %2907 = vmatpush1.bf16.msra.mxu0 0
      %2908 = vmatprep.subr.bf16.mxu0 0
      %2909 = vmatpush1.bf16.msra.mxu0 %v2892
      %2910 = vmatprep.subr.bf16.mxu0 0
      %2911 = vmatpush2.bf16.msra.mxu0 0
      %2912 = vmatprep.subr.bf16.mxu0 0
      %2913 = vmatpush2.bf16.msra.mxu0 0
      %2914 = vmatprep.subr.bf16.mxu0 0
      %2915 = vmatpush2.bf16.msra.mxu0 0
      %2916 = vmatprep.subr.bf16.mxu0 0
      %2917 = vmatpush2.bf16.msra.mxu0 0
      %2918 = vmatprep.subr.bf16.mxu0 0
      %2919 = vmatpush2.bf16.msra.mxu0 0
      %2920 = vmatprep.subr.bf16.mxu0 0
      %2921 = vmatpush2.bf16.msra.mxu0 0
      %2922 = vmatprep.subr.bf16.mxu0 0
      %2923 = vmatpush2.bf16.msra.mxu0 0
      %2924 = vmatprep.subr.bf16.mxu0 0
      %2925 = vmatpush2.bf16.msra.mxu0 0
      %2926 = vmatprep.mubr.bf16.mxu0 0
      %2927 = vmatmul.mubr.bf16.gmra.mxu0 %v2880
      %v2928 = vpop.f32.mrf.mxu0
      %v2929 = vadd.f32 0.0, %v2928
      %v2930 = vpop.f32.mrf.mxu0
      %v2931 = vpop.f32.mrf.mxu0
      %v2932 = vadd.f32 0.0, %v2931
      %v2933 = vpop.f32.mrf.mxu0
      %2934 = vmatprep.mubr.bf16.mxu0 0
      %2935 = vmatmul.mubr.bf16.gmra.mxu0 %v2883
      %v2936 = vpop.f32.mrf.mxu0
      %v2937 = vadd.f32 0.0, %v2936
      %v2938 = vpop.f32.mrf.mxu0
      %v2939 = vpop.f32.mrf.mxu0
      %v2940 = vadd.f32 0.0, %v2939
      %v2941 = vpop.f32.mrf.mxu0
      %2942 = vmatprep.mubr.bf16.mxu0 0
      %2943 = vmatmul.mubr.bf16.gmra.mxu0 %v2886
      %v2944 = vpop.f32.mrf.mxu0
      %v2945 = vadd.f32 0.0, %v2944
      %v2946 = vpop.f32.mrf.mxu0
      %v2947 = vpop.f32.mrf.mxu0
      %v2948 = vadd.f32 0.0, %v2947
      %v2949 = vpop.f32.mrf.mxu0
      %2950 = vmatprep.mubr.bf16.mxu0 0
      %2951 = vmatmul.mubr.bf16.gmra.mxu0 %v2889
      %v2952 = vpop.f32.mrf.mxu0
      %v2953 = vadd.f32 0.0, %v2952
      %v2954 = vpop.f32.mrf.mxu0
      %v2955 = vpop.f32.mrf.mxu0
      %v2956 = vadd.f32 0.0, %v2955
      %v2957 = vpop.f32.mrf.mxu0
      %2958 = vdwg.mxu0
      %v2959 = vadd.f32 %v2373, %v2929
      %v2960 = vadd.f32 %v2374, %v2932
      %v2961 = vadd.f32 %v2375, %v2937
      %v2962 = vadd.f32 %v2376, %v2940
      %v2963 = vadd.f32 %v2377, %v2945
      %v2964 = vadd.f32 %v2378, %v2948
      %v2965 = vadd.f32 %v2379, %v2953
      %v2966 = vadd.f32 %v2380, %v2956
      %2967 = vst.msk [vmem:[%s339] sm:$0xff] %vm350, %v2959
      %2968 = vst.msk [vmem:[%s339 + $0x8] sm:$0xff] %vm350, %v2960
      %2969 = vst.msk [vmem:[%s339 + $0x10] sm:$0xff] %vm350, %v2961
      %2970 = vst.msk [vmem:[%s339 + $0x18] sm:$0xff] %vm350, %v2962
      %2971 = vst.msk [vmem:[%s339 + $0x20] sm:$0xff] %vm350, %v2963
      %2972 = vst.msk [vmem:[%s339 + $0x28] sm:$0xff] %vm350, %v2964
      %2973 = vst.msk [vmem:[%s339 + $0x30] sm:$0xff] %vm350, %v2965
      %2974 = vst.msk [vmem:[%s339 + $0x38] sm:$0xff] %vm350, %v2966
      %s2975 = smul.u32 4, %s20
      %p2976 = scmp.lt.s32.totalorder %s2975, 7
      %s2977 = scalar_select %p2976, %s2975, 7
      %s2978 = smul.addr %s2977, 2
      %s2979 = smul.addr %s2978, 8
      %s2980 = scalar_lea.vmem %s9, %s2979
      // Predicated region
      $region57: #{basic_layer_forward.6} parent=55 // pred_check
        %p2981 = pneg %p232
      $region58: #{basic_layer_forward.6} parent=55 // pred_check_branch
        %2983 = sbr.rel (%p2981) target = $region60
      $region59: #{basic_layer_forward.6} parent=55 // pred_region
        %s2984 = smul.u32 4, %s20
      $region60: #{basic_layer_forward.6} parent=55 // pred_fallthru
        _
    $region56: #{basic_layer_forward.6} parent=5 // pred_fallthru
      _
    %p2985 = scmp.le.s32.totalorder 2, %s15
    // Predicated region
    $region61: #{basic_layer_forward.6} parent=5 // pred_check
      %p2986 = pneg %p2985
    $region62: #{basic_layer_forward.6} parent=5 // pred_check_branch
      %2988 = sbr.rel (%p2986) target = $region64
    $region63: #{basic_layer_forward.6} parent=5 // pred_region
      %s2989 = ssub.s32 %s15, 2
      // Predicated region
      $region65: #{basic_layer_forward.6} parent=63 // pred_check
        %p2990 = pneg %p238
      $region66: #{basic_layer_forward.6} parent=63 // pred_check_branch
        %2992 = sbr.rel (%p2990) target = $region68
      $region67: #{basic_layer_forward.6} parent=63 // pred_region
        %s2993 = smul.u32 4, %s21
        %p2994 = scmp.lt.s32.totalorder %s2993, 7
        %s2995 = scalar_select %p2994, %s2993, 7
        %s2996 = smul.addr %s2995, 2
        %s2997 = smul.addr %s2996, 8
        %s2998 = scalar_lea.vmem %s9, %s2997
      $region68: #{basic_layer_forward.6} parent=63 // pred_fallthru
        _
    $region64: #{basic_layer_forward.6} parent=5 // pred_fallthru
      _
  $region6: #{basic_layer_forward.6} parent=0 // loop_footer
    %s19 = sadd.s32 1, %s15
  $region7: #{basic_layer_forward.6} parent=0 // loop_footer_branch
    %14 = sbr.rel target = $region3
  $region8: #{basic_layer_forward.6} parent=0 // loop_exit
    _

</llo_original>
